<compile_context>
chip_gen: v5e
topology: v5e:2x2
jax: 0.10.0
libtpu: 0.0.40
codegen_flags: <defaults>
</compile_context>

<pallas_src>
import jax
import jax.numpy as jnp
from jax.experimental import pallas as pl
from jax.experimental.pallas import tpu as pltpu

# ----------------------------- configuration --------------------------------
GROWTH = 4                    # growth_rate (small demo config)
BLOCK_CONFIG = (2, 2, 2)
BN_SIZE = 2
NUM_CLASSES = 2
NUM_INIT_FEATURES = 96        # inception1: 3 branches x 32 channels
BN_EPS = 1e-5
IN_CHANNELS = 12
SEQ_LEN = 64                  # input length

KMAX = 7                      # all branch convs fused to k=7
HALO = (KMAX - 1) // 2        # 3
ROW0 = 8                      # aligned leading pad rows in the staging buffer
CMAX = 128                    # channel capacity of the VMEM staging buffer
L_FINAL = SEQ_LEN // (2 ** len(BLOCK_CONFIG))   # 8: after maxpool + 2 transitions

_BN_SCALE = 1.0 / (1.0 + BN_EPS) ** 0.5   # eval-mode BN: gamma=1, var=1


def _r8(n):
    return -(-n // 8) * 8


# --------------------------- in-kernel helpers -------------------------------
def _bn(x2, scale, shift, relu):
    """Inference BatchNorm folded to y = x*scale + shift (optionally ReLU)."""
    y = x2 * scale + shift
    return jnp.maximum(y, 0.0) if relu else y


def _stage(pad_ref, x2, nb, l, c):
    """Write x2 (nb*l, c) into pad_ref rows [ROW0, ROW0+l).  Halo rows are
    already zero (zeroed once at kernel start / when l shrinks)."""
    pad_ref[:, ROW0:ROW0 + l, :c] = x2.reshape(nb, l, c)


def _win(pad_ref, d, nb, l, c):
    """Length-l window shifted by d elements, as a (nb*l, c) value."""
    return pad_ref[:, ROW0 + d:ROW0 + d + l, :c].reshape(nb * l, c)


def _conv7(pad_ref, w_ref, wd, x2, bias, relu, nb, l, cin):
    """'same' 7-tap conv via per-tap MXU accumulation.
    wd = (row_offset, rows, cout) into the packed weight slab; the fused
    weight is stored as 7 taps of round8(cin) rows each."""
    off, rows, cout = wd
    cin8 = rows // KMAX
    _stage(pad_ref, x2, nb, l, cin)
    acc = jnp.zeros((nb * l, cout), jnp.float32)
    for k in range(KMAX):
        xk = _win(pad_ref, k - HALO, nb, l, cin)
        wk = w_ref[off + k * cin8: off + k * cin8 + cin, :cout]
        acc = acc + jnp.dot(xk, wk, preferred_element_type=jnp.float32)
    if bias is not None:
        acc = acc + bias
    if relu:
        acc = jnp.maximum(acc, 0.0)
    return acc


# ------------------------------- fused kernel --------------------------------
def _make_kernel(nb, w_desc, v_desc):
    """w_desc: tuple of (off, rows, cols); v_desc: tuple of (row, cols).
    Both are static and consumed in the exact order init_params packed them."""

    def kernel(x_ref, w_ref, v_ref, out_ref, pad_ref):
        wit = iter(w_desc)
        vit = iter(v_desc)

        def W():                       # next weight descriptor (for convs)
            return next(wit)

        def WV():                      # next weight as a value (small matrices)
            off, rows, cols = next(wit)
            return w_ref[off:off + rows, :cols]

        def V():                       # next (1, cols) vector value
            off, cols = next(vit)
            return v_ref[off:off + 1, :cols]

        # Zero the staging buffer once; halo rows stay zero afterwards (we only
        # ever write rows [ROW0, ROW0+l)).  Re-zero the post-data halo only
        # when l shrinks.
        pad_ref[...] = jnp.zeros_like(pad_ref)

        def shrink_halo(l_new):
            pad_ref[:, ROW0 + l_new:ROW0 + l_new + ROW0, :] = jnp.zeros(
                (nb, ROW0, CMAX), jnp.float32)

        l = SEQ_LEN
        x2 = x_ref[...].reshape(nb * l, IN_CHANNELS)

        # --- stem: inception1 (fused k=3/5/7 conv + bias + ReLU) -------------
        h = _conv7(pad_ref, w_ref, W(), x2, V(), True, nb, l, IN_CHANNELS)

        # --- norm0 + relu0 ----------------------------------------------------
        h = _bn(h, V(), V(), relu=True)
        c = NUM_INIT_FEATURES

        # --- MaxPool1d(3, stride=2, padding=1) --------------------------------
        # post-ReLU input => zero padding is exactly -inf padding.
        _stage(pad_ref, h, nb, l, c)
        m = jnp.maximum(jnp.maximum(_win(pad_ref, -1, nb, l, c),
                                    _win(pad_ref, 0, nb, l, c)),
                        _win(pad_ref, 1, nb, l, c))
        lo = l // 2
        h = m.reshape(nb, lo, 2, c)[:, :, 0, :].reshape(nb * lo, c)
        l = lo
        shrink_halo(l)

        # --- dense blocks + transitions ---------------------------------------
        for bidx, num_layers in enumerate(BLOCK_CONFIG):
            feats = h                                  # (nb*l, c) live value
            for _ in range(num_layers):
                n1s = V(); n1h = V()
                w1 = WV()                              # 1x1 conv, norm2 folded in
                b1 = V()                               # folded norm2 shift
                w2d = W()                              # fused conv2/3/4 (k=3/5/7)
                t = _bn(feats, n1s, n1h, relu=True)    # norm1 + relu1
                t = jnp.maximum(
                    jnp.dot(t, w1, preferred_element_type=jnp.float32) + b1, 0.0)
                new = _conv7(pad_ref, w_ref, w2d, t, None, False, nb, l,
                             BN_SIZE * GROWTH)
                # dropout(p=0.2) is identity in eval mode
                feats = jnp.concatenate([feats, new], axis=-1)
                c += 3 * GROWTH
            h = feats

            if bidx != len(BLOCK_CONFIG) - 1:          # transition
                ts = V(); th = V()
                twd = W()
                tb = V()
                h = _bn(h, ts, th, relu=True)
                h = _conv7(pad_ref, w_ref, twd, h, tb, True, nb, l, c)
                c = 3 * ((c // 2) // 3)
                lo = l // 2                            # AvgPool1d(2, 2): pair mean
                h4 = h.reshape(nb, lo, 2, c)
                h = ((h4[:, :, 0, :] + h4[:, :, 1, :]) * 0.5).reshape(nb * lo, c)
                l = lo
                shrink_halo(l)

        # --- norm5 + ReLU + global average pool + classifier -------------------
        h = _bn(h, V(), V(), relu=True)
        pooled = h.reshape(nb, l, c).sum(axis=1)       # (nb, c); 1/L folded in W
        wc = WV()
        bc = V()
        logits = jnp.dot(pooled, wc, preferred_element_type=jnp.float32) + bc
        out_ref[...] = logits.reshape(1, nb, NUM_CLASSES)

    return kernel


# ------------------------------ forward wrapper -------------------------------
def msdensenet_forward(wslab, vslab, x, w_desc, v_desc, num_steps=1):
    n = x.shape[0]
    assert n % num_steps == 0, (n, num_steps)
    nb = n // num_steps                                # samples per grid step

    out = pl.pallas_call(
        _make_kernel(nb, w_desc, v_desc),
        out_shape=jax.ShapeDtypeStruct((num_steps, nb, NUM_CLASSES), jnp.float32),
        grid=(num_steps,),
        in_specs=[
            pl.BlockSpec((nb, SEQ_LEN, IN_CHANNELS), lambda i: (i, 0, 0)),
            pl.BlockSpec(wslab.shape, lambda i: (0, 0)),   # packed weight slab
            pl.BlockSpec(vslab.shape, lambda i: (0, 0)),   # packed vector slab
        ],
        out_specs=pl.BlockSpec((1, nb, NUM_CLASSES), lambda i: (i, 0, 0)),
        scratch_shapes=[
            pltpu.VMEM((nb, SEQ_LEN + 2 * ROW0, CMAX), jnp.float32),  # staging
        ],
        compiler_params=pltpu.CompilerParams(
            # num_steps=1 (single step, nb=N) on v5e/v6e; num_steps=2 on v7x so
            # the two TensorCores split the batch.
            dimension_semantics=("parallel",),
            vmem_limit_bytes=32 * 1024 * 1024,
        ),
    )(x, wslab, vslab)
    return out.reshape(n, NUM_CLASSES)


# ------------------------------ parameter packing ------------------------------
class _MatPacker:
    """Packs (rows, cols<=128) f32 matrices into one (R, 128) slab.
    Each entry starts at an 8-aligned row offset; descriptors are static ints."""

    def __init__(self, lanes=CMAX):
        self.lanes = lanes
        self.parts = []
        self.desc = []
        self.row = 0

    def add(self, a):
        rows, cols = a.shape
        pad_r = _r8(rows) - rows
        self.parts.append(jnp.pad(a, ((0, pad_r), (0, self.lanes - cols))))
        self.desc.append((self.row, rows, cols))
        self.row += rows + pad_r

    def slab(self):
        return jnp.concatenate(self.parts, axis=0)


class _VecPacker:
    """Packs (1, cols<=128) vectors as rows of one (n, 128) slab."""

    def __init__(self, lanes=CMAX):
        self.lanes = lanes
        self.parts = []
        self.desc = []

    def add(self, v):
        cols = v.shape[1]
        self.parts.append(jnp.pad(v, ((0, 0), (0, self.lanes - cols))))
        self.desc.append((len(self.desc), cols))

    def slab(self):
        return jnp.concatenate(self.parts, axis=0)


# ------------------------------ parameter init --------------------------------
def _conv_w(key, k, cin, cout):
    """kaiming_normal_ init, stored as (K, Cin, Cout)."""
    std = (2.0 / (cin * k)) ** 0.5
    return jax.random.normal(key, (k, cin, cout), jnp.float32) * std


def _conv_b(key, k, cin, cout):
    bound = 1.0 / (cin * k) ** 0.5
    return jax.random.uniform(key, (1, cout), jnp.float32, -bound, bound)


def _fuse_k7(ws):
    """Zero-pad k=3/5 taps to k=7, concat branches along Cout, pad Cin of each
    tap to a multiple of 8 rows, flatten to (7*round8(Cin), sum Cout)."""
    padded = []
    for w in ws:
        p = (KMAX - w.shape[0]) // 2
        padded.append(jnp.pad(w, ((p, p), (0, 0), (0, 0))))
    wf = jnp.concatenate(padded, axis=-1)                   # (7, cin, sum_cout)
    cin = wf.shape[1]
    wf = jnp.pad(wf, ((0, 0), (0, _r8(cin) - cin), (0, 0)))
    return wf.reshape(KMAX * _r8(cin), wf.shape[2])


def _bn_params(c):
    # gamma=1, beta=0, running_mean=0, running_var=1 (torch __init__, eval mode)
    return (jnp.full((1, c), _BN_SCALE, jnp.float32),
            jnp.zeros((1, c), jnp.float32))


def init_params(key):
    keys = iter(jax.random.split(key, 64))
    wp = _MatPacker()
    vp = _VecPacker()

    # inception1: 12 -> 3 x 32 (branches fused along Cout) + bias
    wp.add(_fuse_k7([_conv_w(next(keys), k, IN_CHANNELS, 32) for k in (3, 5, 7)]))
    vp.add(jnp.concatenate([_conv_b(next(keys), k, IN_CHANNELS, 32)
                            for k in (3, 5, 7)], axis=-1))
    s, sh = _bn_params(NUM_INIT_FEATURES)                   # norm0
    vp.add(s); vp.add(sh)

    num_features = NUM_INIT_FEATURES
    for i, num_layers in enumerate(BLOCK_CONFIG):
        for j in range(num_layers):
            cin = num_features + j * 3 * GROWTH
            bott = BN_SIZE * GROWTH
            s, sh = _bn_params(cin)                         # norm1
            vp.add(s); vp.add(sh)
            # conv1 (1x1, bias=False) with norm2 folded into its columns + bias
            w1 = _conv_w(next(keys), 1, cin, bott).reshape(cin, bott) * _BN_SCALE
            wp.add(w1)
            vp.add(jnp.zeros((1, bott), jnp.float32))       # folded norm2 shift
            wp.add(_fuse_k7([_conv_w(next(keys), k, bott, GROWTH)
                             for k in (3, 5, 7)]))          # conv2/3/4 fused
        num_features += num_layers * 3 * GROWTH
        if i != len(BLOCK_CONFIG) - 1:                      # transition
            branch = (num_features // 2) // 3
            s, sh = _bn_params(num_features)                # transition norm
            vp.add(s); vp.add(sh)
            wp.add(_fuse_k7([_conv_w(next(keys), k, num_features, branch)
                             for k in (3, 5, 7)]))          # inception conv
            vp.add(jnp.concatenate([_conv_b(next(keys), k, num_features, branch)
                                    for k in (3, 5, 7)], axis=-1))
            num_features = 3 * branch

    s, sh = _bn_params(num_features)                        # norm5
    vp.add(s); vp.add(sh)
    bound = 1.0 / num_features ** 0.5
    wc = jax.random.uniform(next(keys), (num_features, NUM_CLASSES),
                            jnp.float32, -bound, bound)
    wp.add(wc * (1.0 / L_FINAL))        # global-avg-pool 1/L folded into Linear W
    vp.add(jnp.zeros((1, NUM_CLASSES), jnp.float32))        # Linear bias = 0

    return wp.slab(), vp.slab(), tuple(wp.desc), tuple(vp.desc)


# ----------------------------------- main --------------------------------------
if __name__ == "__main__":
    key = jax.random.PRNGKey(0)
    pkey, xkey = jax.random.split(key)
    wslab, vslab, w_desc, v_desc = init_params(pkey)

    # PyTorch input would be (N=2, C=12, L=64); NLC layout here -> (2, 64, 12).
    x = jax.random.normal(xkey, (2, SEQ_LEN, IN_CHANNELS), jnp.float32)

    # Single grid step with nb=N (best on v5e/v6e); set num_steps=2 on v7x so
    # each TensorCore processes half the batch.
    fwd = jax.jit(lambda w, v, xx: msdensenet_forward(w, v, xx, w_desc, v_desc,
                                                      num_steps=1))
    out = jax.block_until_ready(fwd(wslab, vslab, x))
    assert out.shape == (2, NUM_CLASSES), out.shape
    assert bool(jnp.all(jnp.isfinite(out)))
    print("KERNEL_OK")
</pallas_src>

<mosaic_0001>
module attributes {stable_mosaic.version = 11 : i64} {
  func.func @kernel(%arg0: i32, %arg1: memref<2x64x12xf32, #tpu.memory_space<vmem>>, %arg2: memref<2424x128xf32, #tpu.memory_space<vmem>>, %arg3: memref<30x128xf32, #tpu.memory_space<vmem>>, %arg4: memref<1x2x2xf32, #tpu.memory_space<vmem>>, %arg5: memref<2x80x128xf32, #tpu.memory_space<vmem>>) attributes {dimension_semantics = [#tpu.dimension_semantics<parallel>], iteration_bounds = array<i64: 1>, scalar_prefetch = 0 : i64, scratch_operands = 1 : i64, tpu.core_type = #tpu.core_type<tc>, window_params = [{transform_indices = @transform_0, window_bounds = array<i64: 2, 64, 12>}, {pipeline_mode = #tpu.pipeline_mode<synchronous>, transform_indices = @transform_1, window_bounds = array<i64: 2424, 128>}, {pipeline_mode = #tpu.pipeline_mode<synchronous>, transform_indices = @transform_2, window_bounds = array<i64: 30, 128>}, {transform_indices = @transform_3, window_bounds = array<i64: 1, 2, 2>}]} {
    %cst = arith.constant 0.000000e+00 : f32
    %0 = vector.broadcast %cst : f32 to vector<2x80x128xf32>
    %c0 = arith.constant 0 : index
    %c0_0 = arith.constant 0 : index
    %c0_1 = arith.constant 0 : index
    %1 = vector.load %arg5[%c0, %c0_0, %c0_1] : memref<2x80x128xf32, #tpu.memory_space<vmem>>, vector<2x80x128xf32>
    tpu.vector_store %arg5[%c0, %c0_0, %c0_1], %0 {strides = array<i32>} : memref<2x80x128xf32, #tpu.memory_space<vmem>>, vector<2x80x128xf32>,
    %c0_2 = arith.constant 0 : index
    %c0_3 = arith.constant 0 : index
    %c0_4 = arith.constant 0 : index
    %2 = vector.load %arg1[%c0_2, %c0_3, %c0_4] : memref<2x64x12xf32, #tpu.memory_space<vmem>>, vector<2x64x12xf32>
    %3 = vector.shape_cast %2 : vector<2x64x12xf32> to vector<128x12xf32>
    %c0_5 = arith.constant 0 : index
    %c0_6 = arith.constant 0 : index
    %4 = vector.load %arg3[%c0_5, %c0_6] : memref<30x128xf32, #tpu.memory_space<vmem>>, vector<1x96xf32>
    %5 = vector.shape_cast %3 : vector<128x12xf32> to vector<2x64x12xf32>
    %c0_7 = arith.constant 0 : index
    %c8 = arith.constant 8 : index
    %c0_8 = arith.constant 0 : index
    %6 = vector.load %arg5[%c0_7, %c8, %c0_8] : memref<2x80x128xf32, #tpu.memory_space<vmem>>, vector<2x64x12xf32>
    tpu.vector_store %arg5[%c0_7, %c8, %c0_8], %5 {strides = array<i32>} : memref<2x80x128xf32, #tpu.memory_space<vmem>>, vector<2x64x12xf32>,
    %cst_9 = arith.constant 0.000000e+00 : f32
    %7 = vector.broadcast %cst_9 : f32 to vector<128x96xf32>
    %c0_10 = arith.constant 0 : index
    %c5 = arith.constant 5 : index
    %c0_11 = arith.constant 0 : index
    %8 = vector.load %arg5[%c0_10, %c5, %c0_11] : memref<2x80x128xf32, #tpu.memory_space<vmem>>, vector<2x64x12xf32>
    %9 = vector.shape_cast %8 : vector<2x64x12xf32> to vector<128x12xf32>
    %c0_12 = arith.constant 0 : index
    %c0_13 = arith.constant 0 : index
    %10 = vector.load %arg2[%c0_12, %c0_13] : memref<2424x128xf32, #tpu.memory_space<vmem>>, vector<12x96xf32>
    %cst_14 = arith.constant dense<0.000000e+00> : vector<128x96xf32>
    %11 = tpu.matmul %9, %10, %cst_14 {dimension_numbers = #tpu.dot_dimension_numbers<[1], [0], [0], [1], [0, 0, 1, 1], [], []>} : vector<128x12xf32>, vector<12x96xf32>, vector<128x96xf32> -> vector<128x96xf32>
    %12 = arith.addf %7, %11 : vector<128x96xf32>
    %c0_15 = arith.constant 0 : index
    %c6 = arith.constant 6 : index
    %c0_16 = arith.constant 0 : index
    %13 = vector.load %arg5[%c0_15, %c6, %c0_16] : memref<2x80x128xf32, #tpu.memory_space<vmem>>, vector<2x64x12xf32>
    %14 = vector.shape_cast %13 : vector<2x64x12xf32> to vector<128x12xf32>
    %c16 = arith.constant 16 : index
    %c0_17 = arith.constant 0 : index
    %15 = vector.load %arg2[%c16, %c0_17] : memref<2424x128xf32, #tpu.memory_space<vmem>>, vector<12x96xf32>
    %cst_18 = arith.constant dense<0.000000e+00> : vector<128x96xf32>
    %16 = tpu.matmul %14, %15, %cst_18 {dimension_numbers = #tpu.dot_dimension_numbers<[1], [0], [0], [1], [0, 0, 1, 1], [], []>} : vector<128x12xf32>, vector<12x96xf32>, vector<128x96xf32> -> vector<128x96xf32>
    %17 = arith.addf %12, %16 : vector<128x96xf32>
    %c0_19 = arith.constant 0 : index
    %c7 = arith.constant 7 : index
    %c0_20 = arith.constant 0 : index
    %18 = vector.load %arg5[%c0_19, %c7, %c0_20] : memref<2x80x128xf32, #tpu.memory_space<vmem>>, vector<2x64x12xf32>
    %19 = vector.shape_cast %18 : vector<2x64x12xf32> to vector<128x12xf32>
    %c32 = arith.constant 32 : index
    %c0_21 = arith.constant 0 : index
    %20 = vector.load %arg2[%c32, %c0_21] : memref<2424x128xf32, #tpu.memory_space<vmem>>, vector<12x96xf32>
    %cst_22 = arith.constant dense<0.000000e+00> : vector<128x96xf32>
    %21 = tpu.matmul %19, %20, %cst_22 {dimension_numbers = #tpu.dot_dimension_numbers<[1], [0], [0], [1], [0, 0, 1, 1], [], []>} : vector<128x12xf32>, vector<12x96xf32>, vector<128x96xf32> -> vector<128x96xf32>
    %22 = arith.addf %17, %21 : vector<128x96xf32>
    %c0_23 = arith.constant 0 : index
    %c8_24 = arith.constant 8 : index
    %c0_25 = arith.constant 0 : index
    %23 = vector.load %arg5[%c0_23, %c8_24, %c0_25] : memref<2x80x128xf32, #tpu.memory_space<vmem>>, vector<2x64x12xf32>
    %24 = vector.shape_cast %23 : vector<2x64x12xf32> to vector<128x12xf32>
    %c48 = arith.constant 48 : index
    %c0_26 = arith.constant 0 : index
    %25 = vector.load %arg2[%c48, %c0_26] : memref<2424x128xf32, #tpu.memory_space<vmem>>, vector<12x96xf32>
    %cst_27 = arith.constant dense<0.000000e+00> : vector<128x96xf32>
    %26 = tpu.matmul %24, %25, %cst_27 {dimension_numbers = #tpu.dot_dimension_numbers<[1], [0], [0], [1], [0, 0, 1, 1], [], []>} : vector<128x12xf32>, vector<12x96xf32>, vector<128x96xf32> -> vector<128x96xf32>
    %27 = arith.addf %22, %26 : vector<128x96xf32>
    %c0_28 = arith.constant 0 : index
    %c9 = arith.constant 9 : index
    %c0_29 = arith.constant 0 : index
    %28 = vector.load %arg5[%c0_28, %c9, %c0_29] : memref<2x80x128xf32, #tpu.memory_space<vmem>>, vector<2x64x12xf32>
    %29 = vector.shape_cast %28 : vector<2x64x12xf32> to vector<128x12xf32>
    %c64 = arith.constant 64 : index
    %c0_30 = arith.constant 0 : index
    %30 = vector.load %arg2[%c64, %c0_30] : memref<2424x128xf32, #tpu.memory_space<vmem>>, vector<12x96xf32>
    %cst_31 = arith.constant dense<0.000000e+00> : vector<128x96xf32>
    %31 = tpu.matmul %29, %30, %cst_31 {dimension_numbers = #tpu.dot_dimension_numbers<[1], [0], [0], [1], [0, 0, 1, 1], [], []>} : vector<128x12xf32>, vector<12x96xf32>, vector<128x96xf32> -> vector<128x96xf32>
    %32 = arith.addf %27, %31 : vector<128x96xf32>
    %c0_32 = arith.constant 0 : index
    %c10 = arith.constant 10 : index
    %c0_33 = arith.constant 0 : index
    %33 = vector.load %arg5[%c0_32, %c10, %c0_33] : memref<2x80x128xf32, #tpu.memory_space<vmem>>, vector<2x64x12xf32>
    %34 = vector.shape_cast %33 : vector<2x64x12xf32> to vector<128x12xf32>
    %c80 = arith.constant 80 : index
    %c0_34 = arith.constant 0 : index
    %35 = vector.load %arg2[%c80, %c0_34] : memref<2424x128xf32, #tpu.memory_space<vmem>>, vector<12x96xf32>
    %cst_35 = arith.constant dense<0.000000e+00> : vector<128x96xf32>
    %36 = tpu.matmul %34, %35, %cst_35 {dimension_numbers = #tpu.dot_dimension_numbers<[1], [0], [0], [1], [0, 0, 1, 1], [], []>} : vector<128x12xf32>, vector<12x96xf32>, vector<128x96xf32> -> vector<128x96xf32>
    %37 = arith.addf %32, %36 : vector<128x96xf32>
    %c0_36 = arith.constant 0 : index
    %c11 = arith.constant 11 : index
    %c0_37 = arith.constant 0 : index
    %38 = vector.load %arg5[%c0_36, %c11, %c0_37] : memref<2x80x128xf32, #tpu.memory_space<vmem>>, vector<2x64x12xf32>
    %39 = vector.shape_cast %38 : vector<2x64x12xf32> to vector<128x12xf32>
    %c96 = arith.constant 96 : index
    %c0_38 = arith.constant 0 : index
    %40 = vector.load %arg2[%c96, %c0_38] : memref<2424x128xf32, #tpu.memory_space<vmem>>, vector<12x96xf32>
    %cst_39 = arith.constant dense<0.000000e+00> : vector<128x96xf32>
    %41 = tpu.matmul %39, %40, %cst_39 {dimension_numbers = #tpu.dot_dimension_numbers<[1], [0], [0], [1], [0, 0, 1, 1], [], []>} : vector<128x12xf32>, vector<12x96xf32>, vector<128x96xf32> -> vector<128x96xf32>
    %42 = arith.addf %37, %41 : vector<128x96xf32>
    %43 = vector.broadcast %4 : vector<1x96xf32> to vector<128x96xf32>
    %44 = arith.addf %42, %43 : vector<128x96xf32>
    %cst_40 = arith.constant 0.000000e+00 : f32
    %45 = vector.broadcast %cst_40 : f32 to vector<128x96xf32>
    %46 = arith.maximumf %44, %45 : vector<128x96xf32>
    %c1 = arith.constant 1 : index
    %c0_41 = arith.constant 0 : index
    %47 = vector.load %arg3[%c1, %c0_41] : memref<30x128xf32, #tpu.memory_space<vmem>>, vector<1x96xf32>
    %c2 = arith.constant 2 : index
    %c0_42 = arith.constant 0 : index
    %48 = vector.load %arg3[%c2, %c0_42] : memref<30x128xf32, #tpu.memory_space<vmem>>, vector<1x96xf32>
    %49 = vector.broadcast %47 : vector<1x96xf32> to vector<128x96xf32>
    %50 = arith.mulf %46, %49 : vector<128x96xf32>
    %51 = vector.broadcast %48 : vector<1x96xf32> to vector<128x96xf32>
    %52 = arith.addf %50, %51 : vector<128x96xf32>
    %cst_43 = arith.constant 0.000000e+00 : f32
    %53 = vector.broadcast %cst_43 : f32 to vector<128x96xf32>
    %54 = arith.maximumf %52, %53 : vector<128x96xf32>
    %55 = vector.shape_cast %54 : vector<128x96xf32> to vector<2x64x96xf32>
    %c0_44 = arith.constant 0 : index
    %c8_45 = arith.constant 8 : index
    %c0_46 = arith.constant 0 : index
    %56 = vector.load %arg5[%c0_44, %c8_45, %c0_46] : memref<2x80x128xf32, #tpu.memory_space<vmem>>, vector<2x64x96xf32>
    tpu.vector_store %arg5[%c0_44, %c8_45, %c0_46], %55 {strides = array<i32>} : memref<2x80x128xf32, #tpu.memory_space<vmem>>, vector<2x64x96xf32>,
    %c0_47 = arith.constant 0 : index
    %c7_48 = arith.constant 7 : index
    %c0_49 = arith.constant 0 : index
    %57 = vector.load %arg5[%c0_47, %c7_48, %c0_49] : memref<2x80x128xf32, #tpu.memory_space<vmem>>, vector<2x64x96xf32>
    %58 = vector.shape_cast %57 : vector<2x64x96xf32> to vector<128x96xf32>
    %c0_50 = arith.constant 0 : index
    %c8_51 = arith.constant 8 : index
    %c0_52 = arith.constant 0 : index
    %59 = vector.load %arg5[%c0_50, %c8_51, %c0_52] : memref<2x80x128xf32, #tpu.memory_space<vmem>>, vector<2x64x96xf32>
    %60 = vector.shape_cast %59 : vector<2x64x96xf32> to vector<128x96xf32>
    %61 = arith.maximumf %58, %60 : vector<128x96xf32>
    %c0_53 = arith.constant 0 : index
    %c9_54 = arith.constant 9 : index
    %c0_55 = arith.constant 0 : index
    %62 = vector.load %arg5[%c0_53, %c9_54, %c0_55] : memref<2x80x128xf32, #tpu.memory_space<vmem>>, vector<2x64x96xf32>
    %63 = vector.shape_cast %62 : vector<2x64x96xf32> to vector<128x96xf32>
    %64 = arith.maximumf %61, %63 : vector<128x96xf32>
    %65 = vector.shape_cast %64 : vector<128x96xf32> to vector<2x32x2x96xf32>
    %66 = vector.extract_strided_slice %65 {offsets = [0, 0, 0, 0], sizes = [2, 32, 1, 96], strides = [1, 1, 1, 1]} : vector<2x32x2x96xf32> to vector<2x32x1x96xf32>
    %67 = vector.shape_cast %66 : vector<2x32x1x96xf32> to vector<2x32x96xf32>
    %68 = vector.shape_cast %67 : vector<2x32x96xf32> to vector<64x96xf32>
    %cst_56 = arith.constant 0.000000e+00 : f32
    %69 = vector.broadcast %cst_56 : f32 to vector<2x8x128xf32>
    %c0_57 = arith.constant 0 : index
    %c40 = arith.constant 40 : index
    %c0_58 = arith.constant 0 : index
    %70 = vector.load %arg5[%c0_57, %c40, %c0_58] : memref<2x80x128xf32, #tpu.memory_space<vmem>>, vector<2x8x128xf32>
    tpu.vector_store %arg5[%c0_57, %c40, %c0_58], %69 {strides = array<i32>} : memref<2x80x128xf32, #tpu.memory_space<vmem>>, vector<2x8x128xf32>,
    %c3 = arith.constant 3 : index
    %c0_59 = arith.constant 0 : index
    %71 = vector.load %arg3[%c3, %c0_59] : memref<30x128xf32, #tpu.memory_space<vmem>>, vector<1x96xf32>
    %c4 = arith.constant 4 : index
    %c0_60 = arith.constant 0 : index
    %72 = vector.load %arg3[%c4, %c0_60] : memref<30x128xf32, #tpu.memory_space<vmem>>, vector<1x96xf32>
    %c112 = arith.constant 112 : index
    %c0_61 = arith.constant 0 : index
    %73 = vector.load %arg2[%c112, %c0_61] : memref<2424x128xf32, #tpu.memory_space<vmem>>, vector<96x8xf32>
    %c5_62 = arith.constant 5 : index
    %c0_63 = arith.constant 0 : index
    %74 = vector.load %arg3[%c5_62, %c0_63] : memref<30x128xf32, #tpu.memory_space<vmem>>, vector<1x8xf32>
    %75 = vector.broadcast %71 : vector<1x96xf32> to vector<64x96xf32>
    %76 = arith.mulf %68, %75 : vector<64x96xf32>
    %77 = vector.broadcast %72 : vector<1x96xf32> to vector<64x96xf32>
    %78 = arith.addf %76, %77 : vector<64x96xf32>
    %cst_64 = arith.constant 0.000000e+00 : f32
    %79 = vector.broadcast %cst_64 : f32 to vector<64x96xf32>
    %80 = arith.maximumf %78, %79 : vector<64x96xf32>
    %cst_65 = arith.constant dense<0.000000e+00> : vector<64x8xf32>
    %81 = tpu.matmul %80, %73, %cst_65 {dimension_numbers = #tpu.dot_dimension_numbers<[1], [0], [0], [1], [0, 0, 1, 1], [], []>} : vector<64x96xf32>, vector<96x8xf32>, vector<64x8xf32> -> vector<64x8xf32>
    %82 = vector.broadcast %74 : vector<1x8xf32> to vector<64x8xf32>
    %83 = arith.addf %81, %82 : vector<64x8xf32>
    %cst_66 = arith.constant 0.000000e+00 : f32
    %84 = vector.broadcast %cst_66 : f32 to vector<64x8xf32>
    %85 = arith.maximumf %83, %84 : vector<64x8xf32>
    %86 = vector.shape_cast %85 : vector<64x8xf32> to vector<2x32x8xf32>
    %c0_67 = arith.constant 0 : index
    %c8_68 = arith.constant 8 : index
    %c0_69 = arith.constant 0 : index
    %87 = vector.load %arg5[%c0_67, %c8_68, %c0_69] : memref<2x80x128xf32, #tpu.memory_space<vmem>>, vector<2x32x8xf32>
    tpu.vector_store %arg5[%c0_67, %c8_68, %c0_69], %86 {strides = array<i32>} : memref<2x80x128xf32, #tpu.memory_space<vmem>>, vector<2x32x8xf32>,
    %cst_70 = arith.constant 0.000000e+00 : f32
    %88 = vector.broadcast %cst_70 : f32 to vector<64x12xf32>
    %c0_71 = arith.constant 0 : index
    %c5_72 = arith.constant 5 : index
    %c0_73 = arith.constant 0 : index
    %89 = vector.load %arg5[%c0_71, %c5_72, %c0_73] : memref<2x80x128xf32, #tpu.memory_space<vmem>>, vector<2x32x8xf32>
    %90 = vector.shape_cast %89 : vector<2x32x8xf32> to vector<64x8xf32>
    %c208 = arith.constant 208 : index
    %c0_74 = arith.constant 0 : index
    %91 = vector.load %arg2[%c208, %c0_74] : memref<2424x128xf32, #tpu.memory_space<vmem>>, vector<8x12xf32>
    %cst_75 = arith.constant dense<0.000000e+00> : vector<64x12xf32>
    %92 = tpu.matmul %90, %91, %cst_75 {dimension_numbers = #tpu.dot_dimension_numbers<[1], [0], [0], [1], [0, 0, 1, 1], [], []>} : vector<64x8xf32>, vector<8x12xf32>, vector<64x12xf32> -> vector<64x12xf32>
    %93 = arith.addf %88, %92 : vector<64x12xf32>
    %c0_76 = arith.constant 0 : index
    %c6_77 = arith.constant 6 : index
    %c0_78 = arith.constant 0 : index
    %94 = vector.load %arg5[%c0_76, %c6_77, %c0_78] : memref<2x80x128xf32, #tpu.memory_space<vmem>>, vector<2x32x8xf32>
    %95 = vector.shape_cast %94 : vector<2x32x8xf32> to vector<64x8xf32>
    %c216 = arith.constant 216 : index
    %c0_79 = arith.constant 0 : index
    %96 = vector.load %arg2[%c216, %c0_79] : memref<2424x128xf32, #tpu.memory_space<vmem>>, vector<8x12xf32>
    %cst_80 = arith.constant dense<0.000000e+00> : vector<64x12xf32>
    %97 = tpu.matmul %95, %96, %cst_80 {dimension_numbers = #tpu.dot_dimension_numbers<[1], [0], [0], [1], [0, 0, 1, 1], [], []>} : vector<64x8xf32>, vector<8x12xf32>, vector<64x12xf32> -> vector<64x12xf32>
    %98 = arith.addf %93, %97 : vector<64x12xf32>
    %c0_81 = arith.constant 0 : index
    %c7_82 = arith.constant 7 : index
    %c0_83 = arith.constant 0 : index
    %99 = vector.load %arg5[%c0_81, %c7_82, %c0_83] : memref<2x80x128xf32, #tpu.memory_space<vmem>>, vector<2x32x8xf32>
    %100 = vector.shape_cast %99 : vector<2x32x8xf32> to vector<64x8xf32>
    %c224 = arith.constant 224 : index
    %c0_84 = arith.constant 0 : index
    %101 = vector.load %arg2[%c224, %c0_84] : memref<2424x128xf32, #tpu.memory_space<vmem>>, vector<8x12xf32>
    %cst_85 = arith.constant dense<0.000000e+00> : vector<64x12xf32>
    %102 = tpu.matmul %100, %101, %cst_85 {dimension_numbers = #tpu.dot_dimension_numbers<[1], [0], [0], [1], [0, 0, 1, 1], [], []>} : vector<64x8xf32>, vector<8x12xf32>, vector<64x12xf32> -> vector<64x12xf32>
    %103 = arith.addf %98, %102 : vector<64x12xf32>
    %c0_86 = arith.constant 0 : index
    %c8_87 = arith.constant 8 : index
    %c0_88 = arith.constant 0 : index
    %104 = vector.load %arg5[%c0_86, %c8_87, %c0_88] : memref<2x80x128xf32, #tpu.memory_space<vmem>>, vector<2x32x8xf32>
    %105 = vector.shape_cast %104 : vector<2x32x8xf32> to vector<64x8xf32>
    %c232 = arith.constant 232 : index
    %c0_89 = arith.constant 0 : index
    %106 = vector.load %arg2[%c232, %c0_89] : memref<2424x128xf32, #tpu.memory_space<vmem>>, vector<8x12xf32>
    %cst_90 = arith.constant dense<0.000000e+00> : vector<64x12xf32>
    %107 = tpu.matmul %105, %106, %cst_90 {dimension_numbers = #tpu.dot_dimension_numbers<[1], [0], [0], [1], [0, 0, 1, 1], [], []>} : vector<64x8xf32>, vector<8x12xf32>, vector<64x12xf32> -> vector<64x12xf32>
    %108 = arith.addf %103, %107 : vector<64x12xf32>
    %c0_91 = arith.constant 0 : index
    %c9_92 = arith.constant 9 : index
    %c0_93 = arith.constant 0 : index
    %109 = vector.load %arg5[%c0_91, %c9_92, %c0_93] : memref<2x80x128xf32, #tpu.memory_space<vmem>>, vector<2x32x8xf32>
    %110 = vector.shape_cast %109 : vector<2x32x8xf32> to vector<64x8xf32>
    %c240 = arith.constant 240 : index
    %c0_94 = arith.constant 0 : index
    %111 = vector.load %arg2[%c240, %c0_94] : memref<2424x128xf32, #tpu.memory_space<vmem>>, vector<8x12xf32>
    %cst_95 = arith.constant dense<0.000000e+00> : vector<64x12xf32>
    %112 = tpu.matmul %110, %111, %cst_95 {dimension_numbers = #tpu.dot_dimension_numbers<[1], [0], [0], [1], [0, 0, 1, 1], [], []>} : vector<64x8xf32>, vector<8x12xf32>, vector<64x12xf32> -> vector<64x12xf32>
    %113 = arith.addf %108, %112 : vector<64x12xf32>
    %c0_96 = arith.constant 0 : index
    %c10_97 = arith.constant 10 : index
    %c0_98 = arith.constant 0 : index
    %114 = vector.load %arg5[%c0_96, %c10_97, %c0_98] : memref<2x80x128xf32, #tpu.memory_space<vmem>>, vector<2x32x8xf32>
    %115 = vector.shape_cast %114 : vector<2x32x8xf32> to vector<64x8xf32>
    %c248 = arith.constant 248 : index
    %c0_99 = arith.constant 0 : index
    %116 = vector.load %arg2[%c248, %c0_99] : memref<2424x128xf32, #tpu.memory_space<vmem>>, vector<8x12xf32>
    %cst_100 = arith.constant dense<0.000000e+00> : vector<64x12xf32>
    %117 = tpu.matmul %115, %116, %cst_100 {dimension_numbers = #tpu.dot_dimension_numbers<[1], [0], [0], [1], [0, 0, 1, 1], [], []>} : vector<64x8xf32>, vector<8x12xf32>, vector<64x12xf32> -> vector<64x12xf32>
    %118 = arith.addf %113, %117 : vector<64x12xf32>
    %c0_101 = arith.constant 0 : index
    %c11_102 = arith.constant 11 : index
    %c0_103 = arith.constant 0 : index
    %119 = vector.load %arg5[%c0_101, %c11_102, %c0_103] : memref<2x80x128xf32, #tpu.memory_space<vmem>>, vector<2x32x8xf32>
    %120 = vector.shape_cast %119 : vector<2x32x8xf32> to vector<64x8xf32>
    %c256 = arith.constant 256 : index
    %c0_104 = arith.constant 0 : index
    %121 = vector.load %arg2[%c256, %c0_104] : memref<2424x128xf32, #tpu.memory_space<vmem>>, vector<8x12xf32>
    %cst_105 = arith.constant dense<0.000000e+00> : vector<64x12xf32>
    %122 = tpu.matmul %120, %121, %cst_105 {dimension_numbers = #tpu.dot_dimension_numbers<[1], [0], [0], [1], [0, 0, 1, 1], [], []>} : vector<64x8xf32>, vector<8x12xf32>, vector<64x12xf32> -> vector<64x12xf32>
    %123 = arith.addf %118, %122 : vector<64x12xf32>
    %124 = tpu.concatenate %68, %123 in 1 : vector<64x96xf32>, vector<64x12xf32> -> vector<64x108xf32>
    %c6_106 = arith.constant 6 : index
    %c0_107 = arith.constant 0 : index
    %125 = vector.load %arg3[%c6_106, %c0_107] : memref<30x128xf32, #tpu.memory_space<vmem>>, vector<1x108xf32>
    %c7_108 = arith.constant 7 : index
    %c0_109 = arith.constant 0 : index
    %126 = vector.load %arg3[%c7_108, %c0_109] : memref<30x128xf32, #tpu.memory_space<vmem>>, vector<1x108xf32>
    %c264 = arith.constant 264 : index
    %c0_110 = arith.constant 0 : index
    %127 = vector.load %arg2[%c264, %c0_110] : memref<2424x128xf32, #tpu.memory_space<vmem>>, vector<108x8xf32>
    %c8_111 = arith.constant 8 : index
    %c0_112 = arith.constant 0 : index
    %128 = vector.load %arg3[%c8_111, %c0_112] : memref<30x128xf32, #tpu.memory_space<vmem>>, vector<1x8xf32>
    %129 = vector.broadcast %125 : vector<1x108xf32> to vector<64x108xf32>
    %130 = arith.mulf %124, %129 : vector<64x108xf32>
    %131 = vector.broadcast %126 : vector<1x108xf32> to vector<64x108xf32>
    %132 = arith.addf %130, %131 : vector<64x108xf32>
    %cst_113 = arith.constant 0.000000e+00 : f32
    %133 = vector.broadcast %cst_113 : f32 to vector<64x108xf32>
    %134 = arith.maximumf %132, %133 : vector<64x108xf32>
    %cst_114 = arith.constant dense<0.000000e+00> : vector<64x8xf32>
    %135 = tpu.matmul %134, %127, %cst_114 {dimension_numbers = #tpu.dot_dimension_numbers<[1], [0], [0], [1], [0, 0, 1, 1], [], []>} : vector<64x108xf32>, vector<108x8xf32>, vector<64x8xf32> -> vector<64x8xf32>
    %136 = vector.broadcast %128 : vector<1x8xf32> to vector<64x8xf32>
    %137 = arith.addf %135, %136 : vector<64x8xf32>
    %cst_115 = arith.constant 0.000000e+00 : f32
    %138 = vector.broadcast %cst_115 : f32 to vector<64x8xf32>
    %139 = arith.maximumf %137, %138 : vector<64x8xf32>
    %140 = vector.shape_cast %139 : vector<64x8xf32> to vector<2x32x8xf32>
    %c0_116 = arith.constant 0 : index
    %c8_117 = arith.constant 8 : index
    %c0_118 = arith.constant 0 : index
    %141 = vector.load %arg5[%c0_116, %c8_117, %c0_118] : memref<2x80x128xf32, #tpu.memory_space<vmem>>, vector<2x32x8xf32>
    tpu.vector_store %arg5[%c0_116, %c8_117, %c0_118], %140 {strides = array<i32>} : memref<2x80x128xf32, #tpu.memory_space<vmem>>, vector<2x32x8xf32>,
    %cst_119 = arith.constant 0.000000e+00 : f32
    %142 = vector.broadcast %cst_119 : f32 to vector<64x12xf32>
    %c0_120 = arith.constant 0 : index
    %c5_121 = arith.constant 5 : index
    %c0_122 = arith.constant 0 : index
    %143 = vector.load %arg5[%c0_120, %c5_121, %c0_122] : memref<2x80x128xf32, #tpu.memory_space<vmem>>, vector<2x32x8xf32>
    %144 = vector.shape_cast %143 : vector<2x32x8xf32> to vector<64x8xf32>
    %c376 = arith.constant 376 : index
    %c0_123 = arith.constant 0 : index
    %145 = vector.load %arg2[%c376, %c0_123] : memref<2424x128xf32, #tpu.memory_space<vmem>>, vector<8x12xf32>
    %cst_124 = arith.constant dense<0.000000e+00> : vector<64x12xf32>
    %146 = tpu.matmul %144, %145, %cst_124 {dimension_numbers = #tpu.dot_dimension_numbers<[1], [0], [0], [1], [0, 0, 1, 1], [], []>} : vector<64x8xf32>, vector<8x12xf32>, vector<64x12xf32> -> vector<64x12xf32>
    %147 = arith.addf %142, %146 : vector<64x12xf32>
    %c0_125 = arith.constant 0 : index
    %c6_126 = arith.constant 6 : index
    %c0_127 = arith.constant 0 : index
    %148 = vector.load %arg5[%c0_125, %c6_126, %c0_127] : memref<2x80x128xf32, #tpu.memory_space<vmem>>, vector<2x32x8xf32>
    %149 = vector.shape_cast %148 : vector<2x32x8xf32> to vector<64x8xf32>
    %c384 = arith.constant 384 : index
    %c0_128 = arith.constant 0 : index
    %150 = vector.load %arg2[%c384, %c0_128] : memref<2424x128xf32, #tpu.memory_space<vmem>>, vector<8x12xf32>
    %cst_129 = arith.constant dense<0.000000e+00> : vector<64x12xf32>
    %151 = tpu.matmul %149, %150, %cst_129 {dimension_numbers = #tpu.dot_dimension_numbers<[1], [0], [0], [1], [0, 0, 1, 1], [], []>} : vector<64x8xf32>, vector<8x12xf32>, vector<64x12xf32> -> vector<64x12xf32>
    %152 = arith.addf %147, %151 : vector<64x12xf32>
    %c0_130 = arith.constant 0 : index
    %c7_131 = arith.constant 7 : index
    %c0_132 = arith.constant 0 : index
    %153 = vector.load %arg5[%c0_130, %c7_131, %c0_132] : memref<2x80x128xf32, #tpu.memory_space<vmem>>, vector<2x32x8xf32>
    %154 = vector.shape_cast %153 : vector<2x32x8xf32> to vector<64x8xf32>
    %c392 = arith.constant 392 : index
    %c0_133 = arith.constant 0 : index
    %155 = vector.load %arg2[%c392, %c0_133] : memref<2424x128xf32, #tpu.memory_space<vmem>>, vector<8x12xf32>
    %cst_134 = arith.constant dense<0.000000e+00> : vector<64x12xf32>
    %156 = tpu.matmul %154, %155, %cst_134 {dimension_numbers = #tpu.dot_dimension_numbers<[1], [0], [0], [1], [0, 0, 1, 1], [], []>} : vector<64x8xf32>, vector<8x12xf32>, vector<64x12xf32> -> vector<64x12xf32>
    %157 = arith.addf %152, %156 : vector<64x12xf32>
    %c0_135 = arith.constant 0 : index
    %c8_136 = arith.constant 8 : index
    %c0_137 = arith.constant 0 : index
    %158 = vector.load %arg5[%c0_135, %c8_136, %c0_137] : memref<2x80x128xf32, #tpu.memory_space<vmem>>, vector<2x32x8xf32>
    %159 = vector.shape_cast %158 : vector<2x32x8xf32> to vector<64x8xf32>
    %c400 = arith.constant 400 : index
    %c0_138 = arith.constant 0 : index
    %160 = vector.load %arg2[%c400, %c0_138] : memref<2424x128xf32, #tpu.memory_space<vmem>>, vector<8x12xf32>
    %cst_139 = arith.constant dense<0.000000e+00> : vector<64x12xf32>
    %161 = tpu.matmul %159, %160, %cst_139 {dimension_numbers = #tpu.dot_dimension_numbers<[1], [0], [0], [1], [0, 0, 1, 1], [], []>} : vector<64x8xf32>, vector<8x12xf32>, vector<64x12xf32> -> vector<64x12xf32>
    %162 = arith.addf %157, %161 : vector<64x12xf32>
    %c0_140 = arith.constant 0 : index
    %c9_141 = arith.constant 9 : index
    %c0_142 = arith.constant 0 : index
    %163 = vector.load %arg5[%c0_140, %c9_141, %c0_142] : memref<2x80x128xf32, #tpu.memory_space<vmem>>, vector<2x32x8xf32>
    %164 = vector.shape_cast %163 : vector<2x32x8xf32> to vector<64x8xf32>
    %c408 = arith.constant 408 : index
    %c0_143 = arith.constant 0 : index
    %165 = vector.load %arg2[%c408, %c0_143] : memref<2424x128xf32, #tpu.memory_space<vmem>>, vector<8x12xf32>
    %cst_144 = arith.constant dense<0.000000e+00> : vector<64x12xf32>
    %166 = tpu.matmul %164, %165, %cst_144 {dimension_numbers = #tpu.dot_dimension_numbers<[1], [0], [0], [1], [0, 0, 1, 1], [], []>} : vector<64x8xf32>, vector<8x12xf32>, vector<64x12xf32> -> vector<64x12xf32>
    %167 = arith.addf %162, %166 : vector<64x12xf32>
    %c0_145 = arith.constant 0 : index
    %c10_146 = arith.constant 10 : index
    %c0_147 = arith.constant 0 : index
    %168 = vector.load %arg5[%c0_145, %c10_146, %c0_147] : memref<2x80x128xf32, #tpu.memory_space<vmem>>, vector<2x32x8xf32>
    %169 = vector.shape_cast %168 : vector<2x32x8xf32> to vector<64x8xf32>
    %c416 = arith.constant 416 : index
    %c0_148 = arith.constant 0 : index
    %170 = vector.load %arg2[%c416, %c0_148] : memref<2424x128xf32, #tpu.memory_space<vmem>>, vector<8x12xf32>
    %cst_149 = arith.constant dense<0.000000e+00> : vector<64x12xf32>
    %171 = tpu.matmul %169, %170, %cst_149 {dimension_numbers = #tpu.dot_dimension_numbers<[1], [0], [0], [1], [0, 0, 1, 1], [], []>} : vector<64x8xf32>, vector<8x12xf32>, vector<64x12xf32> -> vector<64x12xf32>
    %172 = arith.addf %167, %171 : vector<64x12xf32>
    %c0_150 = arith.constant 0 : index
    %c11_151 = arith.constant 11 : index
    %c0_152 = arith.constant 0 : index
    %173 = vector.load %arg5[%c0_150, %c11_151, %c0_152] : memref<2x80x128xf32, #tpu.memory_space<vmem>>, vector<2x32x8xf32>
    %174 = vector.shape_cast %173 : vector<2x32x8xf32> to vector<64x8xf32>
    %c424 = arith.constant 424 : index
    %c0_153 = arith.constant 0 : index
    %175 = vector.load %arg2[%c424, %c0_153] : memref<2424x128xf32, #tpu.memory_space<vmem>>, vector<8x12xf32>
    %cst_154 = arith.constant dense<0.000000e+00> : vector<64x12xf32>
    %176 = tpu.matmul %174, %175, %cst_154 {dimension_numbers = #tpu.dot_dimension_numbers<[1], [0], [0], [1], [0, 0, 1, 1], [], []>} : vector<64x8xf32>, vector<8x12xf32>, vector<64x12xf32> -> vector<64x12xf32>
    %177 = arith.addf %172, %176 : vector<64x12xf32>
    %178 = tpu.concatenate %124, %177 in 1 : vector<64x108xf32>, vector<64x12xf32> -> vector<64x120xf32>
    %c9_155 = arith.constant 9 : index
    %c0_156 = arith.constant 0 : index
    %179 = vector.load %arg3[%c9_155, %c0_156] : memref<30x128xf32, #tpu.memory_space<vmem>>, vector<1x120xf32>
    %c10_157 = arith.constant 10 : index
    %c0_158 = arith.constant 0 : index
    %180 = vector.load %arg3[%c10_157, %c0_158] : memref<30x128xf32, #tpu.memory_space<vmem>>, vector<1x120xf32>
    %c11_159 = arith.constant 11 : index
    %c0_160 = arith.constant 0 : index
    %181 = vector.load %arg3[%c11_159, %c0_160] : memref<30x128xf32, #tpu.memory_space<vmem>>, vector<1x60xf32>
    %182 = vector.broadcast %179 : vector<1x120xf32> to vector<64x120xf32>
    %183 = arith.mulf %178, %182 : vector<64x120xf32>
    %184 = vector.broadcast %180 : vector<1x120xf32> to vector<64x120xf32>
    %185 = arith.addf %183, %184 : vector<64x120xf32>
    %cst_161 = arith.constant 0.000000e+00 : f32
    %186 = vector.broadcast %cst_161 : f32 to vector<64x120xf32>
    %187 = arith.maximumf %185, %186 : vector<64x120xf32>
    %188 = vector.shape_cast %187 : vector<64x120xf32> to vector<2x32x120xf32>
    %c0_162 = arith.constant 0 : index
    %c8_163 = arith.constant 8 : index
    %c0_164 = arith.constant 0 : index
    %189 = vector.load %arg5[%c0_162, %c8_163, %c0_164] : memref<2x80x128xf32, #tpu.memory_space<vmem>>, vector<2x32x120xf32>
    tpu.vector_store %arg5[%c0_162, %c8_163, %c0_164], %188 {strides = array<i32>} : memref<2x80x128xf32, #tpu.memory_space<vmem>>, vector<2x32x120xf32>,
    %cst_165 = arith.constant 0.000000e+00 : f32
    %190 = vector.broadcast %cst_165 : f32 to vector<64x60xf32>
    %c0_166 = arith.constant 0 : index
    %c5_167 = arith.constant 5 : index
    %c0_168 = arith.constant 0 : index
    %191 = vector.load %arg5[%c0_166, %c5_167, %c0_168] : memref<2x80x128xf32, #tpu.memory_space<vmem>>, vector<2x32x120xf32>
    %192 = vector.shape_cast %191 : vector<2x32x120xf32> to vector<64x120xf32>
    %c432 = arith.constant 432 : index
    %c0_169 = arith.constant 0 : index
    %193 = vector.load %arg2[%c432, %c0_169] : memref<2424x128xf32, #tpu.memory_space<vmem>>, vector<120x60xf32>
    %cst_170 = arith.constant dense<0.000000e+00> : vector<64x60xf32>
    %194 = tpu.matmul %192, %193, %cst_170 {dimension_numbers = #tpu.dot_dimension_numbers<[1], [0], [0], [1], [0, 0, 1, 1], [], []>} : vector<64x120xf32>, vector<120x60xf32>, vector<64x60xf32> -> vector<64x60xf32>
    %195 = arith.addf %190, %194 : vector<64x60xf32>
    %c0_171 = arith.constant 0 : index
    %c6_172 = arith.constant 6 : index
    %c0_173 = arith.constant 0 : index
    %196 = vector.load %arg5[%c0_171, %c6_172, %c0_173] : memref<2x80x128xf32, #tpu.memory_space<vmem>>, vector<2x32x120xf32>
    %197 = vector.shape_cast %196 : vector<2x32x120xf32> to vector<64x120xf32>
    %c552 = arith.constant 552 : index
    %c0_174 = arith.constant 0 : index
    %198 = vector.load %arg2[%c552, %c0_174] : memref<2424x128xf32, #tpu.memory_space<vmem>>, vector<120x60xf32>
    %cst_175 = arith.constant dense<0.000000e+00> : vector<64x60xf32>
    %199 = tpu.matmul %197, %198, %cst_175 {dimension_numbers = #tpu.dot_dimension_numbers<[1], [0], [0], [1], [0, 0, 1, 1], [], []>} : vector<64x120xf32>, vector<120x60xf32>, vector<64x60xf32> -> vector<64x60xf32>
    %200 = arith.addf %195, %199 : vector<64x60xf32>
    %c0_176 = arith.constant 0 : index
    %c7_177 = arith.constant 7 : index
    %c0_178 = arith.constant 0 : index
    %201 = vector.load %arg5[%c0_176, %c7_177, %c0_178] : memref<2x80x128xf32, #tpu.memory_space<vmem>>, vector<2x32x120xf32>
    %202 = vector.shape_cast %201 : vector<2x32x120xf32> to vector<64x120xf32>
    %c672 = arith.constant 672 : index
    %c0_179 = arith.constant 0 : index
    %203 = vector.load %arg2[%c672, %c0_179] : memref<2424x128xf32, #tpu.memory_space<vmem>>, vector<120x60xf32>
    %cst_180 = arith.constant dense<0.000000e+00> : vector<64x60xf32>
    %204 = tpu.matmul %202, %203, %cst_180 {dimension_numbers = #tpu.dot_dimension_numbers<[1], [0], [0], [1], [0, 0, 1, 1], [], []>} : vector<64x120xf32>, vector<120x60xf32>, vector<64x60xf32> -> vector<64x60xf32>
    %205 = arith.addf %200, %204 : vector<64x60xf32>
    %c0_181 = arith.constant 0 : index
    %c8_182 = arith.constant 8 : index
    %c0_183 = arith.constant 0 : index
    %206 = vector.load %arg5[%c0_181, %c8_182, %c0_183] : memref<2x80x128xf32, #tpu.memory_space<vmem>>, vector<2x32x120xf32>
    %207 = vector.shape_cast %206 : vector<2x32x120xf32> to vector<64x120xf32>
    %c792 = arith.constant 792 : index
    %c0_184 = arith.constant 0 : index
    %208 = vector.load %arg2[%c792, %c0_184] : memref<2424x128xf32, #tpu.memory_space<vmem>>, vector<120x60xf32>
    %cst_185 = arith.constant dense<0.000000e+00> : vector<64x60xf32>
    %209 = tpu.matmul %207, %208, %cst_185 {dimension_numbers = #tpu.dot_dimension_numbers<[1], [0], [0], [1], [0, 0, 1, 1], [], []>} : vector<64x120xf32>, vector<120x60xf32>, vector<64x60xf32> -> vector<64x60xf32>
    %210 = arith.addf %205, %209 : vector<64x60xf32>
    %c0_186 = arith.constant 0 : index
    %c9_187 = arith.constant 9 : index
    %c0_188 = arith.constant 0 : index
    %211 = vector.load %arg5[%c0_186, %c9_187, %c0_188] : memref<2x80x128xf32, #tpu.memory_space<vmem>>, vector<2x32x120xf32>
    %212 = vector.shape_cast %211 : vector<2x32x120xf32> to vector<64x120xf32>
    %c912 = arith.constant 912 : index
    %c0_189 = arith.constant 0 : index
    %213 = vector.load %arg2[%c912, %c0_189] : memref<2424x128xf32, #tpu.memory_space<vmem>>, vector<120x60xf32>
    %cst_190 = arith.constant dense<0.000000e+00> : vector<64x60xf32>
    %214 = tpu.matmul %212, %213, %cst_190 {dimension_numbers = #tpu.dot_dimension_numbers<[1], [0], [0], [1], [0, 0, 1, 1], [], []>} : vector<64x120xf32>, vector<120x60xf32>, vector<64x60xf32> -> vector<64x60xf32>
    %215 = arith.addf %210, %214 : vector<64x60xf32>
    %c0_191 = arith.constant 0 : index
    %c10_192 = arith.constant 10 : index
    %c0_193 = arith.constant 0 : index
    %216 = vector.load %arg5[%c0_191, %c10_192, %c0_193] : memref<2x80x128xf32, #tpu.memory_space<vmem>>, vector<2x32x120xf32>
    %217 = vector.shape_cast %216 : vector<2x32x120xf32> to vector<64x120xf32>
    %c1032 = arith.constant 1032 : index
    %c0_194 = arith.constant 0 : index
    %218 = vector.load %arg2[%c1032, %c0_194] : memref<2424x128xf32, #tpu.memory_space<vmem>>, vector<120x60xf32>
    %cst_195 = arith.constant dense<0.000000e+00> : vector<64x60xf32>
    %219 = tpu.matmul %217, %218, %cst_195 {dimension_numbers = #tpu.dot_dimension_numbers<[1], [0], [0], [1], [0, 0, 1, 1], [], []>} : vector<64x120xf32>, vector<120x60xf32>, vector<64x60xf32> -> vector<64x60xf32>
    %220 = arith.addf %215, %219 : vector<64x60xf32>
    %c0_196 = arith.constant 0 : index
    %c11_197 = arith.constant 11 : index
    %c0_198 = arith.constant 0 : index
    %221 = vector.load %arg5[%c0_196, %c11_197, %c0_198] : memref<2x80x128xf32, #tpu.memory_space<vmem>>, vector<2x32x120xf32>
    %222 = vector.shape_cast %221 : vector<2x32x120xf32> to vector<64x120xf32>
    %c1152 = arith.constant 1152 : index
    %c0_199 = arith.constant 0 : index
    %223 = vector.load %arg2[%c1152, %c0_199] : memref<2424x128xf32, #tpu.memory_space<vmem>>, vector<120x60xf32>
    %cst_200 = arith.constant dense<0.000000e+00> : vector<64x60xf32>
    %224 = tpu.matmul %222, %223, %cst_200 {dimension_numbers = #tpu.dot_dimension_numbers<[1], [0], [0], [1], [0, 0, 1, 1], [], []>} : vector<64x120xf32>, vector<120x60xf32>, vector<64x60xf32> -> vector<64x60xf32>
    %225 = arith.addf %220, %224 : vector<64x60xf32>
    %226 = vector.broadcast %181 : vector<1x60xf32> to vector<64x60xf32>
    %227 = arith.addf %225, %226 : vector<64x60xf32>
    %cst_201 = arith.constant 0.000000e+00 : f32
    %228 = vector.broadcast %cst_201 : f32 to vector<64x60xf32>
    %229 = arith.maximumf %227, %228 : vector<64x60xf32>
    %230 = vector.shape_cast %229 : vector<64x60xf32> to vector<2x16x2x60xf32>
    %231 = vector.extract_strided_slice %230 {offsets = [0, 0, 0, 0], sizes = [2, 16, 1, 60], strides = [1, 1, 1, 1]} : vector<2x16x2x60xf32> to vector<2x16x1x60xf32>
    %232 = vector.shape_cast %231 : vector<2x16x1x60xf32> to vector<2x16x60xf32>
    %233 = vector.extract_strided_slice %230 {offsets = [0, 0, 1, 0], sizes = [2, 16, 1, 60], strides = [1, 1, 1, 1]} : vector<2x16x2x60xf32> to vector<2x16x1x60xf32>
    %234 = vector.shape_cast %233 : vector<2x16x1x60xf32> to vector<2x16x60xf32>
    %235 = arith.addf %232, %234 : vector<2x16x60xf32>
    %cst_202 = arith.constant 5.000000e-01 : f32
    %236 = vector.broadcast %cst_202 : f32 to vector<2x16x60xf32>
    %237 = arith.mulf %235, %236 : vector<2x16x60xf32>
    %238 = vector.shape_cast %237 : vector<2x16x60xf32> to vector<32x60xf32>
    %cst_203 = arith.constant 0.000000e+00 : f32
    %239 = vector.broadcast %cst_203 : f32 to vector<2x8x128xf32>
    %c0_204 = arith.constant 0 : index
    %c24 = arith.constant 24 : index
    %c0_205 = arith.constant 0 : index
    %240 = vector.load %arg5[%c0_204, %c24, %c0_205] : memref<2x80x128xf32, #tpu.memory_space<vmem>>, vector<2x8x128xf32>
    tpu.vector_store %arg5[%c0_204, %c24, %c0_205], %239 {strides = array<i32>} : memref<2x80x128xf32, #tpu.memory_space<vmem>>, vector<2x8x128xf32>,
    %c12 = arith.constant 12 : index
    %c0_206 = arith.constant 0 : index
    %241 = vector.load %arg3[%c12, %c0_206] : memref<30x128xf32, #tpu.memory_space<vmem>>, vector<1x60xf32>
    %c13 = arith.constant 13 : index
    %c0_207 = arith.constant 0 : index
    %242 = vector.load %arg3[%c13, %c0_207] : memref<30x128xf32, #tpu.memory_space<vmem>>, vector<1x60xf32>
    %c1272 = arith.constant 1272 : index
    %c0_208 = arith.constant 0 : index
    %243 = vector.load %arg2[%c1272, %c0_208] : memref<2424x128xf32, #tpu.memory_space<vmem>>, vector<60x8xf32>
    %c14 = arith.constant 14 : index
    %c0_209 = arith.constant 0 : index
    %244 = vector.load %arg3[%c14, %c0_209] : memref<30x128xf32, #tpu.memory_space<vmem>>, vector<1x8xf32>
    %245 = vector.broadcast %241 : vector<1x60xf32> to vector<32x60xf32>
    %246 = arith.mulf %238, %245 : vector<32x60xf32>
    %247 = vector.broadcast %242 : vector<1x60xf32> to vector<32x60xf32>
    %248 = arith.addf %246, %247 : vector<32x60xf32>
    %cst_210 = arith.constant 0.000000e+00 : f32
    %249 = vector.broadcast %cst_210 : f32 to vector<32x60xf32>
    %250 = arith.maximumf %248, %249 : vector<32x60xf32>
    %cst_211 = arith.constant dense<0.000000e+00> : vector<32x8xf32>
    %251 = tpu.matmul %250, %243, %cst_211 {dimension_numbers = #tpu.dot_dimension_numbers<[1], [0], [0], [1], [0, 0, 1, 1], [], []>} : vector<32x60xf32>, vector<60x8xf32>, vector<32x8xf32> -> vector<32x8xf32>
    %252 = vector.broadcast %244 : vector<1x8xf32> to vector<32x8xf32>
    %253 = arith.addf %251, %252 : vector<32x8xf32>
    %cst_212 = arith.constant 0.000000e+00 : f32
    %254 = vector.broadcast %cst_212 : f32 to vector<32x8xf32>
    %255 = arith.maximumf %253, %254 : vector<32x8xf32>
    %256 = vector.shape_cast %255 : vector<32x8xf32> to vector<2x16x8xf32>
    %c0_213 = arith.constant 0 : index
    %c8_214 = arith.constant 8 : index
    %c0_215 = arith.constant 0 : index
    %257 = vector.load %arg5[%c0_213, %c8_214, %c0_215] : memref<2x80x128xf32, #tpu.memory_space<vmem>>, vector<2x16x8xf32>
    tpu.vector_store %arg5[%c0_213, %c8_214, %c0_215], %256 {strides = array<i32>} : memref<2x80x128xf32, #tpu.memory_space<vmem>>, vector<2x16x8xf32>,
    %cst_216 = arith.constant 0.000000e+00 : f32
    %258 = vector.broadcast %cst_216 : f32 to vector<32x12xf32>
    %c0_217 = arith.constant 0 : index
    %c5_218 = arith.constant 5 : index
    %c0_219 = arith.constant 0 : index
    %259 = vector.load %arg5[%c0_217, %c5_218, %c0_219] : memref<2x80x128xf32, #tpu.memory_space<vmem>>, vector<2x16x8xf32>
    %260 = vector.shape_cast %259 : vector<2x16x8xf32> to vector<32x8xf32>
    %c1336 = arith.constant 1336 : index
    %c0_220 = arith.constant 0 : index
    %261 = vector.load %arg2[%c1336, %c0_220] : memref<2424x128xf32, #tpu.memory_space<vmem>>, vector<8x12xf32>
    %cst_221 = arith.constant dense<0.000000e+00> : vector<32x12xf32>
    %262 = tpu.matmul %260, %261, %cst_221 {dimension_numbers = #tpu.dot_dimension_numbers<[1], [0], [0], [1], [0, 0, 1, 1], [], []>} : vector<32x8xf32>, vector<8x12xf32>, vector<32x12xf32> -> vector<32x12xf32>
    %263 = arith.addf %258, %262 : vector<32x12xf32>
    %c0_222 = arith.constant 0 : index
    %c6_223 = arith.constant 6 : index
    %c0_224 = arith.constant 0 : index
    %264 = vector.load %arg5[%c0_222, %c6_223, %c0_224] : memref<2x80x128xf32, #tpu.memory_space<vmem>>, vector<2x16x8xf32>
    %265 = vector.shape_cast %264 : vector<2x16x8xf32> to vector<32x8xf32>
    %c1344 = arith.constant 1344 : index
    %c0_225 = arith.constant 0 : index
    %266 = vector.load %arg2[%c1344, %c0_225] : memref<2424x128xf32, #tpu.memory_space<vmem>>, vector<8x12xf32>
    %cst_226 = arith.constant dense<0.000000e+00> : vector<32x12xf32>
    %267 = tpu.matmul %265, %266, %cst_226 {dimension_numbers = #tpu.dot_dimension_numbers<[1], [0], [0], [1], [0, 0, 1, 1], [], []>} : vector<32x8xf32>, vector<8x12xf32>, vector<32x12xf32> -> vector<32x12xf32>
    %268 = arith.addf %263, %267 : vector<32x12xf32>
    %c0_227 = arith.constant 0 : index
    %c7_228 = arith.constant 7 : index
    %c0_229 = arith.constant 0 : index
    %269 = vector.load %arg5[%c0_227, %c7_228, %c0_229] : memref<2x80x128xf32, #tpu.memory_space<vmem>>, vector<2x16x8xf32>
    %270 = vector.shape_cast %269 : vector<2x16x8xf32> to vector<32x8xf32>
    %c1352 = arith.constant 1352 : index
    %c0_230 = arith.constant 0 : index
    %271 = vector.load %arg2[%c1352, %c0_230] : memref<2424x128xf32, #tpu.memory_space<vmem>>, vector<8x12xf32>
    %cst_231 = arith.constant dense<0.000000e+00> : vector<32x12xf32>
    %272 = tpu.matmul %270, %271, %cst_231 {dimension_numbers = #tpu.dot_dimension_numbers<[1], [0], [0], [1], [0, 0, 1, 1], [], []>} : vector<32x8xf32>, vector<8x12xf32>, vector<32x12xf32> -> vector<32x12xf32>
    %273 = arith.addf %268, %272 : vector<32x12xf32>
    %c0_232 = arith.constant 0 : index
    %c8_233 = arith.constant 8 : index
    %c0_234 = arith.constant 0 : index
    %274 = vector.load %arg5[%c0_232, %c8_233, %c0_234] : memref<2x80x128xf32, #tpu.memory_space<vmem>>, vector<2x16x8xf32>
    %275 = vector.shape_cast %274 : vector<2x16x8xf32> to vector<32x8xf32>
    %c1360 = arith.constant 1360 : index
    %c0_235 = arith.constant 0 : index
    %276 = vector.load %arg2[%c1360, %c0_235] : memref<2424x128xf32, #tpu.memory_space<vmem>>, vector<8x12xf32>
    %cst_236 = arith.constant dense<0.000000e+00> : vector<32x12xf32>
    %277 = tpu.matmul %275, %276, %cst_236 {dimension_numbers = #tpu.dot_dimension_numbers<[1], [0], [0], [1], [0, 0, 1, 1], [], []>} : vector<32x8xf32>, vector<8x12xf32>, vector<32x12xf32> -> vector<32x12xf32>
    %278 = arith.addf %273, %277 : vector<32x12xf32>
    %c0_237 = arith.constant 0 : index
    %c9_238 = arith.constant 9 : index
    %c0_239 = arith.constant 0 : index
    %279 = vector.load %arg5[%c0_237, %c9_238, %c0_239] : memref<2x80x128xf32, #tpu.memory_space<vmem>>, vector<2x16x8xf32>
    %280 = vector.shape_cast %279 : vector<2x16x8xf32> to vector<32x8xf32>
    %c1368 = arith.constant 1368 : index
    %c0_240 = arith.constant 0 : index
    %281 = vector.load %arg2[%c1368, %c0_240] : memref<2424x128xf32, #tpu.memory_space<vmem>>, vector<8x12xf32>
    %cst_241 = arith.constant dense<0.000000e+00> : vector<32x12xf32>
    %282 = tpu.matmul %280, %281, %cst_241 {dimension_numbers = #tpu.dot_dimension_numbers<[1], [0], [0], [1], [0, 0, 1, 1], [], []>} : vector<32x8xf32>, vector<8x12xf32>, vector<32x12xf32> -> vector<32x12xf32>
    %283 = arith.addf %278, %282 : vector<32x12xf32>
    %c0_242 = arith.constant 0 : index
    %c10_243 = arith.constant 10 : index
    %c0_244 = arith.constant 0 : index
    %284 = vector.load %arg5[%c0_242, %c10_243, %c0_244] : memref<2x80x128xf32, #tpu.memory_space<vmem>>, vector<2x16x8xf32>
    %285 = vector.shape_cast %284 : vector<2x16x8xf32> to vector<32x8xf32>
    %c1376 = arith.constant 1376 : index
    %c0_245 = arith.constant 0 : index
    %286 = vector.load %arg2[%c1376, %c0_245] : memref<2424x128xf32, #tpu.memory_space<vmem>>, vector<8x12xf32>
    %cst_246 = arith.constant dense<0.000000e+00> : vector<32x12xf32>
    %287 = tpu.matmul %285, %286, %cst_246 {dimension_numbers = #tpu.dot_dimension_numbers<[1], [0], [0], [1], [0, 0, 1, 1], [], []>} : vector<32x8xf32>, vector<8x12xf32>, vector<32x12xf32> -> vector<32x12xf32>
    %288 = arith.addf %283, %287 : vector<32x12xf32>
    %c0_247 = arith.constant 0 : index
    %c11_248 = arith.constant 11 : index
    %c0_249 = arith.constant 0 : index
    %289 = vector.load %arg5[%c0_247, %c11_248, %c0_249] : memref<2x80x128xf32, #tpu.memory_space<vmem>>, vector<2x16x8xf32>
    %290 = vector.shape_cast %289 : vector<2x16x8xf32> to vector<32x8xf32>
    %c1384 = arith.constant 1384 : index
    %c0_250 = arith.constant 0 : index
    %291 = vector.load %arg2[%c1384, %c0_250] : memref<2424x128xf32, #tpu.memory_space<vmem>>, vector<8x12xf32>
    %cst_251 = arith.constant dense<0.000000e+00> : vector<32x12xf32>
    %292 = tpu.matmul %290, %291, %cst_251 {dimension_numbers = #tpu.dot_dimension_numbers<[1], [0], [0], [1], [0, 0, 1, 1], [], []>} : vector<32x8xf32>, vector<8x12xf32>, vector<32x12xf32> -> vector<32x12xf32>
    %293 = arith.addf %288, %292 : vector<32x12xf32>
    %294 = tpu.concatenate %238, %293 in 1 : vector<32x60xf32>, vector<32x12xf32> -> vector<32x72xf32>
    %c15 = arith.constant 15 : index
    %c0_252 = arith.constant 0 : index
    %295 = vector.load %arg3[%c15, %c0_252] : memref<30x128xf32, #tpu.memory_space<vmem>>, vector<1x72xf32>
    %c16_253 = arith.constant 16 : index
    %c0_254 = arith.constant 0 : index
    %296 = vector.load %arg3[%c16_253, %c0_254] : memref<30x128xf32, #tpu.memory_space<vmem>>, vector<1x72xf32>
    %c1392 = arith.constant 1392 : index
    %c0_255 = arith.constant 0 : index
    %297 = vector.load %arg2[%c1392, %c0_255] : memref<2424x128xf32, #tpu.memory_space<vmem>>, vector<72x8xf32>
    %c17 = arith.constant 17 : index
    %c0_256 = arith.constant 0 : index
    %298 = vector.load %arg3[%c17, %c0_256] : memref<30x128xf32, #tpu.memory_space<vmem>>, vector<1x8xf32>
    %299 = vector.broadcast %295 : vector<1x72xf32> to vector<32x72xf32>
    %300 = arith.mulf %294, %299 : vector<32x72xf32>
    %301 = vector.broadcast %296 : vector<1x72xf32> to vector<32x72xf32>
    %302 = arith.addf %300, %301 : vector<32x72xf32>
    %cst_257 = arith.constant 0.000000e+00 : f32
    %303 = vector.broadcast %cst_257 : f32 to vector<32x72xf32>
    %304 = arith.maximumf %302, %303 : vector<32x72xf32>
    %cst_258 = arith.constant dense<0.000000e+00> : vector<32x8xf32>
    %305 = tpu.matmul %304, %297, %cst_258 {dimension_numbers = #tpu.dot_dimension_numbers<[1], [0], [0], [1], [0, 0, 1, 1], [], []>} : vector<32x72xf32>, vector<72x8xf32>, vector<32x8xf32> -> vector<32x8xf32>
    %306 = vector.broadcast %298 : vector<1x8xf32> to vector<32x8xf32>
    %307 = arith.addf %305, %306 : vector<32x8xf32>
    %cst_259 = arith.constant 0.000000e+00 : f32
    %308 = vector.broadcast %cst_259 : f32 to vector<32x8xf32>
    %309 = arith.maximumf %307, %308 : vector<32x8xf32>
    %310 = vector.shape_cast %309 : vector<32x8xf32> to vector<2x16x8xf32>
    %c0_260 = arith.constant 0 : index
    %c8_261 = arith.constant 8 : index
    %c0_262 = arith.constant 0 : index
    %311 = vector.load %arg5[%c0_260, %c8_261, %c0_262] : memref<2x80x128xf32, #tpu.memory_space<vmem>>, vector<2x16x8xf32>
    tpu.vector_store %arg5[%c0_260, %c8_261, %c0_262], %310 {strides = array<i32>} : memref<2x80x128xf32, #tpu.memory_space<vmem>>, vector<2x16x8xf32>,
    %cst_263 = arith.constant 0.000000e+00 : f32
    %312 = vector.broadcast %cst_263 : f32 to vector<32x12xf32>
    %c0_264 = arith.constant 0 : index
    %c5_265 = arith.constant 5 : index
    %c0_266 = arith.constant 0 : index
    %313 = vector.load %arg5[%c0_264, %c5_265, %c0_266] : memref<2x80x128xf32, #tpu.memory_space<vmem>>, vector<2x16x8xf32>
    %314 = vector.shape_cast %313 : vector<2x16x8xf32> to vector<32x8xf32>
    %c1464 = arith.constant 1464 : index
    %c0_267 = arith.constant 0 : index
    %315 = vector.load %arg2[%c1464, %c0_267] : memref<2424x128xf32, #tpu.memory_space<vmem>>, vector<8x12xf32>
    %cst_268 = arith.constant dense<0.000000e+00> : vector<32x12xf32>
    %316 = tpu.matmul %314, %315, %cst_268 {dimension_numbers = #tpu.dot_dimension_numbers<[1], [0], [0], [1], [0, 0, 1, 1], [], []>} : vector<32x8xf32>, vector<8x12xf32>, vector<32x12xf32> -> vector<32x12xf32>
    %317 = arith.addf %312, %316 : vector<32x12xf32>
    %c0_269 = arith.constant 0 : index
    %c6_270 = arith.constant 6 : index
    %c0_271 = arith.constant 0 : index
    %318 = vector.load %arg5[%c0_269, %c6_270, %c0_271] : memref<2x80x128xf32, #tpu.memory_space<vmem>>, vector<2x16x8xf32>
    %319 = vector.shape_cast %318 : vector<2x16x8xf32> to vector<32x8xf32>
    %c1472 = arith.constant 1472 : index
    %c0_272 = arith.constant 0 : index
    %320 = vector.load %arg2[%c1472, %c0_272] : memref<2424x128xf32, #tpu.memory_space<vmem>>, vector<8x12xf32>
    %cst_273 = arith.constant dense<0.000000e+00> : vector<32x12xf32>
    %321 = tpu.matmul %319, %320, %cst_273 {dimension_numbers = #tpu.dot_dimension_numbers<[1], [0], [0], [1], [0, 0, 1, 1], [], []>} : vector<32x8xf32>, vector<8x12xf32>, vector<32x12xf32> -> vector<32x12xf32>
    %322 = arith.addf %317, %321 : vector<32x12xf32>
    %c0_274 = arith.constant 0 : index
    %c7_275 = arith.constant 7 : index
    %c0_276 = arith.constant 0 : index
    %323 = vector.load %arg5[%c0_274, %c7_275, %c0_276] : memref<2x80x128xf32, #tpu.memory_space<vmem>>, vector<2x16x8xf32>
    %324 = vector.shape_cast %323 : vector<2x16x8xf32> to vector<32x8xf32>
    %c1480 = arith.constant 1480 : index
    %c0_277 = arith.constant 0 : index
    %325 = vector.load %arg2[%c1480, %c0_277] : memref<2424x128xf32, #tpu.memory_space<vmem>>, vector<8x12xf32>
    %cst_278 = arith.constant dense<0.000000e+00> : vector<32x12xf32>
    %326 = tpu.matmul %324, %325, %cst_278 {dimension_numbers = #tpu.dot_dimension_numbers<[1], [0], [0], [1], [0, 0, 1, 1], [], []>} : vector<32x8xf32>, vector<8x12xf32>, vector<32x12xf32> -> vector<32x12xf32>
    %327 = arith.addf %322, %326 : vector<32x12xf32>
    %c0_279 = arith.constant 0 : index
    %c8_280 = arith.constant 8 : index
    %c0_281 = arith.constant 0 : index
    %328 = vector.load %arg5[%c0_279, %c8_280, %c0_281] : memref<2x80x128xf32, #tpu.memory_space<vmem>>, vector<2x16x8xf32>
    %329 = vector.shape_cast %328 : vector<2x16x8xf32> to vector<32x8xf32>
    %c1488 = arith.constant 1488 : index
    %c0_282 = arith.constant 0 : index
    %330 = vector.load %arg2[%c1488, %c0_282] : memref<2424x128xf32, #tpu.memory_space<vmem>>, vector<8x12xf32>
    %cst_283 = arith.constant dense<0.000000e+00> : vector<32x12xf32>
    %331 = tpu.matmul %329, %330, %cst_283 {dimension_numbers = #tpu.dot_dimension_numbers<[1], [0], [0], [1], [0, 0, 1, 1], [], []>} : vector<32x8xf32>, vector<8x12xf32>, vector<32x12xf32> -> vector<32x12xf32>
    %332 = arith.addf %327, %331 : vector<32x12xf32>
    %c0_284 = arith.constant 0 : index
    %c9_285 = arith.constant 9 : index
    %c0_286 = arith.constant 0 : index
    %333 = vector.load %arg5[%c0_284, %c9_285, %c0_286] : memref<2x80x128xf32, #tpu.memory_space<vmem>>, vector<2x16x8xf32>
    %334 = vector.shape_cast %333 : vector<2x16x8xf32> to vector<32x8xf32>
    %c1496 = arith.constant 1496 : index
    %c0_287 = arith.constant 0 : index
    %335 = vector.load %arg2[%c1496, %c0_287] : memref<2424x128xf32, #tpu.memory_space<vmem>>, vector<8x12xf32>
    %cst_288 = arith.constant dense<0.000000e+00> : vector<32x12xf32>
    %336 = tpu.matmul %334, %335, %cst_288 {dimension_numbers = #tpu.dot_dimension_numbers<[1], [0], [0], [1], [0, 0, 1, 1], [], []>} : vector<32x8xf32>, vector<8x12xf32>, vector<32x12xf32> -> vector<32x12xf32>
    %337 = arith.addf %332, %336 : vector<32x12xf32>
    %c0_289 = arith.constant 0 : index
    %c10_290 = arith.constant 10 : index
    %c0_291 = arith.constant 0 : index
    %338 = vector.load %arg5[%c0_289, %c10_290, %c0_291] : memref<2x80x128xf32, #tpu.memory_space<vmem>>, vector<2x16x8xf32>
    %339 = vector.shape_cast %338 : vector<2x16x8xf32> to vector<32x8xf32>
    %c1504 = arith.constant 1504 : index
    %c0_292 = arith.constant 0 : index
    %340 = vector.load %arg2[%c1504, %c0_292] : memref<2424x128xf32, #tpu.memory_space<vmem>>, vector<8x12xf32>
    %cst_293 = arith.constant dense<0.000000e+00> : vector<32x12xf32>
    %341 = tpu.matmul %339, %340, %cst_293 {dimension_numbers = #tpu.dot_dimension_numbers<[1], [0], [0], [1], [0, 0, 1, 1], [], []>} : vector<32x8xf32>, vector<8x12xf32>, vector<32x12xf32> -> vector<32x12xf32>
    %342 = arith.addf %337, %341 : vector<32x12xf32>
    %c0_294 = arith.constant 0 : index
    %c11_295 = arith.constant 11 : index
    %c0_296 = arith.constant 0 : index
    %343 = vector.load %arg5[%c0_294, %c11_295, %c0_296] : memref<2x80x128xf32, #tpu.memory_space<vmem>>, vector<2x16x8xf32>
    %344 = vector.shape_cast %343 : vector<2x16x8xf32> to vector<32x8xf32>
    %c1512 = arith.constant 1512 : index
    %c0_297 = arith.constant 0 : index
    %345 = vector.load %arg2[%c1512, %c0_297] : memref<2424x128xf32, #tpu.memory_space<vmem>>, vector<8x12xf32>
    %cst_298 = arith.constant dense<0.000000e+00> : vector<32x12xf32>
    %346 = tpu.matmul %344, %345, %cst_298 {dimension_numbers = #tpu.dot_dimension_numbers<[1], [0], [0], [1], [0, 0, 1, 1], [], []>} : vector<32x8xf32>, vector<8x12xf32>, vector<32x12xf32> -> vector<32x12xf32>
    %347 = arith.addf %342, %346 : vector<32x12xf32>
    %348 = tpu.concatenate %294, %347 in 1 : vector<32x72xf32>, vector<32x12xf32> -> vector<32x84xf32>
    %c18 = arith.constant 18 : index
    %c0_299 = arith.constant 0 : index
    %349 = vector.load %arg3[%c18, %c0_299] : memref<30x128xf32, #tpu.memory_space<vmem>>, vector<1x84xf32>
    %c19 = arith.constant 19 : index
    %c0_300 = arith.constant 0 : index
    %350 = vector.load %arg3[%c19, %c0_300] : memref<30x128xf32, #tpu.memory_space<vmem>>, vector<1x84xf32>
    %c20 = arith.constant 20 : index
    %c0_301 = arith.constant 0 : index
    %351 = vector.load %arg3[%c20, %c0_301] : memref<30x128xf32, #tpu.memory_space<vmem>>, vector<1x42xf32>
    %352 = vector.broadcast %349 : vector<1x84xf32> to vector<32x84xf32>
    %353 = arith.mulf %348, %352 : vector<32x84xf32>
    %354 = vector.broadcast %350 : vector<1x84xf32> to vector<32x84xf32>
    %355 = arith.addf %353, %354 : vector<32x84xf32>
    %cst_302 = arith.constant 0.000000e+00 : f32
    %356 = vector.broadcast %cst_302 : f32 to vector<32x84xf32>
    %357 = arith.maximumf %355, %356 : vector<32x84xf32>
    %358 = vector.shape_cast %357 : vector<32x84xf32> to vector<2x16x84xf32>
    %c0_303 = arith.constant 0 : index
    %c8_304 = arith.constant 8 : index
    %c0_305 = arith.constant 0 : index
    %359 = vector.load %arg5[%c0_303, %c8_304, %c0_305] : memref<2x80x128xf32, #tpu.memory_space<vmem>>, vector<2x16x84xf32>
    tpu.vector_store %arg5[%c0_303, %c8_304, %c0_305], %358 {strides = array<i32>} : memref<2x80x128xf32, #tpu.memory_space<vmem>>, vector<2x16x84xf32>,
    %cst_306 = arith.constant 0.000000e+00 : f32
    %360 = vector.broadcast %cst_306 : f32 to vector<32x42xf32>
    %c0_307 = arith.constant 0 : index
    %c5_308 = arith.constant 5 : index
    %c0_309 = arith.constant 0 : index
    %361 = vector.load %arg5[%c0_307, %c5_308, %c0_309] : memref<2x80x128xf32, #tpu.memory_space<vmem>>, vector<2x16x84xf32>
    %362 = vector.shape_cast %361 : vector<2x16x84xf32> to vector<32x84xf32>
    %c1520 = arith.constant 1520 : index
    %c0_310 = arith.constant 0 : index
    %363 = vector.load %arg2[%c1520, %c0_310] : memref<2424x128xf32, #tpu.memory_space<vmem>>, vector<84x42xf32>
    %cst_311 = arith.constant dense<0.000000e+00> : vector<32x42xf32>
    %364 = tpu.matmul %362, %363, %cst_311 {dimension_numbers = #tpu.dot_dimension_numbers<[1], [0], [0], [1], [0, 0, 1, 1], [], []>} : vector<32x84xf32>, vector<84x42xf32>, vector<32x42xf32> -> vector<32x42xf32>
    %365 = arith.addf %360, %364 : vector<32x42xf32>
    %c0_312 = arith.constant 0 : index
    %c6_313 = arith.constant 6 : index
    %c0_314 = arith.constant 0 : index
    %366 = vector.load %arg5[%c0_312, %c6_313, %c0_314] : memref<2x80x128xf32, #tpu.memory_space<vmem>>, vector<2x16x84xf32>
    %367 = vector.shape_cast %366 : vector<2x16x84xf32> to vector<32x84xf32>
    %c1608 = arith.constant 1608 : index
    %c0_315 = arith.constant 0 : index
    %368 = vector.load %arg2[%c1608, %c0_315] : memref<2424x128xf32, #tpu.memory_space<vmem>>, vector<84x42xf32>
    %cst_316 = arith.constant dense<0.000000e+00> : vector<32x42xf32>
    %369 = tpu.matmul %367, %368, %cst_316 {dimension_numbers = #tpu.dot_dimension_numbers<[1], [0], [0], [1], [0, 0, 1, 1], [], []>} : vector<32x84xf32>, vector<84x42xf32>, vector<32x42xf32> -> vector<32x42xf32>
    %370 = arith.addf %365, %369 : vector<32x42xf32>
    %c0_317 = arith.constant 0 : index
    %c7_318 = arith.constant 7 : index
    %c0_319 = arith.constant 0 : index
    %371 = vector.load %arg5[%c0_317, %c7_318, %c0_319] : memref<2x80x128xf32, #tpu.memory_space<vmem>>, vector<2x16x84xf32>
    %372 = vector.shape_cast %371 : vector<2x16x84xf32> to vector<32x84xf32>
    %c1696 = arith.constant 1696 : index
    %c0_320 = arith.constant 0 : index
    %373 = vector.load %arg2[%c1696, %c0_320] : memref<2424x128xf32, #tpu.memory_space<vmem>>, vector<84x42xf32>
    %cst_321 = arith.constant dense<0.000000e+00> : vector<32x42xf32>
    %374 = tpu.matmul %372, %373, %cst_321 {dimension_numbers = #tpu.dot_dimension_numbers<[1], [0], [0], [1], [0, 0, 1, 1], [], []>} : vector<32x84xf32>, vector<84x42xf32>, vector<32x42xf32> -> vector<32x42xf32>
    %375 = arith.addf %370, %374 : vector<32x42xf32>
    %c0_322 = arith.constant 0 : index
    %c8_323 = arith.constant 8 : index
    %c0_324 = arith.constant 0 : index
    %376 = vector.load %arg5[%c0_322, %c8_323, %c0_324] : memref<2x80x128xf32, #tpu.memory_space<vmem>>, vector<2x16x84xf32>
    %377 = vector.shape_cast %376 : vector<2x16x84xf32> to vector<32x84xf32>
    %c1784 = arith.constant 1784 : index
    %c0_325 = arith.constant 0 : index
    %378 = vector.load %arg2[%c1784, %c0_325] : memref<2424x128xf32, #tpu.memory_space<vmem>>, vector<84x42xf32>
    %cst_326 = arith.constant dense<0.000000e+00> : vector<32x42xf32>
    %379 = tpu.matmul %377, %378, %cst_326 {dimension_numbers = #tpu.dot_dimension_numbers<[1], [0], [0], [1], [0, 0, 1, 1], [], []>} : vector<32x84xf32>, vector<84x42xf32>, vector<32x42xf32> -> vector<32x42xf32>
    %380 = arith.addf %375, %379 : vector<32x42xf32>
    %c0_327 = arith.constant 0 : index
    %c9_328 = arith.constant 9 : index
    %c0_329 = arith.constant 0 : index
    %381 = vector.load %arg5[%c0_327, %c9_328, %c0_329] : memref<2x80x128xf32, #tpu.memory_space<vmem>>, vector<2x16x84xf32>
    %382 = vector.shape_cast %381 : vector<2x16x84xf32> to vector<32x84xf32>
    %c1872 = arith.constant 1872 : index
    %c0_330 = arith.constant 0 : index
    %383 = vector.load %arg2[%c1872, %c0_330] : memref<2424x128xf32, #tpu.memory_space<vmem>>, vector<84x42xf32>
    %cst_331 = arith.constant dense<0.000000e+00> : vector<32x42xf32>
    %384 = tpu.matmul %382, %383, %cst_331 {dimension_numbers = #tpu.dot_dimension_numbers<[1], [0], [0], [1], [0, 0, 1, 1], [], []>} : vector<32x84xf32>, vector<84x42xf32>, vector<32x42xf32> -> vector<32x42xf32>
    %385 = arith.addf %380, %384 : vector<32x42xf32>
    %c0_332 = arith.constant 0 : index
    %c10_333 = arith.constant 10 : index
    %c0_334 = arith.constant 0 : index
    %386 = vector.load %arg5[%c0_332, %c10_333, %c0_334] : memref<2x80x128xf32, #tpu.memory_space<vmem>>, vector<2x16x84xf32>
    %387 = vector.shape_cast %386 : vector<2x16x84xf32> to vector<32x84xf32>
    %c1960 = arith.constant 1960 : index
    %c0_335 = arith.constant 0 : index
    %388 = vector.load %arg2[%c1960, %c0_335] : memref<2424x128xf32, #tpu.memory_space<vmem>>, vector<84x42xf32>
    %cst_336 = arith.constant dense<0.000000e+00> : vector<32x42xf32>
    %389 = tpu.matmul %387, %388, %cst_336 {dimension_numbers = #tpu.dot_dimension_numbers<[1], [0], [0], [1], [0, 0, 1, 1], [], []>} : vector<32x84xf32>, vector<84x42xf32>, vector<32x42xf32> -> vector<32x42xf32>
    %390 = arith.addf %385, %389 : vector<32x42xf32>
    %c0_337 = arith.constant 0 : index
    %c11_338 = arith.constant 11 : index
    %c0_339 = arith.constant 0 : index
    %391 = vector.load %arg5[%c0_337, %c11_338, %c0_339] : memref<2x80x128xf32, #tpu.memory_space<vmem>>, vector<2x16x84xf32>
    %392 = vector.shape_cast %391 : vector<2x16x84xf32> to vector<32x84xf32>
    %c2048 = arith.constant 2048 : index
    %c0_340 = arith.constant 0 : index
    %393 = vector.load %arg2[%c2048, %c0_340] : memref<2424x128xf32, #tpu.memory_space<vmem>>, vector<84x42xf32>
    %cst_341 = arith.constant dense<0.000000e+00> : vector<32x42xf32>
    %394 = tpu.matmul %392, %393, %cst_341 {dimension_numbers = #tpu.dot_dimension_numbers<[1], [0], [0], [1], [0, 0, 1, 1], [], []>} : vector<32x84xf32>, vector<84x42xf32>, vector<32x42xf32> -> vector<32x42xf32>
    %395 = arith.addf %390, %394 : vector<32x42xf32>
    %396 = vector.broadcast %351 : vector<1x42xf32> to vector<32x42xf32>
    %397 = arith.addf %395, %396 : vector<32x42xf32>
    %cst_342 = arith.constant 0.000000e+00 : f32
    %398 = vector.broadcast %cst_342 : f32 to vector<32x42xf32>
    %399 = arith.maximumf %397, %398 : vector<32x42xf32>
    %400 = vector.shape_cast %399 : vector<32x42xf32> to vector<2x8x2x42xf32>
    %401 = vector.extract_strided_slice %400 {offsets = [0, 0, 0, 0], sizes = [2, 8, 1, 42], strides = [1, 1, 1, 1]} : vector<2x8x2x42xf32> to vector<2x8x1x42xf32>
    %402 = vector.shape_cast %401 : vector<2x8x1x42xf32> to vector<2x8x42xf32>
    %403 = vector.extract_strided_slice %400 {offsets = [0, 0, 1, 0], sizes = [2, 8, 1, 42], strides = [1, 1, 1, 1]} : vector<2x8x2x42xf32> to vector<2x8x1x42xf32>
    %404 = vector.shape_cast %403 : vector<2x8x1x42xf32> to vector<2x8x42xf32>
    %405 = arith.addf %402, %404 : vector<2x8x42xf32>
    %cst_343 = arith.constant 5.000000e-01 : f32
    %406 = vector.broadcast %cst_343 : f32 to vector<2x8x42xf32>
    %407 = arith.mulf %405, %406 : vector<2x8x42xf32>
    %408 = vector.shape_cast %407 : vector<2x8x42xf32> to vector<16x42xf32>
    %cst_344 = arith.constant 0.000000e+00 : f32
    %409 = vector.broadcast %cst_344 : f32 to vector<2x8x128xf32>
    %c0_345 = arith.constant 0 : index
    %c16_346 = arith.constant 16 : index
    %c0_347 = arith.constant 0 : index
    %410 = vector.load %arg5[%c0_345, %c16_346, %c0_347] : memref<2x80x128xf32, #tpu.memory_space<vmem>>, vector<2x8x128xf32>
    tpu.vector_store %arg5[%c0_345, %c16_346, %c0_347], %409 {strides = array<i32>} : memref<2x80x128xf32, #tpu.memory_space<vmem>>, vector<2x8x128xf32>,
    %c21 = arith.constant 21 : index
    %c0_348 = arith.constant 0 : index
    %411 = vector.load %arg3[%c21, %c0_348] : memref<30x128xf32, #tpu.memory_space<vmem>>, vector<1x42xf32>
    %c22 = arith.constant 22 : index
    %c0_349 = arith.constant 0 : index
    %412 = vector.load %arg3[%c22, %c0_349] : memref<30x128xf32, #tpu.memory_space<vmem>>, vector<1x42xf32>
    %c2136 = arith.constant 2136 : index
    %c0_350 = arith.constant 0 : index
    %413 = vector.load %arg2[%c2136, %c0_350] : memref<2424x128xf32, #tpu.memory_space<vmem>>, vector<42x8xf32>
    %c23 = arith.constant 23 : index
    %c0_351 = arith.constant 0 : index
    %414 = vector.load %arg3[%c23, %c0_351] : memref<30x128xf32, #tpu.memory_space<vmem>>, vector<1x8xf32>
    %415 = vector.broadcast %411 : vector<1x42xf32> to vector<16x42xf32>
    %416 = arith.mulf %408, %415 : vector<16x42xf32>
    %417 = vector.broadcast %412 : vector<1x42xf32> to vector<16x42xf32>
    %418 = arith.addf %416, %417 : vector<16x42xf32>
    %cst_352 = arith.constant 0.000000e+00 : f32
    %419 = vector.broadcast %cst_352 : f32 to vector<16x42xf32>
    %420 = arith.maximumf %418, %419 : vector<16x42xf32>
    %cst_353 = arith.constant dense<0.000000e+00> : vector<16x8xf32>
    %421 = tpu.matmul %420, %413, %cst_353 {dimension_numbers = #tpu.dot_dimension_numbers<[1], [0], [0], [1], [0, 0, 1, 1], [], []>} : vector<16x42xf32>, vector<42x8xf32>, vector<16x8xf32> -> vector<16x8xf32>
    %422 = vector.broadcast %414 : vector<1x8xf32> to vector<16x8xf32>
    %423 = arith.addf %421, %422 : vector<16x8xf32>
    %cst_354 = arith.constant 0.000000e+00 : f32
    %424 = vector.broadcast %cst_354 : f32 to vector<16x8xf32>
    %425 = arith.maximumf %423, %424 : vector<16x8xf32>
    %426 = vector.shape_cast %425 : vector<16x8xf32> to vector<2x8x8xf32>
    %c0_355 = arith.constant 0 : index
    %c8_356 = arith.constant 8 : index
    %c0_357 = arith.constant 0 : index
    %427 = vector.load %arg5[%c0_355, %c8_356, %c0_357] : memref<2x80x128xf32, #tpu.memory_space<vmem>>, vector<2x8x8xf32>
    tpu.vector_store %arg5[%c0_355, %c8_356, %c0_357], %426 {strides = array<i32>} : memref<2x80x128xf32, #tpu.memory_space<vmem>>, vector<2x8x8xf32>,
    %cst_358 = arith.constant 0.000000e+00 : f32
    %428 = vector.broadcast %cst_358 : f32 to vector<16x12xf32>
    %c0_359 = arith.constant 0 : index
    %c5_360 = arith.constant 5 : index
    %c0_361 = arith.constant 0 : index
    %429 = vector.load %arg5[%c0_359, %c5_360, %c0_361] : memref<2x80x128xf32, #tpu.memory_space<vmem>>, vector<2x8x8xf32>
    %430 = vector.shape_cast %429 : vector<2x8x8xf32> to vector<16x8xf32>
    %c2184 = arith.constant 2184 : index
    %c0_362 = arith.constant 0 : index
    %431 = vector.load %arg2[%c2184, %c0_362] : memref<2424x128xf32, #tpu.memory_space<vmem>>, vector<8x12xf32>
    %cst_363 = arith.constant dense<0.000000e+00> : vector<16x12xf32>
    %432 = tpu.matmul %430, %431, %cst_363 {dimension_numbers = #tpu.dot_dimension_numbers<[1], [0], [0], [1], [0, 0, 1, 1], [], []>} : vector<16x8xf32>, vector<8x12xf32>, vector<16x12xf32> -> vector<16x12xf32>
    %433 = arith.addf %428, %432 : vector<16x12xf32>
    %c0_364 = arith.constant 0 : index
    %c6_365 = arith.constant 6 : index
    %c0_366 = arith.constant 0 : index
    %434 = vector.load %arg5[%c0_364, %c6_365, %c0_366] : memref<2x80x128xf32, #tpu.memory_space<vmem>>, vector<2x8x8xf32>
    %435 = vector.shape_cast %434 : vector<2x8x8xf32> to vector<16x8xf32>
    %c2192 = arith.constant 2192 : index
    %c0_367 = arith.constant 0 : index
    %436 = vector.load %arg2[%c2192, %c0_367] : memref<2424x128xf32, #tpu.memory_space<vmem>>, vector<8x12xf32>
    %cst_368 = arith.constant dense<0.000000e+00> : vector<16x12xf32>
    %437 = tpu.matmul %435, %436, %cst_368 {dimension_numbers = #tpu.dot_dimension_numbers<[1], [0], [0], [1], [0, 0, 1, 1], [], []>} : vector<16x8xf32>, vector<8x12xf32>, vector<16x12xf32> -> vector<16x12xf32>
    %438 = arith.addf %433, %437 : vector<16x12xf32>
    %c0_369 = arith.constant 0 : index
    %c7_370 = arith.constant 7 : index
    %c0_371 = arith.constant 0 : index
    %439 = vector.load %arg5[%c0_369, %c7_370, %c0_371] : memref<2x80x128xf32, #tpu.memory_space<vmem>>, vector<2x8x8xf32>
    %440 = vector.shape_cast %439 : vector<2x8x8xf32> to vector<16x8xf32>
    %c2200 = arith.constant 2200 : index
    %c0_372 = arith.constant 0 : index
    %441 = vector.load %arg2[%c2200, %c0_372] : memref<2424x128xf32, #tpu.memory_space<vmem>>, vector<8x12xf32>
    %cst_373 = arith.constant dense<0.000000e+00> : vector<16x12xf32>
    %442 = tpu.matmul %440, %441, %cst_373 {dimension_numbers = #tpu.dot_dimension_numbers<[1], [0], [0], [1], [0, 0, 1, 1], [], []>} : vector<16x8xf32>, vector<8x12xf32>, vector<16x12xf32> -> vector<16x12xf32>
    %443 = arith.addf %438, %442 : vector<16x12xf32>
    %c0_374 = arith.constant 0 : index
    %c8_375 = arith.constant 8 : index
    %c0_376 = arith.constant 0 : index
    %444 = vector.load %arg5[%c0_374, %c8_375, %c0_376] : memref<2x80x128xf32, #tpu.memory_space<vmem>>, vector<2x8x8xf32>
    %445 = vector.shape_cast %444 : vector<2x8x8xf32> to vector<16x8xf32>
    %c2208 = arith.constant 2208 : index
    %c0_377 = arith.constant 0 : index
    %446 = vector.load %arg2[%c2208, %c0_377] : memref<2424x128xf32, #tpu.memory_space<vmem>>, vector<8x12xf32>
    %cst_378 = arith.constant dense<0.000000e+00> : vector<16x12xf32>
    %447 = tpu.matmul %445, %446, %cst_378 {dimension_numbers = #tpu.dot_dimension_numbers<[1], [0], [0], [1], [0, 0, 1, 1], [], []>} : vector<16x8xf32>, vector<8x12xf32>, vector<16x12xf32> -> vector<16x12xf32>
    %448 = arith.addf %443, %447 : vector<16x12xf32>
    %c0_379 = arith.constant 0 : index
    %c9_380 = arith.constant 9 : index
    %c0_381 = arith.constant 0 : index
    %449 = vector.load %arg5[%c0_379, %c9_380, %c0_381] : memref<2x80x128xf32, #tpu.memory_space<vmem>>, vector<2x8x8xf32>
    %450 = vector.shape_cast %449 : vector<2x8x8xf32> to vector<16x8xf32>
    %c2216 = arith.constant 2216 : index
    %c0_382 = arith.constant 0 : index
    %451 = vector.load %arg2[%c2216, %c0_382] : memref<2424x128xf32, #tpu.memory_space<vmem>>, vector<8x12xf32>
    %cst_383 = arith.constant dense<0.000000e+00> : vector<16x12xf32>
    %452 = tpu.matmul %450, %451, %cst_383 {dimension_numbers = #tpu.dot_dimension_numbers<[1], [0], [0], [1], [0, 0, 1, 1], [], []>} : vector<16x8xf32>, vector<8x12xf32>, vector<16x12xf32> -> vector<16x12xf32>
    %453 = arith.addf %448, %452 : vector<16x12xf32>
    %c0_384 = arith.constant 0 : index
    %c10_385 = arith.constant 10 : index
    %c0_386 = arith.constant 0 : index
    %454 = vector.load %arg5[%c0_384, %c10_385, %c0_386] : memref<2x80x128xf32, #tpu.memory_space<vmem>>, vector<2x8x8xf32>
    %455 = vector.shape_cast %454 : vector<2x8x8xf32> to vector<16x8xf32>
    %c2224 = arith.constant 2224 : index
    %c0_387 = arith.constant 0 : index
    %456 = vector.load %arg2[%c2224, %c0_387] : memref<2424x128xf32, #tpu.memory_space<vmem>>, vector<8x12xf32>
    %cst_388 = arith.constant dense<0.000000e+00> : vector<16x12xf32>
    %457 = tpu.matmul %455, %456, %cst_388 {dimension_numbers = #tpu.dot_dimension_numbers<[1], [0], [0], [1], [0, 0, 1, 1], [], []>} : vector<16x8xf32>, vector<8x12xf32>, vector<16x12xf32> -> vector<16x12xf32>
    %458 = arith.addf %453, %457 : vector<16x12xf32>
    %c0_389 = arith.constant 0 : index
    %c11_390 = arith.constant 11 : index
    %c0_391 = arith.constant 0 : index
    %459 = vector.load %arg5[%c0_389, %c11_390, %c0_391] : memref<2x80x128xf32, #tpu.memory_space<vmem>>, vector<2x8x8xf32>
    %460 = vector.shape_cast %459 : vector<2x8x8xf32> to vector<16x8xf32>
    %c2232 = arith.constant 2232 : index
    %c0_392 = arith.constant 0 : index
    %461 = vector.load %arg2[%c2232, %c0_392] : memref<2424x128xf32, #tpu.memory_space<vmem>>, vector<8x12xf32>
    %cst_393 = arith.constant dense<0.000000e+00> : vector<16x12xf32>
    %462 = tpu.matmul %460, %461, %cst_393 {dimension_numbers = #tpu.dot_dimension_numbers<[1], [0], [0], [1], [0, 0, 1, 1], [], []>} : vector<16x8xf32>, vector<8x12xf32>, vector<16x12xf32> -> vector<16x12xf32>
    %463 = arith.addf %458, %462 : vector<16x12xf32>
    %464 = tpu.concatenate %408, %463 in 1 : vector<16x42xf32>, vector<16x12xf32> -> vector<16x54xf32>
    %c24_394 = arith.constant 24 : index
    %c0_395 = arith.constant 0 : index
    %465 = vector.load %arg3[%c24_394, %c0_395] : memref<30x128xf32, #tpu.memory_space<vmem>>, vector<1x54xf32>
    %c25 = arith.constant 25 : index
    %c0_396 = arith.constant 0 : index
    %466 = vector.load %arg3[%c25, %c0_396] : memref<30x128xf32, #tpu.memory_space<vmem>>, vector<1x54xf32>
    %c2240 = arith.constant 2240 : index
    %c0_397 = arith.constant 0 : index
    %467 = vector.load %arg2[%c2240, %c0_397] : memref<2424x128xf32, #tpu.memory_space<vmem>>, vector<54x8xf32>
    %c26 = arith.constant 26 : index
    %c0_398 = arith.constant 0 : index
    %468 = vector.load %arg3[%c26, %c0_398] : memref<30x128xf32, #tpu.memory_space<vmem>>, vector<1x8xf32>
    %469 = vector.broadcast %465 : vector<1x54xf32> to vector<16x54xf32>
    %470 = arith.mulf %464, %469 : vector<16x54xf32>
    %471 = vector.broadcast %466 : vector<1x54xf32> to vector<16x54xf32>
    %472 = arith.addf %470, %471 : vector<16x54xf32>
    %cst_399 = arith.constant 0.000000e+00 : f32
    %473 = vector.broadcast %cst_399 : f32 to vector<16x54xf32>
    %474 = arith.maximumf %472, %473 : vector<16x54xf32>
    %cst_400 = arith.constant dense<0.000000e+00> : vector<16x8xf32>
    %475 = tpu.matmul %474, %467, %cst_400 {dimension_numbers = #tpu.dot_dimension_numbers<[1], [0], [0], [1], [0, 0, 1, 1], [], []>} : vector<16x54xf32>, vector<54x8xf32>, vector<16x8xf32> -> vector<16x8xf32>
    %476 = vector.broadcast %468 : vector<1x8xf32> to vector<16x8xf32>
    %477 = arith.addf %475, %476 : vector<16x8xf32>
    %cst_401 = arith.constant 0.000000e+00 : f32
    %478 = vector.broadcast %cst_401 : f32 to vector<16x8xf32>
    %479 = arith.maximumf %477, %478 : vector<16x8xf32>
    %480 = vector.shape_cast %479 : vector<16x8xf32> to vector<2x8x8xf32>
    %c0_402 = arith.constant 0 : index
    %c8_403 = arith.constant 8 : index
    %c0_404 = arith.constant 0 : index
    %481 = vector.load %arg5[%c0_402, %c8_403, %c0_404] : memref<2x80x128xf32, #tpu.memory_space<vmem>>, vector<2x8x8xf32>
    tpu.vector_store %arg5[%c0_402, %c8_403, %c0_404], %480 {strides = array<i32>} : memref<2x80x128xf32, #tpu.memory_space<vmem>>, vector<2x8x8xf32>,
    %cst_405 = arith.constant 0.000000e+00 : f32
    %482 = vector.broadcast %cst_405 : f32 to vector<16x12xf32>
    %c0_406 = arith.constant 0 : index
    %c5_407 = arith.constant 5 : index
    %c0_408 = arith.constant 0 : index
    %483 = vector.load %arg5[%c0_406, %c5_407, %c0_408] : memref<2x80x128xf32, #tpu.memory_space<vmem>>, vector<2x8x8xf32>
    %484 = vector.shape_cast %483 : vector<2x8x8xf32> to vector<16x8xf32>
    %c2296 = arith.constant 2296 : index
    %c0_409 = arith.constant 0 : index
    %485 = vector.load %arg2[%c2296, %c0_409] : memref<2424x128xf32, #tpu.memory_space<vmem>>, vector<8x12xf32>
    %cst_410 = arith.constant dense<0.000000e+00> : vector<16x12xf32>
    %486 = tpu.matmul %484, %485, %cst_410 {dimension_numbers = #tpu.dot_dimension_numbers<[1], [0], [0], [1], [0, 0, 1, 1], [], []>} : vector<16x8xf32>, vector<8x12xf32>, vector<16x12xf32> -> vector<16x12xf32>
    %487 = arith.addf %482, %486 : vector<16x12xf32>
    %c0_411 = arith.constant 0 : index
    %c6_412 = arith.constant 6 : index
    %c0_413 = arith.constant 0 : index
    %488 = vector.load %arg5[%c0_411, %c6_412, %c0_413] : memref<2x80x128xf32, #tpu.memory_space<vmem>>, vector<2x8x8xf32>
    %489 = vector.shape_cast %488 : vector<2x8x8xf32> to vector<16x8xf32>
    %c2304 = arith.constant 2304 : index
    %c0_414 = arith.constant 0 : index
    %490 = vector.load %arg2[%c2304, %c0_414] : memref<2424x128xf32, #tpu.memory_space<vmem>>, vector<8x12xf32>
    %cst_415 = arith.constant dense<0.000000e+00> : vector<16x12xf32>
    %491 = tpu.matmul %489, %490, %cst_415 {dimension_numbers = #tpu.dot_dimension_numbers<[1], [0], [0], [1], [0, 0, 1, 1], [], []>} : vector<16x8xf32>, vector<8x12xf32>, vector<16x12xf32> -> vector<16x12xf32>
    %492 = arith.addf %487, %491 : vector<16x12xf32>
    %c0_416 = arith.constant 0 : index
    %c7_417 = arith.constant 7 : index
    %c0_418 = arith.constant 0 : index
    %493 = vector.load %arg5[%c0_416, %c7_417, %c0_418] : memref<2x80x128xf32, #tpu.memory_space<vmem>>, vector<2x8x8xf32>
    %494 = vector.shape_cast %493 : vector<2x8x8xf32> to vector<16x8xf32>
    %c2312 = arith.constant 2312 : index
    %c0_419 = arith.constant 0 : index
    %495 = vector.load %arg2[%c2312, %c0_419] : memref<2424x128xf32, #tpu.memory_space<vmem>>, vector<8x12xf32>
    %cst_420 = arith.constant dense<0.000000e+00> : vector<16x12xf32>
    %496 = tpu.matmul %494, %495, %cst_420 {dimension_numbers = #tpu.dot_dimension_numbers<[1], [0], [0], [1], [0, 0, 1, 1], [], []>} : vector<16x8xf32>, vector<8x12xf32>, vector<16x12xf32> -> vector<16x12xf32>
    %497 = arith.addf %492, %496 : vector<16x12xf32>
    %c0_421 = arith.constant 0 : index
    %c8_422 = arith.constant 8 : index
    %c0_423 = arith.constant 0 : index
    %498 = vector.load %arg5[%c0_421, %c8_422, %c0_423] : memref<2x80x128xf32, #tpu.memory_space<vmem>>, vector<2x8x8xf32>
    %499 = vector.shape_cast %498 : vector<2x8x8xf32> to vector<16x8xf32>
    %c2320 = arith.constant 2320 : index
    %c0_424 = arith.constant 0 : index
    %500 = vector.load %arg2[%c2320, %c0_424] : memref<2424x128xf32, #tpu.memory_space<vmem>>, vector<8x12xf32>
    %cst_425 = arith.constant dense<0.000000e+00> : vector<16x12xf32>
    %501 = tpu.matmul %499, %500, %cst_425 {dimension_numbers = #tpu.dot_dimension_numbers<[1], [0], [0], [1], [0, 0, 1, 1], [], []>} : vector<16x8xf32>, vector<8x12xf32>, vector<16x12xf32> -> vector<16x12xf32>
    %502 = arith.addf %497, %501 : vector<16x12xf32>
    %c0_426 = arith.constant 0 : index
    %c9_427 = arith.constant 9 : index
    %c0_428 = arith.constant 0 : index
    %503 = vector.load %arg5[%c0_426, %c9_427, %c0_428] : memref<2x80x128xf32, #tpu.memory_space<vmem>>, vector<2x8x8xf32>
    %504 = vector.shape_cast %503 : vector<2x8x8xf32> to vector<16x8xf32>
    %c2328 = arith.constant 2328 : index
    %c0_429 = arith.constant 0 : index
    %505 = vector.load %arg2[%c2328, %c0_429] : memref<2424x128xf32, #tpu.memory_space<vmem>>, vector<8x12xf32>
    %cst_430 = arith.constant dense<0.000000e+00> : vector<16x12xf32>
    %506 = tpu.matmul %504, %505, %cst_430 {dimension_numbers = #tpu.dot_dimension_numbers<[1], [0], [0], [1], [0, 0, 1, 1], [], []>} : vector<16x8xf32>, vector<8x12xf32>, vector<16x12xf32> -> vector<16x12xf32>
    %507 = arith.addf %502, %506 : vector<16x12xf32>
    %c0_431 = arith.constant 0 : index
    %c10_432 = arith.constant 10 : index
    %c0_433 = arith.constant 0 : index
    %508 = vector.load %arg5[%c0_431, %c10_432, %c0_433] : memref<2x80x128xf32, #tpu.memory_space<vmem>>, vector<2x8x8xf32>
    %509 = vector.shape_cast %508 : vector<2x8x8xf32> to vector<16x8xf32>
    %c2336 = arith.constant 2336 : index
    %c0_434 = arith.constant 0 : index
    %510 = vector.load %arg2[%c2336, %c0_434] : memref<2424x128xf32, #tpu.memory_space<vmem>>, vector<8x12xf32>
    %cst_435 = arith.constant dense<0.000000e+00> : vector<16x12xf32>
    %511 = tpu.matmul %509, %510, %cst_435 {dimension_numbers = #tpu.dot_dimension_numbers<[1], [0], [0], [1], [0, 0, 1, 1], [], []>} : vector<16x8xf32>, vector<8x12xf32>, vector<16x12xf32> -> vector<16x12xf32>
    %512 = arith.addf %507, %511 : vector<16x12xf32>
    %c0_436 = arith.constant 0 : index
    %c11_437 = arith.constant 11 : index
    %c0_438 = arith.constant 0 : index
    %513 = vector.load %arg5[%c0_436, %c11_437, %c0_438] : memref<2x80x128xf32, #tpu.memory_space<vmem>>, vector<2x8x8xf32>
    %514 = vector.shape_cast %513 : vector<2x8x8xf32> to vector<16x8xf32>
    %c2344 = arith.constant 2344 : index
    %c0_439 = arith.constant 0 : index
    %515 = vector.load %arg2[%c2344, %c0_439] : memref<2424x128xf32, #tpu.memory_space<vmem>>, vector<8x12xf32>
    %cst_440 = arith.constant dense<0.000000e+00> : vector<16x12xf32>
    %516 = tpu.matmul %514, %515, %cst_440 {dimension_numbers = #tpu.dot_dimension_numbers<[1], [0], [0], [1], [0, 0, 1, 1], [], []>} : vector<16x8xf32>, vector<8x12xf32>, vector<16x12xf32> -> vector<16x12xf32>
    %517 = arith.addf %512, %516 : vector<16x12xf32>
    %518 = tpu.concatenate %464, %517 in 1 : vector<16x54xf32>, vector<16x12xf32> -> vector<16x66xf32>
    %c27 = arith.constant 27 : index
    %c0_441 = arith.constant 0 : index
    %519 = vector.load %arg3[%c27, %c0_441] : memref<30x128xf32, #tpu.memory_space<vmem>>, vector<1x66xf32>
    %c28 = arith.constant 28 : index
    %c0_442 = arith.constant 0 : index
    %520 = vector.load %arg3[%c28, %c0_442] : memref<30x128xf32, #tpu.memory_space<vmem>>, vector<1x66xf32>
    %521 = vector.broadcast %519 : vector<1x66xf32> to vector<16x66xf32>
    %522 = arith.mulf %518, %521 : vector<16x66xf32>
    %523 = vector.broadcast %520 : vector<1x66xf32> to vector<16x66xf32>
    %524 = arith.addf %522, %523 : vector<16x66xf32>
    %cst_443 = arith.constant 0.000000e+00 : f32
    %525 = vector.broadcast %cst_443 : f32 to vector<16x66xf32>
    %526 = arith.maximumf %524, %525 : vector<16x66xf32>
    %527 = vector.shape_cast %526 : vector<16x66xf32> to vector<2x8x66xf32>
    %cst_444 = arith.constant dense<0.000000e+00> : vector<2x66xf32>
    %528 = vector.multi_reduction <add>, %527, %cst_444 [1] : vector<2x8x66xf32> to vector<2x66xf32>
    %c2352 = arith.constant 2352 : index
    %c0_445 = arith.constant 0 : index
    %529 = vector.load %arg2[%c2352, %c0_445] : memref<2424x128xf32, #tpu.memory_space<vmem>>, vector<66x2xf32>
    %c29 = arith.constant 29 : index
    %c0_446 = arith.constant 0 : index
    %530 = vector.load %arg3[%c29, %c0_446] : memref<30x128xf32, #tpu.memory_space<vmem>>, vector<1x2xf32>
    %cst_447 = arith.constant dense<0.000000e+00> : vector<2x2xf32>
    %531 = tpu.matmul %528, %529, %cst_447 {dimension_numbers = #tpu.dot_dimension_numbers<[1], [0], [0], [1], [0, 0, 1, 1], [], []>} : vector<2x66xf32>, vector<66x2xf32>, vector<2x2xf32> -> vector<2x2xf32>
    %532 = vector.broadcast %530 : vector<1x2xf32> to vector<2x2xf32>
    %533 = arith.addf %531, %532 : vector<2x2xf32>
    %534 = vector.shape_cast %533 : vector<2x2xf32> to vector<1x2x2xf32>
    %c0_448 = arith.constant 0 : index
    %c0_449 = arith.constant 0 : index
    %c0_450 = arith.constant 0 : index
    %535 = vector.load %arg4[%c0_448, %c0_449, %c0_450] : memref<1x2x2xf32, #tpu.memory_space<vmem>>, vector<1x2x2xf32>
    tpu.vector_store %arg4[%c0_448, %c0_449, %c0_450], %534 {strides = array<i32>} : memref<1x2x2xf32, #tpu.memory_space<vmem>>, vector<1x2x2xf32>,
    return
  }
  func.func @transform_0(%arg0: i32) -> (i32, i32, i32) {
    %c0_i32 = arith.constant 0 : i32
    %c0_i32_0 = arith.constant 0 : i32
    %c0_i32_1 = arith.constant 0 : i32
    return %arg0, %c0_i32, %c0_i32_0 : i32, i32, i32
  }
  func.func @transform_1(%arg0: i32) -> (i32, i32) {
    %c0_i32 = arith.constant 0 : i32
    %c0_i32_0 = arith.constant 0 : i32
    %c0_i32_1 = arith.constant 0 : i32
    return %c0_i32, %c0_i32_0 : i32, i32
  }
  func.func @transform_2(%arg0: i32) -> (i32, i32) {
    %c0_i32 = arith.constant 0 : i32
    %c0_i32_0 = arith.constant 0 : i32
    %c0_i32_1 = arith.constant 0 : i32
    return %c0_i32, %c0_i32_0 : i32, i32
  }
  func.func @transform_3(%arg0: i32) -> (i32, i32, i32) {
    %c0_i32 = arith.constant 0 : i32
    %c0_i32_0 = arith.constant 0 : i32
    %c0_i32_1 = arith.constant 0 : i32
    return %arg0, %c0_i32, %c0_i32_0 : i32, i32, i32
  }
}

</mosaic_0001>

<llo_original>
// kernel: _lambda_.1
$region0: #{_lambda_.1}
  #allocation0 [shape = 'u32[]', space=smem, size = 0x4, offset = 0x4, fixed_abs, tag = 'smem constant byte address 0x4 - core index']
  #allocation1 [shape = 'u32[72,128]{1,0:T(1,128)}', space=vmem, size = 0x9000, scoped, tag = 'internal scratch']
  #allocation2 [shape = 'f32[2,80,128]{2,1,0:T(8,128)}', space=vmem, size = 0x14000, scoped, tag = 'scratch operand']
  %s0 = inlined_call_operand.vmem [shape: f32[2,64,12], index: 0, kind: input, shape index: {}]
  %s1 = inlined_call_operand.hbm [shape: f32[2424,128], index: 1, kind: input, shape index: {}]
  %s2 = inlined_call_operand.hbm [shape: f32[30,128], index: 2, kind: input, shape index: {}]
  %s3 = inlined_call_operand.hbm [shape: f32[1,2,2], index: 3, kind: output, shape index: {}]
  %s4 = sld [smem:[#allocation0]]
  $region30: #{_lambda_.1} parent=0
    _
  %s6 = ssub.s32 1, %s4
  %s7 = scalar_select 0, %s6, %s4
  $region1: #{_lambda_.1} parent=0
    #allocation3 [shape = 'u8[1241088]{0}', space=vmem, size = 0x12f000, scoped, tag = 'input window, operand 1, single buffered']
    #allocation4 [shape = 's32[1]{0}', space=sflag, size = 0x4, scoped, tag = 'scoped memory for _lambda_.1']
    #allocation5 [shape = 's32[1]{0}', space=sflag, size = 0x4, scoped, tag = 'scoped memory for _lambda_.1']
    #allocation6 [shape = 'u8[16384]{0}', space=vmem, size = 0x4000, scoped, tag = 'input window, operand 2, single buffered']
    #allocation7 [shape = 's32[1]{0}', space=sflag, size = 0x4, scoped, tag = 'scoped memory for _lambda_.1']
    #allocation8 [shape = 'u8[1024]{0}', space=vmem, size = 0x400, scoped, tag = 'output window, operand 0, single buffered']
    %8 = vsyncpa [#allocation4], 0
    %9 = vsyncpa [#allocation7], 0
    %10 = vsyncpa [#allocation5], 0
    // Predicated region
    $region2: #{_lambda_.1} parent=1 // pred_check
      _
    $region3: #{_lambda_.1} parent=1 // pred_check_branch
      %12 = sbr.rel (0) target = $region5
    $region4: #{_lambda_.1} parent=1 // pred_region
      _
    $region5: #{_lambda_.1} parent=1 // pred_fallthru
      _
    // Predicated region
    $region6: #{_lambda_.1} parent=1 // pred_check
      _
    $region7: #{_lambda_.1} parent=1 // pred_check_branch
      %14 = sbr.rel (0) target = $region9
    $region8: #{_lambda_.1} parent=1 // pred_region
      %16 = vsyncadd [#allocation4], 0
      %s17 = sshll.u32 %s1, 4
      %s18 = int_to_ptr.hbm [resolvable:$true] %s17
      %s19 = sshll.u32 [#allocation3], 4
      %s20 = int_to_ptr.vmem [resolvable:$true] %s19
      %25 = dma.hbm_to_vmem [thread:$0]  %s18, 38784, %s20, [#allocation4], 128, 128, 8
    $region9: #{_lambda_.1} parent=1 // pred_fallthru
      _
    // Predicated region
    $region10: #{_lambda_.1} parent=1 // pred_check
      _
    $region11: #{_lambda_.1} parent=1 // pred_check_branch
      %27 = sbr.rel (0) target = $region13
    $region12: #{_lambda_.1} parent=1 // pred_region
      %29 = vsyncadd [#allocation7], 0
      %s30 = sshll.u32 %s2, 4
      %s31 = int_to_ptr.hbm [resolvable:$true] %s30
      %s32 = sshll.u32 [#allocation6], 4
      %s33 = int_to_ptr.vmem [resolvable:$true] %s32
      %38 = dma.hbm_to_vmem [thread:$0]  %s31, 512, %s33, [#allocation7], 128, 128, 8
    $region13: #{_lambda_.1} parent=1 // pred_fallthru
      _
    // Predicated region
    $region14: #{_lambda_.1} parent=1 // pred_check
      _
    $region15: #{_lambda_.1} parent=1 // pred_check_branch
      %40 = sbr.rel (0) target = $region17
    $region16: #{_lambda_.1} parent=1 // pred_region
      %42 = dma.done [#allocation4], 38784
    $region17: #{_lambda_.1} parent=1 // pred_fallthru
      _
    // Predicated region
    $region18: #{_lambda_.1} parent=1 // pred_check
      _
    $region19: #{_lambda_.1} parent=1 // pred_check_branch
      %44 = sbr.rel (0) target = $region21
    $region20: #{_lambda_.1} parent=1 // pred_region
      %46 = dma.done [#allocation7], 512
    $region21: #{_lambda_.1} parent=1 // pred_fallthru
      _
    %47 = vst [vmem:[#allocation2] sm:$0xff] 0.0
    %48 = vst [vmem:[#allocation2 + $0x8] sm:$0xff] 0.0
    %49 = vst [vmem:[#allocation2 + $0x10] sm:$0xff] 0.0
    %50 = vst [vmem:[#allocation2 + $0x18] sm:$0xff] 0.0
    %51 = vst [vmem:[#allocation2 + $0x20] sm:$0xff] 0.0
    %52 = vst [vmem:[#allocation2 + $0x28] sm:$0xff] 0.0
    %53 = vst [vmem:[#allocation2 + $0x30] sm:$0xff] 0.0
    %54 = vst [vmem:[#allocation2 + $0x38] sm:$0xff] 0.0
    %55 = vst [vmem:[#allocation2 + $0x40] sm:$0xff] 0.0
    %56 = vst [vmem:[#allocation2 + $0x48] sm:$0xff] 0.0
    %57 = vst [vmem:[#allocation2 + $0x50] sm:$0xff] 0.0
    %58 = vst [vmem:[#allocation2 + $0x58] sm:$0xff] 0.0
    %59 = vst [vmem:[#allocation2 + $0x60] sm:$0xff] 0.0
    %60 = vst [vmem:[#allocation2 + $0x68] sm:$0xff] 0.0
    %61 = vst [vmem:[#allocation2 + $0x70] sm:$0xff] 0.0
    %62 = vst [vmem:[#allocation2 + $0x78] sm:$0xff] 0.0
    %63 = vst [vmem:[#allocation2 + $0x80] sm:$0xff] 0.0
    %64 = vst [vmem:[#allocation2 + $0x88] sm:$0xff] 0.0
    %65 = vst [vmem:[#allocation2 + $0x90] sm:$0xff] 0.0
    %66 = vst [vmem:[#allocation2 + $0x98] sm:$0xff] 0.0
    %v67 = vld [vmem:[%s0] sm:$0xff]
    %v68 = vld [vmem:[%s0 + $0x8] sm:$0xff]
    %v69 = vld [vmem:[%s0 + $0x10] sm:$0xff]
    %v70 = vld [vmem:[%s0 + $0x18] sm:$0xff]
    %v71 = vld [vmem:[%s0 + $0x20] sm:$0xff]
    %v72 = vld [vmem:[%s0 + $0x28] sm:$0xff]
    %v73 = vld [vmem:[%s0 + $0x30] sm:$0xff]
    %v74 = vld [vmem:[%s0 + $0x38] sm:$0xff]
    %v75 = vld [vmem:[%s0 + $0x40] sm:$0xff]
    %v76 = vld [vmem:[%s0 + $0x48] sm:$0xff]
    %v77 = vld [vmem:[%s0 + $0x50] sm:$0xff]
    %v78 = vld [vmem:[%s0 + $0x58] sm:$0xff]
    %v79 = vld [vmem:[%s0 + $0x60] sm:$0xff]
    %v80 = vld [vmem:[%s0 + $0x68] sm:$0xff]
    %v81 = vld [vmem:[%s0 + $0x70] sm:$0xff]
    %v82 = vld [vmem:[%s0 + $0x78] sm:$0xff]
    %v83 = vld [vmem:[#allocation6] sm:$0x1]
    %vm84 = vcmask 97280
    %85 = vst.msk [vmem:[#allocation2 + $0x8] sm:$0xff] %vm84, %v67
    %86 = vst.msk [vmem:[#allocation2 + $0x10] sm:$0xff] %vm84, %v68
    %87 = vst.msk [vmem:[#allocation2 + $0x18] sm:$0xff] %vm84, %v69
    %88 = vst.msk [vmem:[#allocation2 + $0x20] sm:$0xff] %vm84, %v70
    %89 = vst.msk [vmem:[#allocation2 + $0x28] sm:$0xff] %vm84, %v71
    %90 = vst.msk [vmem:[#allocation2 + $0x30] sm:$0xff] %vm84, %v72
    %91 = vst.msk [vmem:[#allocation2 + $0x38] sm:$0xff] %vm84, %v73
    %92 = vst.msk [vmem:[#allocation2 + $0x40] sm:$0xff] %vm84, %v74
    %93 = vst.msk [vmem:[#allocation2 + $0x58] sm:$0xff] %vm84, %v75
    %94 = vst.msk [vmem:[#allocation2 + $0x60] sm:$0xff] %vm84, %v76
    %95 = vst.msk [vmem:[#allocation2 + $0x68] sm:$0xff] %vm84, %v77
    %96 = vst.msk [vmem:[#allocation2 + $0x70] sm:$0xff] %vm84, %v78
    %97 = vst.msk [vmem:[#allocation2 + $0x78] sm:$0xff] %vm84, %v79
    %98 = vst.msk [vmem:[#allocation2 + $0x80] sm:$0xff] %vm84, %v80
    %99 = vst.msk [vmem:[#allocation2 + $0x88] sm:$0xff] %vm84, %v81
    %100 = vst.msk [vmem:[#allocation2 + $0x90] sm:$0xff] %vm84, %v82
    %v101 = vld [vmem:[#allocation2 + $0x5] sm:$0xff]
    %v102 = vld [vmem:[#allocation2 + $0xd] sm:$0xff]
    %v103 = vld [vmem:[#allocation2 + $0x15] sm:$0xff]
    %v104 = vld [vmem:[#allocation2 + $0x1d] sm:$0xff]
    %v105 = vld [vmem:[#allocation2 + $0x25] sm:$0xff]
    %v106 = vld [vmem:[#allocation2 + $0x2d] sm:$0xff]
    %v107 = vld [vmem:[#allocation2 + $0x35] sm:$0xff]
    %v108 = vld [vmem:[#allocation2 + $0x3d] sm:$0xff]
    %v109 = vld [vmem:[#allocation2 + $0x55] sm:$0xff]
    %v110 = vld [vmem:[#allocation2 + $0x5d] sm:$0xff]
    %v111 = vld [vmem:[#allocation2 + $0x65] sm:$0xff]
    %v112 = vld [vmem:[#allocation2 + $0x6d] sm:$0xff]
    %v113 = vld [vmem:[#allocation2 + $0x75] sm:$0xff]
    %v114 = vld [vmem:[#allocation2 + $0x7d] sm:$0xff]
    %v115 = vld [vmem:[#allocation2 + $0x85] sm:$0xff]
    %v116 = vld [vmem:[#allocation2 + $0x8d] sm:$0xff]
    %v117 = vld [vmem:[#allocation3] sm:$0xff]
    %v118 = vld [vmem:[#allocation3 + $0x8] sm:$0xf]
    %v119 = vld [vmem:[#allocation2 + $0x6] sm:$0xff]
    %v120 = vld [vmem:[#allocation2 + $0xe] sm:$0xff]
    %v121 = vld [vmem:[#allocation2 + $0x16] sm:$0xff]
    %v122 = vld [vmem:[#allocation2 + $0x1e] sm:$0xff]
    %v123 = vld [vmem:[#allocation2 + $0x26] sm:$0xff]
    %v124 = vld [vmem:[#allocation2 + $0x2e] sm:$0xff]
    %v125 = vld [vmem:[#allocation2 + $0x36] sm:$0xff]
    %v126 = vld [vmem:[#allocation2 + $0x3e] sm:$0xff]
    %v127 = vld [vmem:[#allocation2 + $0x56] sm:$0xff]
    %v128 = vld [vmem:[#allocation2 + $0x5e] sm:$0xff]
    %v129 = vld [vmem:[#allocation2 + $0x66] sm:$0xff]
    %v130 = vld [vmem:[#allocation2 + $0x6e] sm:$0xff]
    %v131 = vld [vmem:[#allocation2 + $0x76] sm:$0xff]
    %v132 = vld [vmem:[#allocation2 + $0x7e] sm:$0xff]
    %v133 = vld [vmem:[#allocation2 + $0x86] sm:$0xff]
    %v134 = vld [vmem:[#allocation2 + $0x8e] sm:$0xff]
    %v135 = vld [vmem:[#allocation3 + $0x10] sm:$0xff]
    %v136 = vld [vmem:[#allocation3 + $0x18] sm:$0xf]
    %v138 = vsel %vm84, %v119, 0
    %v141 = vsel %vm84, %v120, 0
    %v144 = vsel %vm84, %v121, 0
    %v147 = vsel %vm84, %v122, 0
    %v150 = vsel %vm84, %v123, 0
    %v153 = vsel %vm84, %v124, 0
    %v156 = vsel %vm84, %v125, 0
    %v159 = vsel %vm84, %v126, 0
    %v162 = vsel %vm84, %v127, 0
    %v165 = vsel %vm84, %v128, 0
    %v168 = vsel %vm84, %v129, 0
    %v171 = vsel %vm84, %v130, 0
    %v174 = vsel %vm84, %v131, 0
    %v177 = vsel %vm84, %v132, 0
    %v180 = vsel %vm84, %v133, 0
    %v183 = vsel %vm84, %v134, 0
    %vm185 = vcmask 1043456
    %v187 = vsel %vm185, %v136, 0
    %189 = vmatpush.msra.mxu0 0.0
    %190 = vmatpush.msra.mxu0 0.0
    %191 = vmatpush.msra.mxu0 0.0
    %192 = vmatpush.msra.mxu0 0.0
    %193 = vmatpush.msra.mxu0 0.0
    %194 = vmatpush.msra.mxu0 0.0
    %195 = vmatpush.msra.mxu0 0.0
    %196 = vmatpush.msra.mxu0 0.0
    %197 = vmatpush.msra.mxu0 0.0
    %198 = vmatpush.msra.mxu0 0.0
    %199 = vmatpush.msra.mxu0 0.0
    %200 = vmatpush.msra.mxu0 0.0
    %201 = vmatpush.msra.mxu0 0.0
    %202 = vmatpush.msra.mxu0 0.0
    %203 = vmatpush.msra.mxu0 %v187
    %204 = vmatpush.msra.mxu0 %v135
    %205 = vmatmul.f32.gmra.mxu0 %v138
    %v206 = vpop.f32.mrf.mxu0
    %v207 = vadd.f32 0.0, %v206
    %208 = vmatmul.f32.gmra.mxu0 %v141
    %v209 = vpop.f32.mrf.mxu0
    %v210 = vadd.f32 0.0, %v209
    %211 = vmatmul.f32.gmra.mxu0 %v144
    %v212 = vpop.f32.mrf.mxu0
    %v213 = vadd.f32 0.0, %v212
    %214 = vmatmul.f32.gmra.mxu0 %v147
    %v215 = vpop.f32.mrf.mxu0
    %v216 = vadd.f32 0.0, %v215
    %217 = vmatmul.f32.gmra.mxu0 %v150
    %v218 = vpop.f32.mrf.mxu0
    %v219 = vadd.f32 0.0, %v218
    %220 = vmatmul.f32.gmra.mxu0 %v153
    %v221 = vpop.f32.mrf.mxu0
    %v222 = vadd.f32 0.0, %v221
    %223 = vmatmul.f32.gmra.mxu0 %v156
    %v224 = vpop.f32.mrf.mxu0
    %v225 = vadd.f32 0.0, %v224
    %226 = vmatmul.f32.gmra.mxu0 %v159
    %v227 = vpop.f32.mrf.mxu0
    %v228 = vadd.f32 0.0, %v227
    %229 = vmatmul.f32.gmra.mxu0 %v162
    %v230 = vpop.f32.mrf.mxu0
    %v231 = vadd.f32 0.0, %v230
    %232 = vmatmul.f32.gmra.mxu0 %v165
    %v233 = vpop.f32.mrf.mxu0
    %v234 = vadd.f32 0.0, %v233
    %235 = vmatmul.f32.gmra.mxu0 %v168
    %v236 = vpop.f32.mrf.mxu0
    %v237 = vadd.f32 0.0, %v236
    %238 = vmatmul.f32.gmra.mxu0 %v171
    %v239 = vpop.f32.mrf.mxu0
    %v240 = vadd.f32 0.0, %v239
    %241 = vmatmul.f32.gmra.mxu0 %v174
    %v242 = vpop.f32.mrf.mxu0
    %v243 = vadd.f32 0.0, %v242
    %244 = vmatmul.f32.gmra.mxu0 %v177
    %v245 = vpop.f32.mrf.mxu0
    %v246 = vadd.f32 0.0, %v245
    %247 = vmatmul.f32.gmra.mxu0 %v180
    %v248 = vpop.f32.mrf.mxu0
    %v249 = vadd.f32 0.0, %v248
    %250 = vmatmul.f32.gmra.mxu0 %v183
    %v251 = vpop.f32.mrf.mxu0
    %v252 = vadd.f32 0.0, %v251
    %253 = vdwg.mxu0
    %v255 = vsel %vm84, %v101, 0
    %v258 = vsel %vm84, %v102, 0
    %v261 = vsel %vm84, %v103, 0
    %v264 = vsel %vm84, %v104, 0
    %v267 = vsel %vm84, %v105, 0
    %v270 = vsel %vm84, %v106, 0
    %v273 = vsel %vm84, %v107, 0
    %v276 = vsel %vm84, %v108, 0
    %v279 = vsel %vm84, %v109, 0
    %v282 = vsel %vm84, %v110, 0
    %v285 = vsel %vm84, %v111, 0
    %v288 = vsel %vm84, %v112, 0
    %v291 = vsel %vm84, %v113, 0
    %v294 = vsel %vm84, %v114, 0
    %v297 = vsel %vm84, %v115, 0
    %v300 = vsel %vm84, %v116, 0
    %v303 = vsel %vm185, %v118, 0
    %305 = vmatpush.msra.mxu0 0.0
    %306 = vmatpush.msra.mxu0 0.0
    %307 = vmatpush.msra.mxu0 0.0
    %308 = vmatpush.msra.mxu0 0.0
    %309 = vmatpush.msra.mxu0 0.0
    %310 = vmatpush.msra.mxu0 0.0
    %311 = vmatpush.msra.mxu0 0.0
    %312 = vmatpush.msra.mxu0 0.0
    %313 = vmatpush.msra.mxu0 0.0
    %314 = vmatpush.msra.mxu0 0.0
    %315 = vmatpush.msra.mxu0 0.0
    %316 = vmatpush.msra.mxu0 0.0
    %317 = vmatpush.msra.mxu0 0.0
    %318 = vmatpush.msra.mxu0 0.0
    %319 = vmatpush.msra.mxu0 %v303
    %320 = vmatpush.msra.mxu0 %v117
    %321 = vmatmul.f32.gmra.mxu0 %v255
    %v322 = vpop.f32.mrf.mxu0
    %v323 = vadd.f32 %v207, %v322
    %324 = vmatmul.f32.gmra.mxu0 %v258
    %v325 = vpop.f32.mrf.mxu0
    %v326 = vadd.f32 %v210, %v325
    %327 = vmatmul.f32.gmra.mxu0 %v261
    %v328 = vpop.f32.mrf.mxu0
    %v329 = vadd.f32 %v213, %v328
    %330 = vmatmul.f32.gmra.mxu0 %v264
    %v331 = vpop.f32.mrf.mxu0
    %v332 = vadd.f32 %v216, %v331
    %333 = vmatmul.f32.gmra.mxu0 %v267
    %v334 = vpop.f32.mrf.mxu0
    %v335 = vadd.f32 %v219, %v334
    %336 = vmatmul.f32.gmra.mxu0 %v270
    %v337 = vpop.f32.mrf.mxu0
    %v338 = vadd.f32 %v222, %v337
    %339 = vmatmul.f32.gmra.mxu0 %v273
    %v340 = vpop.f32.mrf.mxu0
    %v341 = vadd.f32 %v225, %v340
    %342 = vmatmul.f32.gmra.mxu0 %v276
    %v343 = vpop.f32.mrf.mxu0
    %v344 = vadd.f32 %v228, %v343
    %345 = vmatmul.f32.gmra.mxu0 %v279
    %v346 = vpop.f32.mrf.mxu0
    %v347 = vadd.f32 %v231, %v346
    %348 = vmatmul.f32.gmra.mxu0 %v282
    %v349 = vpop.f32.mrf.mxu0
    %v350 = vadd.f32 %v234, %v349
    %351 = vmatmul.f32.gmra.mxu0 %v285
    %v352 = vpop.f32.mrf.mxu0
    %v353 = vadd.f32 %v237, %v352
    %354 = vmatmul.f32.gmra.mxu0 %v288
    %v355 = vpop.f32.mrf.mxu0
    %v356 = vadd.f32 %v240, %v355
    %357 = vmatmul.f32.gmra.mxu0 %v291
    %v358 = vpop.f32.mrf.mxu0
    %v359 = vadd.f32 %v243, %v358
    %360 = vmatmul.f32.gmra.mxu0 %v294
    %v361 = vpop.f32.mrf.mxu0
    %v362 = vadd.f32 %v246, %v361
    %363 = vmatmul.f32.gmra.mxu0 %v297
    %v364 = vpop.f32.mrf.mxu0
    %v365 = vadd.f32 %v249, %v364
    %366 = vmatmul.f32.gmra.mxu0 %v300
    %v367 = vpop.f32.mrf.mxu0
    %v368 = vadd.f32 %v252, %v367
    %369 = vdwg.mxu0
    %v370 = vld [vmem:[#allocation2 + $0x7] sm:$0xff]
    %v371 = vld [vmem:[#allocation2 + $0xf] sm:$0xff]
    %v372 = vld [vmem:[#allocation2 + $0x17] sm:$0xff]
    %v373 = vld [vmem:[#allocation2 + $0x1f] sm:$0xff]
    %v374 = vld [vmem:[#allocation2 + $0x27] sm:$0xff]
    %v375 = vld [vmem:[#allocation2 + $0x2f] sm:$0xff]
    %v376 = vld [vmem:[#allocation2 + $0x37] sm:$0xff]
    %v377 = vld [vmem:[#allocation2 + $0x3f] sm:$0xff]
    %v378 = vld [vmem:[#allocation2 + $0x57] sm:$0xff]
    %v379 = vld [vmem:[#allocation2 + $0x5f] sm:$0xff]
    %v380 = vld [vmem:[#allocation2 + $0x67] sm:$0xff]
    %v381 = vld [vmem:[#allocation2 + $0x6f] sm:$0xff]
    %v382 = vld [vmem:[#allocation2 + $0x77] sm:$0xff]
    %v383 = vld [vmem:[#allocation2 + $0x7f] sm:$0xff]
    %v384 = vld [vmem:[#allocation2 + $0x87] sm:$0xff]
    %v385 = vld [vmem:[#allocation2 + $0x8f] sm:$0xff]
    %v386 = vld [vmem:[#allocation3 + $0x20] sm:$0xff]
    %v387 = vld [vmem:[#allocation3 + $0x28] sm:$0xf]
    %v389 = vsel %vm84, %v370, 0
    %v392 = vsel %vm84, %v371, 0
    %v395 = vsel %vm84, %v372, 0
    %v398 = vsel %vm84, %v373, 0
    %v401 = vsel %vm84, %v374, 0
    %v404 = vsel %vm84, %v375, 0
    %v407 = vsel %vm84, %v376, 0
    %v410 = vsel %vm84, %v377, 0
    %v413 = vsel %vm84, %v378, 0
    %v416 = vsel %vm84, %v379, 0
    %v419 = vsel %vm84, %v380, 0
    %v422 = vsel %vm84, %v381, 0
    %v425 = vsel %vm84, %v382, 0
    %v428 = vsel %vm84, %v383, 0
    %v431 = vsel %vm84, %v384, 0
    %v434 = vsel %vm84, %v385, 0
    %v437 = vsel %vm185, %v387, 0
    %439 = vmatpush.msra.mxu0 0.0
    %440 = vmatpush.msra.mxu0 0.0
    %441 = vmatpush.msra.mxu0 0.0
    %442 = vmatpush.msra.mxu0 0.0
    %443 = vmatpush.msra.mxu0 0.0
    %444 = vmatpush.msra.mxu0 0.0
    %445 = vmatpush.msra.mxu0 0.0
    %446 = vmatpush.msra.mxu0 0.0
    %447 = vmatpush.msra.mxu0 0.0
    %448 = vmatpush.msra.mxu0 0.0
    %449 = vmatpush.msra.mxu0 0.0
    %450 = vmatpush.msra.mxu0 0.0
    %451 = vmatpush.msra.mxu0 0.0
    %452 = vmatpush.msra.mxu0 0.0
    %453 = vmatpush.msra.mxu0 %v437
    %454 = vmatpush.msra.mxu0 %v386
    %455 = vmatmul.f32.gmra.mxu0 %v389
    %v456 = vpop.f32.mrf.mxu0
    %v457 = vadd.f32 0.0, %v456
    %458 = vmatmul.f32.gmra.mxu0 %v392
    %v459 = vpop.f32.mrf.mxu0
    %v460 = vadd.f32 0.0, %v459
    %461 = vmatmul.f32.gmra.mxu0 %v395
    %v462 = vpop.f32.mrf.mxu0
    %v463 = vadd.f32 0.0, %v462
    %464 = vmatmul.f32.gmra.mxu0 %v398
    %v465 = vpop.f32.mrf.mxu0
    %v466 = vadd.f32 0.0, %v465
    %467 = vmatmul.f32.gmra.mxu0 %v401
    %v468 = vpop.f32.mrf.mxu0
    %v469 = vadd.f32 0.0, %v468
    %470 = vmatmul.f32.gmra.mxu0 %v404
    %v471 = vpop.f32.mrf.mxu0
    %v472 = vadd.f32 0.0, %v471
    %473 = vmatmul.f32.gmra.mxu0 %v407
    %v474 = vpop.f32.mrf.mxu0
    %v475 = vadd.f32 0.0, %v474
    %476 = vmatmul.f32.gmra.mxu0 %v410
    %v477 = vpop.f32.mrf.mxu0
    %v478 = vadd.f32 0.0, %v477
    %479 = vmatmul.f32.gmra.mxu0 %v413
    %v480 = vpop.f32.mrf.mxu0
    %v481 = vadd.f32 0.0, %v480
    %482 = vmatmul.f32.gmra.mxu0 %v416
    %v483 = vpop.f32.mrf.mxu0
    %v484 = vadd.f32 0.0, %v483
    %485 = vmatmul.f32.gmra.mxu0 %v419
    %v486 = vpop.f32.mrf.mxu0
    %v487 = vadd.f32 0.0, %v486
    %488 = vmatmul.f32.gmra.mxu0 %v422
    %v489 = vpop.f32.mrf.mxu0
    %v490 = vadd.f32 0.0, %v489
    %491 = vmatmul.f32.gmra.mxu0 %v425
    %v492 = vpop.f32.mrf.mxu0
    %v493 = vadd.f32 0.0, %v492
    %494 = vmatmul.f32.gmra.mxu0 %v428
    %v495 = vpop.f32.mrf.mxu0
    %v496 = vadd.f32 0.0, %v495
    %497 = vmatmul.f32.gmra.mxu0 %v431
    %v498 = vpop.f32.mrf.mxu0
    %v499 = vadd.f32 0.0, %v498
    %500 = vmatmul.f32.gmra.mxu0 %v434
    %v501 = vpop.f32.mrf.mxu0
    %v502 = vadd.f32 0.0, %v501
    %503 = vdwg.mxu0
    %v504 = vadd.f32 %v323, %v457
    %v505 = vadd.f32 %v326, %v460
    %v506 = vadd.f32 %v329, %v463
    %v507 = vadd.f32 %v332, %v466
    %v508 = vadd.f32 %v335, %v469
    %v509 = vadd.f32 %v338, %v472
    %v510 = vadd.f32 %v341, %v475
    %v511 = vadd.f32 %v344, %v478
    %v512 = vadd.f32 %v347, %v481
    %v513 = vadd.f32 %v350, %v484
    %v514 = vadd.f32 %v353, %v487
    %v515 = vadd.f32 %v356, %v490
    %v516 = vadd.f32 %v359, %v493
    %v517 = vadd.f32 %v362, %v496
    %v518 = vadd.f32 %v365, %v499
    %v519 = vadd.f32 %v368, %v502
    %v520 = vld [vmem:[#allocation2 + $0x8] sm:$0xff]
    %v521 = vld [vmem:[#allocation2 + $0x10] sm:$0xff]
    %v522 = vld [vmem:[#allocation2 + $0x18] sm:$0xff]
    %v523 = vld [vmem:[#allocation2 + $0x20] sm:$0xff]
    %v524 = vld [vmem:[#allocation2 + $0x28] sm:$0xff]
    %v525 = vld [vmem:[#allocation2 + $0x30] sm:$0xff]
    %v526 = vld [vmem:[#allocation2 + $0x38] sm:$0xff]
    %v527 = vld [vmem:[#allocation2 + $0x40] sm:$0xff]
    %v528 = vld [vmem:[#allocation2 + $0x58] sm:$0xff]
    %v529 = vld [vmem:[#allocation2 + $0x60] sm:$0xff]
    %v530 = vld [vmem:[#allocation2 + $0x68] sm:$0xff]
    %v531 = vld [vmem:[#allocation2 + $0x70] sm:$0xff]
    %v532 = vld [vmem:[#allocation2 + $0x78] sm:$0xff]
    %v533 = vld [vmem:[#allocation2 + $0x80] sm:$0xff]
    %v534 = vld [vmem:[#allocation2 + $0x88] sm:$0xff]
    %v535 = vld [vmem:[#allocation2 + $0x90] sm:$0xff]
    %v536 = vld [vmem:[#allocation3 + $0x30] sm:$0xff]
    %v537 = vld [vmem:[#allocation3 + $0x38] sm:$0xf]
    %v539 = vsel %vm84, %v520, 0
    %v542 = vsel %vm84, %v521, 0
    %v545 = vsel %vm84, %v522, 0
    %v548 = vsel %vm84, %v523, 0
    %v551 = vsel %vm84, %v524, 0
    %v554 = vsel %vm84, %v525, 0
    %v557 = vsel %vm84, %v526, 0
    %v560 = vsel %vm84, %v527, 0
    %v563 = vsel %vm84, %v528, 0
    %v566 = vsel %vm84, %v529, 0
    %v569 = vsel %vm84, %v530, 0
    %v572 = vsel %vm84, %v531, 0
    %v575 = vsel %vm84, %v532, 0
    %v578 = vsel %vm84, %v533, 0
    %v581 = vsel %vm84, %v534, 0
    %v584 = vsel %vm84, %v535, 0
    %v587 = vsel %vm185, %v537, 0
    %589 = vmatpush.msra.mxu0 0.0
    %590 = vmatpush.msra.mxu0 0.0
    %591 = vmatpush.msra.mxu0 0.0
    %592 = vmatpush.msra.mxu0 0.0
    %593 = vmatpush.msra.mxu0 0.0
    %594 = vmatpush.msra.mxu0 0.0
    %595 = vmatpush.msra.mxu0 0.0
    %596 = vmatpush.msra.mxu0 0.0
    %597 = vmatpush.msra.mxu0 0.0
    %598 = vmatpush.msra.mxu0 0.0
    %599 = vmatpush.msra.mxu0 0.0
    %600 = vmatpush.msra.mxu0 0.0
    %601 = vmatpush.msra.mxu0 0.0
    %602 = vmatpush.msra.mxu0 0.0
    %603 = vmatpush.msra.mxu0 %v587
    %604 = vmatpush.msra.mxu0 %v536
    %605 = vmatmul.f32.gmra.mxu0 %v539
    %v606 = vpop.f32.mrf.mxu0
    %v607 = vadd.f32 0.0, %v606
    %608 = vmatmul.f32.gmra.mxu0 %v542
    %v609 = vpop.f32.mrf.mxu0
    %v610 = vadd.f32 0.0, %v609
    %611 = vmatmul.f32.gmra.mxu0 %v545
    %v612 = vpop.f32.mrf.mxu0
    %v613 = vadd.f32 0.0, %v612
    %614 = vmatmul.f32.gmra.mxu0 %v548
    %v615 = vpop.f32.mrf.mxu0
    %v616 = vadd.f32 0.0, %v615
    %617 = vmatmul.f32.gmra.mxu0 %v551
    %v618 = vpop.f32.mrf.mxu0
    %v619 = vadd.f32 0.0, %v618
    %620 = vmatmul.f32.gmra.mxu0 %v554
    %v621 = vpop.f32.mrf.mxu0
    %v622 = vadd.f32 0.0, %v621
    %623 = vmatmul.f32.gmra.mxu0 %v557
    %v624 = vpop.f32.mrf.mxu0
    %v625 = vadd.f32 0.0, %v624
    %626 = vmatmul.f32.gmra.mxu0 %v560
    %v627 = vpop.f32.mrf.mxu0
    %v628 = vadd.f32 0.0, %v627
    %629 = vmatmul.f32.gmra.mxu0 %v563
    %v630 = vpop.f32.mrf.mxu0
    %v631 = vadd.f32 0.0, %v630
    %632 = vmatmul.f32.gmra.mxu0 %v566
    %v633 = vpop.f32.mrf.mxu0
    %v634 = vadd.f32 0.0, %v633
    %635 = vmatmul.f32.gmra.mxu0 %v569
    %v636 = vpop.f32.mrf.mxu0
    %v637 = vadd.f32 0.0, %v636
    %638 = vmatmul.f32.gmra.mxu0 %v572
    %v639 = vpop.f32.mrf.mxu0
    %v640 = vadd.f32 0.0, %v639
    %641 = vmatmul.f32.gmra.mxu0 %v575
    %v642 = vpop.f32.mrf.mxu0
    %v643 = vadd.f32 0.0, %v642
    %644 = vmatmul.f32.gmra.mxu0 %v578
    %v645 = vpop.f32.mrf.mxu0
    %v646 = vadd.f32 0.0, %v645
    %647 = vmatmul.f32.gmra.mxu0 %v581
    %v648 = vpop.f32.mrf.mxu0
    %v649 = vadd.f32 0.0, %v648
    %650 = vmatmul.f32.gmra.mxu0 %v584
    %v651 = vpop.f32.mrf.mxu0
    %v652 = vadd.f32 0.0, %v651
    %653 = vdwg.mxu0
    %v654 = vadd.f32 %v504, %v607
    %v655 = vadd.f32 %v505, %v610
    %v656 = vadd.f32 %v506, %v613
    %v657 = vadd.f32 %v507, %v616
    %v658 = vadd.f32 %v508, %v619
    %v659 = vadd.f32 %v509, %v622
    %v660 = vadd.f32 %v510, %v625
    %v661 = vadd.f32 %v511, %v628
    %v662 = vadd.f32 %v512, %v631
    %v663 = vadd.f32 %v513, %v634
    %v664 = vadd.f32 %v514, %v637
    %v665 = vadd.f32 %v515, %v640
    %v666 = vadd.f32 %v516, %v643
    %v667 = vadd.f32 %v517, %v646
    %v668 = vadd.f32 %v518, %v649
    %v669 = vadd.f32 %v519, %v652
    %v670 = vld [vmem:[#allocation2 + $0x9] sm:$0xff]
    %v671 = vld [vmem:[#allocation2 + $0x11] sm:$0xff]
    %v672 = vld [vmem:[#allocation2 + $0x19] sm:$0xff]
    %v673 = vld [vmem:[#allocation2 + $0x21] sm:$0xff]
    %v674 = vld [vmem:[#allocation2 + $0x29] sm:$0xff]
    %v675 = vld [vmem:[#allocation2 + $0x31] sm:$0xff]
    %v676 = vld [vmem:[#allocation2 + $0x39] sm:$0xff]
    %v677 = vld [vmem:[#allocation2 + $0x41] sm:$0xff]
    %v678 = vld [vmem:[#allocation2 + $0x59] sm:$0xff]
    %v679 = vld [vmem:[#allocation2 + $0x61] sm:$0xff]
    %v680 = vld [vmem:[#allocation2 + $0x69] sm:$0xff]
    %v681 = vld [vmem:[#allocation2 + $0x71] sm:$0xff]
    %v682 = vld [vmem:[#allocation2 + $0x79] sm:$0xff]
    %v683 = vld [vmem:[#allocation2 + $0x81] sm:$0xff]
    %v684 = vld [vmem:[#allocation2 + $0x89] sm:$0xff]
    %v685 = vld [vmem:[#allocation2 + $0x91] sm:$0xff]
    %v686 = vld [vmem:[#allocation3 + $0x40] sm:$0xff]
    %v687 = vld [vmem:[#allocation3 + $0x48] sm:$0xf]
    %v689 = vsel %vm84, %v670, 0
    %v692 = vsel %vm84, %v671, 0
    %v695 = vsel %vm84, %v672, 0
    %v698 = vsel %vm84, %v673, 0
    %v701 = vsel %vm84, %v674, 0
    %v704 = vsel %vm84, %v675, 0
    %v707 = vsel %vm84, %v676, 0
    %v710 = vsel %vm84, %v677, 0
    %v713 = vsel %vm84, %v678, 0
    %v716 = vsel %vm84, %v679, 0
    %v719 = vsel %vm84, %v680, 0
    %v722 = vsel %vm84, %v681, 0
    %v725 = vsel %vm84, %v682, 0
    %v728 = vsel %vm84, %v683, 0
    %v731 = vsel %vm84, %v684, 0
    %v734 = vsel %vm84, %v685, 0
    %v737 = vsel %vm185, %v687, 0
    %739 = vmatpush.msra.mxu0 0.0
    %740 = vmatpush.msra.mxu0 0.0
    %741 = vmatpush.msra.mxu0 0.0
    %742 = vmatpush.msra.mxu0 0.0
    %743 = vmatpush.msra.mxu0 0.0
    %744 = vmatpush.msra.mxu0 0.0
    %745 = vmatpush.msra.mxu0 0.0
    %746 = vmatpush.msra.mxu0 0.0
    %747 = vmatpush.msra.mxu0 0.0
    %748 = vmatpush.msra.mxu0 0.0
    %749 = vmatpush.msra.mxu0 0.0
    %750 = vmatpush.msra.mxu0 0.0
    %751 = vmatpush.msra.mxu0 0.0
    %752 = vmatpush.msra.mxu0 0.0
    %753 = vmatpush.msra.mxu0 %v737
    %754 = vmatpush.msra.mxu0 %v686
    %755 = vmatmul.f32.gmra.mxu0 %v689
    %v756 = vpop.f32.mrf.mxu0
    %v757 = vadd.f32 0.0, %v756
    %758 = vmatmul.f32.gmra.mxu0 %v692
    %v759 = vpop.f32.mrf.mxu0
    %v760 = vadd.f32 0.0, %v759
    %761 = vmatmul.f32.gmra.mxu0 %v695
    %v762 = vpop.f32.mrf.mxu0
    %v763 = vadd.f32 0.0, %v762
    %764 = vmatmul.f32.gmra.mxu0 %v698
    %v765 = vpop.f32.mrf.mxu0
    %v766 = vadd.f32 0.0, %v765
    %767 = vmatmul.f32.gmra.mxu0 %v701
    %v768 = vpop.f32.mrf.mxu0
    %v769 = vadd.f32 0.0, %v768
    %770 = vmatmul.f32.gmra.mxu0 %v704
    %v771 = vpop.f32.mrf.mxu0
    %v772 = vadd.f32 0.0, %v771
    %773 = vmatmul.f32.gmra.mxu0 %v707
    %v774 = vpop.f32.mrf.mxu0
    %v775 = vadd.f32 0.0, %v774
    %776 = vmatmul.f32.gmra.mxu0 %v710
    %v777 = vpop.f32.mrf.mxu0
    %v778 = vadd.f32 0.0, %v777
    %779 = vmatmul.f32.gmra.mxu0 %v713
    %v780 = vpop.f32.mrf.mxu0
    %v781 = vadd.f32 0.0, %v780
    %782 = vmatmul.f32.gmra.mxu0 %v716
    %v783 = vpop.f32.mrf.mxu0
    %v784 = vadd.f32 0.0, %v783
    %785 = vmatmul.f32.gmra.mxu0 %v719
    %v786 = vpop.f32.mrf.mxu0
    %v787 = vadd.f32 0.0, %v786
    %788 = vmatmul.f32.gmra.mxu0 %v722
    %v789 = vpop.f32.mrf.mxu0
    %v790 = vadd.f32 0.0, %v789
    %791 = vmatmul.f32.gmra.mxu0 %v725
    %v792 = vpop.f32.mrf.mxu0
    %v793 = vadd.f32 0.0, %v792
    %794 = vmatmul.f32.gmra.mxu0 %v728
    %v795 = vpop.f32.mrf.mxu0
    %v796 = vadd.f32 0.0, %v795
    %797 = vmatmul.f32.gmra.mxu0 %v731
    %v798 = vpop.f32.mrf.mxu0
    %v799 = vadd.f32 0.0, %v798
    %800 = vmatmul.f32.gmra.mxu0 %v734
    %v801 = vpop.f32.mrf.mxu0
    %v802 = vadd.f32 0.0, %v801
    %803 = vdwg.mxu0
    %v804 = vadd.f32 %v654, %v757
    %v805 = vadd.f32 %v655, %v760
    %v806 = vadd.f32 %v656, %v763
    %v807 = vadd.f32 %v657, %v766
    %v808 = vadd.f32 %v658, %v769
    %v809 = vadd.f32 %v659, %v772
    %v810 = vadd.f32 %v660, %v775
    %v811 = vadd.f32 %v661, %v778
    %v812 = vadd.f32 %v662, %v781
    %v813 = vadd.f32 %v663, %v784
    %v814 = vadd.f32 %v664, %v787
    %v815 = vadd.f32 %v665, %v790
    %v816 = vadd.f32 %v666, %v793
    %v817 = vadd.f32 %v667, %v796
    %v818 = vadd.f32 %v668, %v799
    %v819 = vadd.f32 %v669, %v802
    %v820 = vld [vmem:[#allocation2 + $0xa] sm:$0xff]
    %v821 = vld [vmem:[#allocation2 + $0x12] sm:$0xff]
    %v822 = vld [vmem:[#allocation2 + $0x1a] sm:$0xff]
    %v823 = vld [vmem:[#allocation2 + $0x22] sm:$0xff]
    %v824 = vld [vmem:[#allocation2 + $0x2a] sm:$0xff]
    %v825 = vld [vmem:[#allocation2 + $0x32] sm:$0xff]
    %v826 = vld [vmem:[#allocation2 + $0x3a] sm:$0xff]
    %v827 = vld [vmem:[#allocation2 + $0x42] sm:$0xff]
    %v828 = vld [vmem:[#allocation2 + $0x5a] sm:$0xff]
    %v829 = vld [vmem:[#allocation2 + $0x62] sm:$0xff]
    %v830 = vld [vmem:[#allocation2 + $0x6a] sm:$0xff]
    %v831 = vld [vmem:[#allocation2 + $0x72] sm:$0xff]
    %v832 = vld [vmem:[#allocation2 + $0x7a] sm:$0xff]
    %v833 = vld [vmem:[#allocation2 + $0x82] sm:$0xff]
    %v834 = vld [vmem:[#allocation2 + $0x8a] sm:$0xff]
    %v835 = vld [vmem:[#allocation2 + $0x92] sm:$0xff]
    %v836 = vld [vmem:[#allocation3 + $0x50] sm:$0xff]
    %v837 = vld [vmem:[#allocation3 + $0x58] sm:$0xf]
    %v839 = vsel %vm84, %v820, 0
    %v842 = vsel %vm84, %v821, 0
    %v845 = vsel %vm84, %v822, 0
    %v848 = vsel %vm84, %v823, 0
    %v851 = vsel %vm84, %v824, 0
    %v854 = vsel %vm84, %v825, 0
    %v857 = vsel %vm84, %v826, 0
    %v860 = vsel %vm84, %v827, 0
    %v863 = vsel %vm84, %v828, 0
    %v866 = vsel %vm84, %v829, 0
    %v869 = vsel %vm84, %v830, 0
    %v872 = vsel %vm84, %v831, 0
    %v875 = vsel %vm84, %v832, 0
    %v878 = vsel %vm84, %v833, 0
    %v881 = vsel %vm84, %v834, 0
    %v884 = vsel %vm84, %v835, 0
    %v887 = vsel %vm185, %v837, 0
    %889 = vmatpush.msra.mxu0 0.0
    %890 = vmatpush.msra.mxu0 0.0
    %891 = vmatpush.msra.mxu0 0.0
    %892 = vmatpush.msra.mxu0 0.0
    %893 = vmatpush.msra.mxu0 0.0
    %894 = vmatpush.msra.mxu0 0.0
    %895 = vmatpush.msra.mxu0 0.0
    %896 = vmatpush.msra.mxu0 0.0
    %897 = vmatpush.msra.mxu0 0.0
    %898 = vmatpush.msra.mxu0 0.0
    %899 = vmatpush.msra.mxu0 0.0
    %900 = vmatpush.msra.mxu0 0.0
    %901 = vmatpush.msra.mxu0 0.0
    %902 = vmatpush.msra.mxu0 0.0
    %903 = vmatpush.msra.mxu0 %v887
    %904 = vmatpush.msra.mxu0 %v836
    %905 = vmatmul.f32.gmra.mxu0 %v839
    %v906 = vpop.f32.mrf.mxu0
    %v907 = vadd.f32 0.0, %v906
    %908 = vmatmul.f32.gmra.mxu0 %v842
    %v909 = vpop.f32.mrf.mxu0
    %v910 = vadd.f32 0.0, %v909
    %911 = vmatmul.f32.gmra.mxu0 %v845
    %v912 = vpop.f32.mrf.mxu0
    %v913 = vadd.f32 0.0, %v912
    %914 = vmatmul.f32.gmra.mxu0 %v848
    %v915 = vpop.f32.mrf.mxu0
    %v916 = vadd.f32 0.0, %v915
    %917 = vmatmul.f32.gmra.mxu0 %v851
    %v918 = vpop.f32.mrf.mxu0
    %v919 = vadd.f32 0.0, %v918
    %920 = vmatmul.f32.gmra.mxu0 %v854
    %v921 = vpop.f32.mrf.mxu0
    %v922 = vadd.f32 0.0, %v921
    %923 = vmatmul.f32.gmra.mxu0 %v857
    %v924 = vpop.f32.mrf.mxu0
    %v925 = vadd.f32 0.0, %v924
    %926 = vmatmul.f32.gmra.mxu0 %v860
    %v927 = vpop.f32.mrf.mxu0
    %v928 = vadd.f32 0.0, %v927
    %929 = vmatmul.f32.gmra.mxu0 %v863
    %v930 = vpop.f32.mrf.mxu0
    %v931 = vadd.f32 0.0, %v930
    %932 = vmatmul.f32.gmra.mxu0 %v866
    %v933 = vpop.f32.mrf.mxu0
    %v934 = vadd.f32 0.0, %v933
    %935 = vmatmul.f32.gmra.mxu0 %v869
    %v936 = vpop.f32.mrf.mxu0
    %v937 = vadd.f32 0.0, %v936
    %938 = vmatmul.f32.gmra.mxu0 %v872
    %v939 = vpop.f32.mrf.mxu0
    %v940 = vadd.f32 0.0, %v939
    %941 = vmatmul.f32.gmra.mxu0 %v875
    %v942 = vpop.f32.mrf.mxu0
    %v943 = vadd.f32 0.0, %v942
    %944 = vmatmul.f32.gmra.mxu0 %v878
    %v945 = vpop.f32.mrf.mxu0
    %v946 = vadd.f32 0.0, %v945
    %947 = vmatmul.f32.gmra.mxu0 %v881
    %v948 = vpop.f32.mrf.mxu0
    %v949 = vadd.f32 0.0, %v948
    %950 = vmatmul.f32.gmra.mxu0 %v884
    %v951 = vpop.f32.mrf.mxu0
    %v952 = vadd.f32 0.0, %v951
    %953 = vdwg.mxu0
    %v954 = vadd.f32 %v804, %v907
    %v955 = vadd.f32 %v805, %v910
    %v956 = vadd.f32 %v806, %v913
    %v957 = vadd.f32 %v807, %v916
    %v958 = vadd.f32 %v808, %v919
    %v959 = vadd.f32 %v809, %v922
    %v960 = vadd.f32 %v810, %v925
    %v961 = vadd.f32 %v811, %v928
    %v962 = vadd.f32 %v812, %v931
    %v963 = vadd.f32 %v813, %v934
    %v964 = vadd.f32 %v814, %v937
    %v965 = vadd.f32 %v815, %v940
    %v966 = vadd.f32 %v816, %v943
    %v967 = vadd.f32 %v817, %v946
    %v968 = vadd.f32 %v818, %v949
    %v969 = vadd.f32 %v819, %v952
    %v970 = vld [vmem:[#allocation2 + $0xb] sm:$0xff]
    %v971 = vld [vmem:[#allocation2 + $0x13] sm:$0xff]
    %v972 = vld [vmem:[#allocation2 + $0x1b] sm:$0xff]
    %v973 = vld [vmem:[#allocation2 + $0x23] sm:$0xff]
    %v974 = vld [vmem:[#allocation2 + $0x2b] sm:$0xff]
    %v975 = vld [vmem:[#allocation2 + $0x33] sm:$0xff]
    %v976 = vld [vmem:[#allocation2 + $0x3b] sm:$0xff]
    %v977 = vld [vmem:[#allocation2 + $0x43] sm:$0xff]
    %v978 = vld [vmem:[#allocation2 + $0x5b] sm:$0xff]
    %v979 = vld [vmem:[#allocation2 + $0x63] sm:$0xff]
    %v980 = vld [vmem:[#allocation2 + $0x6b] sm:$0xff]
    %v981 = vld [vmem:[#allocation2 + $0x73] sm:$0xff]
    %v982 = vld [vmem:[#allocation2 + $0x7b] sm:$0xff]
    %v983 = vld [vmem:[#allocation2 + $0x83] sm:$0xff]
    %v984 = vld [vmem:[#allocation2 + $0x8b] sm:$0xff]
    %v985 = vld [vmem:[#allocation2 + $0x93] sm:$0xff]
    %v986 = vld [vmem:[#allocation3 + $0x60] sm:$0xff]
    %v987 = vld [vmem:[#allocation3 + $0x68] sm:$0xf]
    %v989 = vsel %vm84, %v970, 0
    %v992 = vsel %vm84, %v971, 0
    %v995 = vsel %vm84, %v972, 0
    %v998 = vsel %vm84, %v973, 0
    %v1001 = vsel %vm84, %v974, 0
    %v1004 = vsel %vm84, %v975, 0
    %v1007 = vsel %vm84, %v976, 0
    %v1010 = vsel %vm84, %v977, 0
    %v1013 = vsel %vm84, %v978, 0
    %v1016 = vsel %vm84, %v979, 0
    %v1019 = vsel %vm84, %v980, 0
    %v1022 = vsel %vm84, %v981, 0
    %v1025 = vsel %vm84, %v982, 0
    %v1028 = vsel %vm84, %v983, 0
    %v1031 = vsel %vm84, %v984, 0
    %v1034 = vsel %vm84, %v985, 0
    %v1037 = vsel %vm185, %v987, 0
    %1039 = vmatpush.msra.mxu0 0.0
    %1040 = vmatpush.msra.mxu0 0.0
    %1041 = vmatpush.msra.mxu0 0.0
    %1042 = vmatpush.msra.mxu0 0.0
    %1043 = vmatpush.msra.mxu0 0.0
    %1044 = vmatpush.msra.mxu0 0.0
    %1045 = vmatpush.msra.mxu0 0.0
    %1046 = vmatpush.msra.mxu0 0.0
    %1047 = vmatpush.msra.mxu0 0.0
    %1048 = vmatpush.msra.mxu0 0.0
    %1049 = vmatpush.msra.mxu0 0.0
    %1050 = vmatpush.msra.mxu0 0.0
    %1051 = vmatpush.msra.mxu0 0.0
    %1052 = vmatpush.msra.mxu0 0.0
    %1053 = vmatpush.msra.mxu0 %v1037
    %1054 = vmatpush.msra.mxu0 %v986
    %1055 = vmatmul.f32.gmra.mxu0 %v989
    %v1056 = vpop.f32.mrf.mxu0
    %v1057 = vadd.f32 0.0, %v1056
    %1058 = vmatmul.f32.gmra.mxu0 %v992
    %v1059 = vpop.f32.mrf.mxu0
    %v1060 = vadd.f32 0.0, %v1059
    %1061 = vmatmul.f32.gmra.mxu0 %v995
    %v1062 = vpop.f32.mrf.mxu0
    %v1063 = vadd.f32 0.0, %v1062
    %1064 = vmatmul.f32.gmra.mxu0 %v998
    %v1065 = vpop.f32.mrf.mxu0
    %v1066 = vadd.f32 0.0, %v1065
    %1067 = vmatmul.f32.gmra.mxu0 %v1001
    %v1068 = vpop.f32.mrf.mxu0
    %v1069 = vadd.f32 0.0, %v1068
    %1070 = vmatmul.f32.gmra.mxu0 %v1004
    %v1071 = vpop.f32.mrf.mxu0
    %v1072 = vadd.f32 0.0, %v1071
    %1073 = vmatmul.f32.gmra.mxu0 %v1007
    %v1074 = vpop.f32.mrf.mxu0
    %v1075 = vadd.f32 0.0, %v1074
    %1076 = vmatmul.f32.gmra.mxu0 %v1010
    %v1077 = vpop.f32.mrf.mxu0
    %v1078 = vadd.f32 0.0, %v1077
    %1079 = vmatmul.f32.gmra.mxu0 %v1013
    %v1080 = vpop.f32.mrf.mxu0
    %v1081 = vadd.f32 0.0, %v1080
    %1082 = vmatmul.f32.gmra.mxu0 %v1016
    %v1083 = vpop.f32.mrf.mxu0
    %v1084 = vadd.f32 0.0, %v1083
    %1085 = vmatmul.f32.gmra.mxu0 %v1019
    %v1086 = vpop.f32.mrf.mxu0
    %v1087 = vadd.f32 0.0, %v1086
    %1088 = vmatmul.f32.gmra.mxu0 %v1022
    %v1089 = vpop.f32.mrf.mxu0
    %v1090 = vadd.f32 0.0, %v1089
    %1091 = vmatmul.f32.gmra.mxu0 %v1025
    %v1092 = vpop.f32.mrf.mxu0
    %v1093 = vadd.f32 0.0, %v1092
    %1094 = vmatmul.f32.gmra.mxu0 %v1028
    %v1095 = vpop.f32.mrf.mxu0
    %v1096 = vadd.f32 0.0, %v1095
    %1097 = vmatmul.f32.gmra.mxu0 %v1031
    %v1098 = vpop.f32.mrf.mxu0
    %v1099 = vadd.f32 0.0, %v1098
    %1100 = vmatmul.f32.gmra.mxu0 %v1034
    %v1101 = vpop.f32.mrf.mxu0
    %v1102 = vadd.f32 0.0, %v1101
    %1103 = vdwg.mxu0
    %v1104 = vadd.f32 %v954, %v1057
    %v1105 = vadd.f32 %v955, %v1060
    %v1106 = vadd.f32 %v956, %v1063
    %v1107 = vadd.f32 %v957, %v1066
    %v1108 = vadd.f32 %v958, %v1069
    %v1109 = vadd.f32 %v959, %v1072
    %v1110 = vadd.f32 %v960, %v1075
    %v1111 = vadd.f32 %v961, %v1078
    %v1112 = vadd.f32 %v962, %v1081
    %v1113 = vadd.f32 %v963, %v1084
    %v1114 = vadd.f32 %v964, %v1087
    %v1115 = vadd.f32 %v965, %v1090
    %v1116 = vadd.f32 %v966, %v1093
    %v1117 = vadd.f32 %v967, %v1096
    %v1118 = vadd.f32 %v968, %v1099
    %v1119 = vadd.f32 %v969, %v1102
    %v1120 = vperm.slane %v83, 0
    %v1121 = vadd.f32 %v1104, %v1120
    %v1122 = vadd.f32 %v1105, %v1120
    %v1123 = vadd.f32 %v1106, %v1120
    %v1124 = vadd.f32 %v1107, %v1120
    %v1125 = vadd.f32 %v1108, %v1120
    %v1126 = vadd.f32 %v1109, %v1120
    %v1127 = vadd.f32 %v1110, %v1120
    %v1128 = vadd.f32 %v1111, %v1120
    %v1129 = vadd.f32 %v1112, %v1120
    %v1130 = vadd.f32 %v1113, %v1120
    %v1131 = vadd.f32 %v1114, %v1120
    %v1132 = vadd.f32 %v1115, %v1120
    %v1133 = vadd.f32 %v1116, %v1120
    %v1134 = vadd.f32 %v1117, %v1120
    %v1135 = vadd.f32 %v1118, %v1120
    %v1136 = vadd.f32 %v1119, %v1120
    %v1137 = vmax.f32 %v1121, 0.0
    %v1138 = vmax.f32 %v1122, 0.0
    %v1139 = vmax.f32 %v1123, 0.0
    %v1140 = vmax.f32 %v1124, 0.0
    %v1141 = vmax.f32 %v1125, 0.0
    %v1142 = vmax.f32 %v1126, 0.0
    %v1143 = vmax.f32 %v1127, 0.0
    %v1144 = vmax.f32 %v1128, 0.0
    %v1145 = vmax.f32 %v1129, 0.0
    %v1146 = vmax.f32 %v1130, 0.0
    %v1147 = vmax.f32 %v1131, 0.0
    %v1148 = vmax.f32 %v1132, 0.0
    %v1149 = vmax.f32 %v1133, 0.0
    %v1150 = vmax.f32 %v1134, 0.0
    %v1151 = vmax.f32 %v1135, 0.0
    %v1152 = vmax.f32 %v1136, 0.0
    %v1153 = vld [vmem:[#allocation6 + $0x1] sm:$0x1]
    %v1154 = vld [vmem:[#allocation6 + $0x2] sm:$0x1]
    %v1155 = vperm.slane %v1153, 0
    %v1156 = vmul.f32 %v1137, %v1155
    %v1157 = vmul.f32 %v1138, %v1155
    %v1158 = vmul.f32 %v1139, %v1155
    %v1159 = vmul.f32 %v1140, %v1155
    %v1160 = vmul.f32 %v1141, %v1155
    %v1161 = vmul.f32 %v1142, %v1155
    %v1162 = vmul.f32 %v1143, %v1155
    %v1163 = vmul.f32 %v1144, %v1155
    %v1164 = vmul.f32 %v1145, %v1155
    %v1165 = vmul.f32 %v1146, %v1155
    %v1166 = vmul.f32 %v1147, %v1155
    %v1167 = vmul.f32 %v1148, %v1155
    %v1168 = vmul.f32 %v1149, %v1155
    %v1169 = vmul.f32 %v1150, %v1155
    %v1170 = vmul.f32 %v1151, %v1155
    %v1171 = vmul.f32 %v1152, %v1155
    %v1172 = vperm.slane %v1154, 0
    %v1173 = vadd.f32 %v1156, %v1172
    %v1174 = vadd.f32 %v1157, %v1172
    %v1175 = vadd.f32 %v1158, %v1172
    %v1176 = vadd.f32 %v1159, %v1172
    %v1177 = vadd.f32 %v1160, %v1172
    %v1178 = vadd.f32 %v1161, %v1172
    %v1179 = vadd.f32 %v1162, %v1172
    %v1180 = vadd.f32 %v1163, %v1172
    %v1181 = vadd.f32 %v1164, %v1172
    %v1182 = vadd.f32 %v1165, %v1172
    %v1183 = vadd.f32 %v1166, %v1172
    %v1184 = vadd.f32 %v1167, %v1172
    %v1185 = vadd.f32 %v1168, %v1172
    %v1186 = vadd.f32 %v1169, %v1172
    %v1187 = vadd.f32 %v1170, %v1172
    %v1188 = vadd.f32 %v1171, %v1172
    %v1189 = vmax.f32 %v1173, 0.0
    %v1190 = vmax.f32 %v1174, 0.0
    %v1191 = vmax.f32 %v1175, 0.0
    %v1192 = vmax.f32 %v1176, 0.0
    %v1193 = vmax.f32 %v1177, 0.0
    %v1194 = vmax.f32 %v1178, 0.0
    %v1195 = vmax.f32 %v1179, 0.0
    %v1196 = vmax.f32 %v1180, 0.0
    %v1197 = vmax.f32 %v1181, 0.0
    %v1198 = vmax.f32 %v1182, 0.0
    %v1199 = vmax.f32 %v1183, 0.0
    %v1200 = vmax.f32 %v1184, 0.0
    %v1201 = vmax.f32 %v1185, 0.0
    %v1202 = vmax.f32 %v1186, 0.0
    %v1203 = vmax.f32 %v1187, 0.0
    %v1204 = vmax.f32 %v1188, 0.0
    %vm1205 = vcmask 785408
    %1206 = vst.msk [vmem:[#allocation2 + $0x8] sm:$0xff] %vm1205, %v1189
    %1207 = vst.msk [vmem:[#allocation2 + $0x10] sm:$0xff] %vm1205, %v1190
    %1208 = vst.msk [vmem:[#allocation2 + $0x18] sm:$0xff] %vm1205, %v1191
    %1209 = vst.msk [vmem:[#allocation2 + $0x20] sm:$0xff] %vm1205, %v1192
    %1210 = vst.msk [vmem:[#allocation2 + $0x28] sm:$0xff] %vm1205, %v1193
    %1211 = vst.msk [vmem:[#allocation2 + $0x30] sm:$0xff] %vm1205, %v1194
    %1212 = vst.msk [vmem:[#allocation2 + $0x38] sm:$0xff] %vm1205, %v1195
    %1213 = vst.msk [vmem:[#allocation2 + $0x40] sm:$0xff] %vm1205, %v1196
    %1214 = vst.msk [vmem:[#allocation2 + $0x58] sm:$0xff] %vm1205, %v1197
    %1215 = vst.msk [vmem:[#allocation2 + $0x60] sm:$0xff] %vm1205, %v1198
    %1216 = vst.msk [vmem:[#allocation2 + $0x68] sm:$0xff] %vm1205, %v1199
    %1217 = vst.msk [vmem:[#allocation2 + $0x70] sm:$0xff] %vm1205, %v1200
    %1218 = vst.msk [vmem:[#allocation2 + $0x78] sm:$0xff] %vm1205, %v1201
    %1219 = vst.msk [vmem:[#allocation2 + $0x80] sm:$0xff] %vm1205, %v1202
    %1220 = vst.msk [vmem:[#allocation2 + $0x88] sm:$0xff] %vm1205, %v1203
    %1221 = vst.msk [vmem:[#allocation2 + $0x90] sm:$0xff] %vm1205, %v1204
    %v1222 = vld [vmem:[#allocation2 + $0x7] sm:$0xff]
    %v1223 = vld [vmem:[#allocation2 + $0xf] sm:$0xff]
    %v1224 = vld [vmem:[#allocation2 + $0x17] sm:$0xff]
    %v1225 = vld [vmem:[#allocation2 + $0x1f] sm:$0xff]
    %v1226 = vld [vmem:[#allocation2 + $0x27] sm:$0xff]
    %v1227 = vld [vmem:[#allocation2 + $0x2f] sm:$0xff]
    %v1228 = vld [vmem:[#allocation2 + $0x37] sm:$0xff]
    %v1229 = vld [vmem:[#allocation2 + $0x3f] sm:$0xff]
    %v1230 = vld [vmem:[#allocation2 + $0x57] sm:$0xff]
    %v1231 = vld [vmem:[#allocation2 + $0x5f] sm:$0xff]
    %v1232 = vld [vmem:[#allocation2 + $0x67] sm:$0xff]
    %v1233 = vld [vmem:[#allocation2 + $0x6f] sm:$0xff]
    %v1234 = vld [vmem:[#allocation2 + $0x77] sm:$0xff]
    %v1235 = vld [vmem:[#allocation2 + $0x7f] sm:$0xff]
    %v1236 = vld [vmem:[#allocation2 + $0x87] sm:$0xff]
    %v1237 = vld [vmem:[#allocation2 + $0x8f] sm:$0xff]
    %v1238 = vld [vmem:[#allocation2 + $0x8] sm:$0xff]
    %v1239 = vld [vmem:[#allocation2 + $0x10] sm:$0xff]
    %v1240 = vld [vmem:[#allocation2 + $0x18] sm:$0xff]
    %v1241 = vld [vmem:[#allocation2 + $0x20] sm:$0xff]
    %v1242 = vld [vmem:[#allocation2 + $0x28] sm:$0xff]
    %v1243 = vld [vmem:[#allocation2 + $0x30] sm:$0xff]
    %v1244 = vld [vmem:[#allocation2 + $0x38] sm:$0xff]
    %v1245 = vld [vmem:[#allocation2 + $0x40] sm:$0xff]
    %v1246 = vld [vmem:[#allocation2 + $0x58] sm:$0xff]
    %v1247 = vld [vmem:[#allocation2 + $0x60] sm:$0xff]
    %v1248 = vld [vmem:[#allocation2 + $0x68] sm:$0xff]
    %v1249 = vld [vmem:[#allocation2 + $0x70] sm:$0xff]
    %v1250 = vld [vmem:[#allocation2 + $0x78] sm:$0xff]
    %v1251 = vld [vmem:[#allocation2 + $0x80] sm:$0xff]
    %v1252 = vld [vmem:[#allocation2 + $0x88] sm:$0xff]
    %v1253 = vld [vmem:[#allocation2 + $0x90] sm:$0xff]
    %v1254 = vmax.f32 %v1222, %v1238
    %v1255 = vmax.f32 %v1223, %v1239
    %v1256 = vmax.f32 %v1224, %v1240
    %v1257 = vmax.f32 %v1225, %v1241
    %v1258 = vmax.f32 %v1226, %v1242
    %v1259 = vmax.f32 %v1227, %v1243
    %v1260 = vmax.f32 %v1228, %v1244
    %v1261 = vmax.f32 %v1229, %v1245
    %v1262 = vmax.f32 %v1230, %v1246
    %v1263 = vmax.f32 %v1231, %v1247
    %v1264 = vmax.f32 %v1232, %v1248
    %v1265 = vmax.f32 %v1233, %v1249
    %v1266 = vmax.f32 %v1234, %v1250
    %v1267 = vmax.f32 %v1235, %v1251
    %v1268 = vmax.f32 %v1236, %v1252
    %v1269 = vmax.f32 %v1237, %v1253
    %v1270 = vld [vmem:[#allocation2 + $0x9] sm:$0xff]
    %v1271 = vld [vmem:[#allocation2 + $0x11] sm:$0xff]
    %v1272 = vld [vmem:[#allocation2 + $0x19] sm:$0xff]
    %v1273 = vld [vmem:[#allocation2 + $0x21] sm:$0xff]
    %v1274 = vld [vmem:[#allocation2 + $0x29] sm:$0xff]
    %v1275 = vld [vmem:[#allocation2 + $0x31] sm:$0xff]
    %v1276 = vld [vmem:[#allocation2 + $0x39] sm:$0xff]
    %v1277 = vld [vmem:[#allocation2 + $0x41] sm:$0xff]
    %v1278 = vld [vmem:[#allocation2 + $0x59] sm:$0xff]
    %v1279 = vld [vmem:[#allocation2 + $0x61] sm:$0xff]
    %v1280 = vld [vmem:[#allocation2 + $0x69] sm:$0xff]
    %v1281 = vld [vmem:[#allocation2 + $0x71] sm:$0xff]
    %v1282 = vld [vmem:[#allocation2 + $0x79] sm:$0xff]
    %v1283 = vld [vmem:[#allocation2 + $0x81] sm:$0xff]
    %v1284 = vld [vmem:[#allocation2 + $0x89] sm:$0xff]
    %v1285 = vld [vmem:[#allocation2 + $0x91] sm:$0xff]
    %v1286 = vmax.f32 %v1254, %v1270
    %v1287 = vmax.f32 %v1255, %v1271
    %v1288 = vmax.f32 %v1256, %v1272
    %v1289 = vmax.f32 %v1257, %v1273
    %v1290 = vmax.f32 %v1258, %v1274
    %v1291 = vmax.f32 %v1259, %v1275
    %v1292 = vmax.f32 %v1260, %v1276
    %v1293 = vmax.f32 %v1261, %v1277
    %v1294 = vmax.f32 %v1262, %v1278
    %v1295 = vmax.f32 %v1263, %v1279
    %v1296 = vmax.f32 %v1264, %v1280
    %v1297 = vmax.f32 %v1265, %v1281
    %v1298 = vmax.f32 %v1266, %v1282
    %v1299 = vmax.f32 %v1267, %v1283
    %v1300 = vmax.f32 %v1268, %v1284
    %v1301 = vmax.f32 %v1269, %v1285
    %v1318 = vrot.slane %v1286, 2
    %v1319 = vrot.slane %v1286, 4
    %v1320 = vrot.slane %v1286, 6
    %v1321 = vrot.slane %v1287, 2
    %v1322 = vrot.slane %v1287, 4
    %v1323 = vrot.slane %v1287, 6
    %v1324 = vrot.slane %v1288, 2
    %v1325 = vrot.slane %v1288, 4
    %v1326 = vrot.slane %v1288, 6
    %v1327 = vrot.slane %v1289, 2
    %v1328 = vrot.slane %v1289, 4
    %v1329 = vrot.slane %v1289, 6
    %v1330 = vrot.slane %v1290, 2
    %v1331 = vrot.slane %v1290, 4
    %v1332 = vrot.slane %v1290, 6
    %v1333 = vrot.slane %v1291, 2
    %v1334 = vrot.slane %v1291, 4
    %v1335 = vrot.slane %v1291, 6
    %v1336 = vrot.slane %v1292, 2
    %v1337 = vrot.slane %v1292, 4
    %v1338 = vrot.slane %v1292, 6
    %v1339 = vrot.slane %v1293, 2
    %v1340 = vrot.slane %v1293, 4
    %v1341 = vrot.slane %v1293, 6
    %v1342 = vrot.slane %v1294, 2
    %v1343 = vrot.slane %v1294, 4
    %v1344 = vrot.slane %v1294, 6
    %v1345 = vrot.slane %v1295, 2
    %v1346 = vrot.slane %v1295, 4
    %v1347 = vrot.slane %v1295, 6
    %v1348 = vrot.slane %v1296, 2
    %v1349 = vrot.slane %v1296, 4
    %v1350 = vrot.slane %v1296, 6
    %v1351 = vrot.slane %v1297, 2
    %v1352 = vrot.slane %v1297, 4
    %v1353 = vrot.slane %v1297, 6
    %v1354 = vrot.slane %v1298, 2
    %v1355 = vrot.slane %v1298, 4
    %v1356 = vrot.slane %v1298, 6
    %v1357 = vrot.slane %v1299, 2
    %v1358 = vrot.slane %v1299, 4
    %v1359 = vrot.slane %v1299, 6
    %v1360 = vrot.slane %v1300, 2
    %v1361 = vrot.slane %v1300, 4
    %v1362 = vrot.slane %v1300, 6
    %v1363 = vrot.slane %v1301, 2
    %v1364 = vrot.slane %v1301, 4
    %v1365 = vrot.slane %v1301, 6
    %1414 = vst [vmem:[#allocation2 + $0x28] sm:$0xff] 0.0
    %1415 = vst [vmem:[#allocation2 + $0x78] sm:$0xff] 0.0
    %v1416 = vld [vmem:[#allocation6 + $0x3] sm:$0x1]
    %v1417 = vld [vmem:[#allocation6 + $0x4] sm:$0x1]
    %v1418 = vld [vmem:[#allocation3 + $0x70] sm:$0xff]
    %v1419 = vld [vmem:[#allocation3 + $0x78] sm:$0xff]
    %v1420 = vld [vmem:[#allocation3 + $0x80] sm:$0xff]
    %v1421 = vld [vmem:[#allocation3 + $0x88] sm:$0xff]
    %v1422 = vld [vmem:[#allocation3 + $0x90] sm:$0xff]
    %v1423 = vld [vmem:[#allocation3 + $0x98] sm:$0xff]
    %v1424 = vld [vmem:[#allocation3 + $0xa0] sm:$0xff]
    %v1425 = vld [vmem:[#allocation3 + $0xa8] sm:$0xff]
    %v1426 = vld [vmem:[#allocation3 + $0xb0] sm:$0xff]
    %v1427 = vld [vmem:[#allocation3 + $0xb8] sm:$0xff]
    %v1428 = vld [vmem:[#allocation3 + $0xc0] sm:$0xff]
    %v1429 = vld [vmem:[#allocation3 + $0xc8] sm:$0xff]
    %v1430 = vld [vmem:[#allocation6 + $0x5] sm:$0x1]
    %v1431 = vperm.slane %v1416, 0
    %v1433 = vrot.slane %v1431, 2
    %v1434 = vrot.slane %v1431, 4
    %v1435 = vrot.slane %v1431, 6
    %v1436 = vrot.slane %v1431, 1
    %v1437 = vrot.slane %v1433, 1
    %v1438 = vrot.slane %v1434, 1
    %v1439 = vrot.slane %v1435, 1
    %v1448 = vmul.f32 %v1286, %v1431
    %v1449 = vmul.f32 %v1318, %v1436
    %v1450 = vmul.f32 %v1319, %v1433
    %v1451 = vmul.f32 %v1320, %v1437
    %v1452 = vmul.f32 %v1287, %v1434
    %v1453 = vmul.f32 %v1321, %v1438
    %v1454 = vmul.f32 %v1322, %v1435
    %v1455 = vmul.f32 %v1323, %v1439
    %v1456 = vmul.f32 %v1288, %v1431
    %v1457 = vmul.f32 %v1324, %v1436
    %v1458 = vmul.f32 %v1325, %v1433
    %v1459 = vmul.f32 %v1326, %v1437
    %v1460 = vmul.f32 %v1289, %v1434
    %v1461 = vmul.f32 %v1327, %v1438
    %v1462 = vmul.f32 %v1328, %v1435
    %v1463 = vmul.f32 %v1329, %v1439
    %v1464 = vmul.f32 %v1290, %v1431
    %v1465 = vmul.f32 %v1330, %v1436
    %v1466 = vmul.f32 %v1331, %v1433
    %v1467 = vmul.f32 %v1332, %v1437
    %v1468 = vmul.f32 %v1291, %v1434
    %v1469 = vmul.f32 %v1333, %v1438
    %v1470 = vmul.f32 %v1334, %v1435
    %v1471 = vmul.f32 %v1335, %v1439
    %v1472 = vmul.f32 %v1292, %v1431
    %v1473 = vmul.f32 %v1336, %v1436
    %v1474 = vmul.f32 %v1337, %v1433
    %v1475 = vmul.f32 %v1338, %v1437
    %v1476 = vmul.f32 %v1293, %v1434
    %v1477 = vmul.f32 %v1339, %v1438
    %v1478 = vmul.f32 %v1340, %v1435
    %v1479 = vmul.f32 %v1341, %v1439
    %v1480 = vmul.f32 %v1294, %v1431
    %v1481 = vmul.f32 %v1342, %v1436
    %v1482 = vmul.f32 %v1343, %v1433
    %v1483 = vmul.f32 %v1344, %v1437
    %v1484 = vmul.f32 %v1295, %v1434
    %v1485 = vmul.f32 %v1345, %v1438
    %v1486 = vmul.f32 %v1346, %v1435
    %v1487 = vmul.f32 %v1347, %v1439
    %v1488 = vmul.f32 %v1296, %v1431
    %v1489 = vmul.f32 %v1348, %v1436
    %v1490 = vmul.f32 %v1349, %v1433
    %v1491 = vmul.f32 %v1350, %v1437
    %v1492 = vmul.f32 %v1297, %v1434
    %v1493 = vmul.f32 %v1351, %v1438
    %v1494 = vmul.f32 %v1352, %v1435
    %v1495 = vmul.f32 %v1353, %v1439
    %v1496 = vmul.f32 %v1298, %v1431
    %v1497 = vmul.f32 %v1354, %v1436
    %v1498 = vmul.f32 %v1355, %v1433
    %v1499 = vmul.f32 %v1356, %v1437
    %v1500 = vmul.f32 %v1299, %v1434
    %v1501 = vmul.f32 %v1357, %v1438
    %v1502 = vmul.f32 %v1358, %v1435
    %v1503 = vmul.f32 %v1359, %v1439
    %v1504 = vmul.f32 %v1300, %v1431
    %v1505 = vmul.f32 %v1360, %v1436
    %v1506 = vmul.f32 %v1361, %v1433
    %v1507 = vmul.f32 %v1362, %v1437
    %v1508 = vmul.f32 %v1301, %v1434
    %v1509 = vmul.f32 %v1363, %v1438
    %v1510 = vmul.f32 %v1364, %v1435
    %v1511 = vmul.f32 %v1365, %v1439
    %v1512 = vperm.slane %v1417, 0
    %v1514 = vrot.slane %v1512, 2
    %v1515 = vrot.slane %v1512, 4
    %v1516 = vrot.slane %v1512, 6
    %v1517 = vrot.slane %v1512, 1
    %v1518 = vrot.slane %v1514, 1
    %v1519 = vrot.slane %v1515, 1
    %v1520 = vrot.slane %v1516, 1
    %v1529 = vadd.f32 %v1448, %v1512
    %v1530 = vadd.f32 %v1449, %v1517
    %v1531 = vadd.f32 %v1450, %v1514
    %v1532 = vadd.f32 %v1451, %v1518
    %v1533 = vadd.f32 %v1452, %v1515
    %v1534 = vadd.f32 %v1453, %v1519
    %v1535 = vadd.f32 %v1454, %v1516
    %v1536 = vadd.f32 %v1455, %v1520
    %v1537 = vadd.f32 %v1456, %v1512
    %v1538 = vadd.f32 %v1457, %v1517
    %v1539 = vadd.f32 %v1458, %v1514
    %v1540 = vadd.f32 %v1459, %v1518
    %v1541 = vadd.f32 %v1460, %v1515
    %v1542 = vadd.f32 %v1461, %v1519
    %v1543 = vadd.f32 %v1462, %v1516
    %v1544 = vadd.f32 %v1463, %v1520
    %v1545 = vadd.f32 %v1464, %v1512
    %v1546 = vadd.f32 %v1465, %v1517
    %v1547 = vadd.f32 %v1466, %v1514
    %v1548 = vadd.f32 %v1467, %v1518
    %v1549 = vadd.f32 %v1468, %v1515
    %v1550 = vadd.f32 %v1469, %v1519
    %v1551 = vadd.f32 %v1470, %v1516
    %v1552 = vadd.f32 %v1471, %v1520
    %v1553 = vadd.f32 %v1472, %v1512
    %v1554 = vadd.f32 %v1473, %v1517
    %v1555 = vadd.f32 %v1474, %v1514
    %v1556 = vadd.f32 %v1475, %v1518
    %v1557 = vadd.f32 %v1476, %v1515
    %v1558 = vadd.f32 %v1477, %v1519
    %v1559 = vadd.f32 %v1478, %v1516
    %v1560 = vadd.f32 %v1479, %v1520
    %v1561 = vadd.f32 %v1480, %v1512
    %v1562 = vadd.f32 %v1481, %v1517
    %v1563 = vadd.f32 %v1482, %v1514
    %v1564 = vadd.f32 %v1483, %v1518
    %v1565 = vadd.f32 %v1484, %v1515
    %v1566 = vadd.f32 %v1485, %v1519
    %v1567 = vadd.f32 %v1486, %v1516
    %v1568 = vadd.f32 %v1487, %v1520
    %v1569 = vadd.f32 %v1488, %v1512
    %v1570 = vadd.f32 %v1489, %v1517
    %v1571 = vadd.f32 %v1490, %v1514
    %v1572 = vadd.f32 %v1491, %v1518
    %v1573 = vadd.f32 %v1492, %v1515
    %v1574 = vadd.f32 %v1493, %v1519
    %v1575 = vadd.f32 %v1494, %v1516
    %v1576 = vadd.f32 %v1495, %v1520
    %v1577 = vadd.f32 %v1496, %v1512
    %v1578 = vadd.f32 %v1497, %v1517
    %v1579 = vadd.f32 %v1498, %v1514
    %v1580 = vadd.f32 %v1499, %v1518
    %v1581 = vadd.f32 %v1500, %v1515
    %v1582 = vadd.f32 %v1501, %v1519
    %v1583 = vadd.f32 %v1502, %v1516
    %v1584 = vadd.f32 %v1503, %v1520
    %v1585 = vadd.f32 %v1504, %v1512
    %v1586 = vadd.f32 %v1505, %v1517
    %v1587 = vadd.f32 %v1506, %v1514
    %v1588 = vadd.f32 %v1507, %v1518
    %v1589 = vadd.f32 %v1508, %v1515
    %v1590 = vadd.f32 %v1509, %v1519
    %v1591 = vadd.f32 %v1510, %v1516
    %v1592 = vadd.f32 %v1511, %v1520
    %v1593 = vmax.f32 %v1529, 0.0
    %v1594 = vmax.f32 %v1530, 0.0
    %v1595 = vmax.f32 %v1531, 0.0
    %v1596 = vmax.f32 %v1532, 0.0
    %v1597 = vmax.f32 %v1533, 0.0
    %v1598 = vmax.f32 %v1534, 0.0
    %v1599 = vmax.f32 %v1535, 0.0
    %v1600 = vmax.f32 %v1536, 0.0
    %v1601 = vmax.f32 %v1537, 0.0
    %v1602 = vmax.f32 %v1538, 0.0
    %v1603 = vmax.f32 %v1539, 0.0
    %v1604 = vmax.f32 %v1540, 0.0
    %v1605 = vmax.f32 %v1541, 0.0
    %v1606 = vmax.f32 %v1542, 0.0
    %v1607 = vmax.f32 %v1543, 0.0
    %v1608 = vmax.f32 %v1544, 0.0
    %v1609 = vmax.f32 %v1545, 0.0
    %v1610 = vmax.f32 %v1546, 0.0
    %v1611 = vmax.f32 %v1547, 0.0
    %v1612 = vmax.f32 %v1548, 0.0
    %v1613 = vmax.f32 %v1549, 0.0
    %v1614 = vmax.f32 %v1550, 0.0
    %v1615 = vmax.f32 %v1551, 0.0
    %v1616 = vmax.f32 %v1552, 0.0
    %v1617 = vmax.f32 %v1553, 0.0
    %v1618 = vmax.f32 %v1554, 0.0
    %v1619 = vmax.f32 %v1555, 0.0
    %v1620 = vmax.f32 %v1556, 0.0
    %v1621 = vmax.f32 %v1557, 0.0
    %v1622 = vmax.f32 %v1558, 0.0
    %v1623 = vmax.f32 %v1559, 0.0
    %v1624 = vmax.f32 %v1560, 0.0
    %v1625 = vmax.f32 %v1561, 0.0
    %v1626 = vmax.f32 %v1562, 0.0
    %v1627 = vmax.f32 %v1563, 0.0
    %v1628 = vmax.f32 %v1564, 0.0
    %v1629 = vmax.f32 %v1565, 0.0
    %v1630 = vmax.f32 %v1566, 0.0
    %v1631 = vmax.f32 %v1567, 0.0
    %v1632 = vmax.f32 %v1568, 0.0
    %v1633 = vmax.f32 %v1569, 0.0
    %v1634 = vmax.f32 %v1570, 0.0
    %v1635 = vmax.f32 %v1571, 0.0
    %v1636 = vmax.f32 %v1572, 0.0
    %v1637 = vmax.f32 %v1573, 0.0
    %v1638 = vmax.f32 %v1574, 0.0
    %v1639 = vmax.f32 %v1575, 0.0
    %v1640 = vmax.f32 %v1576, 0.0
    %v1641 = vmax.f32 %v1577, 0.0
    %v1642 = vmax.f32 %v1578, 0.0
    %v1643 = vmax.f32 %v1579, 0.0
    %v1644 = vmax.f32 %v1580, 0.0
    %v1645 = vmax.f32 %v1581, 0.0
    %v1646 = vmax.f32 %v1582, 0.0
    %v1647 = vmax.f32 %v1583, 0.0
    %v1648 = vmax.f32 %v1584, 0.0
    %v1649 = vmax.f32 %v1585, 0.0
    %v1650 = vmax.f32 %v1586, 0.0
    %v1651 = vmax.f32 %v1587, 0.0
    %v1652 = vmax.f32 %v1588, 0.0
    %v1653 = vmax.f32 %v1589, 0.0
    %v1654 = vmax.f32 %v1590, 0.0
    %v1655 = vmax.f32 %v1591, 0.0
    %v1656 = vmax.f32 %v1592, 0.0
    %v1657 = vperm.slane %v1430, 0
    %v1722 = vperm.slane %v1593, 0
    %v1723 = vperm.slane %v1594, 0
    %v1724 = vperm.slane %v1595, 0
    %v1725 = vperm.slane %v1596, 0
    %v1726 = vperm.slane %v1597, 0
    %v1727 = vperm.slane %v1598, 0
    %v1728 = vperm.slane %v1599, 0
    %v1729 = vperm.slane %v1600, 0
    %v1730 = vperm.slane %v1601, 0
    %v1731 = vperm.slane %v1602, 0
    %v1732 = vperm.slane %v1603, 0
    %v1733 = vperm.slane %v1604, 0
    %v1734 = vperm.slane %v1605, 0
    %v1735 = vperm.slane %v1606, 0
    %v1736 = vperm.slane %v1607, 0
    %v1737 = vperm.slane %v1608, 0
    %v1738 = vperm.slane %v1609, 0
    %v1739 = vperm.slane %v1610, 0
    %v1740 = vperm.slane %v1611, 0
    %v1741 = vperm.slane %v1612, 0
    %v1742 = vperm.slane %v1613, 0
    %v1743 = vperm.slane %v1614, 0
    %v1744 = vperm.slane %v1615, 0
    %v1745 = vperm.slane %v1616, 0
    %v1746 = vperm.slane %v1617, 0
    %v1747 = vperm.slane %v1618, 0
    %v1748 = vperm.slane %v1619, 0
    %v1749 = vperm.slane %v1620, 0
    %v1750 = vperm.slane %v1621, 0
    %v1751 = vperm.slane %v1622, 0
    %v1752 = vperm.slane %v1623, 0
    %v1753 = vperm.slane %v1624, 0
    %v1754 = vperm.slane %v1625, 0
    %v1755 = vperm.slane %v1626, 0
    %v1756 = vperm.slane %v1627, 0
    %v1757 = vperm.slane %v1628, 0
    %v1758 = vperm.slane %v1629, 0
    %v1759 = vperm.slane %v1630, 0
    %v1760 = vperm.slane %v1631, 0
    %v1761 = vperm.slane %v1632, 0
    %v1762 = vperm.slane %v1633, 0
    %v1763 = vperm.slane %v1634, 0
    %v1764 = vperm.slane %v1635, 0
    %v1765 = vperm.slane %v1636, 0
    %v1766 = vperm.slane %v1637, 0
    %v1767 = vperm.slane %v1638, 0
    %v1768 = vperm.slane %v1639, 0
    %v1769 = vperm.slane %v1640, 0
    %v1770 = vperm.slane %v1641, 0
    %v1771 = vperm.slane %v1642, 0
    %v1772 = vperm.slane %v1643, 0
    %v1773 = vperm.slane %v1644, 0
    %v1774 = vperm.slane %v1645, 0
    %v1775 = vperm.slane %v1646, 0
    %v1776 = vperm.slane %v1647, 0
    %v1777 = vperm.slane %v1648, 0
    %v1778 = vperm.slane %v1649, 0
    %v1779 = vperm.slane %v1650, 0
    %v1780 = vperm.slane %v1651, 0
    %v1781 = vperm.slane %v1652, 0
    %v1782 = vperm.slane %v1653, 0
    %v1783 = vperm.slane %v1654, 0
    %v1784 = vperm.slane %v1655, 0
    %v1785 = vperm.slane %v1656, 0
    %vm1786 = vcmask 1041409
    %v1787 = vsel %vm1786, %v1723, %v1722
    %vm1788 = vcmask 1042434
    %v1789 = vsel %vm1788, %v1724, %v1787
    %vm1790 = vcmask 1043459
    %v1791 = vsel %vm1790, %v1725, %v1789
    %vm1792 = vcmask 1044484
    %v1793 = vsel %vm1792, %v1726, %v1791
    %vm1794 = vcmask 1045509
    %v1795 = vsel %vm1794, %v1727, %v1793
    %vm1796 = vcmask 1046534
    %v1797 = vsel %vm1796, %v1728, %v1795
    %vm1798 = vcmask 1047559
    %v1799 = vsel %vm1798, %v1729, %v1797
    %v1800 = vsel %vm1786, %v1731, %v1730
    %v1801 = vsel %vm1788, %v1732, %v1800
    %v1802 = vsel %vm1790, %v1733, %v1801
    %v1803 = vsel %vm1792, %v1734, %v1802
    %v1804 = vsel %vm1794, %v1735, %v1803
    %v1805 = vsel %vm1796, %v1736, %v1804
    %v1806 = vsel %vm1798, %v1737, %v1805
    %v1807 = vsel %vm1786, %v1739, %v1738
    %v1808 = vsel %vm1788, %v1740, %v1807
    %v1809 = vsel %vm1790, %v1741, %v1808
    %v1810 = vsel %vm1792, %v1742, %v1809
    %v1811 = vsel %vm1794, %v1743, %v1810
    %v1812 = vsel %vm1796, %v1744, %v1811
    %v1813 = vsel %vm1798, %v1745, %v1812
    %v1814 = vsel %vm1786, %v1747, %v1746
    %v1815 = vsel %vm1788, %v1748, %v1814
    %v1816 = vsel %vm1790, %v1749, %v1815
    %v1817 = vsel %vm1792, %v1750, %v1816
    %v1818 = vsel %vm1794, %v1751, %v1817
    %v1819 = vsel %vm1796, %v1752, %v1818
    %v1820 = vsel %vm1798, %v1753, %v1819
    %v1821 = vsel %vm1786, %v1755, %v1754
    %v1822 = vsel %vm1788, %v1756, %v1821
    %v1823 = vsel %vm1790, %v1757, %v1822
    %v1824 = vsel %vm1792, %v1758, %v1823
    %v1825 = vsel %vm1794, %v1759, %v1824
    %v1826 = vsel %vm1796, %v1760, %v1825
    %v1827 = vsel %vm1798, %v1761, %v1826
    %v1828 = vsel %vm1786, %v1763, %v1762
    %v1829 = vsel %vm1788, %v1764, %v1828
    %v1830 = vsel %vm1790, %v1765, %v1829
    %v1831 = vsel %vm1792, %v1766, %v1830
    %v1832 = vsel %vm1794, %v1767, %v1831
    %v1833 = vsel %vm1796, %v1768, %v1832
    %v1834 = vsel %vm1798, %v1769, %v1833
    %v1835 = vsel %vm1786, %v1771, %v1770
    %v1836 = vsel %vm1788, %v1772, %v1835
    %v1837 = vsel %vm1790, %v1773, %v1836
    %v1838 = vsel %vm1792, %v1774, %v1837
    %v1839 = vsel %vm1794, %v1775, %v1838
    %v1840 = vsel %vm1796, %v1776, %v1839
    %v1841 = vsel %vm1798, %v1777, %v1840
    %v1842 = vsel %vm1786, %v1779, %v1778
    %v1843 = vsel %vm1788, %v1780, %v1842
    %v1844 = vsel %vm1790, %v1781, %v1843
    %v1845 = vsel %vm1792, %v1782, %v1844
    %v1846 = vsel %vm1794, %v1783, %v1845
    %v1847 = vsel %vm1796, %v1784, %v1846
    %v1848 = vsel %vm1798, %v1785, %v1847
    %v1849 = vsel %vm1205, %v1799, 0
    %v1851 = vsel %vm1205, %v1806, 0
    %v1853 = vsel %vm1205, %v1813, 0
    %v1855 = vsel %vm1205, %v1820, 0
    %v1857 = vsel %vm1205, %v1827, 0
    %v1859 = vsel %vm1205, %v1834, 0
    %v1861 = vsel %vm1205, %v1841, 0
    %v1863 = vsel %vm1205, %v1848, 0
    %1865 = vmatpush.msra.mxu0 0.0
    %1866 = vmatpush.msra.mxu0 0.0
    %1867 = vmatpush.msra.mxu0 0.0
    %1868 = vmatpush.msra.mxu0 0.0
    %1869 = vmatpush.msra.mxu0 %v1429
    %1870 = vmatpush.msra.mxu0 %v1428
    %1871 = vmatpush.msra.mxu0 %v1427
    %1872 = vmatpush.msra.mxu0 %v1426
    %1873 = vmatpush.msra.mxu0 %v1425
    %1874 = vmatpush.msra.mxu0 %v1424
    %1875 = vmatpush.msra.mxu0 %v1423
    %1876 = vmatpush.msra.mxu0 %v1422
    %1877 = vmatpush.msra.mxu0 %v1421
    %1878 = vmatpush.msra.mxu0 %v1420
    %1879 = vmatpush.msra.mxu0 %v1419
    %1880 = vmatpush.msra.mxu0 %v1418
    %1881 = vmatmul.f32.gmra.mxu0 %v1849
    %v1882 = vpop.f32.mrf.mxu0
    %v1883 = vadd.f32 %v1657, %v1882
    %1884 = vmatmul.f32.gmra.mxu0 %v1851
    %v1885 = vpop.f32.mrf.mxu0
    %v1886 = vadd.f32 %v1657, %v1885
    %1887 = vmatmul.f32.gmra.mxu0 %v1853
    %v1888 = vpop.f32.mrf.mxu0
    %v1889 = vadd.f32 %v1657, %v1888
    %1890 = vmatmul.f32.gmra.mxu0 %v1855
    %v1891 = vpop.f32.mrf.mxu0
    %v1892 = vadd.f32 %v1657, %v1891
    %1893 = vmatmul.f32.gmra.mxu0 %v1857
    %v1894 = vpop.f32.mrf.mxu0
    %v1895 = vadd.f32 %v1657, %v1894
    %1896 = vmatmul.f32.gmra.mxu0 %v1859
    %v1897 = vpop.f32.mrf.mxu0
    %v1898 = vadd.f32 %v1657, %v1897
    %1899 = vmatmul.f32.gmra.mxu0 %v1861
    %v1900 = vpop.f32.mrf.mxu0
    %v1901 = vadd.f32 %v1657, %v1900
    %1902 = vmatmul.f32.gmra.mxu0 %v1863
    %v1903 = vpop.f32.mrf.mxu0
    %v1904 = vadd.f32 %v1657, %v1903
    %1905 = vdwg.mxu0
    %v1906 = vmax.f32 %v1883, 0.0
    %v1907 = vmax.f32 %v1886, 0.0
    %v1908 = vmax.f32 %v1889, 0.0
    %v1909 = vmax.f32 %v1892, 0.0
    %v1910 = vmax.f32 %v1895, 0.0
    %v1911 = vmax.f32 %v1898, 0.0
    %v1912 = vmax.f32 %v1901, 0.0
    %v1913 = vmax.f32 %v1904, 0.0
    %vm1914 = vcmask 64512
    %1915 = vst.msk [vmem:[#allocation2 + $0x8] sm:$0xff] %vm1914, %v1906
    %1916 = vst.msk [vmem:[#allocation2 + $0x10] sm:$0xff] %vm1914, %v1907
    %1917 = vst.msk [vmem:[#allocation2 + $0x18] sm:$0xff] %vm1914, %v1908
    %1918 = vst.msk [vmem:[#allocation2 + $0x20] sm:$0xff] %vm1914, %v1909
    %1919 = vst.msk [vmem:[#allocation2 + $0x58] sm:$0xff] %vm1914, %v1910
    %1920 = vst.msk [vmem:[#allocation2 + $0x60] sm:$0xff] %vm1914, %v1911
    %1921 = vst.msk [vmem:[#allocation2 + $0x68] sm:$0xff] %vm1914, %v1912
    %1922 = vst.msk [vmem:[#allocation2 + $0x70] sm:$0xff] %vm1914, %v1913
    %v1923 = vld [vmem:[#allocation2 + $0x5] sm:$0xff]
    %v1924 = vld [vmem:[#allocation2 + $0xd] sm:$0xff]
    %v1925 = vld [vmem:[#allocation2 + $0x15] sm:$0xff]
    %v1926 = vld [vmem:[#allocation2 + $0x1d] sm:$0xff]
    %v1927 = vld [vmem:[#allocation2 + $0x55] sm:$0xff]
    %v1928 = vld [vmem:[#allocation2 + $0x5d] sm:$0xff]
    %v1929 = vld [vmem:[#allocation2 + $0x65] sm:$0xff]
    %v1930 = vld [vmem:[#allocation2 + $0x6d] sm:$0xff]
    %v1931 = vld [vmem:[#allocation3 + $0xd0] sm:$0xff]
    %v1932 = vld [vmem:[#allocation2 + $0x6] sm:$0xff]
    %v1933 = vld [vmem:[#allocation2 + $0xe] sm:$0xff]
    %v1934 = vld [vmem:[#allocation2 + $0x16] sm:$0xff]
    %v1935 = vld [vmem:[#allocation2 + $0x1e] sm:$0xff]
    %v1936 = vld [vmem:[#allocation2 + $0x56] sm:$0xff]
    %v1937 = vld [vmem:[#allocation2 + $0x5e] sm:$0xff]
    %v1938 = vld [vmem:[#allocation2 + $0x66] sm:$0xff]
    %v1939 = vld [vmem:[#allocation2 + $0x6e] sm:$0xff]
    %v1940 = vld [vmem:[#allocation3 + $0xd8] sm:$0xff]
    %v1942 = vsel %vm1914, %v1932, 0
    %v1945 = vsel %vm1914, %v1933, 0
    %v1948 = vsel %vm1914, %v1934, 0
    %v1951 = vsel %vm1914, %v1935, 0
    %v1954 = vsel %vm1914, %v1936, 0
    %v1957 = vsel %vm1914, %v1937, 0
    %v1960 = vsel %vm1914, %v1938, 0
    %v1963 = vsel %vm1914, %v1939, 0
    %1965 = vmatpush.msra.mxu0 0.0
    %1966 = vmatpush.msra.mxu0 0.0
    %1967 = vmatpush.msra.mxu0 0.0
    %1968 = vmatpush.msra.mxu0 0.0
    %1969 = vmatpush.msra.mxu0 0.0
    %1970 = vmatpush.msra.mxu0 0.0
    %1971 = vmatpush.msra.mxu0 0.0
    %1972 = vmatpush.msra.mxu0 0.0
    %1973 = vmatpush.msra.mxu0 0.0
    %1974 = vmatpush.msra.mxu0 0.0
    %1975 = vmatpush.msra.mxu0 0.0
    %1976 = vmatpush.msra.mxu0 0.0
    %1977 = vmatpush.msra.mxu0 0.0
    %1978 = vmatpush.msra.mxu0 0.0
    %1979 = vmatpush.msra.mxu0 0.0
    %1980 = vmatpush.msra.mxu0 %v1940
    %1981 = vmatmul.f32.gmra.mxu0 %v1942
    %v1982 = vpop.f32.mrf.mxu0
    %v1983 = vadd.f32 0.0, %v1982
    %1984 = vmatmul.f32.gmra.mxu0 %v1945
    %v1985 = vpop.f32.mrf.mxu0
    %v1986 = vadd.f32 0.0, %v1985
    %1987 = vmatmul.f32.gmra.mxu0 %v1948
    %v1988 = vpop.f32.mrf.mxu0
    %v1989 = vadd.f32 0.0, %v1988
    %1990 = vmatmul.f32.gmra.mxu0 %v1951
    %v1991 = vpop.f32.mrf.mxu0
    %v1992 = vadd.f32 0.0, %v1991
    %1993 = vmatmul.f32.gmra.mxu0 %v1954
    %v1994 = vpop.f32.mrf.mxu0
    %v1995 = vadd.f32 0.0, %v1994
    %1996 = vmatmul.f32.gmra.mxu0 %v1957
    %v1997 = vpop.f32.mrf.mxu0
    %v1998 = vadd.f32 0.0, %v1997
    %1999 = vmatmul.f32.gmra.mxu0 %v1960
    %v2000 = vpop.f32.mrf.mxu0
    %v2001 = vadd.f32 0.0, %v2000
    %2002 = vmatmul.f32.gmra.mxu0 %v1963
    %v2003 = vpop.f32.mrf.mxu0
    %v2004 = vadd.f32 0.0, %v2003
    %2005 = vdwg.mxu0
    %v2007 = vsel %vm1914, %v1923, 0
    %v2010 = vsel %vm1914, %v1924, 0
    %v2013 = vsel %vm1914, %v1925, 0
    %v2016 = vsel %vm1914, %v1926, 0
    %v2019 = vsel %vm1914, %v1927, 0
    %v2022 = vsel %vm1914, %v1928, 0
    %v2025 = vsel %vm1914, %v1929, 0
    %v2028 = vsel %vm1914, %v1930, 0
    %2030 = vmatpush.msra.mxu0 0.0
    %2031 = vmatpush.msra.mxu0 0.0
    %2032 = vmatpush.msra.mxu0 0.0
    %2033 = vmatpush.msra.mxu0 0.0
    %2034 = vmatpush.msra.mxu0 0.0
    %2035 = vmatpush.msra.mxu0 0.0
    %2036 = vmatpush.msra.mxu0 0.0
    %2037 = vmatpush.msra.mxu0 0.0
    %2038 = vmatpush.msra.mxu0 0.0
    %2039 = vmatpush.msra.mxu0 0.0
    %2040 = vmatpush.msra.mxu0 0.0
    %2041 = vmatpush.msra.mxu0 0.0
    %2042 = vmatpush.msra.mxu0 0.0
    %2043 = vmatpush.msra.mxu0 0.0
    %2044 = vmatpush.msra.mxu0 0.0
    %2045 = vmatpush.msra.mxu0 %v1931
    %2046 = vmatmul.f32.gmra.mxu0 %v2007
    %v2047 = vpop.f32.mrf.mxu0
    %v2048 = vadd.f32 %v1983, %v2047
    %2049 = vmatmul.f32.gmra.mxu0 %v2010
    %v2050 = vpop.f32.mrf.mxu0
    %v2051 = vadd.f32 %v1986, %v2050
    %2052 = vmatmul.f32.gmra.mxu0 %v2013
    %v2053 = vpop.f32.mrf.mxu0
    %v2054 = vadd.f32 %v1989, %v2053
    %2055 = vmatmul.f32.gmra.mxu0 %v2016
    %v2056 = vpop.f32.mrf.mxu0
    %v2057 = vadd.f32 %v1992, %v2056
    %2058 = vmatmul.f32.gmra.mxu0 %v2019
    %v2059 = vpop.f32.mrf.mxu0
    %v2060 = vadd.f32 %v1995, %v2059
    %2061 = vmatmul.f32.gmra.mxu0 %v2022
    %v2062 = vpop.f32.mrf.mxu0
    %v2063 = vadd.f32 %v1998, %v2062
    %2064 = vmatmul.f32.gmra.mxu0 %v2025
    %v2065 = vpop.f32.mrf.mxu0
    %v2066 = vadd.f32 %v2001, %v2065
    %2067 = vmatmul.f32.gmra.mxu0 %v2028
    %v2068 = vpop.f32.mrf.mxu0
    %v2069 = vadd.f32 %v2004, %v2068
    %2070 = vdwg.mxu0
    %v2071 = vld [vmem:[#allocation2 + $0x7] sm:$0xff]
    %v2072 = vld [vmem:[#allocation2 + $0xf] sm:$0xff]
    %v2073 = vld [vmem:[#allocation2 + $0x17] sm:$0xff]
    %v2074 = vld [vmem:[#allocation2 + $0x1f] sm:$0xff]
    %v2075 = vld [vmem:[#allocation2 + $0x57] sm:$0xff]
    %v2076 = vld [vmem:[#allocation2 + $0x5f] sm:$0xff]
    %v2077 = vld [vmem:[#allocation2 + $0x67] sm:$0xff]
    %v2078 = vld [vmem:[#allocation2 + $0x6f] sm:$0xff]
    %v2079 = vld [vmem:[#allocation3 + $0xe0] sm:$0xff]
    %v2081 = vsel %vm1914, %v2071, 0
    %v2084 = vsel %vm1914, %v2072, 0
    %v2087 = vsel %vm1914, %v2073, 0
    %v2090 = vsel %vm1914, %v2074, 0
    %v2093 = vsel %vm1914, %v2075, 0
    %v2096 = vsel %vm1914, %v2076, 0
    %v2099 = vsel %vm1914, %v2077, 0
    %v2102 = vsel %vm1914, %v2078, 0
    %2104 = vmatpush.msra.mxu0 0.0
    %2105 = vmatpush.msra.mxu0 0.0
    %2106 = vmatpush.msra.mxu0 0.0
    %2107 = vmatpush.msra.mxu0 0.0
    %2108 = vmatpush.msra.mxu0 0.0
    %2109 = vmatpush.msra.mxu0 0.0
    %2110 = vmatpush.msra.mxu0 0.0
    %2111 = vmatpush.msra.mxu0 0.0
    %2112 = vmatpush.msra.mxu0 0.0
    %2113 = vmatpush.msra.mxu0 0.0
    %2114 = vmatpush.msra.mxu0 0.0
    %2115 = vmatpush.msra.mxu0 0.0
    %2116 = vmatpush.msra.mxu0 0.0
    %2117 = vmatpush.msra.mxu0 0.0
    %2118 = vmatpush.msra.mxu0 0.0
    %2119 = vmatpush.msra.mxu0 %v2079
    %2120 = vmatmul.f32.gmra.mxu0 %v2081
    %v2121 = vpop.f32.mrf.mxu0
    %v2122 = vadd.f32 0.0, %v2121
    %2123 = vmatmul.f32.gmra.mxu0 %v2084
    %v2124 = vpop.f32.mrf.mxu0
    %v2125 = vadd.f32 0.0, %v2124
    %2126 = vmatmul.f32.gmra.mxu0 %v2087
    %v2127 = vpop.f32.mrf.mxu0
    %v2128 = vadd.f32 0.0, %v2127
    %2129 = vmatmul.f32.gmra.mxu0 %v2090
    %v2130 = vpop.f32.mrf.mxu0
    %v2131 = vadd.f32 0.0, %v2130
    %2132 = vmatmul.f32.gmra.mxu0 %v2093
    %v2133 = vpop.f32.mrf.mxu0
    %v2134 = vadd.f32 0.0, %v2133
    %2135 = vmatmul.f32.gmra.mxu0 %v2096
    %v2136 = vpop.f32.mrf.mxu0
    %v2137 = vadd.f32 0.0, %v2136
    %2138 = vmatmul.f32.gmra.mxu0 %v2099
    %v2139 = vpop.f32.mrf.mxu0
    %v2140 = vadd.f32 0.0, %v2139
    %2141 = vmatmul.f32.gmra.mxu0 %v2102
    %v2142 = vpop.f32.mrf.mxu0
    %v2143 = vadd.f32 0.0, %v2142
    %2144 = vdwg.mxu0
    %v2145 = vadd.f32 %v2048, %v2122
    %v2146 = vadd.f32 %v2051, %v2125
    %v2147 = vadd.f32 %v2054, %v2128
    %v2148 = vadd.f32 %v2057, %v2131
    %v2149 = vadd.f32 %v2060, %v2134
    %v2150 = vadd.f32 %v2063, %v2137
    %v2151 = vadd.f32 %v2066, %v2140
    %v2152 = vadd.f32 %v2069, %v2143
    %v2153 = vld [vmem:[#allocation2 + $0x8] sm:$0xff]
    %v2154 = vld [vmem:[#allocation2 + $0x10] sm:$0xff]
    %v2155 = vld [vmem:[#allocation2 + $0x18] sm:$0xff]
    %v2156 = vld [vmem:[#allocation2 + $0x20] sm:$0xff]
    %v2157 = vld [vmem:[#allocation2 + $0x58] sm:$0xff]
    %v2158 = vld [vmem:[#allocation2 + $0x60] sm:$0xff]
    %v2159 = vld [vmem:[#allocation2 + $0x68] sm:$0xff]
    %v2160 = vld [vmem:[#allocation2 + $0x70] sm:$0xff]
    %v2161 = vld [vmem:[#allocation3 + $0xe8] sm:$0xff]
    %v2163 = vsel %vm1914, %v2153, 0
    %v2166 = vsel %vm1914, %v2154, 0
    %v2169 = vsel %vm1914, %v2155, 0
    %v2172 = vsel %vm1914, %v2156, 0
    %v2175 = vsel %vm1914, %v2157, 0
    %v2178 = vsel %vm1914, %v2158, 0
    %v2181 = vsel %vm1914, %v2159, 0
    %v2184 = vsel %vm1914, %v2160, 0
    %2186 = vmatpush.msra.mxu0 0.0
    %2187 = vmatpush.msra.mxu0 0.0
    %2188 = vmatpush.msra.mxu0 0.0
    %2189 = vmatpush.msra.mxu0 0.0
    %2190 = vmatpush.msra.mxu0 0.0
    %2191 = vmatpush.msra.mxu0 0.0
    %2192 = vmatpush.msra.mxu0 0.0
    %2193 = vmatpush.msra.mxu0 0.0
    %2194 = vmatpush.msra.mxu0 0.0
    %2195 = vmatpush.msra.mxu0 0.0
    %2196 = vmatpush.msra.mxu0 0.0
    %2197 = vmatpush.msra.mxu0 0.0
    %2198 = vmatpush.msra.mxu0 0.0
    %2199 = vmatpush.msra.mxu0 0.0
    %2200 = vmatpush.msra.mxu0 0.0
    %2201 = vmatpush.msra.mxu0 %v2161
    %2202 = vmatmul.f32.gmra.mxu0 %v2163
    %v2203 = vpop.f32.mrf.mxu0
    %v2204 = vadd.f32 0.0, %v2203
    %2205 = vmatmul.f32.gmra.mxu0 %v2166
    %v2206 = vpop.f32.mrf.mxu0
    %v2207 = vadd.f32 0.0, %v2206
    %2208 = vmatmul.f32.gmra.mxu0 %v2169
    %v2209 = vpop.f32.mrf.mxu0
    %v2210 = vadd.f32 0.0, %v2209
    %2211 = vmatmul.f32.gmra.mxu0 %v2172
    %v2212 = vpop.f32.mrf.mxu0
    %v2213 = vadd.f32 0.0, %v2212
    %2214 = vmatmul.f32.gmra.mxu0 %v2175
    %v2215 = vpop.f32.mrf.mxu0
    %v2216 = vadd.f32 0.0, %v2215
    %2217 = vmatmul.f32.gmra.mxu0 %v2178
    %v2218 = vpop.f32.mrf.mxu0
    %v2219 = vadd.f32 0.0, %v2218
    %2220 = vmatmul.f32.gmra.mxu0 %v2181
    %v2221 = vpop.f32.mrf.mxu0
    %v2222 = vadd.f32 0.0, %v2221
    %2223 = vmatmul.f32.gmra.mxu0 %v2184
    %v2224 = vpop.f32.mrf.mxu0
    %v2225 = vadd.f32 0.0, %v2224
    %2226 = vdwg.mxu0
    %v2227 = vadd.f32 %v2145, %v2204
    %v2228 = vadd.f32 %v2146, %v2207
    %v2229 = vadd.f32 %v2147, %v2210
    %v2230 = vadd.f32 %v2148, %v2213
    %v2231 = vadd.f32 %v2149, %v2216
    %v2232 = vadd.f32 %v2150, %v2219
    %v2233 = vadd.f32 %v2151, %v2222
    %v2234 = vadd.f32 %v2152, %v2225
    %v2235 = vld [vmem:[#allocation2 + $0x9] sm:$0xff]
    %v2236 = vld [vmem:[#allocation2 + $0x11] sm:$0xff]
    %v2237 = vld [vmem:[#allocation2 + $0x19] sm:$0xff]
    %v2238 = vld [vmem:[#allocation2 + $0x21] sm:$0xff]
    %v2239 = vld [vmem:[#allocation2 + $0x59] sm:$0xff]
    %v2240 = vld [vmem:[#allocation2 + $0x61] sm:$0xff]
    %v2241 = vld [vmem:[#allocation2 + $0x69] sm:$0xff]
    %v2242 = vld [vmem:[#allocation2 + $0x71] sm:$0xff]
    %v2243 = vld [vmem:[#allocation3 + $0xf0] sm:$0xff]
    %v2245 = vsel %vm1914, %v2235, 0
    %v2248 = vsel %vm1914, %v2236, 0
    %v2251 = vsel %vm1914, %v2237, 0
    %v2254 = vsel %vm1914, %v2238, 0
    %v2257 = vsel %vm1914, %v2239, 0
    %v2260 = vsel %vm1914, %v2240, 0
    %v2263 = vsel %vm1914, %v2241, 0
    %v2266 = vsel %vm1914, %v2242, 0
    %2268 = vmatpush.msra.mxu0 0.0
    %2269 = vmatpush.msra.mxu0 0.0
    %2270 = vmatpush.msra.mxu0 0.0
    %2271 = vmatpush.msra.mxu0 0.0
    %2272 = vmatpush.msra.mxu0 0.0
    %2273 = vmatpush.msra.mxu0 0.0
    %2274 = vmatpush.msra.mxu0 0.0
    %2275 = vmatpush.msra.mxu0 0.0
    %2276 = vmatpush.msra.mxu0 0.0
    %2277 = vmatpush.msra.mxu0 0.0
    %2278 = vmatpush.msra.mxu0 0.0
    %2279 = vmatpush.msra.mxu0 0.0
    %2280 = vmatpush.msra.mxu0 0.0
    %2281 = vmatpush.msra.mxu0 0.0
    %2282 = vmatpush.msra.mxu0 0.0
    %2283 = vmatpush.msra.mxu0 %v2243
    %2284 = vmatmul.f32.gmra.mxu0 %v2245
    %v2285 = vpop.f32.mrf.mxu0
    %v2286 = vadd.f32 0.0, %v2285
    %2287 = vmatmul.f32.gmra.mxu0 %v2248
    %v2288 = vpop.f32.mrf.mxu0
    %v2289 = vadd.f32 0.0, %v2288
    %2290 = vmatmul.f32.gmra.mxu0 %v2251
    %v2291 = vpop.f32.mrf.mxu0
    %v2292 = vadd.f32 0.0, %v2291
    %2293 = vmatmul.f32.gmra.mxu0 %v2254
    %v2294 = vpop.f32.mrf.mxu0
    %v2295 = vadd.f32 0.0, %v2294
    %2296 = vmatmul.f32.gmra.mxu0 %v2257
    %v2297 = vpop.f32.mrf.mxu0
    %v2298 = vadd.f32 0.0, %v2297
    %2299 = vmatmul.f32.gmra.mxu0 %v2260
    %v2300 = vpop.f32.mrf.mxu0
    %v2301 = vadd.f32 0.0, %v2300
    %2302 = vmatmul.f32.gmra.mxu0 %v2263
    %v2303 = vpop.f32.mrf.mxu0
    %v2304 = vadd.f32 0.0, %v2303
    %2305 = vmatmul.f32.gmra.mxu0 %v2266
    %v2306 = vpop.f32.mrf.mxu0
    %v2307 = vadd.f32 0.0, %v2306
    %2308 = vdwg.mxu0
    %v2309 = vadd.f32 %v2227, %v2286
    %v2310 = vadd.f32 %v2228, %v2289
    %v2311 = vadd.f32 %v2229, %v2292
    %v2312 = vadd.f32 %v2230, %v2295
    %v2313 = vadd.f32 %v2231, %v2298
    %v2314 = vadd.f32 %v2232, %v2301
    %v2315 = vadd.f32 %v2233, %v2304
    %v2316 = vadd.f32 %v2234, %v2307
    %v2317 = vld [vmem:[#allocation2 + $0xa] sm:$0xff]
    %v2318 = vld [vmem:[#allocation2 + $0x12] sm:$0xff]
    %v2319 = vld [vmem:[#allocation2 + $0x1a] sm:$0xff]
    %v2320 = vld [vmem:[#allocation2 + $0x22] sm:$0xff]
    %v2321 = vld [vmem:[#allocation2 + $0x5a] sm:$0xff]
    %v2322 = vld [vmem:[#allocation2 + $0x62] sm:$0xff]
    %v2323 = vld [vmem:[#allocation2 + $0x6a] sm:$0xff]
    %v2324 = vld [vmem:[#allocation2 + $0x72] sm:$0xff]
    %v2325 = vld [vmem:[#allocation3 + $0xf8] sm:$0xff]
    %v2327 = vsel %vm1914, %v2317, 0
    %v2330 = vsel %vm1914, %v2318, 0
    %v2333 = vsel %vm1914, %v2319, 0
    %v2336 = vsel %vm1914, %v2320, 0
    %v2339 = vsel %vm1914, %v2321, 0
    %v2342 = vsel %vm1914, %v2322, 0
    %v2345 = vsel %vm1914, %v2323, 0
    %v2348 = vsel %vm1914, %v2324, 0
    %2350 = vmatpush.msra.mxu0 0.0
    %2351 = vmatpush.msra.mxu0 0.0
    %2352 = vmatpush.msra.mxu0 0.0
    %2353 = vmatpush.msra.mxu0 0.0
    %2354 = vmatpush.msra.mxu0 0.0
    %2355 = vmatpush.msra.mxu0 0.0
    %2356 = vmatpush.msra.mxu0 0.0
    %2357 = vmatpush.msra.mxu0 0.0
    %2358 = vmatpush.msra.mxu0 0.0
    %2359 = vmatpush.msra.mxu0 0.0
    %2360 = vmatpush.msra.mxu0 0.0
    %2361 = vmatpush.msra.mxu0 0.0
    %2362 = vmatpush.msra.mxu0 0.0
    %2363 = vmatpush.msra.mxu0 0.0
    %2364 = vmatpush.msra.mxu0 0.0
    %2365 = vmatpush.msra.mxu0 %v2325
    %2366 = vmatmul.f32.gmra.mxu0 %v2327
    %v2367 = vpop.f32.mrf.mxu0
    %v2368 = vadd.f32 0.0, %v2367
    %2369 = vmatmul.f32.gmra.mxu0 %v2330
    %v2370 = vpop.f32.mrf.mxu0
    %v2371 = vadd.f32 0.0, %v2370
    %2372 = vmatmul.f32.gmra.mxu0 %v2333
    %v2373 = vpop.f32.mrf.mxu0
    %v2374 = vadd.f32 0.0, %v2373
    %2375 = vmatmul.f32.gmra.mxu0 %v2336
    %v2376 = vpop.f32.mrf.mxu0
    %v2377 = vadd.f32 0.0, %v2376
    %2378 = vmatmul.f32.gmra.mxu0 %v2339
    %v2379 = vpop.f32.mrf.mxu0
    %v2380 = vadd.f32 0.0, %v2379
    %2381 = vmatmul.f32.gmra.mxu0 %v2342
    %v2382 = vpop.f32.mrf.mxu0
    %v2383 = vadd.f32 0.0, %v2382
    %2384 = vmatmul.f32.gmra.mxu0 %v2345
    %v2385 = vpop.f32.mrf.mxu0
    %v2386 = vadd.f32 0.0, %v2385
    %2387 = vmatmul.f32.gmra.mxu0 %v2348
    %v2388 = vpop.f32.mrf.mxu0
    %v2389 = vadd.f32 0.0, %v2388
    %2390 = vdwg.mxu0
    %v2391 = vadd.f32 %v2309, %v2368
    %v2392 = vadd.f32 %v2310, %v2371
    %v2393 = vadd.f32 %v2311, %v2374
    %v2394 = vadd.f32 %v2312, %v2377
    %v2395 = vadd.f32 %v2313, %v2380
    %v2396 = vadd.f32 %v2314, %v2383
    %v2397 = vadd.f32 %v2315, %v2386
    %v2398 = vadd.f32 %v2316, %v2389
    %v2399 = vld [vmem:[#allocation2 + $0xb] sm:$0xff]
    %v2400 = vld [vmem:[#allocation2 + $0x13] sm:$0xff]
    %v2401 = vld [vmem:[#allocation2 + $0x1b] sm:$0xff]
    %v2402 = vld [vmem:[#allocation2 + $0x23] sm:$0xff]
    %v2403 = vld [vmem:[#allocation2 + $0x5b] sm:$0xff]
    %v2404 = vld [vmem:[#allocation2 + $0x63] sm:$0xff]
    %v2405 = vld [vmem:[#allocation2 + $0x6b] sm:$0xff]
    %v2406 = vld [vmem:[#allocation2 + $0x73] sm:$0xff]
    %v2407 = vld [vmem:[#allocation3 + $0x100] sm:$0xff]
    %v2409 = vsel %vm1914, %v2399, 0
    %v2412 = vsel %vm1914, %v2400, 0
    %v2415 = vsel %vm1914, %v2401, 0
    %v2418 = vsel %vm1914, %v2402, 0
    %v2421 = vsel %vm1914, %v2403, 0
    %v2424 = vsel %vm1914, %v2404, 0
    %v2427 = vsel %vm1914, %v2405, 0
    %v2430 = vsel %vm1914, %v2406, 0
    %2432 = vmatpush.msra.mxu0 0.0
    %2433 = vmatpush.msra.mxu0 0.0
    %2434 = vmatpush.msra.mxu0 0.0
    %2435 = vmatpush.msra.mxu0 0.0
    %2436 = vmatpush.msra.mxu0 0.0
    %2437 = vmatpush.msra.mxu0 0.0
    %2438 = vmatpush.msra.mxu0 0.0
    %2439 = vmatpush.msra.mxu0 0.0
    %2440 = vmatpush.msra.mxu0 0.0
    %2441 = vmatpush.msra.mxu0 0.0
    %2442 = vmatpush.msra.mxu0 0.0
    %2443 = vmatpush.msra.mxu0 0.0
    %2444 = vmatpush.msra.mxu0 0.0
    %2445 = vmatpush.msra.mxu0 0.0
    %2446 = vmatpush.msra.mxu0 0.0
    %2447 = vmatpush.msra.mxu0 %v2407
    %2448 = vmatmul.f32.gmra.mxu0 %v2409
    %v2449 = vpop.f32.mrf.mxu0
    %v2450 = vadd.f32 0.0, %v2449
    %2451 = vmatmul.f32.gmra.mxu0 %v2412
    %v2452 = vpop.f32.mrf.mxu0
    %v2453 = vadd.f32 0.0, %v2452
    %2454 = vmatmul.f32.gmra.mxu0 %v2415
    %v2455 = vpop.f32.mrf.mxu0
    %v2456 = vadd.f32 0.0, %v2455
    %2457 = vmatmul.f32.gmra.mxu0 %v2418
    %v2458 = vpop.f32.mrf.mxu0
    %v2459 = vadd.f32 0.0, %v2458
    %2460 = vmatmul.f32.gmra.mxu0 %v2421
    %v2461 = vpop.f32.mrf.mxu0
    %v2462 = vadd.f32 0.0, %v2461
    %2463 = vmatmul.f32.gmra.mxu0 %v2424
    %v2464 = vpop.f32.mrf.mxu0
    %v2465 = vadd.f32 0.0, %v2464
    %2466 = vmatmul.f32.gmra.mxu0 %v2427
    %v2467 = vpop.f32.mrf.mxu0
    %v2468 = vadd.f32 0.0, %v2467
    %2469 = vmatmul.f32.gmra.mxu0 %v2430
    %v2470 = vpop.f32.mrf.mxu0
    %v2471 = vadd.f32 0.0, %v2470
    %2472 = vdwg.mxu0
    %v2473 = vadd.f32 %v2391, %v2450
    %v2474 = vadd.f32 %v2392, %v2453
    %v2475 = vadd.f32 %v2393, %v2456
    %v2476 = vadd.f32 %v2394, %v2459
    %v2477 = vadd.f32 %v2395, %v2462
    %v2478 = vadd.f32 %v2396, %v2465
    %v2479 = vadd.f32 %v2397, %v2468
    %v2480 = vadd.f32 %v2398, %v2471
    %v2481 = vperm.slane %v1286, 0
    %v2482 = vperm.slane %v1318, 0
    %v2483 = vperm.slane %v1319, 0
    %v2484 = vperm.slane %v1320, 0
    %v2485 = vperm.slane %v1287, 0
    %v2486 = vperm.slane %v1321, 0
    %v2487 = vperm.slane %v1322, 0
    %v2488 = vperm.slane %v1323, 0
    %v2489 = vperm.slane %v1288, 0
    %v2490 = vperm.slane %v1324, 0
    %v2491 = vperm.slane %v1325, 0
    %v2492 = vperm.slane %v1326, 0
    %v2493 = vperm.slane %v1289, 0
    %v2494 = vperm.slane %v1327, 0
    %v2495 = vperm.slane %v1328, 0
    %v2496 = vperm.slane %v1329, 0
    %v2497 = vperm.slane %v1290, 0
    %v2498 = vperm.slane %v1330, 0
    %v2499 = vperm.slane %v1331, 0
    %v2500 = vperm.slane %v1332, 0
    %v2501 = vperm.slane %v1291, 0
    %v2502 = vperm.slane %v1333, 0
    %v2503 = vperm.slane %v1334, 0
    %v2504 = vperm.slane %v1335, 0
    %v2505 = vperm.slane %v1292, 0
    %v2506 = vperm.slane %v1336, 0
    %v2507 = vperm.slane %v1337, 0
    %v2508 = vperm.slane %v1338, 0
    %v2509 = vperm.slane %v1293, 0
    %v2510 = vperm.slane %v1339, 0
    %v2511 = vperm.slane %v1340, 0
    %v2512 = vperm.slane %v1341, 0
    %v2513 = vperm.slane %v1294, 0
    %v2514 = vperm.slane %v1342, 0
    %v2515 = vperm.slane %v1343, 0
    %v2516 = vperm.slane %v1344, 0
    %v2517 = vperm.slane %v1295, 0
    %v2518 = vperm.slane %v1345, 0
    %v2519 = vperm.slane %v1346, 0
    %v2520 = vperm.slane %v1347, 0
    %v2521 = vperm.slane %v1296, 0
    %v2522 = vperm.slane %v1348, 0
    %v2523 = vperm.slane %v1349, 0
    %v2524 = vperm.slane %v1350, 0
    %v2525 = vperm.slane %v1297, 0
    %v2526 = vperm.slane %v1351, 0
    %v2527 = vperm.slane %v1352, 0
    %v2528 = vperm.slane %v1353, 0
    %v2529 = vperm.slane %v1298, 0
    %v2530 = vperm.slane %v1354, 0
    %v2531 = vperm.slane %v1355, 0
    %v2532 = vperm.slane %v1356, 0
    %v2533 = vperm.slane %v1299, 0
    %v2534 = vperm.slane %v1357, 0
    %v2535 = vperm.slane %v1358, 0
    %v2536 = vperm.slane %v1359, 0
    %v2537 = vperm.slane %v1300, 0
    %v2538 = vperm.slane %v1360, 0
    %v2539 = vperm.slane %v1361, 0
    %v2540 = vperm.slane %v1362, 0
    %v2541 = vperm.slane %v1301, 0
    %v2542 = vperm.slane %v1363, 0
    %v2543 = vperm.slane %v1364, 0
    %v2544 = vperm.slane %v1365, 0
    %v2545 = vsel %vm1786, %v2482, %v2481
    %v2546 = vsel %vm1788, %v2483, %v2545
    %v2547 = vsel %vm1790, %v2484, %v2546
    %v2548 = vsel %vm1792, %v2485, %v2547
    %v2549 = vsel %vm1794, %v2486, %v2548
    %v2550 = vsel %vm1796, %v2487, %v2549
    %v2551 = vsel %vm1798, %v2488, %v2550
    %v2552 = vsel %vm1786, %v2490, %v2489
    %v2553 = vsel %vm1788, %v2491, %v2552
    %v2554 = vsel %vm1790, %v2492, %v2553
    %v2555 = vsel %vm1792, %v2493, %v2554
    %v2556 = vsel %vm1794, %v2494, %v2555
    %v2557 = vsel %vm1796, %v2495, %v2556
    %v2558 = vsel %vm1798, %v2496, %v2557
    %v2559 = vsel %vm1786, %v2498, %v2497
    %v2560 = vsel %vm1788, %v2499, %v2559
    %v2561 = vsel %vm1790, %v2500, %v2560
    %v2562 = vsel %vm1792, %v2501, %v2561
    %v2563 = vsel %vm1794, %v2502, %v2562
    %v2564 = vsel %vm1796, %v2503, %v2563
    %v2565 = vsel %vm1798, %v2504, %v2564
    %v2566 = vsel %vm1786, %v2506, %v2505
    %v2567 = vsel %vm1788, %v2507, %v2566
    %v2568 = vsel %vm1790, %v2508, %v2567
    %v2569 = vsel %vm1792, %v2509, %v2568
    %v2570 = vsel %vm1794, %v2510, %v2569
    %v2571 = vsel %vm1796, %v2511, %v2570
    %v2572 = vsel %vm1798, %v2512, %v2571
    %v2573 = vsel %vm1786, %v2514, %v2513
    %v2574 = vsel %vm1788, %v2515, %v2573
    %v2575 = vsel %vm1790, %v2516, %v2574
    %v2576 = vsel %vm1792, %v2517, %v2575
    %v2577 = vsel %vm1794, %v2518, %v2576
    %v2578 = vsel %vm1796, %v2519, %v2577
    %v2579 = vsel %vm1798, %v2520, %v2578
    %v2580 = vsel %vm1786, %v2522, %v2521
    %v2581 = vsel %vm1788, %v2523, %v2580
    %v2582 = vsel %vm1790, %v2524, %v2581
    %v2583 = vsel %vm1792, %v2525, %v2582
    %v2584 = vsel %vm1794, %v2526, %v2583
    %v2585 = vsel %vm1796, %v2527, %v2584
    %v2586 = vsel %vm1798, %v2528, %v2585
    %v2587 = vsel %vm1786, %v2530, %v2529
    %v2588 = vsel %vm1788, %v2531, %v2587
    %v2589 = vsel %vm1790, %v2532, %v2588
    %v2590 = vsel %vm1792, %v2533, %v2589
    %v2591 = vsel %vm1794, %v2534, %v2590
    %v2592 = vsel %vm1796, %v2535, %v2591
    %v2593 = vsel %vm1798, %v2536, %v2592
    %v2594 = vsel %vm1786, %v2538, %v2537
    %v2595 = vsel %vm1788, %v2539, %v2594
    %v2596 = vsel %vm1790, %v2540, %v2595
    %v2597 = vsel %vm1792, %v2541, %v2596
    %v2598 = vsel %vm1794, %v2542, %v2597
    %v2599 = vsel %vm1796, %v2543, %v2598
    %v2600 = vsel %vm1798, %v2544, %v2599
    %2617 = vrot.lane.b32.xlu0 %v2473, 96
    %v2618 = vpop.permute.xlu0 %2617
    %2619 = vrot.lane.b32.xlu0 %v2474, 96
    %v2620 = vpop.permute.xlu0 %2619
    %2621 = vrot.lane.b32.xlu0 %v2475, 96
    %v2622 = vpop.permute.xlu0 %2621
    %2623 = vrot.lane.b32.xlu0 %v2476, 96
    %v2624 = vpop.permute.xlu0 %2623
    %2625 = vrot.lane.b32.xlu0 %v2477, 96
    %v2626 = vpop.permute.xlu0 %2625
    %2627 = vrot.lane.b32.xlu0 %v2478, 96
    %v2628 = vpop.permute.xlu0 %2627
    %2629 = vrot.lane.b32.xlu0 %v2479, 96
    %v2630 = vpop.permute.xlu0 %2629
    %2631 = vrot.lane.b32.xlu0 %v2480, 96
    %v2632 = vpop.permute.xlu0 %2631
    %v2641 = vsel %vm1205, %v2551, %v2618
    %v2642 = vsel %vm1205, %v2558, %v2620
    %v2643 = vsel %vm1205, %v2565, %v2622
    %v2644 = vsel %vm1205, %v2572, %v2624
    %v2645 = vsel %vm1205, %v2579, %v2626
    %v2646 = vsel %vm1205, %v2586, %v2628
    %v2647 = vsel %vm1205, %v2593, %v2630
    %v2648 = vsel %vm1205, %v2600, %v2632
    %v2649 = vld [vmem:[#allocation6 + $0x6] sm:$0x1]
    %v2650 = vld [vmem:[#allocation6 + $0x7] sm:$0x1]
    %v2651 = vld [vmem:[#allocation3 + $0x108] sm:$0xff]
    %v2652 = vld [vmem:[#allocation3 + $0x110] sm:$0xff]
    %v2653 = vld [vmem:[#allocation3 + $0x118] sm:$0xff]
    %v2654 = vld [vmem:[#allocation3 + $0x120] sm:$0xff]
    %v2655 = vld [vmem:[#allocation3 + $0x128] sm:$0xff]
    %v2656 = vld [vmem:[#allocation3 + $0x130] sm:$0xff]
    %v2657 = vld [vmem:[#allocation3 + $0x138] sm:$0xff]
    %v2658 = vld [vmem:[#allocation3 + $0x140] sm:$0xff]
    %v2659 = vld [vmem:[#allocation3 + $0x148] sm:$0xff]
    %v2660 = vld [vmem:[#allocation3 + $0x150] sm:$0xff]
    %v2661 = vld [vmem:[#allocation3 + $0x158] sm:$0xff]
    %v2662 = vld [vmem:[#allocation3 + $0x160] sm:$0xff]
    %v2663 = vld [vmem:[#allocation3 + $0x168] sm:$0xff]
    %v2664 = vld [vmem:[#allocation3 + $0x170] sm:$0xf]
    %v2665 = vld [vmem:[#allocation6 + $0x8] sm:$0x1]
    %v2666 = vperm.slane %v2649, 0
    %v2667 = vmul.f32 %v2641, %v2666
    %v2668 = vmul.f32 %v2642, %v2666
    %v2669 = vmul.f32 %v2643, %v2666
    %v2670 = vmul.f32 %v2644, %v2666
    %v2671 = vmul.f32 %v2645, %v2666
    %v2672 = vmul.f32 %v2646, %v2666
    %v2673 = vmul.f32 %v2647, %v2666
    %v2674 = vmul.f32 %v2648, %v2666
    %v2675 = vperm.slane %v2650, 0
    %v2676 = vadd.f32 %v2667, %v2675
    %v2677 = vadd.f32 %v2668, %v2675
    %v2678 = vadd.f32 %v2669, %v2675
    %v2679 = vadd.f32 %v2670, %v2675
    %v2680 = vadd.f32 %v2671, %v2675
    %v2681 = vadd.f32 %v2672, %v2675
    %v2682 = vadd.f32 %v2673, %v2675
    %v2683 = vadd.f32 %v2674, %v2675
    %v2684 = vmax.f32 %v2676, 0.0
    %v2685 = vmax.f32 %v2677, 0.0
    %v2686 = vmax.f32 %v2678, 0.0
    %v2687 = vmax.f32 %v2679, 0.0
    %v2688 = vmax.f32 %v2680, 0.0
    %v2689 = vmax.f32 %v2681, 0.0
    %v2690 = vmax.f32 %v2682, 0.0
    %v2691 = vmax.f32 %v2683, 0.0
    %v2692 = vperm.slane %v2665, 0
    %vm2693 = vcmask 883712
    %v2695 = vsel %vm2693, %v2684, 0
    %v2698 = vsel %vm2693, %v2685, 0
    %v2701 = vsel %vm2693, %v2686, 0
    %v2704 = vsel %vm2693, %v2687, 0
    %v2707 = vsel %vm2693, %v2688, 0
    %v2710 = vsel %vm2693, %v2689, 0
    %v2713 = vsel %vm2693, %v2690, 0
    %v2716 = vsel %vm2693, %v2691, 0
    %v2719 = vsel %vm185, %v2664, 0
    %2721 = vmatpush.msra.mxu0 0.0
    %2722 = vmatpush.msra.mxu0 0.0
    %2723 = vmatpush.msra.mxu0 %v2719
    %2724 = vmatpush.msra.mxu0 %v2663
    %2725 = vmatpush.msra.mxu0 %v2662
    %2726 = vmatpush.msra.mxu0 %v2661
    %2727 = vmatpush.msra.mxu0 %v2660
    %2728 = vmatpush.msra.mxu0 %v2659
    %2729 = vmatpush.msra.mxu0 %v2658
    %2730 = vmatpush.msra.mxu0 %v2657
    %2731 = vmatpush.msra.mxu0 %v2656
    %2732 = vmatpush.msra.mxu0 %v2655
    %2733 = vmatpush.msra.mxu0 %v2654
    %2734 = vmatpush.msra.mxu0 %v2653
    %2735 = vmatpush.msra.mxu0 %v2652
    %2736 = vmatpush.msra.mxu0 %v2651
    %2737 = vmatmul.f32.gmra.mxu0 %v2695
    %v2738 = vpop.f32.mrf.mxu0
    %v2739 = vadd.f32 %v2692, %v2738
    %2740 = vmatmul.f32.gmra.mxu0 %v2698
    %v2741 = vpop.f32.mrf.mxu0
    %v2742 = vadd.f32 %v2692, %v2741
    %2743 = vmatmul.f32.gmra.mxu0 %v2701
    %v2744 = vpop.f32.mrf.mxu0
    %v2745 = vadd.f32 %v2692, %v2744
    %2746 = vmatmul.f32.gmra.mxu0 %v2704
    %v2747 = vpop.f32.mrf.mxu0
    %v2748 = vadd.f32 %v2692, %v2747
    %2749 = vmatmul.f32.gmra.mxu0 %v2707
    %v2750 = vpop.f32.mrf.mxu0
    %v2751 = vadd.f32 %v2692, %v2750
    %2752 = vmatmul.f32.gmra.mxu0 %v2710
    %v2753 = vpop.f32.mrf.mxu0
    %v2754 = vadd.f32 %v2692, %v2753
    %2755 = vmatmul.f32.gmra.mxu0 %v2713
    %v2756 = vpop.f32.mrf.mxu0
    %v2757 = vadd.f32 %v2692, %v2756
    %2758 = vmatmul.f32.gmra.mxu0 %v2716
    %v2759 = vpop.f32.mrf.mxu0
    %v2760 = vadd.f32 %v2692, %v2759
    %2761 = vdwg.mxu0
    %v2762 = vmax.f32 %v2739, 0.0
    %v2763 = vmax.f32 %v2742, 0.0
    %v2764 = vmax.f32 %v2745, 0.0
    %v2765 = vmax.f32 %v2748, 0.0
    %v2766 = vmax.f32 %v2751, 0.0
    %v2767 = vmax.f32 %v2754, 0.0
    %v2768 = vmax.f32 %v2757, 0.0
    %v2769 = vmax.f32 %v2760, 0.0
    %2770 = vst.msk [vmem:[#allocation2 + $0x8] sm:$0xff] %vm1914, %v2762
    %2771 = vst.msk [vmem:[#allocation2 + $0x10] sm:$0xff] %vm1914, %v2763
    %2772 = vst.msk [vmem:[#allocation2 + $0x18] sm:$0xff] %vm1914, %v2764
    %2773 = vst.msk [vmem:[#allocation2 + $0x20] sm:$0xff] %vm1914, %v2765
    %2774 = vst.msk [vmem:[#allocation2 + $0x58] sm:$0xff] %vm1914, %v2766
    %2775 = vst.msk [vmem:[#allocation2 + $0x60] sm:$0xff] %vm1914, %v2767
    %2776 = vst.msk [vmem:[#allocation2 + $0x68] sm:$0xff] %vm1914, %v2768
    %2777 = vst.msk [vmem:[#allocation2 + $0x70] sm:$0xff] %vm1914, %v2769
    %v2778 = vld [vmem:[#allocation2 + $0x5] sm:$0xff]
    %v2779 = vld [vmem:[#allocation2 + $0xd] sm:$0xff]
    %v2780 = vld [vmem:[#allocation2 + $0x15] sm:$0xff]
    %v2781 = vld [vmem:[#allocation2 + $0x1d] sm:$0xff]
    %v2782 = vld [vmem:[#allocation2 + $0x55] sm:$0xff]
    %v2783 = vld [vmem:[#allocation2 + $0x5d] sm:$0xff]
    %v2784 = vld [vmem:[#allocation2 + $0x65] sm:$0xff]
    %v2785 = vld [vmem:[#allocation2 + $0x6d] sm:$0xff]
    %v2786 = vld [vmem:[#allocation3 + $0x178] sm:$0xff]
    %v2787 = vld [vmem:[#allocation2 + $0x6] sm:$0xff]
    %v2788 = vld [vmem:[#allocation2 + $0xe] sm:$0xff]
    %v2789 = vld [vmem:[#allocation2 + $0x16] sm:$0xff]
    %v2790 = vld [vmem:[#allocation2 + $0x1e] sm:$0xff]
    %v2791 = vld [vmem:[#allocation2 + $0x56] sm:$0xff]
    %v2792 = vld [vmem:[#allocation2 + $0x5e] sm:$0xff]
    %v2793 = vld [vmem:[#allocation2 + $0x66] sm:$0xff]
    %v2794 = vld [vmem:[#allocation2 + $0x6e] sm:$0xff]
    %v2795 = vld [vmem:[#allocation3 + $0x180] sm:$0xff]
    %v2797 = vsel %vm1914, %v2787, 0
    %v2800 = vsel %vm1914, %v2788, 0
    %v2803 = vsel %vm1914, %v2789, 0
    %v2806 = vsel %vm1914, %v2790, 0
    %v2809 = vsel %vm1914, %v2791, 0
    %v2812 = vsel %vm1914, %v2792, 0
    %v2815 = vsel %vm1914, %v2793, 0
    %v2818 = vsel %vm1914, %v2794, 0
    %2820 = vmatpush.msra.mxu0 0.0
    %2821 = vmatpush.msra.mxu0 0.0
    %2822 = vmatpush.msra.mxu0 0.0
    %2823 = vmatpush.msra.mxu0 0.0
    %2824 = vmatpush.msra.mxu0 0.0
    %2825 = vmatpush.msra.mxu0 0.0
    %2826 = vmatpush.msra.mxu0 0.0
    %2827 = vmatpush.msra.mxu0 0.0
    %2828 = vmatpush.msra.mxu0 0.0
    %2829 = vmatpush.msra.mxu0 0.0
    %2830 = vmatpush.msra.mxu0 0.0
    %2831 = vmatpush.msra.mxu0 0.0
    %2832 = vmatpush.msra.mxu0 0.0
    %2833 = vmatpush.msra.mxu0 0.0
    %2834 = vmatpush.msra.mxu0 0.0
    %2835 = vmatpush.msra.mxu0 %v2795
    %2836 = vmatmul.f32.gmra.mxu0 %v2797
    %v2837 = vpop.f32.mrf.mxu0
    %v2838 = vadd.f32 0.0, %v2837
    %2839 = vmatmul.f32.gmra.mxu0 %v2800
    %v2840 = vpop.f32.mrf.mxu0
    %v2841 = vadd.f32 0.0, %v2840
    %2842 = vmatmul.f32.gmra.mxu0 %v2803
    %v2843 = vpop.f32.mrf.mxu0
    %v2844 = vadd.f32 0.0, %v2843
    %2845 = vmatmul.f32.gmra.mxu0 %v2806
    %v2846 = vpop.f32.mrf.mxu0
    %v2847 = vadd.f32 0.0, %v2846
    %2848 = vmatmul.f32.gmra.mxu0 %v2809
    %v2849 = vpop.f32.mrf.mxu0
    %v2850 = vadd.f32 0.0, %v2849
    %2851 = vmatmul.f32.gmra.mxu0 %v2812
    %v2852 = vpop.f32.mrf.mxu0
    %v2853 = vadd.f32 0.0, %v2852
    %2854 = vmatmul.f32.gmra.mxu0 %v2815
    %v2855 = vpop.f32.mrf.mxu0
    %v2856 = vadd.f32 0.0, %v2855
    %2857 = vmatmul.f32.gmra.mxu0 %v2818
    %v2858 = vpop.f32.mrf.mxu0
    %v2859 = vadd.f32 0.0, %v2858
    %2860 = vdwg.mxu0
    %v2862 = vsel %vm1914, %v2778, 0
    %v2865 = vsel %vm1914, %v2779, 0
    %v2868 = vsel %vm1914, %v2780, 0
    %v2871 = vsel %vm1914, %v2781, 0
    %v2874 = vsel %vm1914, %v2782, 0
    %v2877 = vsel %vm1914, %v2783, 0
    %v2880 = vsel %vm1914, %v2784, 0
    %v2883 = vsel %vm1914, %v2785, 0
    %2885 = vmatpush.msra.mxu0 0.0
    %2886 = vmatpush.msra.mxu0 0.0
    %2887 = vmatpush.msra.mxu0 0.0
    %2888 = vmatpush.msra.mxu0 0.0
    %2889 = vmatpush.msra.mxu0 0.0
    %2890 = vmatpush.msra.mxu0 0.0
    %2891 = vmatpush.msra.mxu0 0.0
    %2892 = vmatpush.msra.mxu0 0.0
    %2893 = vmatpush.msra.mxu0 0.0
    %2894 = vmatpush.msra.mxu0 0.0
    %2895 = vmatpush.msra.mxu0 0.0
    %2896 = vmatpush.msra.mxu0 0.0
    %2897 = vmatpush.msra.mxu0 0.0
    %2898 = vmatpush.msra.mxu0 0.0
    %2899 = vmatpush.msra.mxu0 0.0
    %2900 = vmatpush.msra.mxu0 %v2786
    %2901 = vmatmul.f32.gmra.mxu0 %v2862
    %v2902 = vpop.f32.mrf.mxu0
    %v2903 = vadd.f32 %v2838, %v2902
    %2904 = vmatmul.f32.gmra.mxu0 %v2865
    %v2905 = vpop.f32.mrf.mxu0
    %v2906 = vadd.f32 %v2841, %v2905
    %2907 = vmatmul.f32.gmra.mxu0 %v2868
    %v2908 = vpop.f32.mrf.mxu0
    %v2909 = vadd.f32 %v2844, %v2908
    %2910 = vmatmul.f32.gmra.mxu0 %v2871
    %v2911 = vpop.f32.mrf.mxu0
    %v2912 = vadd.f32 %v2847, %v2911
    %2913 = vmatmul.f32.gmra.mxu0 %v2874
    %v2914 = vpop.f32.mrf.mxu0
    %v2915 = vadd.f32 %v2850, %v2914
    %2916 = vmatmul.f32.gmra.mxu0 %v2877
    %v2917 = vpop.f32.mrf.mxu0
    %v2918 = vadd.f32 %v2853, %v2917
    %2919 = vmatmul.f32.gmra.mxu0 %v2880
    %v2920 = vpop.f32.mrf.mxu0
    %v2921 = vadd.f32 %v2856, %v2920
    %2922 = vmatmul.f32.gmra.mxu0 %v2883
    %v2923 = vpop.f32.mrf.mxu0
    %v2924 = vadd.f32 %v2859, %v2923
    %2925 = vdwg.mxu0
    %v2926 = vld [vmem:[#allocation2 + $0x7] sm:$0xff]
    %v2927 = vld [vmem:[#allocation2 + $0xf] sm:$0xff]
    %v2928 = vld [vmem:[#allocation2 + $0x17] sm:$0xff]
    %v2929 = vld [vmem:[#allocation2 + $0x1f] sm:$0xff]
    %v2930 = vld [vmem:[#allocation2 + $0x57] sm:$0xff]
    %v2931 = vld [vmem:[#allocation2 + $0x5f] sm:$0xff]
    %v2932 = vld [vmem:[#allocation2 + $0x67] sm:$0xff]
    %v2933 = vld [vmem:[#allocation2 + $0x6f] sm:$0xff]
    %v2934 = vld [vmem:[#allocation3 + $0x188] sm:$0xff]
    %v2936 = vsel %vm1914, %v2926, 0
    %v2939 = vsel %vm1914, %v2927, 0
    %v2942 = vsel %vm1914, %v2928, 0
    %v2945 = vsel %vm1914, %v2929, 0
    %v2948 = vsel %vm1914, %v2930, 0
    %v2951 = vsel %vm1914, %v2931, 0
    %v2954 = vsel %vm1914, %v2932, 0
    %v2957 = vsel %vm1914, %v2933, 0
    %2959 = vmatpush.msra.mxu0 0.0
    %2960 = vmatpush.msra.mxu0 0.0
    %2961 = vmatpush.msra.mxu0 0.0
    %2962 = vmatpush.msra.mxu0 0.0
    %2963 = vmatpush.msra.mxu0 0.0
    %2964 = vmatpush.msra.mxu0 0.0
    %2965 = vmatpush.msra.mxu0 0.0
    %2966 = vmatpush.msra.mxu0 0.0
    %2967 = vmatpush.msra.mxu0 0.0
    %2968 = vmatpush.msra.mxu0 0.0
    %2969 = vmatpush.msra.mxu0 0.0
    %2970 = vmatpush.msra.mxu0 0.0
    %2971 = vmatpush.msra.mxu0 0.0
    %2972 = vmatpush.msra.mxu0 0.0
    %2973 = vmatpush.msra.mxu0 0.0
    %2974 = vmatpush.msra.mxu0 %v2934
    %2975 = vmatmul.f32.gmra.mxu0 %v2936
    %v2976 = vpop.f32.mrf.mxu0
    %v2977 = vadd.f32 0.0, %v2976
    %2978 = vmatmul.f32.gmra.mxu0 %v2939
    %v2979 = vpop.f32.mrf.mxu0
    %v2980 = vadd.f32 0.0, %v2979
    %2981 = vmatmul.f32.gmra.mxu0 %v2942
    %v2982 = vpop.f32.mrf.mxu0
    %v2983 = vadd.f32 0.0, %v2982
    %2984 = vmatmul.f32.gmra.mxu0 %v2945
    %v2985 = vpop.f32.mrf.mxu0
    %v2986 = vadd.f32 0.0, %v2985
    %2987 = vmatmul.f32.gmra.mxu0 %v2948
    %v2988 = vpop.f32.mrf.mxu0
    %v2989 = vadd.f32 0.0, %v2988
    %2990 = vmatmul.f32.gmra.mxu0 %v2951
    %v2991 = vpop.f32.mrf.mxu0
    %v2992 = vadd.f32 0.0, %v2991
    %2993 = vmatmul.f32.gmra.mxu0 %v2954
    %v2994 = vpop.f32.mrf.mxu0
    %v2995 = vadd.f32 0.0, %v2994
    %2996 = vmatmul.f32.gmra.mxu0 %v2957
    %v2997 = vpop.f32.mrf.mxu0
    %v2998 = vadd.f32 0.0, %v2997
    %2999 = vdwg.mxu0
    %v3000 = vadd.f32 %v2903, %v2977
    %v3001 = vadd.f32 %v2906, %v2980
    %v3002 = vadd.f32 %v2909, %v2983
    %v3003 = vadd.f32 %v2912, %v2986
    %v3004 = vadd.f32 %v2915, %v2989
    %v3005 = vadd.f32 %v2918, %v2992
    %v3006 = vadd.f32 %v2921, %v2995
    %v3007 = vadd.f32 %v2924, %v2998
    %v3008 = vld [vmem:[#allocation2 + $0x8] sm:$0xff]
    %v3009 = vld [vmem:[#allocation2 + $0x10] sm:$0xff]
    %v3010 = vld [vmem:[#allocation2 + $0x18] sm:$0xff]
    %v3011 = vld [vmem:[#allocation2 + $0x20] sm:$0xff]
    %v3012 = vld [vmem:[#allocation2 + $0x58] sm:$0xff]
    %v3013 = vld [vmem:[#allocation2 + $0x60] sm:$0xff]
    %v3014 = vld [vmem:[#allocation2 + $0x68] sm:$0xff]
    %v3015 = vld [vmem:[#allocation2 + $0x70] sm:$0xff]
    %v3016 = vld [vmem:[#allocation3 + $0x190] sm:$0xff]
    %v3018 = vsel %vm1914, %v3008, 0
    %v3021 = vsel %vm1914, %v3009, 0
    %v3024 = vsel %vm1914, %v3010, 0
    %v3027 = vsel %vm1914, %v3011, 0
    %v3030 = vsel %vm1914, %v3012, 0
    %v3033 = vsel %vm1914, %v3013, 0
    %v3036 = vsel %vm1914, %v3014, 0
    %v3039 = vsel %vm1914, %v3015, 0
    %3041 = vmatpush.msra.mxu0 0.0
    %3042 = vmatpush.msra.mxu0 0.0
    %3043 = vmatpush.msra.mxu0 0.0
    %3044 = vmatpush.msra.mxu0 0.0
    %3045 = vmatpush.msra.mxu0 0.0
    %3046 = vmatpush.msra.mxu0 0.0
    %3047 = vmatpush.msra.mxu0 0.0
    %3048 = vmatpush.msra.mxu0 0.0
    %3049 = vmatpush.msra.mxu0 0.0
    %3050 = vmatpush.msra.mxu0 0.0
    %3051 = vmatpush.msra.mxu0 0.0
    %3052 = vmatpush.msra.mxu0 0.0
    %3053 = vmatpush.msra.mxu0 0.0
    %3054 = vmatpush.msra.mxu0 0.0
    %3055 = vmatpush.msra.mxu0 0.0
    %3056 = vmatpush.msra.mxu0 %v3016
    %3057 = vmatmul.f32.gmra.mxu0 %v3018
    %v3058 = vpop.f32.mrf.mxu0
    %v3059 = vadd.f32 0.0, %v3058
    %3060 = vmatmul.f32.gmra.mxu0 %v3021
    %v3061 = vpop.f32.mrf.mxu0
    %v3062 = vadd.f32 0.0, %v3061
    %3063 = vmatmul.f32.gmra.mxu0 %v3024
    %v3064 = vpop.f32.mrf.mxu0
    %v3065 = vadd.f32 0.0, %v3064
    %3066 = vmatmul.f32.gmra.mxu0 %v3027
    %v3067 = vpop.f32.mrf.mxu0
    %v3068 = vadd.f32 0.0, %v3067
    %3069 = vmatmul.f32.gmra.mxu0 %v3030
    %v3070 = vpop.f32.mrf.mxu0
    %v3071 = vadd.f32 0.0, %v3070
    %3072 = vmatmul.f32.gmra.mxu0 %v3033
    %v3073 = vpop.f32.mrf.mxu0
    %v3074 = vadd.f32 0.0, %v3073
    %3075 = vmatmul.f32.gmra.mxu0 %v3036
    %v3076 = vpop.f32.mrf.mxu0
    %v3077 = vadd.f32 0.0, %v3076
    %3078 = vmatmul.f32.gmra.mxu0 %v3039
    %v3079 = vpop.f32.mrf.mxu0
    %v3080 = vadd.f32 0.0, %v3079
    %3081 = vdwg.mxu0
    %v3082 = vadd.f32 %v3000, %v3059
    %v3083 = vadd.f32 %v3001, %v3062
    %v3084 = vadd.f32 %v3002, %v3065
    %v3085 = vadd.f32 %v3003, %v3068
    %v3086 = vadd.f32 %v3004, %v3071
    %v3087 = vadd.f32 %v3005, %v3074
    %v3088 = vadd.f32 %v3006, %v3077
    %v3089 = vadd.f32 %v3007, %v3080
    %v3090 = vld [vmem:[#allocation2 + $0x9] sm:$0xff]
    %v3091 = vld [vmem:[#allocation2 + $0x11] sm:$0xff]
    %v3092 = vld [vmem:[#allocation2 + $0x19] sm:$0xff]
    %v3093 = vld [vmem:[#allocation2 + $0x21] sm:$0xff]
    %v3094 = vld [vmem:[#allocation2 + $0x59] sm:$0xff]
    %v3095 = vld [vmem:[#allocation2 + $0x61] sm:$0xff]
    %v3096 = vld [vmem:[#allocation2 + $0x69] sm:$0xff]
    %v3097 = vld [vmem:[#allocation2 + $0x71] sm:$0xff]
    %v3098 = vld [vmem:[#allocation3 + $0x198] sm:$0xff]
    %v3100 = vsel %vm1914, %v3090, 0
    %v3103 = vsel %vm1914, %v3091, 0
    %v3106 = vsel %vm1914, %v3092, 0
    %v3109 = vsel %vm1914, %v3093, 0
    %v3112 = vsel %vm1914, %v3094, 0
    %v3115 = vsel %vm1914, %v3095, 0
    %v3118 = vsel %vm1914, %v3096, 0
    %v3121 = vsel %vm1914, %v3097, 0
    %3123 = vmatpush.msra.mxu0 0.0
    %3124 = vmatpush.msra.mxu0 0.0
    %3125 = vmatpush.msra.mxu0 0.0
    %3126 = vmatpush.msra.mxu0 0.0
    %3127 = vmatpush.msra.mxu0 0.0
    %3128 = vmatpush.msra.mxu0 0.0
    %3129 = vmatpush.msra.mxu0 0.0
    %3130 = vmatpush.msra.mxu0 0.0
    %3131 = vmatpush.msra.mxu0 0.0
    %3132 = vmatpush.msra.mxu0 0.0
    %3133 = vmatpush.msra.mxu0 0.0
    %3134 = vmatpush.msra.mxu0 0.0
    %3135 = vmatpush.msra.mxu0 0.0
    %3136 = vmatpush.msra.mxu0 0.0
    %3137 = vmatpush.msra.mxu0 0.0
    %3138 = vmatpush.msra.mxu0 %v3098
    %3139 = vmatmul.f32.gmra.mxu0 %v3100
    %v3140 = vpop.f32.mrf.mxu0
    %v3141 = vadd.f32 0.0, %v3140
    %3142 = vmatmul.f32.gmra.mxu0 %v3103
    %v3143 = vpop.f32.mrf.mxu0
    %v3144 = vadd.f32 0.0, %v3143
    %3145 = vmatmul.f32.gmra.mxu0 %v3106
    %v3146 = vpop.f32.mrf.mxu0
    %v3147 = vadd.f32 0.0, %v3146
    %3148 = vmatmul.f32.gmra.mxu0 %v3109
    %v3149 = vpop.f32.mrf.mxu0
    %v3150 = vadd.f32 0.0, %v3149
    %3151 = vmatmul.f32.gmra.mxu0 %v3112
    %v3152 = vpop.f32.mrf.mxu0
    %v3153 = vadd.f32 0.0, %v3152
    %3154 = vmatmul.f32.gmra.mxu0 %v3115
    %v3155 = vpop.f32.mrf.mxu0
    %v3156 = vadd.f32 0.0, %v3155
    %3157 = vmatmul.f32.gmra.mxu0 %v3118
    %v3158 = vpop.f32.mrf.mxu0
    %v3159 = vadd.f32 0.0, %v3158
    %3160 = vmatmul.f32.gmra.mxu0 %v3121
    %v3161 = vpop.f32.mrf.mxu0
    %v3162 = vadd.f32 0.0, %v3161
    %3163 = vdwg.mxu0
    %v3164 = vadd.f32 %v3082, %v3141
    %v3165 = vadd.f32 %v3083, %v3144
    %v3166 = vadd.f32 %v3084, %v3147
    %v3167 = vadd.f32 %v3085, %v3150
    %v3168 = vadd.f32 %v3086, %v3153
    %v3169 = vadd.f32 %v3087, %v3156
    %v3170 = vadd.f32 %v3088, %v3159
    %v3171 = vadd.f32 %v3089, %v3162
    %v3172 = vld [vmem:[#allocation2 + $0xa] sm:$0xff]
    %v3173 = vld [vmem:[#allocation2 + $0x12] sm:$0xff]
    %v3174 = vld [vmem:[#allocation2 + $0x1a] sm:$0xff]
    %v3175 = vld [vmem:[#allocation2 + $0x22] sm:$0xff]
    %v3176 = vld [vmem:[#allocation2 + $0x5a] sm:$0xff]
    %v3177 = vld [vmem:[#allocation2 + $0x62] sm:$0xff]
    %v3178 = vld [vmem:[#allocation2 + $0x6a] sm:$0xff]
    %v3179 = vld [vmem:[#allocation2 + $0x72] sm:$0xff]
    %v3180 = vld [vmem:[#allocation3 + $0x1a0] sm:$0xff]
    %v3182 = vsel %vm1914, %v3172, 0
    %v3185 = vsel %vm1914, %v3173, 0
    %v3188 = vsel %vm1914, %v3174, 0
    %v3191 = vsel %vm1914, %v3175, 0
    %v3194 = vsel %vm1914, %v3176, 0
    %v3197 = vsel %vm1914, %v3177, 0
    %v3200 = vsel %vm1914, %v3178, 0
    %v3203 = vsel %vm1914, %v3179, 0
    %3205 = vmatpush.msra.mxu0 0.0
    %3206 = vmatpush.msra.mxu0 0.0
    %3207 = vmatpush.msra.mxu0 0.0
    %3208 = vmatpush.msra.mxu0 0.0
    %3209 = vmatpush.msra.mxu0 0.0
    %3210 = vmatpush.msra.mxu0 0.0
    %3211 = vmatpush.msra.mxu0 0.0
    %3212 = vmatpush.msra.mxu0 0.0
    %3213 = vmatpush.msra.mxu0 0.0
    %3214 = vmatpush.msra.mxu0 0.0
    %3215 = vmatpush.msra.mxu0 0.0
    %3216 = vmatpush.msra.mxu0 0.0
    %3217 = vmatpush.msra.mxu0 0.0
    %3218 = vmatpush.msra.mxu0 0.0
    %3219 = vmatpush.msra.mxu0 0.0
    %3220 = vmatpush.msra.mxu0 %v3180
    %3221 = vmatmul.f32.gmra.mxu0 %v3182
    %v3222 = vpop.f32.mrf.mxu0
    %v3223 = vadd.f32 0.0, %v3222
    %3224 = vmatmul.f32.gmra.mxu0 %v3185
    %v3225 = vpop.f32.mrf.mxu0
    %v3226 = vadd.f32 0.0, %v3225
    %3227 = vmatmul.f32.gmra.mxu0 %v3188
    %v3228 = vpop.f32.mrf.mxu0
    %v3229 = vadd.f32 0.0, %v3228
    %3230 = vmatmul.f32.gmra.mxu0 %v3191
    %v3231 = vpop.f32.mrf.mxu0
    %v3232 = vadd.f32 0.0, %v3231
    %3233 = vmatmul.f32.gmra.mxu0 %v3194
    %v3234 = vpop.f32.mrf.mxu0
    %v3235 = vadd.f32 0.0, %v3234
    %3236 = vmatmul.f32.gmra.mxu0 %v3197
    %v3237 = vpop.f32.mrf.mxu0
    %v3238 = vadd.f32 0.0, %v3237
    %3239 = vmatmul.f32.gmra.mxu0 %v3200
    %v3240 = vpop.f32.mrf.mxu0
    %v3241 = vadd.f32 0.0, %v3240
    %3242 = vmatmul.f32.gmra.mxu0 %v3203
    %v3243 = vpop.f32.mrf.mxu0
    %v3244 = vadd.f32 0.0, %v3243
    %3245 = vdwg.mxu0
    %v3246 = vadd.f32 %v3164, %v3223
    %v3247 = vadd.f32 %v3165, %v3226
    %v3248 = vadd.f32 %v3166, %v3229
    %v3249 = vadd.f32 %v3167, %v3232
    %v3250 = vadd.f32 %v3168, %v3235
    %v3251 = vadd.f32 %v3169, %v3238
    %v3252 = vadd.f32 %v3170, %v3241
    %v3253 = vadd.f32 %v3171, %v3244
    %v3254 = vld [vmem:[#allocation2 + $0xb] sm:$0xff]
    %v3255 = vld [vmem:[#allocation2 + $0x13] sm:$0xff]
    %v3256 = vld [vmem:[#allocation2 + $0x1b] sm:$0xff]
    %v3257 = vld [vmem:[#allocation2 + $0x23] sm:$0xff]
    %v3258 = vld [vmem:[#allocation2 + $0x5b] sm:$0xff]
    %v3259 = vld [vmem:[#allocation2 + $0x63] sm:$0xff]
    %v3260 = vld [vmem:[#allocation2 + $0x6b] sm:$0xff]
    %v3261 = vld [vmem:[#allocation2 + $0x73] sm:$0xff]
    %v3262 = vld [vmem:[#allocation3 + $0x1a8] sm:$0xff]
    %v3264 = vsel %vm1914, %v3254, 0
    %v3267 = vsel %vm1914, %v3255, 0
    %v3270 = vsel %vm1914, %v3256, 0
    %v3273 = vsel %vm1914, %v3257, 0
    %v3276 = vsel %vm1914, %v3258, 0
    %v3279 = vsel %vm1914, %v3259, 0
    %v3282 = vsel %vm1914, %v3260, 0
    %v3285 = vsel %vm1914, %v3261, 0
    %3287 = vmatpush.msra.mxu0 0.0
    %3288 = vmatpush.msra.mxu0 0.0
    %3289 = vmatpush.msra.mxu0 0.0
    %3290 = vmatpush.msra.mxu0 0.0
    %3291 = vmatpush.msra.mxu0 0.0
    %3292 = vmatpush.msra.mxu0 0.0
    %3293 = vmatpush.msra.mxu0 0.0
    %3294 = vmatpush.msra.mxu0 0.0
    %3295 = vmatpush.msra.mxu0 0.0
    %3296 = vmatpush.msra.mxu0 0.0
    %3297 = vmatpush.msra.mxu0 0.0
    %3298 = vmatpush.msra.mxu0 0.0
    %3299 = vmatpush.msra.mxu0 0.0
    %3300 = vmatpush.msra.mxu0 0.0
    %3301 = vmatpush.msra.mxu0 0.0
    %3302 = vmatpush.msra.mxu0 %v3262
    %3303 = vmatmul.f32.gmra.mxu0 %v3264
    %v3304 = vpop.f32.mrf.mxu0
    %v3305 = vadd.f32 0.0, %v3304
    %3306 = vmatmul.f32.gmra.mxu0 %v3267
    %v3307 = vpop.f32.mrf.mxu0
    %v3308 = vadd.f32 0.0, %v3307
    %3309 = vmatmul.f32.gmra.mxu0 %v3270
    %v3310 = vpop.f32.mrf.mxu0
    %v3311 = vadd.f32 0.0, %v3310
    %3312 = vmatmul.f32.gmra.mxu0 %v3273
    %v3313 = vpop.f32.mrf.mxu0
    %v3314 = vadd.f32 0.0, %v3313
    %3315 = vmatmul.f32.gmra.mxu0 %v3276
    %v3316 = vpop.f32.mrf.mxu0
    %v3317 = vadd.f32 0.0, %v3316
    %3318 = vmatmul.f32.gmra.mxu0 %v3279
    %v3319 = vpop.f32.mrf.mxu0
    %v3320 = vadd.f32 0.0, %v3319
    %3321 = vmatmul.f32.gmra.mxu0 %v3282
    %v3322 = vpop.f32.mrf.mxu0
    %v3323 = vadd.f32 0.0, %v3322
    %3324 = vmatmul.f32.gmra.mxu0 %v3285
    %v3325 = vpop.f32.mrf.mxu0
    %v3326 = vadd.f32 0.0, %v3325
    %3327 = vdwg.mxu0
    %v3328 = vadd.f32 %v3246, %v3305
    %v3329 = vadd.f32 %v3247, %v3308
    %v3330 = vadd.f32 %v3248, %v3311
    %v3331 = vadd.f32 %v3249, %v3314
    %v3332 = vadd.f32 %v3250, %v3317
    %v3333 = vadd.f32 %v3251, %v3320
    %v3334 = vadd.f32 %v3252, %v3323
    %v3335 = vadd.f32 %v3253, %v3326
    %3344 = vrot.lane.b32.xlu0 %v3328, 108
    %v3345 = vpop.permute.xlu0 %3344
    %3346 = vrot.lane.b32.xlu0 %v3329, 108
    %v3347 = vpop.permute.xlu0 %3346
    %3348 = vrot.lane.b32.xlu0 %v3330, 108
    %v3349 = vpop.permute.xlu0 %3348
    %3350 = vrot.lane.b32.xlu0 %v3331, 108
    %v3351 = vpop.permute.xlu0 %3350
    %3352 = vrot.lane.b32.xlu0 %v3332, 108
    %v3353 = vpop.permute.xlu0 %3352
    %3354 = vrot.lane.b32.xlu0 %v3333, 108
    %v3355 = vpop.permute.xlu0 %3354
    %3356 = vrot.lane.b32.xlu0 %v3334, 108
    %v3357 = vpop.permute.xlu0 %3356
    %3358 = vrot.lane.b32.xlu0 %v3335, 108
    %v3359 = vpop.permute.xlu0 %3358
    %v3368 = vsel %vm2693, %v2641, %v3345
    %v3369 = vsel %vm2693, %v2642, %v3347
    %v3370 = vsel %vm2693, %v2643, %v3349
    %v3371 = vsel %vm2693, %v2644, %v3351
    %v3372 = vsel %vm2693, %v2645, %v3353
    %v3373 = vsel %vm2693, %v2646, %v3355
    %v3374 = vsel %vm2693, %v2647, %v3357
    %v3375 = vsel %vm2693, %v2648, %v3359
    %v3376 = vld [vmem:[#allocation6 + $0x9] sm:$0x1]
    %v3377 = vld [vmem:[#allocation6 + $0xa] sm:$0x1]
    %v3378 = vld [vmem:[#allocation6 + $0xb] sm:$0x1]
    %v3379 = vperm.slane %v3376, 0
    %v3380 = vmul.f32 %v3368, %v3379
    %v3381 = vmul.f32 %v3369, %v3379
    %v3382 = vmul.f32 %v3370, %v3379
    %v3383 = vmul.f32 %v3371, %v3379
    %v3384 = vmul.f32 %v3372, %v3379
    %v3385 = vmul.f32 %v3373, %v3379
    %v3386 = vmul.f32 %v3374, %v3379
    %v3387 = vmul.f32 %v3375, %v3379
    %v3388 = vperm.slane %v3377, 0
    %v3389 = vadd.f32 %v3380, %v3388
    %v3390 = vadd.f32 %v3381, %v3388
    %v3391 = vadd.f32 %v3382, %v3388
    %v3392 = vadd.f32 %v3383, %v3388
    %v3393 = vadd.f32 %v3384, %v3388
    %v3394 = vadd.f32 %v3385, %v3388
    %v3395 = vadd.f32 %v3386, %v3388
    %v3396 = vadd.f32 %v3387, %v3388
    %v3397 = vmax.f32 %v3389, 0.0
    %v3398 = vmax.f32 %v3390, 0.0
    %v3399 = vmax.f32 %v3391, 0.0
    %v3400 = vmax.f32 %v3392, 0.0
    %v3401 = vmax.f32 %v3393, 0.0
    %v3402 = vmax.f32 %v3394, 0.0
    %v3403 = vmax.f32 %v3395, 0.0
    %v3404 = vmax.f32 %v3396, 0.0
    %vm3405 = vcmask 982016
    %3406 = vst.msk [vmem:[#allocation2 + $0x8] sm:$0xff] %vm3405, %v3397
    %3407 = vst.msk [vmem:[#allocation2 + $0x10] sm:$0xff] %vm3405, %v3398
    %3408 = vst.msk [vmem:[#allocation2 + $0x18] sm:$0xff] %vm3405, %v3399
    %3409 = vst.msk [vmem:[#allocation2 + $0x20] sm:$0xff] %vm3405, %v3400
    %3410 = vst.msk [vmem:[#allocation2 + $0x58] sm:$0xff] %vm3405, %v3401
    %3411 = vst.msk [vmem:[#allocation2 + $0x60] sm:$0xff] %vm3405, %v3402
    %3412 = vst.msk [vmem:[#allocation2 + $0x68] sm:$0xff] %vm3405, %v3403
    %3413 = vst.msk [vmem:[#allocation2 + $0x70] sm:$0xff] %vm3405, %v3404
    %v3414 = vld [vmem:[#allocation2 + $0x5] sm:$0xff]
    %v3415 = vld [vmem:[#allocation2 + $0xd] sm:$0xff]
    %v3416 = vld [vmem:[#allocation2 + $0x15] sm:$0xff]
    %v3417 = vld [vmem:[#allocation2 + $0x1d] sm:$0xff]
    %v3418 = vld [vmem:[#allocation2 + $0x55] sm:$0xff]
    %v3419 = vld [vmem:[#allocation2 + $0x5d] sm:$0xff]
    %v3420 = vld [vmem:[#allocation2 + $0x65] sm:$0xff]
    %v3421 = vld [vmem:[#allocation2 + $0x6d] sm:$0xff]
    %v3422 = vld [vmem:[#allocation3 + $0x1b0] sm:$0xff]
    %v3423 = vld [vmem:[#allocation3 + $0x1b8] sm:$0xff]
    %v3424 = vld [vmem:[#allocation3 + $0x1c0] sm:$0xff]
    %v3425 = vld [vmem:[#allocation3 + $0x1c8] sm:$0xff]
    %v3426 = vld [vmem:[#allocation3 + $0x1d0] sm:$0xff]
    %v3427 = vld [vmem:[#allocation3 + $0x1d8] sm:$0xff]
    %v3428 = vld [vmem:[#allocation3 + $0x1e0] sm:$0xff]
    %v3429 = vld [vmem:[#allocation3 + $0x1e8] sm:$0xff]
    %v3430 = vld [vmem:[#allocation3 + $0x1f0] sm:$0xff]
    %v3431 = vld [vmem:[#allocation3 + $0x1f8] sm:$0xff]
    %v3432 = vld [vmem:[#allocation3 + $0x200] sm:$0xff]
    %v3433 = vld [vmem:[#allocation3 + $0x208] sm:$0xff]
    %v3434 = vld [vmem:[#allocation3 + $0x210] sm:$0xff]
    %v3435 = vld [vmem:[#allocation3 + $0x218] sm:$0xff]
    %v3436 = vld [vmem:[#allocation3 + $0x220] sm:$0xff]
    %v3437 = vld [vmem:[#allocation2 + $0x6] sm:$0xff]
    %v3438 = vld [vmem:[#allocation2 + $0xe] sm:$0xff]
    %v3439 = vld [vmem:[#allocation2 + $0x16] sm:$0xff]
    %v3440 = vld [vmem:[#allocation2 + $0x1e] sm:$0xff]
    %v3441 = vld [vmem:[#allocation2 + $0x56] sm:$0xff]
    %v3442 = vld [vmem:[#allocation2 + $0x5e] sm:$0xff]
    %v3443 = vld [vmem:[#allocation2 + $0x66] sm:$0xff]
    %v3444 = vld [vmem:[#allocation2 + $0x6e] sm:$0xff]
    %v3445 = vld [vmem:[#allocation3 + $0x228] sm:$0xff]
    %v3446 = vld [vmem:[#allocation3 + $0x230] sm:$0xff]
    %v3447 = vld [vmem:[#allocation3 + $0x238] sm:$0xff]
    %v3448 = vld [vmem:[#allocation3 + $0x240] sm:$0xff]
    %v3449 = vld [vmem:[#allocation3 + $0x248] sm:$0xff]
    %v3450 = vld [vmem:[#allocation3 + $0x250] sm:$0xff]
    %v3451 = vld [vmem:[#allocation3 + $0x258] sm:$0xff]
    %v3452 = vld [vmem:[#allocation3 + $0x260] sm:$0xff]
    %v3453 = vld [vmem:[#allocation3 + $0x268] sm:$0xff]
    %v3454 = vld [vmem:[#allocation3 + $0x270] sm:$0xff]
    %v3455 = vld [vmem:[#allocation3 + $0x278] sm:$0xff]
    %v3456 = vld [vmem:[#allocation3 + $0x280] sm:$0xff]
    %v3457 = vld [vmem:[#allocation3 + $0x288] sm:$0xff]
    %v3458 = vld [vmem:[#allocation3 + $0x290] sm:$0xff]
    %v3459 = vld [vmem:[#allocation3 + $0x298] sm:$0xff]
    %v3461 = vsel %vm3405, %v3437, 0
    %v3464 = vsel %vm3405, %v3438, 0
    %v3467 = vsel %vm3405, %v3439, 0
    %v3470 = vsel %vm3405, %v3440, 0
    %v3473 = vsel %vm3405, %v3441, 0
    %v3476 = vsel %vm3405, %v3442, 0
    %v3479 = vsel %vm3405, %v3443, 0
    %v3482 = vsel %vm3405, %v3444, 0
    %3484 = vmatpush.msra.mxu0 0.0
    %3485 = vmatpush.msra.mxu0 %v3459
    %3486 = vmatpush.msra.mxu0 %v3458
    %3487 = vmatpush.msra.mxu0 %v3457
    %3488 = vmatpush.msra.mxu0 %v3456
    %3489 = vmatpush.msra.mxu0 %v3455
    %3490 = vmatpush.msra.mxu0 %v3454
    %3491 = vmatpush.msra.mxu0 %v3453
    %3492 = vmatpush.msra.mxu0 %v3452
    %3493 = vmatpush.msra.mxu0 %v3451
    %3494 = vmatpush.msra.mxu0 %v3450
    %3495 = vmatpush.msra.mxu0 %v3449
    %3496 = vmatpush.msra.mxu0 %v3448
    %3497 = vmatpush.msra.mxu0 %v3447
    %3498 = vmatpush.msra.mxu0 %v3446
    %3499 = vmatpush.msra.mxu0 %v3445
    %3500 = vmatmul.f32.gmra.mxu0 %v3461
    %v3501 = vpop.f32.mrf.mxu0
    %v3502 = vadd.f32 0.0, %v3501
    %3503 = vmatmul.f32.gmra.mxu0 %v3464
    %v3504 = vpop.f32.mrf.mxu0
    %v3505 = vadd.f32 0.0, %v3504
    %3506 = vmatmul.f32.gmra.mxu0 %v3467
    %v3507 = vpop.f32.mrf.mxu0
    %v3508 = vadd.f32 0.0, %v3507
    %3509 = vmatmul.f32.gmra.mxu0 %v3470
    %v3510 = vpop.f32.mrf.mxu0
    %v3511 = vadd.f32 0.0, %v3510
    %3512 = vmatmul.f32.gmra.mxu0 %v3473
    %v3513 = vpop.f32.mrf.mxu0
    %v3514 = vadd.f32 0.0, %v3513
    %3515 = vmatmul.f32.gmra.mxu0 %v3476
    %v3516 = vpop.f32.mrf.mxu0
    %v3517 = vadd.f32 0.0, %v3516
    %3518 = vmatmul.f32.gmra.mxu0 %v3479
    %v3519 = vpop.f32.mrf.mxu0
    %v3520 = vadd.f32 0.0, %v3519
    %3521 = vmatmul.f32.gmra.mxu0 %v3482
    %v3522 = vpop.f32.mrf.mxu0
    %v3523 = vadd.f32 0.0, %v3522
    %3524 = vdwg.mxu0
    %v3526 = vsel %vm3405, %v3414, 0
    %v3529 = vsel %vm3405, %v3415, 0
    %v3532 = vsel %vm3405, %v3416, 0
    %v3535 = vsel %vm3405, %v3417, 0
    %v3538 = vsel %vm3405, %v3418, 0
    %v3541 = vsel %vm3405, %v3419, 0
    %v3544 = vsel %vm3405, %v3420, 0
    %v3547 = vsel %vm3405, %v3421, 0
    %3549 = vmatpush.msra.mxu0 0.0
    %3550 = vmatpush.msra.mxu0 %v3436
    %3551 = vmatpush.msra.mxu0 %v3435
    %3552 = vmatpush.msra.mxu0 %v3434
    %3553 = vmatpush.msra.mxu0 %v3433
    %3554 = vmatpush.msra.mxu0 %v3432
    %3555 = vmatpush.msra.mxu0 %v3431
    %3556 = vmatpush.msra.mxu0 %v3430
    %3557 = vmatpush.msra.mxu0 %v3429
    %3558 = vmatpush.msra.mxu0 %v3428
    %3559 = vmatpush.msra.mxu0 %v3427
    %3560 = vmatpush.msra.mxu0 %v3426
    %3561 = vmatpush.msra.mxu0 %v3425
    %3562 = vmatpush.msra.mxu0 %v3424
    %3563 = vmatpush.msra.mxu0 %v3423
    %3564 = vmatpush.msra.mxu0 %v3422
    %3565 = vmatmul.f32.gmra.mxu0 %v3526
    %v3566 = vpop.f32.mrf.mxu0
    %v3567 = vadd.f32 %v3502, %v3566
    %3568 = vmatmul.f32.gmra.mxu0 %v3529
    %v3569 = vpop.f32.mrf.mxu0
    %v3570 = vadd.f32 %v3505, %v3569
    %3571 = vmatmul.f32.gmra.mxu0 %v3532
    %v3572 = vpop.f32.mrf.mxu0
    %v3573 = vadd.f32 %v3508, %v3572
    %3574 = vmatmul.f32.gmra.mxu0 %v3535
    %v3575 = vpop.f32.mrf.mxu0
    %v3576 = vadd.f32 %v3511, %v3575
    %3577 = vmatmul.f32.gmra.mxu0 %v3538
    %v3578 = vpop.f32.mrf.mxu0
    %v3579 = vadd.f32 %v3514, %v3578
    %3580 = vmatmul.f32.gmra.mxu0 %v3541
    %v3581 = vpop.f32.mrf.mxu0
    %v3582 = vadd.f32 %v3517, %v3581
    %3583 = vmatmul.f32.gmra.mxu0 %v3544
    %v3584 = vpop.f32.mrf.mxu0
    %v3585 = vadd.f32 %v3520, %v3584
    %3586 = vmatmul.f32.gmra.mxu0 %v3547
    %v3587 = vpop.f32.mrf.mxu0
    %v3588 = vadd.f32 %v3523, %v3587
    %3589 = vdwg.mxu0
    %v3590 = vld [vmem:[#allocation2 + $0x7] sm:$0xff]
    %v3591 = vld [vmem:[#allocation2 + $0xf] sm:$0xff]
    %v3592 = vld [vmem:[#allocation2 + $0x17] sm:$0xff]
    %v3593 = vld [vmem:[#allocation2 + $0x1f] sm:$0xff]
    %v3594 = vld [vmem:[#allocation2 + $0x57] sm:$0xff]
    %v3595 = vld [vmem:[#allocation2 + $0x5f] sm:$0xff]
    %v3596 = vld [vmem:[#allocation2 + $0x67] sm:$0xff]
    %v3597 = vld [vmem:[#allocation2 + $0x6f] sm:$0xff]
    %v3598 = vld [vmem:[#allocation3 + $0x2a0] sm:$0xff]
    %v3599 = vld [vmem:[#allocation3 + $0x2a8] sm:$0xff]
    %v3600 = vld [vmem:[#allocation3 + $0x2b0] sm:$0xff]
    %v3601 = vld [vmem:[#allocation3 + $0x2b8] sm:$0xff]
    %v3602 = vld [vmem:[#allocation3 + $0x2c0] sm:$0xff]
    %v3603 = vld [vmem:[#allocation3 + $0x2c8] sm:$0xff]
    %v3604 = vld [vmem:[#allocation3 + $0x2d0] sm:$0xff]
    %v3605 = vld [vmem:[#allocation3 + $0x2d8] sm:$0xff]
    %v3606 = vld [vmem:[#allocation3 + $0x2e0] sm:$0xff]
    %v3607 = vld [vmem:[#allocation3 + $0x2e8] sm:$0xff]
    %v3608 = vld [vmem:[#allocation3 + $0x2f0] sm:$0xff]
    %v3609 = vld [vmem:[#allocation3 + $0x2f8] sm:$0xff]
    %v3610 = vld [vmem:[#allocation3 + $0x300] sm:$0xff]
    %v3611 = vld [vmem:[#allocation3 + $0x308] sm:$0xff]
    %v3612 = vld [vmem:[#allocation3 + $0x310] sm:$0xff]
    %v3614 = vsel %vm3405, %v3590, 0
    %v3617 = vsel %vm3405, %v3591, 0
    %v3620 = vsel %vm3405, %v3592, 0
    %v3623 = vsel %vm3405, %v3593, 0
    %v3626 = vsel %vm3405, %v3594, 0
    %v3629 = vsel %vm3405, %v3595, 0
    %v3632 = vsel %vm3405, %v3596, 0
    %v3635 = vsel %vm3405, %v3597, 0
    %3637 = vmatpush.msra.mxu0 0.0
    %3638 = vmatpush.msra.mxu0 %v3612
    %3639 = vmatpush.msra.mxu0 %v3611
    %3640 = vmatpush.msra.mxu0 %v3610
    %3641 = vmatpush.msra.mxu0 %v3609
    %3642 = vmatpush.msra.mxu0 %v3608
    %3643 = vmatpush.msra.mxu0 %v3607
    %3644 = vmatpush.msra.mxu0 %v3606
    %3645 = vmatpush.msra.mxu0 %v3605
    %3646 = vmatpush.msra.mxu0 %v3604
    %3647 = vmatpush.msra.mxu0 %v3603
    %3648 = vmatpush.msra.mxu0 %v3602
    %3649 = vmatpush.msra.mxu0 %v3601
    %3650 = vmatpush.msra.mxu0 %v3600
    %3651 = vmatpush.msra.mxu0 %v3599
    %3652 = vmatpush.msra.mxu0 %v3598
    %3653 = vmatmul.f32.gmra.mxu0 %v3614
    %v3654 = vpop.f32.mrf.mxu0
    %v3655 = vadd.f32 0.0, %v3654
    %3656 = vmatmul.f32.gmra.mxu0 %v3617
    %v3657 = vpop.f32.mrf.mxu0
    %v3658 = vadd.f32 0.0, %v3657
    %3659 = vmatmul.f32.gmra.mxu0 %v3620
    %v3660 = vpop.f32.mrf.mxu0
    %v3661 = vadd.f32 0.0, %v3660
    %3662 = vmatmul.f32.gmra.mxu0 %v3623
    %v3663 = vpop.f32.mrf.mxu0
    %v3664 = vadd.f32 0.0, %v3663
    %3665 = vmatmul.f32.gmra.mxu0 %v3626
    %v3666 = vpop.f32.mrf.mxu0
    %v3667 = vadd.f32 0.0, %v3666
    %3668 = vmatmul.f32.gmra.mxu0 %v3629
    %v3669 = vpop.f32.mrf.mxu0
    %v3670 = vadd.f32 0.0, %v3669
    %3671 = vmatmul.f32.gmra.mxu0 %v3632
    %v3672 = vpop.f32.mrf.mxu0
    %v3673 = vadd.f32 0.0, %v3672
    %3674 = vmatmul.f32.gmra.mxu0 %v3635
    %v3675 = vpop.f32.mrf.mxu0
    %v3676 = vadd.f32 0.0, %v3675
    %3677 = vdwg.mxu0
    %v3678 = vadd.f32 %v3567, %v3655
    %v3679 = vadd.f32 %v3570, %v3658
    %v3680 = vadd.f32 %v3573, %v3661
    %v3681 = vadd.f32 %v3576, %v3664
    %v3682 = vadd.f32 %v3579, %v3667
    %v3683 = vadd.f32 %v3582, %v3670
    %v3684 = vadd.f32 %v3585, %v3673
    %v3685 = vadd.f32 %v3588, %v3676
    %v3686 = vld [vmem:[#allocation2 + $0x8] sm:$0xff]
    %v3687 = vld [vmem:[#allocation2 + $0x10] sm:$0xff]
    %v3688 = vld [vmem:[#allocation2 + $0x18] sm:$0xff]
    %v3689 = vld [vmem:[#allocation2 + $0x20] sm:$0xff]
    %v3690 = vld [vmem:[#allocation2 + $0x58] sm:$0xff]
    %v3691 = vld [vmem:[#allocation2 + $0x60] sm:$0xff]
    %v3692 = vld [vmem:[#allocation2 + $0x68] sm:$0xff]
    %v3693 = vld [vmem:[#allocation2 + $0x70] sm:$0xff]
    %v3694 = vld [vmem:[#allocation3 + $0x318] sm:$0xff]
    %v3695 = vld [vmem:[#allocation3 + $0x320] sm:$0xff]
    %v3696 = vld [vmem:[#allocation3 + $0x328] sm:$0xff]
    %v3697 = vld [vmem:[#allocation3 + $0x330] sm:$0xff]
    %v3698 = vld [vmem:[#allocation3 + $0x338] sm:$0xff]
    %v3699 = vld [vmem:[#allocation3 + $0x340] sm:$0xff]
    %v3700 = vld [vmem:[#allocation3 + $0x348] sm:$0xff]
    %v3701 = vld [vmem:[#allocation3 + $0x350] sm:$0xff]
    %v3702 = vld [vmem:[#allocation3 + $0x358] sm:$0xff]
    %v3703 = vld [vmem:[#allocation3 + $0x360] sm:$0xff]
    %v3704 = vld [vmem:[#allocation3 + $0x368] sm:$0xff]
    %v3705 = vld [vmem:[#allocation3 + $0x370] sm:$0xff]
    %v3706 = vld [vmem:[#allocation3 + $0x378] sm:$0xff]
    %v3707 = vld [vmem:[#allocation3 + $0x380] sm:$0xff]
    %v3708 = vld [vmem:[#allocation3 + $0x388] sm:$0xff]
    %v3710 = vsel %vm3405, %v3686, 0
    %v3713 = vsel %vm3405, %v3687, 0
    %v3716 = vsel %vm3405, %v3688, 0
    %v3719 = vsel %vm3405, %v3689, 0
    %v3722 = vsel %vm3405, %v3690, 0
    %v3725 = vsel %vm3405, %v3691, 0
    %v3728 = vsel %vm3405, %v3692, 0
    %v3731 = vsel %vm3405, %v3693, 0
    %3733 = vmatpush.msra.mxu0 0.0
    %3734 = vmatpush.msra.mxu0 %v3708
    %3735 = vmatpush.msra.mxu0 %v3707
    %3736 = vmatpush.msra.mxu0 %v3706
    %3737 = vmatpush.msra.mxu0 %v3705
    %3738 = vmatpush.msra.mxu0 %v3704
    %3739 = vmatpush.msra.mxu0 %v3703
    %3740 = vmatpush.msra.mxu0 %v3702
    %3741 = vmatpush.msra.mxu0 %v3701
    %3742 = vmatpush.msra.mxu0 %v3700
    %3743 = vmatpush.msra.mxu0 %v3699
    %3744 = vmatpush.msra.mxu0 %v3698
    %3745 = vmatpush.msra.mxu0 %v3697
    %3746 = vmatpush.msra.mxu0 %v3696
    %3747 = vmatpush.msra.mxu0 %v3695
    %3748 = vmatpush.msra.mxu0 %v3694
    %3749 = vmatmul.f32.gmra.mxu0 %v3710
    %v3750 = vpop.f32.mrf.mxu0
    %v3751 = vadd.f32 0.0, %v3750
    %3752 = vmatmul.f32.gmra.mxu0 %v3713
    %v3753 = vpop.f32.mrf.mxu0
    %v3754 = vadd.f32 0.0, %v3753
    %3755 = vmatmul.f32.gmra.mxu0 %v3716
    %v3756 = vpop.f32.mrf.mxu0
    %v3757 = vadd.f32 0.0, %v3756
    %3758 = vmatmul.f32.gmra.mxu0 %v3719
    %v3759 = vpop.f32.mrf.mxu0
    %v3760 = vadd.f32 0.0, %v3759
    %3761 = vmatmul.f32.gmra.mxu0 %v3722
    %v3762 = vpop.f32.mrf.mxu0
    %v3763 = vadd.f32 0.0, %v3762
    %3764 = vmatmul.f32.gmra.mxu0 %v3725
    %v3765 = vpop.f32.mrf.mxu0
    %v3766 = vadd.f32 0.0, %v3765
    %3767 = vmatmul.f32.gmra.mxu0 %v3728
    %v3768 = vpop.f32.mrf.mxu0
    %v3769 = vadd.f32 0.0, %v3768
    %3770 = vmatmul.f32.gmra.mxu0 %v3731
    %v3771 = vpop.f32.mrf.mxu0
    %v3772 = vadd.f32 0.0, %v3771
    %3773 = vdwg.mxu0
    %v3774 = vadd.f32 %v3678, %v3751
    %v3775 = vadd.f32 %v3679, %v3754
    %v3776 = vadd.f32 %v3680, %v3757
    %v3777 = vadd.f32 %v3681, %v3760
    %v3778 = vadd.f32 %v3682, %v3763
    %v3779 = vadd.f32 %v3683, %v3766
    %v3780 = vadd.f32 %v3684, %v3769
    %v3781 = vadd.f32 %v3685, %v3772
    %v3782 = vld [vmem:[#allocation2 + $0x9] sm:$0xff]
    %v3783 = vld [vmem:[#allocation2 + $0x11] sm:$0xff]
    %v3784 = vld [vmem:[#allocation2 + $0x19] sm:$0xff]
    %v3785 = vld [vmem:[#allocation2 + $0x21] sm:$0xff]
    %v3786 = vld [vmem:[#allocation2 + $0x59] sm:$0xff]
    %v3787 = vld [vmem:[#allocation2 + $0x61] sm:$0xff]
    %v3788 = vld [vmem:[#allocation2 + $0x69] sm:$0xff]
    %v3789 = vld [vmem:[#allocation2 + $0x71] sm:$0xff]
    %v3790 = vld [vmem:[#allocation3 + $0x390] sm:$0xff]
    %v3791 = vld [vmem:[#allocation3 + $0x398] sm:$0xff]
    %v3792 = vld [vmem:[#allocation3 + $0x3a0] sm:$0xff]
    %v3793 = vld [vmem:[#allocation3 + $0x3a8] sm:$0xff]
    %v3794 = vld [vmem:[#allocation3 + $0x3b0] sm:$0xff]
    %v3795 = vld [vmem:[#allocation3 + $0x3b8] sm:$0xff]
    %v3796 = vld [vmem:[#allocation3 + $0x3c0] sm:$0xff]
    %v3797 = vld [vmem:[#allocation3 + $0x3c8] sm:$0xff]
    %v3798 = vld [vmem:[#allocation3 + $0x3d0] sm:$0xff]
    %v3799 = vld [vmem:[#allocation3 + $0x3d8] sm:$0xff]
    %v3800 = vld [vmem:[#allocation3 + $0x3e0] sm:$0xff]
    %v3801 = vld [vmem:[#allocation3 + $0x3e8] sm:$0xff]
    %v3802 = vld [vmem:[#allocation3 + $0x3f0] sm:$0xff]
    %v3803 = vld [vmem:[#allocation3 + $0x3f8] sm:$0xff]
    %v3804 = vld [vmem:[#allocation3 + $0x400] sm:$0xff]
    %v3806 = vsel %vm3405, %v3782, 0
    %v3809 = vsel %vm3405, %v3783, 0
    %v3812 = vsel %vm3405, %v3784, 0
    %v3815 = vsel %vm3405, %v3785, 0
    %v3818 = vsel %vm3405, %v3786, 0
    %v3821 = vsel %vm3405, %v3787, 0
    %v3824 = vsel %vm3405, %v3788, 0
    %v3827 = vsel %vm3405, %v3789, 0
    %3829 = vmatpush.msra.mxu0 0.0
    %3830 = vmatpush.msra.mxu0 %v3804
    %3831 = vmatpush.msra.mxu0 %v3803
    %3832 = vmatpush.msra.mxu0 %v3802
    %3833 = vmatpush.msra.mxu0 %v3801
    %3834 = vmatpush.msra.mxu0 %v3800
    %3835 = vmatpush.msra.mxu0 %v3799
    %3836 = vmatpush.msra.mxu0 %v3798
    %3837 = vmatpush.msra.mxu0 %v3797
    %3838 = vmatpush.msra.mxu0 %v3796
    %3839 = vmatpush.msra.mxu0 %v3795
    %3840 = vmatpush.msra.mxu0 %v3794
    %3841 = vmatpush.msra.mxu0 %v3793
    %3842 = vmatpush.msra.mxu0 %v3792
    %3843 = vmatpush.msra.mxu0 %v3791
    %3844 = vmatpush.msra.mxu0 %v3790
    %3845 = vmatmul.f32.gmra.mxu0 %v3806
    %v3846 = vpop.f32.mrf.mxu0
    %v3847 = vadd.f32 0.0, %v3846
    %3848 = vmatmul.f32.gmra.mxu0 %v3809
    %v3849 = vpop.f32.mrf.mxu0
    %v3850 = vadd.f32 0.0, %v3849
    %3851 = vmatmul.f32.gmra.mxu0 %v3812
    %v3852 = vpop.f32.mrf.mxu0
    %v3853 = vadd.f32 0.0, %v3852
    %3854 = vmatmul.f32.gmra.mxu0 %v3815
    %v3855 = vpop.f32.mrf.mxu0
    %v3856 = vadd.f32 0.0, %v3855
    %3857 = vmatmul.f32.gmra.mxu0 %v3818
    %v3858 = vpop.f32.mrf.mxu0
    %v3859 = vadd.f32 0.0, %v3858
    %3860 = vmatmul.f32.gmra.mxu0 %v3821
    %v3861 = vpop.f32.mrf.mxu0
    %v3862 = vadd.f32 0.0, %v3861
    %3863 = vmatmul.f32.gmra.mxu0 %v3824
    %v3864 = vpop.f32.mrf.mxu0
    %v3865 = vadd.f32 0.0, %v3864
    %3866 = vmatmul.f32.gmra.mxu0 %v3827
    %v3867 = vpop.f32.mrf.mxu0
    %v3868 = vadd.f32 0.0, %v3867
    %3869 = vdwg.mxu0
    %v3870 = vadd.f32 %v3774, %v3847
    %v3871 = vadd.f32 %v3775, %v3850
    %v3872 = vadd.f32 %v3776, %v3853
    %v3873 = vadd.f32 %v3777, %v3856
    %v3874 = vadd.f32 %v3778, %v3859
    %v3875 = vadd.f32 %v3779, %v3862
    %v3876 = vadd.f32 %v3780, %v3865
    %v3877 = vadd.f32 %v3781, %v3868
    %v3878 = vld [vmem:[#allocation2 + $0xa] sm:$0xff]
    %v3879 = vld [vmem:[#allocation2 + $0x12] sm:$0xff]
    %v3880 = vld [vmem:[#allocation2 + $0x1a] sm:$0xff]
    %v3881 = vld [vmem:[#allocation2 + $0x22] sm:$0xff]
    %v3882 = vld [vmem:[#allocation2 + $0x5a] sm:$0xff]
    %v3883 = vld [vmem:[#allocation2 + $0x62] sm:$0xff]
    %v3884 = vld [vmem:[#allocation2 + $0x6a] sm:$0xff]
    %v3885 = vld [vmem:[#allocation2 + $0x72] sm:$0xff]
    %v3886 = vld [vmem:[#allocation3 + $0x408] sm:$0xff]
    %v3887 = vld [vmem:[#allocation3 + $0x410] sm:$0xff]
    %v3888 = vld [vmem:[#allocation3 + $0x418] sm:$0xff]
    %v3889 = vld [vmem:[#allocation3 + $0x420] sm:$0xff]
    %v3890 = vld [vmem:[#allocation3 + $0x428] sm:$0xff]
    %v3891 = vld [vmem:[#allocation3 + $0x430] sm:$0xff]
    %v3892 = vld [vmem:[#allocation3 + $0x438] sm:$0xff]
    %v3893 = vld [vmem:[#allocation3 + $0x440] sm:$0xff]
    %v3894 = vld [vmem:[#allocation3 + $0x448] sm:$0xff]
    %v3895 = vld [vmem:[#allocation3 + $0x450] sm:$0xff]
    %v3896 = vld [vmem:[#allocation3 + $0x458] sm:$0xff]
    %v3897 = vld [vmem:[#allocation3 + $0x460] sm:$0xff]
    %v3898 = vld [vmem:[#allocation3 + $0x468] sm:$0xff]
    %v3899 = vld [vmem:[#allocation3 + $0x470] sm:$0xff]
    %v3900 = vld [vmem:[#allocation3 + $0x478] sm:$0xff]
    %v3902 = vsel %vm3405, %v3878, 0
    %v3905 = vsel %vm3405, %v3879, 0
    %v3908 = vsel %vm3405, %v3880, 0
    %v3911 = vsel %vm3405, %v3881, 0
    %v3914 = vsel %vm3405, %v3882, 0
    %v3917 = vsel %vm3405, %v3883, 0
    %v3920 = vsel %vm3405, %v3884, 0
    %v3923 = vsel %vm3405, %v3885, 0
    %3925 = vmatpush.msra.mxu0 0.0
    %3926 = vmatpush.msra.mxu0 %v3900
    %3927 = vmatpush.msra.mxu0 %v3899
    %3928 = vmatpush.msra.mxu0 %v3898
    %3929 = vmatpush.msra.mxu0 %v3897
    %3930 = vmatpush.msra.mxu0 %v3896
    %3931 = vmatpush.msra.mxu0 %v3895
    %3932 = vmatpush.msra.mxu0 %v3894
    %3933 = vmatpush.msra.mxu0 %v3893
    %3934 = vmatpush.msra.mxu0 %v3892
    %3935 = vmatpush.msra.mxu0 %v3891
    %3936 = vmatpush.msra.mxu0 %v3890
    %3937 = vmatpush.msra.mxu0 %v3889
    %3938 = vmatpush.msra.mxu0 %v3888
    %3939 = vmatpush.msra.mxu0 %v3887
    %3940 = vmatpush.msra.mxu0 %v3886
    %3941 = vmatmul.f32.gmra.mxu0 %v3902
    %v3942 = vpop.f32.mrf.mxu0
    %v3943 = vadd.f32 0.0, %v3942
    %3944 = vmatmul.f32.gmra.mxu0 %v3905
    %v3945 = vpop.f32.mrf.mxu0
    %v3946 = vadd.f32 0.0, %v3945
    %3947 = vmatmul.f32.gmra.mxu0 %v3908
    %v3948 = vpop.f32.mrf.mxu0
    %v3949 = vadd.f32 0.0, %v3948
    %3950 = vmatmul.f32.gmra.mxu0 %v3911
    %v3951 = vpop.f32.mrf.mxu0
    %v3952 = vadd.f32 0.0, %v3951
    %3953 = vmatmul.f32.gmra.mxu0 %v3914
    %v3954 = vpop.f32.mrf.mxu0
    %v3955 = vadd.f32 0.0, %v3954
    %3956 = vmatmul.f32.gmra.mxu0 %v3917
    %v3957 = vpop.f32.mrf.mxu0
    %v3958 = vadd.f32 0.0, %v3957
    %3959 = vmatmul.f32.gmra.mxu0 %v3920
    %v3960 = vpop.f32.mrf.mxu0
    %v3961 = vadd.f32 0.0, %v3960
    %3962 = vmatmul.f32.gmra.mxu0 %v3923
    %v3963 = vpop.f32.mrf.mxu0
    %v3964 = vadd.f32 0.0, %v3963
    %3965 = vdwg.mxu0
    %v3966 = vadd.f32 %v3870, %v3943
    %v3967 = vadd.f32 %v3871, %v3946
    %v3968 = vadd.f32 %v3872, %v3949
    %v3969 = vadd.f32 %v3873, %v3952
    %v3970 = vadd.f32 %v3874, %v3955
    %v3971 = vadd.f32 %v3875, %v3958
    %v3972 = vadd.f32 %v3876, %v3961
    %v3973 = vadd.f32 %v3877, %v3964
    %v3974 = vld [vmem:[#allocation2 + $0xb] sm:$0xff]
    %v3975 = vld [vmem:[#allocation2 + $0x13] sm:$0xff]
    %v3976 = vld [vmem:[#allocation2 + $0x1b] sm:$0xff]
    %v3977 = vld [vmem:[#allocation2 + $0x23] sm:$0xff]
    %v3978 = vld [vmem:[#allocation2 + $0x5b] sm:$0xff]
    %v3979 = vld [vmem:[#allocation2 + $0x63] sm:$0xff]
    %v3980 = vld [vmem:[#allocation2 + $0x6b] sm:$0xff]
    %v3981 = vld [vmem:[#allocation2 + $0x73] sm:$0xff]
    %v3982 = vld [vmem:[#allocation3 + $0x480] sm:$0xff]
    %v3983 = vld [vmem:[#allocation3 + $0x488] sm:$0xff]
    %v3984 = vld [vmem:[#allocation3 + $0x490] sm:$0xff]
    %v3985 = vld [vmem:[#allocation3 + $0x498] sm:$0xff]
    %v3986 = vld [vmem:[#allocation3 + $0x4a0] sm:$0xff]
    %v3987 = vld [vmem:[#allocation3 + $0x4a8] sm:$0xff]
    %v3988 = vld [vmem:[#allocation3 + $0x4b0] sm:$0xff]
    %v3989 = vld [vmem:[#allocation3 + $0x4b8] sm:$0xff]
    %v3990 = vld [vmem:[#allocation3 + $0x4c0] sm:$0xff]
    %v3991 = vld [vmem:[#allocation3 + $0x4c8] sm:$0xff]
    %v3992 = vld [vmem:[#allocation3 + $0x4d0] sm:$0xff]
    %v3993 = vld [vmem:[#allocation3 + $0x4d8] sm:$0xff]
    %v3994 = vld [vmem:[#allocation3 + $0x4e0] sm:$0xff]
    %v3995 = vld [vmem:[#allocation3 + $0x4e8] sm:$0xff]
    %v3996 = vld [vmem:[#allocation3 + $0x4f0] sm:$0xff]
    %v3998 = vsel %vm3405, %v3974, 0
    %v4001 = vsel %vm3405, %v3975, 0
    %v4004 = vsel %vm3405, %v3976, 0
    %v4007 = vsel %vm3405, %v3977, 0
    %v4010 = vsel %vm3405, %v3978, 0
    %v4013 = vsel %vm3405, %v3979, 0
    %v4016 = vsel %vm3405, %v3980, 0
    %v4019 = vsel %vm3405, %v3981, 0
    %4021 = vmatpush.msra.mxu0 0.0
    %4022 = vmatpush.msra.mxu0 %v3996
    %4023 = vmatpush.msra.mxu0 %v3995
    %4024 = vmatpush.msra.mxu0 %v3994
    %4025 = vmatpush.msra.mxu0 %v3993
    %4026 = vmatpush.msra.mxu0 %v3992
    %4027 = vmatpush.msra.mxu0 %v3991
    %4028 = vmatpush.msra.mxu0 %v3990
    %4029 = vmatpush.msra.mxu0 %v3989
    %4030 = vmatpush.msra.mxu0 %v3988
    %4031 = vmatpush.msra.mxu0 %v3987
    %4032 = vmatpush.msra.mxu0 %v3986
    %4033 = vmatpush.msra.mxu0 %v3985
    %4034 = vmatpush.msra.mxu0 %v3984
    %4035 = vmatpush.msra.mxu0 %v3983
    %4036 = vmatpush.msra.mxu0 %v3982
    %4037 = vmatmul.f32.gmra.mxu0 %v3998
    %v4038 = vpop.f32.mrf.mxu0
    %v4039 = vadd.f32 0.0, %v4038
    %4040 = vmatmul.f32.gmra.mxu0 %v4001
    %v4041 = vpop.f32.mrf.mxu0
    %v4042 = vadd.f32 0.0, %v4041
    %4043 = vmatmul.f32.gmra.mxu0 %v4004
    %v4044 = vpop.f32.mrf.mxu0
    %v4045 = vadd.f32 0.0, %v4044
    %4046 = vmatmul.f32.gmra.mxu0 %v4007
    %v4047 = vpop.f32.mrf.mxu0
    %v4048 = vadd.f32 0.0, %v4047
    %4049 = vmatmul.f32.gmra.mxu0 %v4010
    %v4050 = vpop.f32.mrf.mxu0
    %v4051 = vadd.f32 0.0, %v4050
    %4052 = vmatmul.f32.gmra.mxu0 %v4013
    %v4053 = vpop.f32.mrf.mxu0
    %v4054 = vadd.f32 0.0, %v4053
    %4055 = vmatmul.f32.gmra.mxu0 %v4016
    %v4056 = vpop.f32.mrf.mxu0
    %v4057 = vadd.f32 0.0, %v4056
    %4058 = vmatmul.f32.gmra.mxu0 %v4019
    %v4059 = vpop.f32.mrf.mxu0
    %v4060 = vadd.f32 0.0, %v4059
    %4061 = vdwg.mxu0
    %v4062 = vadd.f32 %v3966, %v4039
    %v4063 = vadd.f32 %v3967, %v4042
    %v4064 = vadd.f32 %v3968, %v4045
    %v4065 = vadd.f32 %v3969, %v4048
    %v4066 = vadd.f32 %v3970, %v4051
    %v4067 = vadd.f32 %v3971, %v4054
    %v4068 = vadd.f32 %v3972, %v4057
    %v4069 = vadd.f32 %v3973, %v4060
    %v4070 = vperm.slane %v3378, 0
    %v4071 = vadd.f32 %v4062, %v4070
    %v4072 = vadd.f32 %v4063, %v4070
    %v4073 = vadd.f32 %v4064, %v4070
    %v4074 = vadd.f32 %v4065, %v4070
    %v4075 = vadd.f32 %v4066, %v4070
    %v4076 = vadd.f32 %v4067, %v4070
    %v4077 = vadd.f32 %v4068, %v4070
    %v4078 = vadd.f32 %v4069, %v4070
    %v4079 = vmax.f32 %v4071, 0.0
    %v4080 = vmax.f32 %v4072, 0.0
    %v4081 = vmax.f32 %v4073, 0.0
    %v4082 = vmax.f32 %v4074, 0.0
    %v4083 = vmax.f32 %v4075, 0.0
    %v4084 = vmax.f32 %v4076, 0.0
    %v4085 = vmax.f32 %v4077, 0.0
    %v4086 = vmax.f32 %v4078, 0.0
    %v4095 = vrot.slane %v4079, 2
    %v4096 = vrot.slane %v4079, 4
    %v4097 = vrot.slane %v4079, 6
    %v4098 = vrot.slane %v4080, 2
    %v4099 = vrot.slane %v4080, 4
    %v4100 = vrot.slane %v4080, 6
    %v4101 = vrot.slane %v4081, 2
    %v4102 = vrot.slane %v4081, 4
    %v4103 = vrot.slane %v4081, 6
    %v4104 = vrot.slane %v4082, 2
    %v4105 = vrot.slane %v4082, 4
    %v4106 = vrot.slane %v4082, 6
    %v4107 = vrot.slane %v4083, 2
    %v4108 = vrot.slane %v4083, 4
    %v4109 = vrot.slane %v4083, 6
    %v4110 = vrot.slane %v4084, 2
    %v4111 = vrot.slane %v4084, 4
    %v4112 = vrot.slane %v4084, 6
    %v4113 = vrot.slane %v4085, 2
    %v4114 = vrot.slane %v4085, 4
    %v4115 = vrot.slane %v4085, 6
    %v4116 = vrot.slane %v4086, 2
    %v4117 = vrot.slane %v4086, 4
    %v4118 = vrot.slane %v4086, 6
    %v4143 = vrot.slane %v4079, 7
    %v4144 = vrot.slane %v4143, 2
    %v4145 = vrot.slane %v4095, 7
    %v4146 = vrot.slane %v4145, 2
    %v4147 = vrot.slane %v4096, 7
    %v4148 = vrot.slane %v4147, 2
    %v4149 = vrot.slane %v4097, 7
    %v4150 = vrot.slane %v4149, 2
    %v4151 = vrot.slane %v4080, 7
    %v4152 = vrot.slane %v4151, 2
    %v4153 = vrot.slane %v4098, 7
    %v4154 = vrot.slane %v4153, 2
    %v4155 = vrot.slane %v4099, 7
    %v4156 = vrot.slane %v4155, 2
    %v4157 = vrot.slane %v4100, 7
    %v4158 = vrot.slane %v4157, 2
    %v4159 = vrot.slane %v4081, 7
    %v4160 = vrot.slane %v4159, 2
    %v4161 = vrot.slane %v4101, 7
    %v4162 = vrot.slane %v4161, 2
    %v4163 = vrot.slane %v4102, 7
    %v4164 = vrot.slane %v4163, 2
    %v4165 = vrot.slane %v4103, 7
    %v4166 = vrot.slane %v4165, 2
    %v4167 = vrot.slane %v4082, 7
    %v4168 = vrot.slane %v4167, 2
    %v4169 = vrot.slane %v4104, 7
    %v4170 = vrot.slane %v4169, 2
    %v4171 = vrot.slane %v4105, 7
    %v4172 = vrot.slane %v4171, 2
    %v4173 = vrot.slane %v4106, 7
    %v4174 = vrot.slane %v4173, 2
    %v4175 = vrot.slane %v4083, 7
    %v4176 = vrot.slane %v4175, 2
    %v4177 = vrot.slane %v4107, 7
    %v4178 = vrot.slane %v4177, 2
    %v4179 = vrot.slane %v4108, 7
    %v4180 = vrot.slane %v4179, 2
    %v4181 = vrot.slane %v4109, 7
    %v4182 = vrot.slane %v4181, 2
    %v4183 = vrot.slane %v4084, 7
    %v4184 = vrot.slane %v4183, 2
    %v4185 = vrot.slane %v4110, 7
    %v4186 = vrot.slane %v4185, 2
    %v4187 = vrot.slane %v4111, 7
    %v4188 = vrot.slane %v4187, 2
    %v4189 = vrot.slane %v4112, 7
    %v4190 = vrot.slane %v4189, 2
    %v4191 = vrot.slane %v4085, 7
    %v4192 = vrot.slane %v4191, 2
    %v4193 = vrot.slane %v4113, 7
    %v4194 = vrot.slane %v4193, 2
    %v4195 = vrot.slane %v4114, 7
    %v4196 = vrot.slane %v4195, 2
    %v4197 = vrot.slane %v4115, 7
    %v4198 = vrot.slane %v4197, 2
    %v4199 = vrot.slane %v4086, 7
    %v4200 = vrot.slane %v4199, 2
    %v4201 = vrot.slane %v4116, 7
    %v4202 = vrot.slane %v4201, 2
    %v4203 = vrot.slane %v4117, 7
    %v4204 = vrot.slane %v4203, 2
    %v4205 = vrot.slane %v4118, 7
    %v4206 = vrot.slane %v4205, 2
    %v4239 = vadd.f32 %v4079, %v4144
    %v4240 = vadd.f32 %v4095, %v4146
    %v4241 = vadd.f32 %v4096, %v4148
    %v4242 = vadd.f32 %v4097, %v4150
    %v4243 = vadd.f32 %v4080, %v4152
    %v4244 = vadd.f32 %v4098, %v4154
    %v4245 = vadd.f32 %v4099, %v4156
    %v4246 = vadd.f32 %v4100, %v4158
    %v4247 = vadd.f32 %v4081, %v4160
    %v4248 = vadd.f32 %v4101, %v4162
    %v4249 = vadd.f32 %v4102, %v4164
    %v4250 = vadd.f32 %v4103, %v4166
    %v4251 = vadd.f32 %v4082, %v4168
    %v4252 = vadd.f32 %v4104, %v4170
    %v4253 = vadd.f32 %v4105, %v4172
    %v4254 = vadd.f32 %v4106, %v4174
    %v4255 = vadd.f32 %v4083, %v4176
    %v4256 = vadd.f32 %v4107, %v4178
    %v4257 = vadd.f32 %v4108, %v4180
    %v4258 = vadd.f32 %v4109, %v4182
    %v4259 = vadd.f32 %v4084, %v4184
    %v4260 = vadd.f32 %v4110, %v4186
    %v4261 = vadd.f32 %v4111, %v4188
    %v4262 = vadd.f32 %v4112, %v4190
    %v4263 = vadd.f32 %v4085, %v4192
    %v4264 = vadd.f32 %v4113, %v4194
    %v4265 = vadd.f32 %v4114, %v4196
    %v4266 = vadd.f32 %v4115, %v4198
    %v4267 = vadd.f32 %v4086, %v4200
    %v4268 = vadd.f32 %v4116, %v4202
    %v4269 = vadd.f32 %v4117, %v4204
    %v4270 = vadd.f32 %v4118, %v4206
    %v4271 = vmul.f32 %v4239, 0.5
    %v4272 = vmul.f32 %v4240, 0.5
    %v4273 = vmul.f32 %v4241, 0.5
    %v4274 = vmul.f32 %v4242, 0.5
    %v4275 = vmul.f32 %v4243, 0.5
    %v4276 = vmul.f32 %v4244, 0.5
    %v4277 = vmul.f32 %v4245, 0.5
    %v4278 = vmul.f32 %v4246, 0.5
    %v4279 = vmul.f32 %v4247, 0.5
    %v4280 = vmul.f32 %v4248, 0.5
    %v4281 = vmul.f32 %v4249, 0.5
    %v4282 = vmul.f32 %v4250, 0.5
    %v4283 = vmul.f32 %v4251, 0.5
    %v4284 = vmul.f32 %v4252, 0.5
    %v4285 = vmul.f32 %v4253, 0.5
    %v4286 = vmul.f32 %v4254, 0.5
    %v4287 = vmul.f32 %v4255, 0.5
    %v4288 = vmul.f32 %v4256, 0.5
    %v4289 = vmul.f32 %v4257, 0.5
    %v4290 = vmul.f32 %v4258, 0.5
    %v4291 = vmul.f32 %v4259, 0.5
    %v4292 = vmul.f32 %v4260, 0.5
    %v4293 = vmul.f32 %v4261, 0.5
    %v4294 = vmul.f32 %v4262, 0.5
    %v4295 = vmul.f32 %v4263, 0.5
    %v4296 = vmul.f32 %v4264, 0.5
    %v4297 = vmul.f32 %v4265, 0.5
    %v4298 = vmul.f32 %v4266, 0.5
    %v4299 = vmul.f32 %v4267, 0.5
    %v4300 = vmul.f32 %v4268, 0.5
    %v4301 = vmul.f32 %v4269, 0.5
    %v4302 = vmul.f32 %v4270, 0.5
    %4303 = vst [vmem:[#allocation2 + $0x18] sm:$0xff] 0.0
    %4304 = vst [vmem:[#allocation2 + $0x68] sm:$0xff] 0.0
    %v4305 = vld [vmem:[#allocation6 + $0xc] sm:$0x1]
    %v4306 = vld [vmem:[#allocation6 + $0xd] sm:$0x1]
    %v4307 = vld [vmem:[#allocation3 + $0x4f8] sm:$0xff]
    %v4308 = vld [vmem:[#allocation3 + $0x500] sm:$0xff]
    %v4309 = vld [vmem:[#allocation3 + $0x508] sm:$0xff]
    %v4310 = vld [vmem:[#allocation3 + $0x510] sm:$0xff]
    %v4311 = vld [vmem:[#allocation3 + $0x518] sm:$0xff]
    %v4312 = vld [vmem:[#allocation3 + $0x520] sm:$0xff]
    %v4313 = vld [vmem:[#allocation3 + $0x528] sm:$0xff]
    %v4314 = vld [vmem:[#allocation3 + $0x530] sm:$0xf]
    %v4315 = vld [vmem:[#allocation6 + $0xe] sm:$0x1]
    %v4316 = vperm.slane %v4305, 0
    %v4318 = vrot.slane %v4316, 2
    %v4319 = vrot.slane %v4316, 4
    %v4320 = vrot.slane %v4316, 6
    %v4321 = vrot.slane %v4316, 1
    %v4322 = vrot.slane %v4318, 1
    %v4323 = vrot.slane %v4319, 1
    %v4324 = vrot.slane %v4320, 1
    %v4333 = vmul.f32 %v4271, %v4316
    %v4334 = vmul.f32 %v4272, %v4321
    %v4335 = vmul.f32 %v4273, %v4318
    %v4336 = vmul.f32 %v4274, %v4322
    %v4337 = vmul.f32 %v4275, %v4319
    %v4338 = vmul.f32 %v4276, %v4323
    %v4339 = vmul.f32 %v4277, %v4320
    %v4340 = vmul.f32 %v4278, %v4324
    %v4341 = vmul.f32 %v4279, %v4316
    %v4342 = vmul.f32 %v4280, %v4321
    %v4343 = vmul.f32 %v4281, %v4318
    %v4344 = vmul.f32 %v4282, %v4322
    %v4345 = vmul.f32 %v4283, %v4319
    %v4346 = vmul.f32 %v4284, %v4323
    %v4347 = vmul.f32 %v4285, %v4320
    %v4348 = vmul.f32 %v4286, %v4324
    %v4349 = vmul.f32 %v4287, %v4316
    %v4350 = vmul.f32 %v4288, %v4321
    %v4351 = vmul.f32 %v4289, %v4318
    %v4352 = vmul.f32 %v4290, %v4322
    %v4353 = vmul.f32 %v4291, %v4319
    %v4354 = vmul.f32 %v4292, %v4323
    %v4355 = vmul.f32 %v4293, %v4320
    %v4356 = vmul.f32 %v4294, %v4324
    %v4357 = vmul.f32 %v4295, %v4316
    %v4358 = vmul.f32 %v4296, %v4321
    %v4359 = vmul.f32 %v4297, %v4318
    %v4360 = vmul.f32 %v4298, %v4322
    %v4361 = vmul.f32 %v4299, %v4319
    %v4362 = vmul.f32 %v4300, %v4323
    %v4363 = vmul.f32 %v4301, %v4320
    %v4364 = vmul.f32 %v4302, %v4324
    %v4365 = vperm.slane %v4306, 0
    %v4367 = vrot.slane %v4365, 2
    %v4368 = vrot.slane %v4365, 4
    %v4369 = vrot.slane %v4365, 6
    %v4370 = vrot.slane %v4365, 1
    %v4371 = vrot.slane %v4367, 1
    %v4372 = vrot.slane %v4368, 1
    %v4373 = vrot.slane %v4369, 1
    %v4382 = vadd.f32 %v4333, %v4365
    %v4383 = vadd.f32 %v4334, %v4370
    %v4384 = vadd.f32 %v4335, %v4367
    %v4385 = vadd.f32 %v4336, %v4371
    %v4386 = vadd.f32 %v4337, %v4368
    %v4387 = vadd.f32 %v4338, %v4372
    %v4388 = vadd.f32 %v4339, %v4369
    %v4389 = vadd.f32 %v4340, %v4373
    %v4390 = vadd.f32 %v4341, %v4365
    %v4391 = vadd.f32 %v4342, %v4370
    %v4392 = vadd.f32 %v4343, %v4367
    %v4393 = vadd.f32 %v4344, %v4371
    %v4394 = vadd.f32 %v4345, %v4368
    %v4395 = vadd.f32 %v4346, %v4372
    %v4396 = vadd.f32 %v4347, %v4369
    %v4397 = vadd.f32 %v4348, %v4373
    %v4398 = vadd.f32 %v4349, %v4365
    %v4399 = vadd.f32 %v4350, %v4370
    %v4400 = vadd.f32 %v4351, %v4367
    %v4401 = vadd.f32 %v4352, %v4371
    %v4402 = vadd.f32 %v4353, %v4368
    %v4403 = vadd.f32 %v4354, %v4372
    %v4404 = vadd.f32 %v4355, %v4369
    %v4405 = vadd.f32 %v4356, %v4373
    %v4406 = vadd.f32 %v4357, %v4365
    %v4407 = vadd.f32 %v4358, %v4370
    %v4408 = vadd.f32 %v4359, %v4367
    %v4409 = vadd.f32 %v4360, %v4371
    %v4410 = vadd.f32 %v4361, %v4368
    %v4411 = vadd.f32 %v4362, %v4372
    %v4412 = vadd.f32 %v4363, %v4369
    %v4413 = vadd.f32 %v4364, %v4373
    %v4414 = vmax.f32 %v4382, 0.0
    %v4415 = vmax.f32 %v4383, 0.0
    %v4416 = vmax.f32 %v4384, 0.0
    %v4417 = vmax.f32 %v4385, 0.0
    %v4418 = vmax.f32 %v4386, 0.0
    %v4419 = vmax.f32 %v4387, 0.0
    %v4420 = vmax.f32 %v4388, 0.0
    %v4421 = vmax.f32 %v4389, 0.0
    %v4422 = vmax.f32 %v4390, 0.0
    %v4423 = vmax.f32 %v4391, 0.0
    %v4424 = vmax.f32 %v4392, 0.0
    %v4425 = vmax.f32 %v4393, 0.0
    %v4426 = vmax.f32 %v4394, 0.0
    %v4427 = vmax.f32 %v4395, 0.0
    %v4428 = vmax.f32 %v4396, 0.0
    %v4429 = vmax.f32 %v4397, 0.0
    %v4430 = vmax.f32 %v4398, 0.0
    %v4431 = vmax.f32 %v4399, 0.0
    %v4432 = vmax.f32 %v4400, 0.0
    %v4433 = vmax.f32 %v4401, 0.0
    %v4434 = vmax.f32 %v4402, 0.0
    %v4435 = vmax.f32 %v4403, 0.0
    %v4436 = vmax.f32 %v4404, 0.0
    %v4437 = vmax.f32 %v4405, 0.0
    %v4438 = vmax.f32 %v4406, 0.0
    %v4439 = vmax.f32 %v4407, 0.0
    %v4440 = vmax.f32 %v4408, 0.0
    %v4441 = vmax.f32 %v4409, 0.0
    %v4442 = vmax.f32 %v4410, 0.0
    %v4443 = vmax.f32 %v4411, 0.0
    %v4444 = vmax.f32 %v4412, 0.0
    %v4445 = vmax.f32 %v4413, 0.0
    %v4446 = vperm.slane %v4315, 0
    %v4479 = vperm.slane %v4414, 0
    %v4480 = vperm.slane %v4415, 0
    %v4481 = vperm.slane %v4416, 0
    %v4482 = vperm.slane %v4417, 0
    %v4483 = vperm.slane %v4418, 0
    %v4484 = vperm.slane %v4419, 0
    %v4485 = vperm.slane %v4420, 0
    %v4486 = vperm.slane %v4421, 0
    %v4487 = vperm.slane %v4422, 0
    %v4488 = vperm.slane %v4423, 0
    %v4489 = vperm.slane %v4424, 0
    %v4490 = vperm.slane %v4425, 0
    %v4491 = vperm.slane %v4426, 0
    %v4492 = vperm.slane %v4427, 0
    %v4493 = vperm.slane %v4428, 0
    %v4494 = vperm.slane %v4429, 0
    %v4495 = vperm.slane %v4430, 0
    %v4496 = vperm.slane %v4431, 0
    %v4497 = vperm.slane %v4432, 0
    %v4498 = vperm.slane %v4433, 0
    %v4499 = vperm.slane %v4434, 0
    %v4500 = vperm.slane %v4435, 0
    %v4501 = vperm.slane %v4436, 0
    %v4502 = vperm.slane %v4437, 0
    %v4503 = vperm.slane %v4438, 0
    %v4504 = vperm.slane %v4439, 0
    %v4505 = vperm.slane %v4440, 0
    %v4506 = vperm.slane %v4441, 0
    %v4507 = vperm.slane %v4442, 0
    %v4508 = vperm.slane %v4443, 0
    %v4509 = vperm.slane %v4444, 0
    %v4510 = vperm.slane %v4445, 0
    %v4511 = vsel %vm1786, %v4480, %v4479
    %v4512 = vsel %vm1788, %v4481, %v4511
    %v4513 = vsel %vm1790, %v4482, %v4512
    %v4514 = vsel %vm1792, %v4483, %v4513
    %v4515 = vsel %vm1794, %v4484, %v4514
    %v4516 = vsel %vm1796, %v4485, %v4515
    %v4517 = vsel %vm1798, %v4486, %v4516
    %v4518 = vsel %vm1786, %v4488, %v4487
    %v4519 = vsel %vm1788, %v4489, %v4518
    %v4520 = vsel %vm1790, %v4490, %v4519
    %v4521 = vsel %vm1792, %v4491, %v4520
    %v4522 = vsel %vm1794, %v4492, %v4521
    %v4523 = vsel %vm1796, %v4493, %v4522
    %v4524 = vsel %vm1798, %v4494, %v4523
    %v4525 = vsel %vm1786, %v4496, %v4495
    %v4526 = vsel %vm1788, %v4497, %v4525
    %v4527 = vsel %vm1790, %v4498, %v4526
    %v4528 = vsel %vm1792, %v4499, %v4527
    %v4529 = vsel %vm1794, %v4500, %v4528
    %v4530 = vsel %vm1796, %v4501, %v4529
    %v4531 = vsel %vm1798, %v4502, %v4530
    %v4532 = vsel %vm1786, %v4504, %v4503
    %v4533 = vsel %vm1788, %v4505, %v4532
    %v4534 = vsel %vm1790, %v4506, %v4533
    %v4535 = vsel %vm1792, %v4507, %v4534
    %v4536 = vsel %vm1794, %v4508, %v4535
    %v4537 = vsel %vm1796, %v4509, %v4536
    %v4538 = vsel %vm1798, %v4510, %v4537
    %vm4539 = vcmask 490496
    %v4540 = vsel %vm4539, %v4517, 0
    %v4542 = vsel %vm4539, %v4524, 0
    %v4544 = vsel %vm4539, %v4531, 0
    %v4546 = vsel %vm4539, %v4538, 0
    %v4549 = vsel %vm185, %v4314, 0
    %4551 = vmatpush.msra.mxu0 0.0
    %4552 = vmatpush.msra.mxu0 0.0
    %4553 = vmatpush.msra.mxu0 0.0
    %4554 = vmatpush.msra.mxu0 0.0
    %4555 = vmatpush.msra.mxu0 0.0
    %4556 = vmatpush.msra.mxu0 0.0
    %4557 = vmatpush.msra.mxu0 0.0
    %4558 = vmatpush.msra.mxu0 0.0
    %4559 = vmatpush.msra.mxu0 %v4549
    %4560 = vmatpush.msra.mxu0 %v4313
    %4561 = vmatpush.msra.mxu0 %v4312
    %4562 = vmatpush.msra.mxu0 %v4311
    %4563 = vmatpush.msra.mxu0 %v4310
    %4564 = vmatpush.msra.mxu0 %v4309
    %4565 = vmatpush.msra.mxu0 %v4308
    %4566 = vmatpush.msra.mxu0 %v4307
    %4567 = vmatmul.f32.gmra.mxu0 %v4540
    %v4568 = vpop.f32.mrf.mxu0
    %v4569 = vadd.f32 %v4446, %v4568
    %4570 = vmatmul.f32.gmra.mxu0 %v4542
    %v4571 = vpop.f32.mrf.mxu0
    %v4572 = vadd.f32 %v4446, %v4571
    %4573 = vmatmul.f32.gmra.mxu0 %v4544
    %v4574 = vpop.f32.mrf.mxu0
    %v4575 = vadd.f32 %v4446, %v4574
    %4576 = vmatmul.f32.gmra.mxu0 %v4546
    %v4577 = vpop.f32.mrf.mxu0
    %v4578 = vadd.f32 %v4446, %v4577
    %4579 = vdwg.mxu0
    %v4580 = vmax.f32 %v4569, 0.0
    %v4581 = vmax.f32 %v4572, 0.0
    %v4582 = vmax.f32 %v4575, 0.0
    %v4583 = vmax.f32 %v4578, 0.0
    %4584 = vst.msk [vmem:[#allocation2 + $0x8] sm:$0xff] %vm1914, %v4580
    %4585 = vst.msk [vmem:[#allocation2 + $0x10] sm:$0xff] %vm1914, %v4581
    %4586 = vst.msk [vmem:[#allocation2 + $0x58] sm:$0xff] %vm1914, %v4582
    %4587 = vst.msk [vmem:[#allocation2 + $0x60] sm:$0xff] %vm1914, %v4583
    %v4588 = vld [vmem:[#allocation2 + $0x5] sm:$0xff]
    %v4589 = vld [vmem:[#allocation2 + $0xd] sm:$0xff]
    %v4590 = vld [vmem:[#allocation2 + $0x55] sm:$0xff]
    %v4591 = vld [vmem:[#allocation2 + $0x5d] sm:$0xff]
    %v4592 = vld [vmem:[#allocation3 + $0x538] sm:$0xff]
    %v4593 = vld [vmem:[#allocation2 + $0x6] sm:$0xff]
    %v4594 = vld [vmem:[#allocation2 + $0xe] sm:$0xff]
    %v4595 = vld [vmem:[#allocation2 + $0x56] sm:$0xff]
    %v4596 = vld [vmem:[#allocation2 + $0x5e] sm:$0xff]
    %v4597 = vld [vmem:[#allocation3 + $0x540] sm:$0xff]
    %v4599 = vsel %vm1914, %v4593, 0
    %v4602 = vsel %vm1914, %v4594, 0
    %v4605 = vsel %vm1914, %v4595, 0
    %v4608 = vsel %vm1914, %v4596, 0
    %4610 = vmatpush.msra.mxu0 0.0
    %4611 = vmatpush.msra.mxu0 0.0
    %4612 = vmatpush.msra.mxu0 0.0
    %4613 = vmatpush.msra.mxu0 0.0
    %4614 = vmatpush.msra.mxu0 0.0
    %4615 = vmatpush.msra.mxu0 0.0
    %4616 = vmatpush.msra.mxu0 0.0
    %4617 = vmatpush.msra.mxu0 0.0
    %4618 = vmatpush.msra.mxu0 0.0
    %4619 = vmatpush.msra.mxu0 0.0
    %4620 = vmatpush.msra.mxu0 0.0
    %4621 = vmatpush.msra.mxu0 0.0
    %4622 = vmatpush.msra.mxu0 0.0
    %4623 = vmatpush.msra.mxu0 0.0
    %4624 = vmatpush.msra.mxu0 0.0
    %4625 = vmatpush.msra.mxu0 %v4597
    %4626 = vmatmul.f32.gmra.mxu0 %v4599
    %v4627 = vpop.f32.mrf.mxu0
    %v4628 = vadd.f32 0.0, %v4627
    %4629 = vmatmul.f32.gmra.mxu0 %v4602
    %v4630 = vpop.f32.mrf.mxu0
    %v4631 = vadd.f32 0.0, %v4630
    %4632 = vmatmul.f32.gmra.mxu0 %v4605
    %v4633 = vpop.f32.mrf.mxu0
    %v4634 = vadd.f32 0.0, %v4633
    %4635 = vmatmul.f32.gmra.mxu0 %v4608
    %v4636 = vpop.f32.mrf.mxu0
    %v4637 = vadd.f32 0.0, %v4636
    %4638 = vdwg.mxu0
    %v4640 = vsel %vm1914, %v4588, 0
    %v4643 = vsel %vm1914, %v4589, 0
    %v4646 = vsel %vm1914, %v4590, 0
    %v4649 = vsel %vm1914, %v4591, 0
    %4651 = vmatpush.msra.mxu0 0.0
    %4652 = vmatpush.msra.mxu0 0.0
    %4653 = vmatpush.msra.mxu0 0.0
    %4654 = vmatpush.msra.mxu0 0.0
    %4655 = vmatpush.msra.mxu0 0.0
    %4656 = vmatpush.msra.mxu0 0.0
    %4657 = vmatpush.msra.mxu0 0.0
    %4658 = vmatpush.msra.mxu0 0.0
    %4659 = vmatpush.msra.mxu0 0.0
    %4660 = vmatpush.msra.mxu0 0.0
    %4661 = vmatpush.msra.mxu0 0.0
    %4662 = vmatpush.msra.mxu0 0.0
    %4663 = vmatpush.msra.mxu0 0.0
    %4664 = vmatpush.msra.mxu0 0.0
    %4665 = vmatpush.msra.mxu0 0.0
    %4666 = vmatpush.msra.mxu0 %v4592
    %4667 = vmatmul.f32.gmra.mxu0 %v4640
    %v4668 = vpop.f32.mrf.mxu0
    %v4669 = vadd.f32 %v4628, %v4668
    %4670 = vmatmul.f32.gmra.mxu0 %v4643
    %v4671 = vpop.f32.mrf.mxu0
    %v4672 = vadd.f32 %v4631, %v4671
    %4673 = vmatmul.f32.gmra.mxu0 %v4646
    %v4674 = vpop.f32.mrf.mxu0
    %v4675 = vadd.f32 %v4634, %v4674
    %4676 = vmatmul.f32.gmra.mxu0 %v4649
    %v4677 = vpop.f32.mrf.mxu0
    %v4678 = vadd.f32 %v4637, %v4677
    %4679 = vdwg.mxu0
    %v4680 = vld [vmem:[#allocation2 + $0x7] sm:$0xff]
    %v4681 = vld [vmem:[#allocation2 + $0xf] sm:$0xff]
    %v4682 = vld [vmem:[#allocation2 + $0x57] sm:$0xff]
    %v4683 = vld [vmem:[#allocation2 + $0x5f] sm:$0xff]
    %v4684 = vld [vmem:[#allocation3 + $0x548] sm:$0xff]
    %v4686 = vsel %vm1914, %v4680, 0
    %v4689 = vsel %vm1914, %v4681, 0
    %v4692 = vsel %vm1914, %v4682, 0
    %v4695 = vsel %vm1914, %v4683, 0
    %4697 = vmatpush.msra.mxu0 0.0
    %4698 = vmatpush.msra.mxu0 0.0
    %4699 = vmatpush.msra.mxu0 0.0
    %4700 = vmatpush.msra.mxu0 0.0
    %4701 = vmatpush.msra.mxu0 0.0
    %4702 = vmatpush.msra.mxu0 0.0
    %4703 = vmatpush.msra.mxu0 0.0
    %4704 = vmatpush.msra.mxu0 0.0
    %4705 = vmatpush.msra.mxu0 0.0
    %4706 = vmatpush.msra.mxu0 0.0
    %4707 = vmatpush.msra.mxu0 0.0
    %4708 = vmatpush.msra.mxu0 0.0
    %4709 = vmatpush.msra.mxu0 0.0
    %4710 = vmatpush.msra.mxu0 0.0
    %4711 = vmatpush.msra.mxu0 0.0
    %4712 = vmatpush.msra.mxu0 %v4684
    %4713 = vmatmul.f32.gmra.mxu0 %v4686
    %v4714 = vpop.f32.mrf.mxu0
    %v4715 = vadd.f32 0.0, %v4714
    %4716 = vmatmul.f32.gmra.mxu0 %v4689
    %v4717 = vpop.f32.mrf.mxu0
    %v4718 = vadd.f32 0.0, %v4717
    %4719 = vmatmul.f32.gmra.mxu0 %v4692
    %v4720 = vpop.f32.mrf.mxu0
    %v4721 = vadd.f32 0.0, %v4720
    %4722 = vmatmul.f32.gmra.mxu0 %v4695
    %v4723 = vpop.f32.mrf.mxu0
    %v4724 = vadd.f32 0.0, %v4723
    %4725 = vdwg.mxu0
    %v4726 = vadd.f32 %v4669, %v4715
    %v4727 = vadd.f32 %v4672, %v4718
    %v4728 = vadd.f32 %v4675, %v4721
    %v4729 = vadd.f32 %v4678, %v4724
    %v4730 = vld [vmem:[#allocation2 + $0x8] sm:$0xff]
    %v4731 = vld [vmem:[#allocation2 + $0x10] sm:$0xff]
    %v4732 = vld [vmem:[#allocation2 + $0x58] sm:$0xff]
    %v4733 = vld [vmem:[#allocation2 + $0x60] sm:$0xff]
    %v4734 = vld [vmem:[#allocation3 + $0x550] sm:$0xff]
    %v4736 = vsel %vm1914, %v4730, 0
    %v4739 = vsel %vm1914, %v4731, 0
    %v4742 = vsel %vm1914, %v4732, 0
    %v4745 = vsel %vm1914, %v4733, 0
    %4747 = vmatpush.msra.mxu0 0.0
    %4748 = vmatpush.msra.mxu0 0.0
    %4749 = vmatpush.msra.mxu0 0.0
    %4750 = vmatpush.msra.mxu0 0.0
    %4751 = vmatpush.msra.mxu0 0.0
    %4752 = vmatpush.msra.mxu0 0.0
    %4753 = vmatpush.msra.mxu0 0.0
    %4754 = vmatpush.msra.mxu0 0.0
    %4755 = vmatpush.msra.mxu0 0.0
    %4756 = vmatpush.msra.mxu0 0.0
    %4757 = vmatpush.msra.mxu0 0.0
    %4758 = vmatpush.msra.mxu0 0.0
    %4759 = vmatpush.msra.mxu0 0.0
    %4760 = vmatpush.msra.mxu0 0.0
    %4761 = vmatpush.msra.mxu0 0.0
    %4762 = vmatpush.msra.mxu0 %v4734
    %4763 = vmatmul.f32.gmra.mxu0 %v4736
    %v4764 = vpop.f32.mrf.mxu0
    %v4765 = vadd.f32 0.0, %v4764
    %4766 = vmatmul.f32.gmra.mxu0 %v4739
    %v4767 = vpop.f32.mrf.mxu0
    %v4768 = vadd.f32 0.0, %v4767
    %4769 = vmatmul.f32.gmra.mxu0 %v4742
    %v4770 = vpop.f32.mrf.mxu0
    %v4771 = vadd.f32 0.0, %v4770
    %4772 = vmatmul.f32.gmra.mxu0 %v4745
    %v4773 = vpop.f32.mrf.mxu0
    %v4774 = vadd.f32 0.0, %v4773
    %4775 = vdwg.mxu0
    %v4776 = vadd.f32 %v4726, %v4765
    %v4777 = vadd.f32 %v4727, %v4768
    %v4778 = vadd.f32 %v4728, %v4771
    %v4779 = vadd.f32 %v4729, %v4774
    %v4780 = vld [vmem:[#allocation2 + $0x9] sm:$0xff]
    %v4781 = vld [vmem:[#allocation2 + $0x11] sm:$0xff]
    %v4782 = vld [vmem:[#allocation2 + $0x59] sm:$0xff]
    %v4783 = vld [vmem:[#allocation2 + $0x61] sm:$0xff]
    %v4784 = vld [vmem:[#allocation3 + $0x558] sm:$0xff]
    %v4786 = vsel %vm1914, %v4780, 0
    %v4789 = vsel %vm1914, %v4781, 0
    %v4792 = vsel %vm1914, %v4782, 0
    %v4795 = vsel %vm1914, %v4783, 0
    %4797 = vmatpush.msra.mxu0 0.0
    %4798 = vmatpush.msra.mxu0 0.0
    %4799 = vmatpush.msra.mxu0 0.0
    %4800 = vmatpush.msra.mxu0 0.0
    %4801 = vmatpush.msra.mxu0 0.0
    %4802 = vmatpush.msra.mxu0 0.0
    %4803 = vmatpush.msra.mxu0 0.0
    %4804 = vmatpush.msra.mxu0 0.0
    %4805 = vmatpush.msra.mxu0 0.0
    %4806 = vmatpush.msra.mxu0 0.0
    %4807 = vmatpush.msra.mxu0 0.0
    %4808 = vmatpush.msra.mxu0 0.0
    %4809 = vmatpush.msra.mxu0 0.0
    %4810 = vmatpush.msra.mxu0 0.0
    %4811 = vmatpush.msra.mxu0 0.0
    %4812 = vmatpush.msra.mxu0 %v4784
    %4813 = vmatmul.f32.gmra.mxu0 %v4786
    %v4814 = vpop.f32.mrf.mxu0
    %v4815 = vadd.f32 0.0, %v4814
    %4816 = vmatmul.f32.gmra.mxu0 %v4789
    %v4817 = vpop.f32.mrf.mxu0
    %v4818 = vadd.f32 0.0, %v4817
    %4819 = vmatmul.f32.gmra.mxu0 %v4792
    %v4820 = vpop.f32.mrf.mxu0
    %v4821 = vadd.f32 0.0, %v4820
    %4822 = vmatmul.f32.gmra.mxu0 %v4795
    %v4823 = vpop.f32.mrf.mxu0
    %v4824 = vadd.f32 0.0, %v4823
    %4825 = vdwg.mxu0
    %v4826 = vadd.f32 %v4776, %v4815
    %v4827 = vadd.f32 %v4777, %v4818
    %v4828 = vadd.f32 %v4778, %v4821
    %v4829 = vadd.f32 %v4779, %v4824
    %v4830 = vld [vmem:[#allocation2 + $0xa] sm:$0xff]
    %v4831 = vld [vmem:[#allocation2 + $0x12] sm:$0xff]
    %v4832 = vld [vmem:[#allocation2 + $0x5a] sm:$0xff]
    %v4833 = vld [vmem:[#allocation2 + $0x62] sm:$0xff]
    %v4834 = vld [vmem:[#allocation3 + $0x560] sm:$0xff]
    %v4836 = vsel %vm1914, %v4830, 0
    %v4839 = vsel %vm1914, %v4831, 0
    %v4842 = vsel %vm1914, %v4832, 0
    %v4845 = vsel %vm1914, %v4833, 0
    %4847 = vmatpush.msra.mxu0 0.0
    %4848 = vmatpush.msra.mxu0 0.0
    %4849 = vmatpush.msra.mxu0 0.0
    %4850 = vmatpush.msra.mxu0 0.0
    %4851 = vmatpush.msra.mxu0 0.0
    %4852 = vmatpush.msra.mxu0 0.0
    %4853 = vmatpush.msra.mxu0 0.0
    %4854 = vmatpush.msra.mxu0 0.0
    %4855 = vmatpush.msra.mxu0 0.0
    %4856 = vmatpush.msra.mxu0 0.0
    %4857 = vmatpush.msra.mxu0 0.0
    %4858 = vmatpush.msra.mxu0 0.0
    %4859 = vmatpush.msra.mxu0 0.0
    %4860 = vmatpush.msra.mxu0 0.0
    %4861 = vmatpush.msra.mxu0 0.0
    %4862 = vmatpush.msra.mxu0 %v4834
    %4863 = vmatmul.f32.gmra.mxu0 %v4836
    %v4864 = vpop.f32.mrf.mxu0
    %v4865 = vadd.f32 0.0, %v4864
    %4866 = vmatmul.f32.gmra.mxu0 %v4839
    %v4867 = vpop.f32.mrf.mxu0
    %v4868 = vadd.f32 0.0, %v4867
    %4869 = vmatmul.f32.gmra.mxu0 %v4842
    %v4870 = vpop.f32.mrf.mxu0
    %v4871 = vadd.f32 0.0, %v4870
    %4872 = vmatmul.f32.gmra.mxu0 %v4845
    %v4873 = vpop.f32.mrf.mxu0
    %v4874 = vadd.f32 0.0, %v4873
    %4875 = vdwg.mxu0
    %v4876 = vadd.f32 %v4826, %v4865
    %v4877 = vadd.f32 %v4827, %v4868
    %v4878 = vadd.f32 %v4828, %v4871
    %v4879 = vadd.f32 %v4829, %v4874
    %v4880 = vld [vmem:[#allocation2 + $0xb] sm:$0xff]
    %v4881 = vld [vmem:[#allocation2 + $0x13] sm:$0xff]
    %v4882 = vld [vmem:[#allocation2 + $0x5b] sm:$0xff]
    %v4883 = vld [vmem:[#allocation2 + $0x63] sm:$0xff]
    %v4884 = vld [vmem:[#allocation3 + $0x568] sm:$0xff]
    %v4886 = vsel %vm1914, %v4880, 0
    %v4889 = vsel %vm1914, %v4881, 0
    %v4892 = vsel %vm1914, %v4882, 0
    %v4895 = vsel %vm1914, %v4883, 0
    %4897 = vmatpush.msra.mxu0 0.0
    %4898 = vmatpush.msra.mxu0 0.0
    %4899 = vmatpush.msra.mxu0 0.0
    %4900 = vmatpush.msra.mxu0 0.0
    %4901 = vmatpush.msra.mxu0 0.0
    %4902 = vmatpush.msra.mxu0 0.0
    %4903 = vmatpush.msra.mxu0 0.0
    %4904 = vmatpush.msra.mxu0 0.0
    %4905 = vmatpush.msra.mxu0 0.0
    %4906 = vmatpush.msra.mxu0 0.0
    %4907 = vmatpush.msra.mxu0 0.0
    %4908 = vmatpush.msra.mxu0 0.0
    %4909 = vmatpush.msra.mxu0 0.0
    %4910 = vmatpush.msra.mxu0 0.0
    %4911 = vmatpush.msra.mxu0 0.0
    %4912 = vmatpush.msra.mxu0 %v4884
    %4913 = vmatmul.f32.gmra.mxu0 %v4886
    %v4914 = vpop.f32.mrf.mxu0
    %v4915 = vadd.f32 0.0, %v4914
    %4916 = vmatmul.f32.gmra.mxu0 %v4889
    %v4917 = vpop.f32.mrf.mxu0
    %v4918 = vadd.f32 0.0, %v4917
    %4919 = vmatmul.f32.gmra.mxu0 %v4892
    %v4920 = vpop.f32.mrf.mxu0
    %v4921 = vadd.f32 0.0, %v4920
    %4922 = vmatmul.f32.gmra.mxu0 %v4895
    %v4923 = vpop.f32.mrf.mxu0
    %v4924 = vadd.f32 0.0, %v4923
    %4925 = vdwg.mxu0
    %v4926 = vadd.f32 %v4876, %v4915
    %v4927 = vadd.f32 %v4877, %v4918
    %v4928 = vadd.f32 %v4878, %v4921
    %v4929 = vadd.f32 %v4879, %v4924
    %v4962 = vperm.slane %v4271, 0
    %v4963 = vperm.slane %v4272, 0
    %v4964 = vperm.slane %v4273, 0
    %v4965 = vperm.slane %v4274, 0
    %v4966 = vperm.slane %v4275, 0
    %v4967 = vperm.slane %v4276, 0
    %v4968 = vperm.slane %v4277, 0
    %v4969 = vperm.slane %v4278, 0
    %v4970 = vperm.slane %v4279, 0
    %v4971 = vperm.slane %v4280, 0
    %v4972 = vperm.slane %v4281, 0
    %v4973 = vperm.slane %v4282, 0
    %v4974 = vperm.slane %v4283, 0
    %v4975 = vperm.slane %v4284, 0
    %v4976 = vperm.slane %v4285, 0
    %v4977 = vperm.slane %v4286, 0
    %v4978 = vperm.slane %v4287, 0
    %v4979 = vperm.slane %v4288, 0
    %v4980 = vperm.slane %v4289, 0
    %v4981 = vperm.slane %v4290, 0
    %v4982 = vperm.slane %v4291, 0
    %v4983 = vperm.slane %v4292, 0
    %v4984 = vperm.slane %v4293, 0
    %v4985 = vperm.slane %v4294, 0
    %v4986 = vperm.slane %v4295, 0
    %v4987 = vperm.slane %v4296, 0
    %v4988 = vperm.slane %v4297, 0
    %v4989 = vperm.slane %v4298, 0
    %v4990 = vperm.slane %v4299, 0
    %v4991 = vperm.slane %v4300, 0
    %v4992 = vperm.slane %v4301, 0
    %v4993 = vperm.slane %v4302, 0
    %v4994 = vsel %vm1786, %v4963, %v4962
    %v4995 = vsel %vm1788, %v4964, %v4994
    %v4996 = vsel %vm1790, %v4965, %v4995
    %v4997 = vsel %vm1792, %v4966, %v4996
    %v4998 = vsel %vm1794, %v4967, %v4997
    %v4999 = vsel %vm1796, %v4968, %v4998
    %v5000 = vsel %vm1798, %v4969, %v4999
    %v5001 = vsel %vm1786, %v4971, %v4970
    %v5002 = vsel %vm1788, %v4972, %v5001
    %v5003 = vsel %vm1790, %v4973, %v5002
    %v5004 = vsel %vm1792, %v4974, %v5003
    %v5005 = vsel %vm1794, %v4975, %v5004
    %v5006 = vsel %vm1796, %v4976, %v5005
    %v5007 = vsel %vm1798, %v4977, %v5006
    %v5008 = vsel %vm1786, %v4979, %v4978
    %v5009 = vsel %vm1788, %v4980, %v5008
    %v5010 = vsel %vm1790, %v4981, %v5009
    %v5011 = vsel %vm1792, %v4982, %v5010
    %v5012 = vsel %vm1794, %v4983, %v5011
    %v5013 = vsel %vm1796, %v4984, %v5012
    %v5014 = vsel %vm1798, %v4985, %v5013
    %v5015 = vsel %vm1786, %v4987, %v4986
    %v5016 = vsel %vm1788, %v4988, %v5015
    %v5017 = vsel %vm1790, %v4989, %v5016
    %v5018 = vsel %vm1792, %v4990, %v5017
    %v5019 = vsel %vm1794, %v4991, %v5018
    %v5020 = vsel %vm1796, %v4992, %v5019
    %v5021 = vsel %vm1798, %v4993, %v5020
    %5030 = vrot.lane.b32.xlu0 %v4926, 60
    %v5031 = vpop.permute.xlu0 %5030
    %5032 = vrot.lane.b32.xlu0 %v4927, 60
    %v5033 = vpop.permute.xlu0 %5032
    %5034 = vrot.lane.b32.xlu0 %v4928, 60
    %v5035 = vpop.permute.xlu0 %5034
    %5036 = vrot.lane.b32.xlu0 %v4929, 60
    %v5037 = vpop.permute.xlu0 %5036
    %v5042 = vsel %vm4539, %v5000, %v5031
    %v5043 = vsel %vm4539, %v5007, %v5033
    %v5044 = vsel %vm4539, %v5014, %v5035
    %v5045 = vsel %vm4539, %v5021, %v5037
    %v5046 = vld [vmem:[#allocation6 + $0xf] sm:$0x1]
    %v5047 = vld [vmem:[#allocation6 + $0x10] sm:$0x1]
    %v5048 = vld [vmem:[#allocation3 + $0x570] sm:$0xff]
    %v5049 = vld [vmem:[#allocation3 + $0x578] sm:$0xff]
    %v5050 = vld [vmem:[#allocation3 + $0x580] sm:$0xff]
    %v5051 = vld [vmem:[#allocation3 + $0x588] sm:$0xff]
    %v5052 = vld [vmem:[#allocation3 + $0x590] sm:$0xff]
    %v5053 = vld [vmem:[#allocation3 + $0x598] sm:$0xff]
    %v5054 = vld [vmem:[#allocation3 + $0x5a0] sm:$0xff]
    %v5055 = vld [vmem:[#allocation3 + $0x5a8] sm:$0xff]
    %v5056 = vld [vmem:[#allocation3 + $0x5b0] sm:$0xff]
    %v5057 = vld [vmem:[#allocation6 + $0x11] sm:$0x1]
    %v5058 = vperm.slane %v5046, 0
    %v5059 = vmul.f32 %v5042, %v5058
    %v5060 = vmul.f32 %v5043, %v5058
    %v5061 = vmul.f32 %v5044, %v5058
    %v5062 = vmul.f32 %v5045, %v5058
    %v5063 = vperm.slane %v5047, 0
    %v5064 = vadd.f32 %v5059, %v5063
    %v5065 = vadd.f32 %v5060, %v5063
    %v5066 = vadd.f32 %v5061, %v5063
    %v5067 = vadd.f32 %v5062, %v5063
    %v5068 = vmax.f32 %v5064, 0.0
    %v5069 = vmax.f32 %v5065, 0.0
    %v5070 = vmax.f32 %v5066, 0.0
    %v5071 = vmax.f32 %v5067, 0.0
    %v5072 = vperm.slane %v5057, 0
    %vm5073 = vcmask 588800
    %v5075 = vsel %vm5073, %v5068, 0
    %v5078 = vsel %vm5073, %v5069, 0
    %v5081 = vsel %vm5073, %v5070, 0
    %v5084 = vsel %vm5073, %v5071, 0
    %5086 = vmatpush.msra.mxu0 0.0
    %5087 = vmatpush.msra.mxu0 0.0
    %5088 = vmatpush.msra.mxu0 0.0
    %5089 = vmatpush.msra.mxu0 0.0
    %5090 = vmatpush.msra.mxu0 0.0
    %5091 = vmatpush.msra.mxu0 0.0
    %5092 = vmatpush.msra.mxu0 0.0
    %5093 = vmatpush.msra.mxu0 %v5056
    %5094 = vmatpush.msra.mxu0 %v5055
    %5095 = vmatpush.msra.mxu0 %v5054
    %5096 = vmatpush.msra.mxu0 %v5053
    %5097 = vmatpush.msra.mxu0 %v5052
    %5098 = vmatpush.msra.mxu0 %v5051
    %5099 = vmatpush.msra.mxu0 %v5050
    %5100 = vmatpush.msra.mxu0 %v5049
    %5101 = vmatpush.msra.mxu0 %v5048
    %5102 = vmatmul.f32.gmra.mxu0 %v5075
    %v5103 = vpop.f32.mrf.mxu0
    %v5104 = vadd.f32 %v5072, %v5103
    %5105 = vmatmul.f32.gmra.mxu0 %v5078
    %v5106 = vpop.f32.mrf.mxu0
    %v5107 = vadd.f32 %v5072, %v5106
    %5108 = vmatmul.f32.gmra.mxu0 %v5081
    %v5109 = vpop.f32.mrf.mxu0
    %v5110 = vadd.f32 %v5072, %v5109
    %5111 = vmatmul.f32.gmra.mxu0 %v5084
    %v5112 = vpop.f32.mrf.mxu0
    %v5113 = vadd.f32 %v5072, %v5112
    %5114 = vdwg.mxu0
    %v5115 = vmax.f32 %v5104, 0.0
    %v5116 = vmax.f32 %v5107, 0.0
    %v5117 = vmax.f32 %v5110, 0.0
    %v5118 = vmax.f32 %v5113, 0.0
    %5119 = vst.msk [vmem:[#allocation2 + $0x8] sm:$0xff] %vm1914, %v5115
    %5120 = vst.msk [vmem:[#allocation2 + $0x10] sm:$0xff] %vm1914, %v5116
    %5121 = vst.msk [vmem:[#allocation2 + $0x58] sm:$0xff] %vm1914, %v5117
    %5122 = vst.msk [vmem:[#allocation2 + $0x60] sm:$0xff] %vm1914, %v5118
    %v5123 = vld [vmem:[#allocation2 + $0x5] sm:$0xff]
    %v5124 = vld [vmem:[#allocation2 + $0xd] sm:$0xff]
    %v5125 = vld [vmem:[#allocation2 + $0x55] sm:$0xff]
    %v5126 = vld [vmem:[#allocation2 + $0x5d] sm:$0xff]
    %v5127 = vld [vmem:[#allocation3 + $0x5b8] sm:$0xff]
    %v5128 = vld [vmem:[#allocation2 + $0x6] sm:$0xff]
    %v5129 = vld [vmem:[#allocation2 + $0xe] sm:$0xff]
    %v5130 = vld [vmem:[#allocation2 + $0x56] sm:$0xff]
    %v5131 = vld [vmem:[#allocation2 + $0x5e] sm:$0xff]
    %v5132 = vld [vmem:[#allocation3 + $0x5c0] sm:$0xff]
    %v5134 = vsel %vm1914, %v5128, 0
    %v5137 = vsel %vm1914, %v5129, 0
    %v5140 = vsel %vm1914, %v5130, 0
    %v5143 = vsel %vm1914, %v5131, 0
    %5145 = vmatpush.msra.mxu0 0.0
    %5146 = vmatpush.msra.mxu0 0.0
    %5147 = vmatpush.msra.mxu0 0.0
    %5148 = vmatpush.msra.mxu0 0.0
    %5149 = vmatpush.msra.mxu0 0.0
    %5150 = vmatpush.msra.mxu0 0.0
    %5151 = vmatpush.msra.mxu0 0.0
    %5152 = vmatpush.msra.mxu0 0.0
    %5153 = vmatpush.msra.mxu0 0.0
    %5154 = vmatpush.msra.mxu0 0.0
    %5155 = vmatpush.msra.mxu0 0.0
    %5156 = vmatpush.msra.mxu0 0.0
    %5157 = vmatpush.msra.mxu0 0.0
    %5158 = vmatpush.msra.mxu0 0.0
    %5159 = vmatpush.msra.mxu0 0.0
    %5160 = vmatpush.msra.mxu0 %v5132
    %5161 = vmatmul.f32.gmra.mxu0 %v5134
    %v5162 = vpop.f32.mrf.mxu0
    %v5163 = vadd.f32 0.0, %v5162
    %5164 = vmatmul.f32.gmra.mxu0 %v5137
    %v5165 = vpop.f32.mrf.mxu0
    %v5166 = vadd.f32 0.0, %v5165
    %5167 = vmatmul.f32.gmra.mxu0 %v5140
    %v5168 = vpop.f32.mrf.mxu0
    %v5169 = vadd.f32 0.0, %v5168
    %5170 = vmatmul.f32.gmra.mxu0 %v5143
    %v5171 = vpop.f32.mrf.mxu0
    %v5172 = vadd.f32 0.0, %v5171
    %5173 = vdwg.mxu0
    %v5175 = vsel %vm1914, %v5123, 0
    %v5178 = vsel %vm1914, %v5124, 0
    %v5181 = vsel %vm1914, %v5125, 0
    %v5184 = vsel %vm1914, %v5126, 0
    %5186 = vmatpush.msra.mxu0 0.0
    %5187 = vmatpush.msra.mxu0 0.0
    %5188 = vmatpush.msra.mxu0 0.0
    %5189 = vmatpush.msra.mxu0 0.0
    %5190 = vmatpush.msra.mxu0 0.0
    %5191 = vmatpush.msra.mxu0 0.0
    %5192 = vmatpush.msra.mxu0 0.0
    %5193 = vmatpush.msra.mxu0 0.0
    %5194 = vmatpush.msra.mxu0 0.0
    %5195 = vmatpush.msra.mxu0 0.0
    %5196 = vmatpush.msra.mxu0 0.0
    %5197 = vmatpush.msra.mxu0 0.0
    %5198 = vmatpush.msra.mxu0 0.0
    %5199 = vmatpush.msra.mxu0 0.0
    %5200 = vmatpush.msra.mxu0 0.0
    %5201 = vmatpush.msra.mxu0 %v5127
    %5202 = vmatmul.f32.gmra.mxu0 %v5175
    %v5203 = vpop.f32.mrf.mxu0
    %v5204 = vadd.f32 %v5163, %v5203
    %5205 = vmatmul.f32.gmra.mxu0 %v5178
    %v5206 = vpop.f32.mrf.mxu0
    %v5207 = vadd.f32 %v5166, %v5206
    %5208 = vmatmul.f32.gmra.mxu0 %v5181
    %v5209 = vpop.f32.mrf.mxu0
    %v5210 = vadd.f32 %v5169, %v5209
    %5211 = vmatmul.f32.gmra.mxu0 %v5184
    %v5212 = vpop.f32.mrf.mxu0
    %v5213 = vadd.f32 %v5172, %v5212
    %5214 = vdwg.mxu0
    %v5215 = vld [vmem:[#allocation2 + $0x7] sm:$0xff]
    %v5216 = vld [vmem:[#allocation2 + $0xf] sm:$0xff]
    %v5217 = vld [vmem:[#allocation2 + $0x57] sm:$0xff]
    %v5218 = vld [vmem:[#allocation2 + $0x5f] sm:$0xff]
    %v5219 = vld [vmem:[#allocation3 + $0x5c8] sm:$0xff]
    %v5221 = vsel %vm1914, %v5215, 0
    %v5224 = vsel %vm1914, %v5216, 0
    %v5227 = vsel %vm1914, %v5217, 0
    %v5230 = vsel %vm1914, %v5218, 0
    %5232 = vmatpush.msra.mxu0 0.0
    %5233 = vmatpush.msra.mxu0 0.0
    %5234 = vmatpush.msra.mxu0 0.0
    %5235 = vmatpush.msra.mxu0 0.0
    %5236 = vmatpush.msra.mxu0 0.0
    %5237 = vmatpush.msra.mxu0 0.0
    %5238 = vmatpush.msra.mxu0 0.0
    %5239 = vmatpush.msra.mxu0 0.0
    %5240 = vmatpush.msra.mxu0 0.0
    %5241 = vmatpush.msra.mxu0 0.0
    %5242 = vmatpush.msra.mxu0 0.0
    %5243 = vmatpush.msra.mxu0 0.0
    %5244 = vmatpush.msra.mxu0 0.0
    %5245 = vmatpush.msra.mxu0 0.0
    %5246 = vmatpush.msra.mxu0 0.0
    %5247 = vmatpush.msra.mxu0 %v5219
    %5248 = vmatmul.f32.gmra.mxu0 %v5221
    %v5249 = vpop.f32.mrf.mxu0
    %v5250 = vadd.f32 0.0, %v5249
    %5251 = vmatmul.f32.gmra.mxu0 %v5224
    %v5252 = vpop.f32.mrf.mxu0
    %v5253 = vadd.f32 0.0, %v5252
    %5254 = vmatmul.f32.gmra.mxu0 %v5227
    %v5255 = vpop.f32.mrf.mxu0
    %v5256 = vadd.f32 0.0, %v5255
    %5257 = vmatmul.f32.gmra.mxu0 %v5230
    %v5258 = vpop.f32.mrf.mxu0
    %v5259 = vadd.f32 0.0, %v5258
    %5260 = vdwg.mxu0
    %v5261 = vadd.f32 %v5204, %v5250
    %v5262 = vadd.f32 %v5207, %v5253
    %v5263 = vadd.f32 %v5210, %v5256
    %v5264 = vadd.f32 %v5213, %v5259
    %v5265 = vld [vmem:[#allocation2 + $0x8] sm:$0xff]
    %v5266 = vld [vmem:[#allocation2 + $0x10] sm:$0xff]
    %v5267 = vld [vmem:[#allocation2 + $0x58] sm:$0xff]
    %v5268 = vld [vmem:[#allocation2 + $0x60] sm:$0xff]
    %v5269 = vld [vmem:[#allocation3 + $0x5d0] sm:$0xff]
    %v5271 = vsel %vm1914, %v5265, 0
    %v5274 = vsel %vm1914, %v5266, 0
    %v5277 = vsel %vm1914, %v5267, 0
    %v5280 = vsel %vm1914, %v5268, 0
    %5282 = vmatpush.msra.mxu0 0.0
    %5283 = vmatpush.msra.mxu0 0.0
    %5284 = vmatpush.msra.mxu0 0.0
    %5285 = vmatpush.msra.mxu0 0.0
    %5286 = vmatpush.msra.mxu0 0.0
    %5287 = vmatpush.msra.mxu0 0.0
    %5288 = vmatpush.msra.mxu0 0.0
    %5289 = vmatpush.msra.mxu0 0.0
    %5290 = vmatpush.msra.mxu0 0.0
    %5291 = vmatpush.msra.mxu0 0.0
    %5292 = vmatpush.msra.mxu0 0.0
    %5293 = vmatpush.msra.mxu0 0.0
    %5294 = vmatpush.msra.mxu0 0.0
    %5295 = vmatpush.msra.mxu0 0.0
    %5296 = vmatpush.msra.mxu0 0.0
    %5297 = vmatpush.msra.mxu0 %v5269
    %5298 = vmatmul.f32.gmra.mxu0 %v5271
    %v5299 = vpop.f32.mrf.mxu0
    %v5300 = vadd.f32 0.0, %v5299
    %5301 = vmatmul.f32.gmra.mxu0 %v5274
    %v5302 = vpop.f32.mrf.mxu0
    %v5303 = vadd.f32 0.0, %v5302
    %5304 = vmatmul.f32.gmra.mxu0 %v5277
    %v5305 = vpop.f32.mrf.mxu0
    %v5306 = vadd.f32 0.0, %v5305
    %5307 = vmatmul.f32.gmra.mxu0 %v5280
    %v5308 = vpop.f32.mrf.mxu0
    %v5309 = vadd.f32 0.0, %v5308
    %5310 = vdwg.mxu0
    %v5311 = vadd.f32 %v5261, %v5300
    %v5312 = vadd.f32 %v5262, %v5303
    %v5313 = vadd.f32 %v5263, %v5306
    %v5314 = vadd.f32 %v5264, %v5309
    %v5315 = vld [vmem:[#allocation2 + $0x9] sm:$0xff]
    %v5316 = vld [vmem:[#allocation2 + $0x11] sm:$0xff]
    %v5317 = vld [vmem:[#allocation2 + $0x59] sm:$0xff]
    %v5318 = vld [vmem:[#allocation2 + $0x61] sm:$0xff]
    %v5319 = vld [vmem:[#allocation3 + $0x5d8] sm:$0xff]
    %v5321 = vsel %vm1914, %v5315, 0
    %v5324 = vsel %vm1914, %v5316, 0
    %v5327 = vsel %vm1914, %v5317, 0
    %v5330 = vsel %vm1914, %v5318, 0
    %5332 = vmatpush.msra.mxu0 0.0
    %5333 = vmatpush.msra.mxu0 0.0
    %5334 = vmatpush.msra.mxu0 0.0
    %5335 = vmatpush.msra.mxu0 0.0
    %5336 = vmatpush.msra.mxu0 0.0
    %5337 = vmatpush.msra.mxu0 0.0
    %5338 = vmatpush.msra.mxu0 0.0
    %5339 = vmatpush.msra.mxu0 0.0
    %5340 = vmatpush.msra.mxu0 0.0
    %5341 = vmatpush.msra.mxu0 0.0
    %5342 = vmatpush.msra.mxu0 0.0
    %5343 = vmatpush.msra.mxu0 0.0
    %5344 = vmatpush.msra.mxu0 0.0
    %5345 = vmatpush.msra.mxu0 0.0
    %5346 = vmatpush.msra.mxu0 0.0
    %5347 = vmatpush.msra.mxu0 %v5319
    %5348 = vmatmul.f32.gmra.mxu0 %v5321
    %v5349 = vpop.f32.mrf.mxu0
    %v5350 = vadd.f32 0.0, %v5349
    %5351 = vmatmul.f32.gmra.mxu0 %v5324
    %v5352 = vpop.f32.mrf.mxu0
    %v5353 = vadd.f32 0.0, %v5352
    %5354 = vmatmul.f32.gmra.mxu0 %v5327
    %v5355 = vpop.f32.mrf.mxu0
    %v5356 = vadd.f32 0.0, %v5355
    %5357 = vmatmul.f32.gmra.mxu0 %v5330
    %v5358 = vpop.f32.mrf.mxu0
    %v5359 = vadd.f32 0.0, %v5358
    %5360 = vdwg.mxu0
    %v5361 = vadd.f32 %v5311, %v5350
    %v5362 = vadd.f32 %v5312, %v5353
    %v5363 = vadd.f32 %v5313, %v5356
    %v5364 = vadd.f32 %v5314, %v5359
    %v5365 = vld [vmem:[#allocation2 + $0xa] sm:$0xff]
    %v5366 = vld [vmem:[#allocation2 + $0x12] sm:$0xff]
    %v5367 = vld [vmem:[#allocation2 + $0x5a] sm:$0xff]
    %v5368 = vld [vmem:[#allocation2 + $0x62] sm:$0xff]
    %v5369 = vld [vmem:[#allocation3 + $0x5e0] sm:$0xff]
    %v5371 = vsel %vm1914, %v5365, 0
    %v5374 = vsel %vm1914, %v5366, 0
    %v5377 = vsel %vm1914, %v5367, 0
    %v5380 = vsel %vm1914, %v5368, 0
    %5382 = vmatpush.msra.mxu0 0.0
    %5383 = vmatpush.msra.mxu0 0.0
    %5384 = vmatpush.msra.mxu0 0.0
    %5385 = vmatpush.msra.mxu0 0.0
    %5386 = vmatpush.msra.mxu0 0.0
    %5387 = vmatpush.msra.mxu0 0.0
    %5388 = vmatpush.msra.mxu0 0.0
    %5389 = vmatpush.msra.mxu0 0.0
    %5390 = vmatpush.msra.mxu0 0.0
    %5391 = vmatpush.msra.mxu0 0.0
    %5392 = vmatpush.msra.mxu0 0.0
    %5393 = vmatpush.msra.mxu0 0.0
    %5394 = vmatpush.msra.mxu0 0.0
    %5395 = vmatpush.msra.mxu0 0.0
    %5396 = vmatpush.msra.mxu0 0.0
    %5397 = vmatpush.msra.mxu0 %v5369
    %5398 = vmatmul.f32.gmra.mxu0 %v5371
    %v5399 = vpop.f32.mrf.mxu0
    %v5400 = vadd.f32 0.0, %v5399
    %5401 = vmatmul.f32.gmra.mxu0 %v5374
    %v5402 = vpop.f32.mrf.mxu0
    %v5403 = vadd.f32 0.0, %v5402
    %5404 = vmatmul.f32.gmra.mxu0 %v5377
    %v5405 = vpop.f32.mrf.mxu0
    %v5406 = vadd.f32 0.0, %v5405
    %5407 = vmatmul.f32.gmra.mxu0 %v5380
    %v5408 = vpop.f32.mrf.mxu0
    %v5409 = vadd.f32 0.0, %v5408
    %5410 = vdwg.mxu0
    %v5411 = vadd.f32 %v5361, %v5400
    %v5412 = vadd.f32 %v5362, %v5403
    %v5413 = vadd.f32 %v5363, %v5406
    %v5414 = vadd.f32 %v5364, %v5409
    %v5415 = vld [vmem:[#allocation2 + $0xb] sm:$0xff]
    %v5416 = vld [vmem:[#allocation2 + $0x13] sm:$0xff]
    %v5417 = vld [vmem:[#allocation2 + $0x5b] sm:$0xff]
    %v5418 = vld [vmem:[#allocation2 + $0x63] sm:$0xff]
    %v5419 = vld [vmem:[#allocation3 + $0x5e8] sm:$0xff]
    %v5421 = vsel %vm1914, %v5415, 0
    %v5424 = vsel %vm1914, %v5416, 0
    %v5427 = vsel %vm1914, %v5417, 0
    %v5430 = vsel %vm1914, %v5418, 0
    %5432 = vmatpush.msra.mxu0 0.0
    %5433 = vmatpush.msra.mxu0 0.0
    %5434 = vmatpush.msra.mxu0 0.0
    %5435 = vmatpush.msra.mxu0 0.0
    %5436 = vmatpush.msra.mxu0 0.0
    %5437 = vmatpush.msra.mxu0 0.0
    %5438 = vmatpush.msra.mxu0 0.0
    %5439 = vmatpush.msra.mxu0 0.0
    %5440 = vmatpush.msra.mxu0 0.0
    %5441 = vmatpush.msra.mxu0 0.0
    %5442 = vmatpush.msra.mxu0 0.0
    %5443 = vmatpush.msra.mxu0 0.0
    %5444 = vmatpush.msra.mxu0 0.0
    %5445 = vmatpush.msra.mxu0 0.0
    %5446 = vmatpush.msra.mxu0 0.0
    %5447 = vmatpush.msra.mxu0 %v5419
    %5448 = vmatmul.f32.gmra.mxu0 %v5421
    %v5449 = vpop.f32.mrf.mxu0
    %v5450 = vadd.f32 0.0, %v5449
    %5451 = vmatmul.f32.gmra.mxu0 %v5424
    %v5452 = vpop.f32.mrf.mxu0
    %v5453 = vadd.f32 0.0, %v5452
    %5454 = vmatmul.f32.gmra.mxu0 %v5427
    %v5455 = vpop.f32.mrf.mxu0
    %v5456 = vadd.f32 0.0, %v5455
    %5457 = vmatmul.f32.gmra.mxu0 %v5430
    %v5458 = vpop.f32.mrf.mxu0
    %v5459 = vadd.f32 0.0, %v5458
    %5460 = vdwg.mxu0
    %v5461 = vadd.f32 %v5411, %v5450
    %v5462 = vadd.f32 %v5412, %v5453
    %v5463 = vadd.f32 %v5413, %v5456
    %v5464 = vadd.f32 %v5414, %v5459
    %5469 = vrot.lane.b32.xlu0 %v5461, 72
    %v5470 = vpop.permute.xlu0 %5469
    %5471 = vrot.lane.b32.xlu0 %v5462, 72
    %v5472 = vpop.permute.xlu0 %5471
    %5473 = vrot.lane.b32.xlu0 %v5463, 72
    %v5474 = vpop.permute.xlu0 %5473
    %5475 = vrot.lane.b32.xlu0 %v5464, 72
    %v5476 = vpop.permute.xlu0 %5475
    %v5481 = vsel %vm5073, %v5042, %v5470
    %v5482 = vsel %vm5073, %v5043, %v5472
    %v5483 = vsel %vm5073, %v5044, %v5474
    %v5484 = vsel %vm5073, %v5045, %v5476
    %v5485 = vld [vmem:[#allocation6 + $0x12] sm:$0x1]
    %v5486 = vld [vmem:[#allocation6 + $0x13] sm:$0x1]
    %v5487 = vld [vmem:[#allocation6 + $0x14] sm:$0x1]
    %v5488 = vperm.slane %v5485, 0
    %v5489 = vmul.f32 %v5481, %v5488
    %v5490 = vmul.f32 %v5482, %v5488
    %v5491 = vmul.f32 %v5483, %v5488
    %v5492 = vmul.f32 %v5484, %v5488
    %v5493 = vperm.slane %v5486, 0
    %v5494 = vadd.f32 %v5489, %v5493
    %v5495 = vadd.f32 %v5490, %v5493
    %v5496 = vadd.f32 %v5491, %v5493
    %v5497 = vadd.f32 %v5492, %v5493
    %v5498 = vmax.f32 %v5494, 0.0
    %v5499 = vmax.f32 %v5495, 0.0
    %v5500 = vmax.f32 %v5496, 0.0
    %v5501 = vmax.f32 %v5497, 0.0
    %vm5502 = vcmask 687104
    %5503 = vst.msk [vmem:[#allocation2 + $0x8] sm:$0xff] %vm5502, %v5498
    %5504 = vst.msk [vmem:[#allocation2 + $0x10] sm:$0xff] %vm5502, %v5499
    %5505 = vst.msk [vmem:[#allocation2 + $0x58] sm:$0xff] %vm5502, %v5500
    %5506 = vst.msk [vmem:[#allocation2 + $0x60] sm:$0xff] %vm5502, %v5501
    %v5507 = vld [vmem:[#allocation2 + $0x5] sm:$0xff]
    %v5508 = vld [vmem:[#allocation2 + $0xd] sm:$0xff]
    %v5509 = vld [vmem:[#allocation2 + $0x55] sm:$0xff]
    %v5510 = vld [vmem:[#allocation2 + $0x5d] sm:$0xff]
    %v5511 = vld [vmem:[#allocation3 + $0x5f0] sm:$0xff]
    %v5512 = vld [vmem:[#allocation3 + $0x5f8] sm:$0xff]
    %v5513 = vld [vmem:[#allocation3 + $0x600] sm:$0xff]
    %v5514 = vld [vmem:[#allocation3 + $0x608] sm:$0xff]
    %v5515 = vld [vmem:[#allocation3 + $0x610] sm:$0xff]
    %v5516 = vld [vmem:[#allocation3 + $0x618] sm:$0xff]
    %v5517 = vld [vmem:[#allocation3 + $0x620] sm:$0xff]
    %v5518 = vld [vmem:[#allocation3 + $0x628] sm:$0xff]
    %v5519 = vld [vmem:[#allocation3 + $0x630] sm:$0xff]
    %v5520 = vld [vmem:[#allocation3 + $0x638] sm:$0xff]
    %v5521 = vld [vmem:[#allocation3 + $0x640] sm:$0xf]
    %v5522 = vld [vmem:[#allocation2 + $0x6] sm:$0xff]
    %v5523 = vld [vmem:[#allocation2 + $0xe] sm:$0xff]
    %v5524 = vld [vmem:[#allocation2 + $0x56] sm:$0xff]
    %v5525 = vld [vmem:[#allocation2 + $0x5e] sm:$0xff]
    %v5526 = vld [vmem:[#allocation3 + $0x648] sm:$0xff]
    %v5527 = vld [vmem:[#allocation3 + $0x650] sm:$0xff]
    %v5528 = vld [vmem:[#allocation3 + $0x658] sm:$0xff]
    %v5529 = vld [vmem:[#allocation3 + $0x660] sm:$0xff]
    %v5530 = vld [vmem:[#allocation3 + $0x668] sm:$0xff]
    %v5531 = vld [vmem:[#allocation3 + $0x670] sm:$0xff]
    %v5532 = vld [vmem:[#allocation3 + $0x678] sm:$0xff]
    %v5533 = vld [vmem:[#allocation3 + $0x680] sm:$0xff]
    %v5534 = vld [vmem:[#allocation3 + $0x688] sm:$0xff]
    %v5535 = vld [vmem:[#allocation3 + $0x690] sm:$0xff]
    %v5536 = vld [vmem:[#allocation3 + $0x698] sm:$0xf]
    %v5538 = vsel %vm5502, %v5522, 0
    %v5541 = vsel %vm5502, %v5523, 0
    %v5544 = vsel %vm5502, %v5524, 0
    %v5547 = vsel %vm5502, %v5525, 0
    %v5550 = vsel %vm185, %v5536, 0
    %5552 = vmatpush.msra.mxu0 0.0
    %5553 = vmatpush.msra.mxu0 0.0
    %5554 = vmatpush.msra.mxu0 0.0
    %5555 = vmatpush.msra.mxu0 0.0
    %5556 = vmatpush.msra.mxu0 0.0
    %5557 = vmatpush.msra.mxu0 %v5550
    %5558 = vmatpush.msra.mxu0 %v5535
    %5559 = vmatpush.msra.mxu0 %v5534
    %5560 = vmatpush.msra.mxu0 %v5533
    %5561 = vmatpush.msra.mxu0 %v5532
    %5562 = vmatpush.msra.mxu0 %v5531
    %5563 = vmatpush.msra.mxu0 %v5530
    %5564 = vmatpush.msra.mxu0 %v5529
    %5565 = vmatpush.msra.mxu0 %v5528
    %5566 = vmatpush.msra.mxu0 %v5527
    %5567 = vmatpush.msra.mxu0 %v5526
    %5568 = vmatmul.f32.gmra.mxu0 %v5538
    %v5569 = vpop.f32.mrf.mxu0
    %v5570 = vadd.f32 0.0, %v5569
    %5571 = vmatmul.f32.gmra.mxu0 %v5541
    %v5572 = vpop.f32.mrf.mxu0
    %v5573 = vadd.f32 0.0, %v5572
    %5574 = vmatmul.f32.gmra.mxu0 %v5544
    %v5575 = vpop.f32.mrf.mxu0
    %v5576 = vadd.f32 0.0, %v5575
    %5577 = vmatmul.f32.gmra.mxu0 %v5547
    %v5578 = vpop.f32.mrf.mxu0
    %v5579 = vadd.f32 0.0, %v5578
    %5580 = vdwg.mxu0
    %v5582 = vsel %vm5502, %v5507, 0
    %v5585 = vsel %vm5502, %v5508, 0
    %v5588 = vsel %vm5502, %v5509, 0
    %v5591 = vsel %vm5502, %v5510, 0
    %v5594 = vsel %vm185, %v5521, 0
    %5596 = vmatpush.msra.mxu0 0.0
    %5597 = vmatpush.msra.mxu0 0.0
    %5598 = vmatpush.msra.mxu0 0.0
    %5599 = vmatpush.msra.mxu0 0.0
    %5600 = vmatpush.msra.mxu0 0.0
    %5601 = vmatpush.msra.mxu0 %v5594
    %5602 = vmatpush.msra.mxu0 %v5520
    %5603 = vmatpush.msra.mxu0 %v5519
    %5604 = vmatpush.msra.mxu0 %v5518
    %5605 = vmatpush.msra.mxu0 %v5517
    %5606 = vmatpush.msra.mxu0 %v5516
    %5607 = vmatpush.msra.mxu0 %v5515
    %5608 = vmatpush.msra.mxu0 %v5514
    %5609 = vmatpush.msra.mxu0 %v5513
    %5610 = vmatpush.msra.mxu0 %v5512
    %5611 = vmatpush.msra.mxu0 %v5511
    %5612 = vmatmul.f32.gmra.mxu0 %v5582
    %v5613 = vpop.f32.mrf.mxu0
    %v5614 = vadd.f32 %v5570, %v5613
    %5615 = vmatmul.f32.gmra.mxu0 %v5585
    %v5616 = vpop.f32.mrf.mxu0
    %v5617 = vadd.f32 %v5573, %v5616
    %5618 = vmatmul.f32.gmra.mxu0 %v5588
    %v5619 = vpop.f32.mrf.mxu0
    %v5620 = vadd.f32 %v5576, %v5619
    %5621 = vmatmul.f32.gmra.mxu0 %v5591
    %v5622 = vpop.f32.mrf.mxu0
    %v5623 = vadd.f32 %v5579, %v5622
    %5624 = vdwg.mxu0
    %v5625 = vld [vmem:[#allocation2 + $0x7] sm:$0xff]
    %v5626 = vld [vmem:[#allocation2 + $0xf] sm:$0xff]
    %v5627 = vld [vmem:[#allocation2 + $0x57] sm:$0xff]
    %v5628 = vld [vmem:[#allocation2 + $0x5f] sm:$0xff]
    %v5629 = vld [vmem:[#allocation3 + $0x6a0] sm:$0xff]
    %v5630 = vld [vmem:[#allocation3 + $0x6a8] sm:$0xff]
    %v5631 = vld [vmem:[#allocation3 + $0x6b0] sm:$0xff]
    %v5632 = vld [vmem:[#allocation3 + $0x6b8] sm:$0xff]
    %v5633 = vld [vmem:[#allocation3 + $0x6c0] sm:$0xff]
    %v5634 = vld [vmem:[#allocation3 + $0x6c8] sm:$0xff]
    %v5635 = vld [vmem:[#allocation3 + $0x6d0] sm:$0xff]
    %v5636 = vld [vmem:[#allocation3 + $0x6d8] sm:$0xff]
    %v5637 = vld [vmem:[#allocation3 + $0x6e0] sm:$0xff]
    %v5638 = vld [vmem:[#allocation3 + $0x6e8] sm:$0xff]
    %v5639 = vld [vmem:[#allocation3 + $0x6f0] sm:$0xf]
    %v5641 = vsel %vm5502, %v5625, 0
    %v5644 = vsel %vm5502, %v5626, 0
    %v5647 = vsel %vm5502, %v5627, 0
    %v5650 = vsel %vm5502, %v5628, 0
    %v5653 = vsel %vm185, %v5639, 0
    %5655 = vmatpush.msra.mxu0 0.0
    %5656 = vmatpush.msra.mxu0 0.0
    %5657 = vmatpush.msra.mxu0 0.0
    %5658 = vmatpush.msra.mxu0 0.0
    %5659 = vmatpush.msra.mxu0 0.0
    %5660 = vmatpush.msra.mxu0 %v5653
    %5661 = vmatpush.msra.mxu0 %v5638
    %5662 = vmatpush.msra.mxu0 %v5637
    %5663 = vmatpush.msra.mxu0 %v5636
    %5664 = vmatpush.msra.mxu0 %v5635
    %5665 = vmatpush.msra.mxu0 %v5634
    %5666 = vmatpush.msra.mxu0 %v5633
    %5667 = vmatpush.msra.mxu0 %v5632
    %5668 = vmatpush.msra.mxu0 %v5631
    %5669 = vmatpush.msra.mxu0 %v5630
    %5670 = vmatpush.msra.mxu0 %v5629
    %5671 = vmatmul.f32.gmra.mxu0 %v5641
    %v5672 = vpop.f32.mrf.mxu0
    %v5673 = vadd.f32 0.0, %v5672
    %5674 = vmatmul.f32.gmra.mxu0 %v5644
    %v5675 = vpop.f32.mrf.mxu0
    %v5676 = vadd.f32 0.0, %v5675
    %5677 = vmatmul.f32.gmra.mxu0 %v5647
    %v5678 = vpop.f32.mrf.mxu0
    %v5679 = vadd.f32 0.0, %v5678
    %5680 = vmatmul.f32.gmra.mxu0 %v5650
    %v5681 = vpop.f32.mrf.mxu0
    %v5682 = vadd.f32 0.0, %v5681
    %5683 = vdwg.mxu0
    %v5684 = vadd.f32 %v5614, %v5673
    %v5685 = vadd.f32 %v5617, %v5676
    %v5686 = vadd.f32 %v5620, %v5679
    %v5687 = vadd.f32 %v5623, %v5682
    %v5688 = vld [vmem:[#allocation2 + $0x8] sm:$0xff]
    %v5689 = vld [vmem:[#allocation2 + $0x10] sm:$0xff]
    %v5690 = vld [vmem:[#allocation2 + $0x58] sm:$0xff]
    %v5691 = vld [vmem:[#allocation2 + $0x60] sm:$0xff]
    %v5692 = vld [vmem:[#allocation3 + $0x6f8] sm:$0xff]
    %v5693 = vld [vmem:[#allocation3 + $0x700] sm:$0xff]
    %v5694 = vld [vmem:[#allocation3 + $0x708] sm:$0xff]
    %v5695 = vld [vmem:[#allocation3 + $0x710] sm:$0xff]
    %v5696 = vld [vmem:[#allocation3 + $0x718] sm:$0xff]
    %v5697 = vld [vmem:[#allocation3 + $0x720] sm:$0xff]
    %v5698 = vld [vmem:[#allocation3 + $0x728] sm:$0xff]
    %v5699 = vld [vmem:[#allocation3 + $0x730] sm:$0xff]
    %v5700 = vld [vmem:[#allocation3 + $0x738] sm:$0xff]
    %v5701 = vld [vmem:[#allocation3 + $0x740] sm:$0xff]
    %v5702 = vld [vmem:[#allocation3 + $0x748] sm:$0xf]
    %v5704 = vsel %vm5502, %v5688, 0
    %v5707 = vsel %vm5502, %v5689, 0
    %v5710 = vsel %vm5502, %v5690, 0
    %v5713 = vsel %vm5502, %v5691, 0
    %v5716 = vsel %vm185, %v5702, 0
    %5718 = vmatpush.msra.mxu0 0.0
    %5719 = vmatpush.msra.mxu0 0.0
    %5720 = vmatpush.msra.mxu0 0.0
    %5721 = vmatpush.msra.mxu0 0.0
    %5722 = vmatpush.msra.mxu0 0.0
    %5723 = vmatpush.msra.mxu0 %v5716
    %5724 = vmatpush.msra.mxu0 %v5701
    %5725 = vmatpush.msra.mxu0 %v5700
    %5726 = vmatpush.msra.mxu0 %v5699
    %5727 = vmatpush.msra.mxu0 %v5698
    %5728 = vmatpush.msra.mxu0 %v5697
    %5729 = vmatpush.msra.mxu0 %v5696
    %5730 = vmatpush.msra.mxu0 %v5695
    %5731 = vmatpush.msra.mxu0 %v5694
    %5732 = vmatpush.msra.mxu0 %v5693
    %5733 = vmatpush.msra.mxu0 %v5692
    %5734 = vmatmul.f32.gmra.mxu0 %v5704
    %v5735 = vpop.f32.mrf.mxu0
    %v5736 = vadd.f32 0.0, %v5735
    %5737 = vmatmul.f32.gmra.mxu0 %v5707
    %v5738 = vpop.f32.mrf.mxu0
    %v5739 = vadd.f32 0.0, %v5738
    %5740 = vmatmul.f32.gmra.mxu0 %v5710
    %v5741 = vpop.f32.mrf.mxu0
    %v5742 = vadd.f32 0.0, %v5741
    %5743 = vmatmul.f32.gmra.mxu0 %v5713
    %v5744 = vpop.f32.mrf.mxu0
    %v5745 = vadd.f32 0.0, %v5744
    %5746 = vdwg.mxu0
    %v5747 = vadd.f32 %v5684, %v5736
    %v5748 = vadd.f32 %v5685, %v5739
    %v5749 = vadd.f32 %v5686, %v5742
    %v5750 = vadd.f32 %v5687, %v5745
    %v5751 = vld [vmem:[#allocation2 + $0x9] sm:$0xff]
    %v5752 = vld [vmem:[#allocation2 + $0x11] sm:$0xff]
    %v5753 = vld [vmem:[#allocation2 + $0x59] sm:$0xff]
    %v5754 = vld [vmem:[#allocation2 + $0x61] sm:$0xff]
    %v5755 = vld [vmem:[#allocation3 + $0x750] sm:$0xff]
    %v5756 = vld [vmem:[#allocation3 + $0x758] sm:$0xff]
    %v5757 = vld [vmem:[#allocation3 + $0x760] sm:$0xff]
    %v5758 = vld [vmem:[#allocation3 + $0x768] sm:$0xff]
    %v5759 = vld [vmem:[#allocation3 + $0x770] sm:$0xff]
    %v5760 = vld [vmem:[#allocation3 + $0x778] sm:$0xff]
    %v5761 = vld [vmem:[#allocation3 + $0x780] sm:$0xff]
    %v5762 = vld [vmem:[#allocation3 + $0x788] sm:$0xff]
    %v5763 = vld [vmem:[#allocation3 + $0x790] sm:$0xff]
    %v5764 = vld [vmem:[#allocation3 + $0x798] sm:$0xff]
    %v5765 = vld [vmem:[#allocation3 + $0x7a0] sm:$0xf]
    %v5767 = vsel %vm5502, %v5751, 0
    %v5770 = vsel %vm5502, %v5752, 0
    %v5773 = vsel %vm5502, %v5753, 0
    %v5776 = vsel %vm5502, %v5754, 0
    %v5779 = vsel %vm185, %v5765, 0
    %5781 = vmatpush.msra.mxu0 0.0
    %5782 = vmatpush.msra.mxu0 0.0
    %5783 = vmatpush.msra.mxu0 0.0
    %5784 = vmatpush.msra.mxu0 0.0
    %5785 = vmatpush.msra.mxu0 0.0
    %5786 = vmatpush.msra.mxu0 %v5779
    %5787 = vmatpush.msra.mxu0 %v5764
    %5788 = vmatpush.msra.mxu0 %v5763
    %5789 = vmatpush.msra.mxu0 %v5762
    %5790 = vmatpush.msra.mxu0 %v5761
    %5791 = vmatpush.msra.mxu0 %v5760
    %5792 = vmatpush.msra.mxu0 %v5759
    %5793 = vmatpush.msra.mxu0 %v5758
    %5794 = vmatpush.msra.mxu0 %v5757
    %5795 = vmatpush.msra.mxu0 %v5756
    %5796 = vmatpush.msra.mxu0 %v5755
    %5797 = vmatmul.f32.gmra.mxu0 %v5767
    %v5798 = vpop.f32.mrf.mxu0
    %v5799 = vadd.f32 0.0, %v5798
    %5800 = vmatmul.f32.gmra.mxu0 %v5770
    %v5801 = vpop.f32.mrf.mxu0
    %v5802 = vadd.f32 0.0, %v5801
    %5803 = vmatmul.f32.gmra.mxu0 %v5773
    %v5804 = vpop.f32.mrf.mxu0
    %v5805 = vadd.f32 0.0, %v5804
    %5806 = vmatmul.f32.gmra.mxu0 %v5776
    %v5807 = vpop.f32.mrf.mxu0
    %v5808 = vadd.f32 0.0, %v5807
    %5809 = vdwg.mxu0
    %v5810 = vadd.f32 %v5747, %v5799
    %v5811 = vadd.f32 %v5748, %v5802
    %v5812 = vadd.f32 %v5749, %v5805
    %v5813 = vadd.f32 %v5750, %v5808
    %v5814 = vld [vmem:[#allocation2 + $0xa] sm:$0xff]
    %v5815 = vld [vmem:[#allocation2 + $0x12] sm:$0xff]
    %v5816 = vld [vmem:[#allocation2 + $0x5a] sm:$0xff]
    %v5817 = vld [vmem:[#allocation2 + $0x62] sm:$0xff]
    %v5818 = vld [vmem:[#allocation3 + $0x7a8] sm:$0xff]
    %v5819 = vld [vmem:[#allocation3 + $0x7b0] sm:$0xff]
    %v5820 = vld [vmem:[#allocation3 + $0x7b8] sm:$0xff]
    %v5821 = vld [vmem:[#allocation3 + $0x7c0] sm:$0xff]
    %v5822 = vld [vmem:[#allocation3 + $0x7c8] sm:$0xff]
    %v5823 = vld [vmem:[#allocation3 + $0x7d0] sm:$0xff]
    %v5824 = vld [vmem:[#allocation3 + $0x7d8] sm:$0xff]
    %v5825 = vld [vmem:[#allocation3 + $0x7e0] sm:$0xff]
    %v5826 = vld [vmem:[#allocation3 + $0x7e8] sm:$0xff]
    %v5827 = vld [vmem:[#allocation3 + $0x7f0] sm:$0xff]
    %v5828 = vld [vmem:[#allocation3 + $0x7f8] sm:$0xf]
    %v5830 = vsel %vm5502, %v5814, 0
    %v5833 = vsel %vm5502, %v5815, 0
    %v5836 = vsel %vm5502, %v5816, 0
    %v5839 = vsel %vm5502, %v5817, 0
    %v5842 = vsel %vm185, %v5828, 0
    %5844 = vmatpush.msra.mxu0 0.0
    %5845 = vmatpush.msra.mxu0 0.0
    %5846 = vmatpush.msra.mxu0 0.0
    %5847 = vmatpush.msra.mxu0 0.0
    %5848 = vmatpush.msra.mxu0 0.0
    %5849 = vmatpush.msra.mxu0 %v5842
    %5850 = vmatpush.msra.mxu0 %v5827
    %5851 = vmatpush.msra.mxu0 %v5826
    %5852 = vmatpush.msra.mxu0 %v5825
    %5853 = vmatpush.msra.mxu0 %v5824
    %5854 = vmatpush.msra.mxu0 %v5823
    %5855 = vmatpush.msra.mxu0 %v5822
    %5856 = vmatpush.msra.mxu0 %v5821
    %5857 = vmatpush.msra.mxu0 %v5820
    %5858 = vmatpush.msra.mxu0 %v5819
    %5859 = vmatpush.msra.mxu0 %v5818
    %5860 = vmatmul.f32.gmra.mxu0 %v5830
    %v5861 = vpop.f32.mrf.mxu0
    %v5862 = vadd.f32 0.0, %v5861
    %5863 = vmatmul.f32.gmra.mxu0 %v5833
    %v5864 = vpop.f32.mrf.mxu0
    %v5865 = vadd.f32 0.0, %v5864
    %5866 = vmatmul.f32.gmra.mxu0 %v5836
    %v5867 = vpop.f32.mrf.mxu0
    %v5868 = vadd.f32 0.0, %v5867
    %5869 = vmatmul.f32.gmra.mxu0 %v5839
    %v5870 = vpop.f32.mrf.mxu0
    %v5871 = vadd.f32 0.0, %v5870
    %5872 = vdwg.mxu0
    %v5873 = vadd.f32 %v5810, %v5862
    %v5874 = vadd.f32 %v5811, %v5865
    %v5875 = vadd.f32 %v5812, %v5868
    %v5876 = vadd.f32 %v5813, %v5871
    %v5877 = vld [vmem:[#allocation2 + $0xb] sm:$0xff]
    %v5878 = vld [vmem:[#allocation2 + $0x13] sm:$0xff]
    %v5879 = vld [vmem:[#allocation2 + $0x5b] sm:$0xff]
    %v5880 = vld [vmem:[#allocation2 + $0x63] sm:$0xff]
    %v5881 = vld [vmem:[#allocation3 + $0x800] sm:$0xff]
    %v5882 = vld [vmem:[#allocation3 + $0x808] sm:$0xff]
    %v5883 = vld [vmem:[#allocation3 + $0x810] sm:$0xff]
    %v5884 = vld [vmem:[#allocation3 + $0x818] sm:$0xff]
    %v5885 = vld [vmem:[#allocation3 + $0x820] sm:$0xff]
    %v5886 = vld [vmem:[#allocation3 + $0x828] sm:$0xff]
    %v5887 = vld [vmem:[#allocation3 + $0x830] sm:$0xff]
    %v5888 = vld [vmem:[#allocation3 + $0x838] sm:$0xff]
    %v5889 = vld [vmem:[#allocation3 + $0x840] sm:$0xff]
    %v5890 = vld [vmem:[#allocation3 + $0x848] sm:$0xff]
    %v5891 = vld [vmem:[#allocation3 + $0x850] sm:$0xf]
    %v5893 = vsel %vm5502, %v5877, 0
    %v5896 = vsel %vm5502, %v5878, 0
    %v5899 = vsel %vm5502, %v5879, 0
    %v5902 = vsel %vm5502, %v5880, 0
    %v5905 = vsel %vm185, %v5891, 0
    %5907 = vmatpush.msra.mxu0 0.0
    %5908 = vmatpush.msra.mxu0 0.0
    %5909 = vmatpush.msra.mxu0 0.0
    %5910 = vmatpush.msra.mxu0 0.0
    %5911 = vmatpush.msra.mxu0 0.0
    %5912 = vmatpush.msra.mxu0 %v5905
    %5913 = vmatpush.msra.mxu0 %v5890
    %5914 = vmatpush.msra.mxu0 %v5889
    %5915 = vmatpush.msra.mxu0 %v5888
    %5916 = vmatpush.msra.mxu0 %v5887
    %5917 = vmatpush.msra.mxu0 %v5886
    %5918 = vmatpush.msra.mxu0 %v5885
    %5919 = vmatpush.msra.mxu0 %v5884
    %5920 = vmatpush.msra.mxu0 %v5883
    %5921 = vmatpush.msra.mxu0 %v5882
    %5922 = vmatpush.msra.mxu0 %v5881
    %5923 = vmatmul.f32.gmra.mxu0 %v5893
    %v5924 = vpop.f32.mrf.mxu0
    %v5925 = vadd.f32 0.0, %v5924
    %5926 = vmatmul.f32.gmra.mxu0 %v5896
    %v5927 = vpop.f32.mrf.mxu0
    %v5928 = vadd.f32 0.0, %v5927
    %5929 = vmatmul.f32.gmra.mxu0 %v5899
    %v5930 = vpop.f32.mrf.mxu0
    %v5931 = vadd.f32 0.0, %v5930
    %5932 = vmatmul.f32.gmra.mxu0 %v5902
    %v5933 = vpop.f32.mrf.mxu0
    %v5934 = vadd.f32 0.0, %v5933
    %5935 = vdwg.mxu0
    %v5936 = vadd.f32 %v5873, %v5925
    %v5937 = vadd.f32 %v5874, %v5928
    %v5938 = vadd.f32 %v5875, %v5931
    %v5939 = vadd.f32 %v5876, %v5934
    %v5940 = vperm.slane %v5487, 0
    %v5941 = vadd.f32 %v5936, %v5940
    %v5942 = vadd.f32 %v5937, %v5940
    %v5943 = vadd.f32 %v5938, %v5940
    %v5944 = vadd.f32 %v5939, %v5940
    %v5945 = vmax.f32 %v5941, 0.0
    %v5946 = vmax.f32 %v5942, 0.0
    %v5947 = vmax.f32 %v5943, 0.0
    %v5948 = vmax.f32 %v5944, 0.0
    %v5953 = vrot.slane %v5945, 2
    %v5954 = vrot.slane %v5945, 4
    %v5955 = vrot.slane %v5945, 6
    %v5956 = vrot.slane %v5946, 2
    %v5957 = vrot.slane %v5946, 4
    %v5958 = vrot.slane %v5946, 6
    %v5959 = vrot.slane %v5947, 2
    %v5960 = vrot.slane %v5947, 4
    %v5961 = vrot.slane %v5947, 6
    %v5962 = vrot.slane %v5948, 2
    %v5963 = vrot.slane %v5948, 4
    %v5964 = vrot.slane %v5948, 6
    %v5977 = vrot.slane %v5945, 7
    %v5978 = vrot.slane %v5977, 2
    %v5979 = vrot.slane %v5953, 7
    %v5980 = vrot.slane %v5979, 2
    %v5981 = vrot.slane %v5954, 7
    %v5982 = vrot.slane %v5981, 2
    %v5983 = vrot.slane %v5955, 7
    %v5984 = vrot.slane %v5983, 2
    %v5985 = vrot.slane %v5946, 7
    %v5986 = vrot.slane %v5985, 2
    %v5987 = vrot.slane %v5956, 7
    %v5988 = vrot.slane %v5987, 2
    %v5989 = vrot.slane %v5957, 7
    %v5990 = vrot.slane %v5989, 2
    %v5991 = vrot.slane %v5958, 7
    %v5992 = vrot.slane %v5991, 2
    %v5993 = vrot.slane %v5947, 7
    %v5994 = vrot.slane %v5993, 2
    %v5995 = vrot.slane %v5959, 7
    %v5996 = vrot.slane %v5995, 2
    %v5997 = vrot.slane %v5960, 7
    %v5998 = vrot.slane %v5997, 2
    %v5999 = vrot.slane %v5961, 7
    %v6000 = vrot.slane %v5999, 2
    %v6001 = vrot.slane %v5948, 7
    %v6002 = vrot.slane %v6001, 2
    %v6003 = vrot.slane %v5962, 7
    %v6004 = vrot.slane %v6003, 2
    %v6005 = vrot.slane %v5963, 7
    %v6006 = vrot.slane %v6005, 2
    %v6007 = vrot.slane %v5964, 7
    %v6008 = vrot.slane %v6007, 2
    %v6025 = vadd.f32 %v5945, %v5978
    %v6026 = vadd.f32 %v5953, %v5980
    %v6027 = vadd.f32 %v5954, %v5982
    %v6028 = vadd.f32 %v5955, %v5984
    %v6029 = vadd.f32 %v5946, %v5986
    %v6030 = vadd.f32 %v5956, %v5988
    %v6031 = vadd.f32 %v5957, %v5990
    %v6032 = vadd.f32 %v5958, %v5992
    %v6033 = vadd.f32 %v5947, %v5994
    %v6034 = vadd.f32 %v5959, %v5996
    %v6035 = vadd.f32 %v5960, %v5998
    %v6036 = vadd.f32 %v5961, %v6000
    %v6037 = vadd.f32 %v5948, %v6002
    %v6038 = vadd.f32 %v5962, %v6004
    %v6039 = vadd.f32 %v5963, %v6006
    %v6040 = vadd.f32 %v5964, %v6008
    %v6041 = vmul.f32 %v6025, 0.5
    %v6042 = vmul.f32 %v6026, 0.5
    %v6043 = vmul.f32 %v6027, 0.5
    %v6044 = vmul.f32 %v6028, 0.5
    %v6045 = vmul.f32 %v6029, 0.5
    %v6046 = vmul.f32 %v6030, 0.5
    %v6047 = vmul.f32 %v6031, 0.5
    %v6048 = vmul.f32 %v6032, 0.5
    %v6049 = vmul.f32 %v6033, 0.5
    %v6050 = vmul.f32 %v6034, 0.5
    %v6051 = vmul.f32 %v6035, 0.5
    %v6052 = vmul.f32 %v6036, 0.5
    %v6053 = vmul.f32 %v6037, 0.5
    %v6054 = vmul.f32 %v6038, 0.5
    %v6055 = vmul.f32 %v6039, 0.5
    %v6056 = vmul.f32 %v6040, 0.5
    %6057 = vst [vmem:[#allocation2 + $0x10] sm:$0xff] 0.0
    %6058 = vst [vmem:[#allocation2 + $0x60] sm:$0xff] 0.0
    %v6059 = vld [vmem:[#allocation6 + $0x15] sm:$0x1]
    %v6060 = vld [vmem:[#allocation6 + $0x16] sm:$0x1]
    %v6061 = vld [vmem:[#allocation3 + $0x858] sm:$0xff]
    %v6062 = vld [vmem:[#allocation3 + $0x860] sm:$0xff]
    %v6063 = vld [vmem:[#allocation3 + $0x868] sm:$0xff]
    %v6064 = vld [vmem:[#allocation3 + $0x870] sm:$0xff]
    %v6065 = vld [vmem:[#allocation3 + $0x878] sm:$0xff]
    %v6066 = vld [vmem:[#allocation3 + $0x880] sm:$0x3]
    %v6067 = vld [vmem:[#allocation6 + $0x17] sm:$0x1]
    %v6068 = vperm.slane %v6059, 0
    %v6070 = vrot.slane %v6068, 2
    %v6071 = vrot.slane %v6068, 4
    %v6072 = vrot.slane %v6068, 6
    %v6073 = vrot.slane %v6068, 1
    %v6074 = vrot.slane %v6070, 1
    %v6075 = vrot.slane %v6071, 1
    %v6076 = vrot.slane %v6072, 1
    %v6085 = vmul.f32 %v6041, %v6068
    %v6086 = vmul.f32 %v6042, %v6073
    %v6087 = vmul.f32 %v6043, %v6070
    %v6088 = vmul.f32 %v6044, %v6074
    %v6089 = vmul.f32 %v6045, %v6071
    %v6090 = vmul.f32 %v6046, %v6075
    %v6091 = vmul.f32 %v6047, %v6072
    %v6092 = vmul.f32 %v6048, %v6076
    %v6093 = vmul.f32 %v6049, %v6068
    %v6094 = vmul.f32 %v6050, %v6073
    %v6095 = vmul.f32 %v6051, %v6070
    %v6096 = vmul.f32 %v6052, %v6074
    %v6097 = vmul.f32 %v6053, %v6071
    %v6098 = vmul.f32 %v6054, %v6075
    %v6099 = vmul.f32 %v6055, %v6072
    %v6100 = vmul.f32 %v6056, %v6076
    %v6101 = vperm.slane %v6060, 0
    %v6103 = vrot.slane %v6101, 2
    %v6104 = vrot.slane %v6101, 4
    %v6105 = vrot.slane %v6101, 6
    %v6106 = vrot.slane %v6101, 1
    %v6107 = vrot.slane %v6103, 1
    %v6108 = vrot.slane %v6104, 1
    %v6109 = vrot.slane %v6105, 1
    %v6118 = vadd.f32 %v6085, %v6101
    %v6119 = vadd.f32 %v6086, %v6106
    %v6120 = vadd.f32 %v6087, %v6103
    %v6121 = vadd.f32 %v6088, %v6107
    %v6122 = vadd.f32 %v6089, %v6104
    %v6123 = vadd.f32 %v6090, %v6108
    %v6124 = vadd.f32 %v6091, %v6105
    %v6125 = vadd.f32 %v6092, %v6109
    %v6126 = vadd.f32 %v6093, %v6101
    %v6127 = vadd.f32 %v6094, %v6106
    %v6128 = vadd.f32 %v6095, %v6103
    %v6129 = vadd.f32 %v6096, %v6107
    %v6130 = vadd.f32 %v6097, %v6104
    %v6131 = vadd.f32 %v6098, %v6108
    %v6132 = vadd.f32 %v6099, %v6105
    %v6133 = vadd.f32 %v6100, %v6109
    %v6134 = vmax.f32 %v6118, 0.0
    %v6135 = vmax.f32 %v6119, 0.0
    %v6136 = vmax.f32 %v6120, 0.0
    %v6137 = vmax.f32 %v6121, 0.0
    %v6138 = vmax.f32 %v6122, 0.0
    %v6139 = vmax.f32 %v6123, 0.0
    %v6140 = vmax.f32 %v6124, 0.0
    %v6141 = vmax.f32 %v6125, 0.0
    %v6142 = vmax.f32 %v6126, 0.0
    %v6143 = vmax.f32 %v6127, 0.0
    %v6144 = vmax.f32 %v6128, 0.0
    %v6145 = vmax.f32 %v6129, 0.0
    %v6146 = vmax.f32 %v6130, 0.0
    %v6147 = vmax.f32 %v6131, 0.0
    %v6148 = vmax.f32 %v6132, 0.0
    %v6149 = vmax.f32 %v6133, 0.0
    %v6150 = vperm.slane %v6067, 0
    %v6167 = vperm.slane %v6134, 0
    %v6168 = vperm.slane %v6135, 0
    %v6169 = vperm.slane %v6136, 0
    %v6170 = vperm.slane %v6137, 0
    %v6171 = vperm.slane %v6138, 0
    %v6172 = vperm.slane %v6139, 0
    %v6173 = vperm.slane %v6140, 0
    %v6174 = vperm.slane %v6141, 0
    %v6175 = vperm.slane %v6142, 0
    %v6176 = vperm.slane %v6143, 0
    %v6177 = vperm.slane %v6144, 0
    %v6178 = vperm.slane %v6145, 0
    %v6179 = vperm.slane %v6146, 0
    %v6180 = vperm.slane %v6147, 0
    %v6181 = vperm.slane %v6148, 0
    %v6182 = vperm.slane %v6149, 0
    %v6183 = vsel %vm1786, %v6168, %v6167
    %v6184 = vsel %vm1788, %v6169, %v6183
    %v6185 = vsel %vm1790, %v6170, %v6184
    %v6186 = vsel %vm1792, %v6171, %v6185
    %v6187 = vsel %vm1794, %v6172, %v6186
    %v6188 = vsel %vm1796, %v6173, %v6187
    %v6189 = vsel %vm1798, %v6174, %v6188
    %v6190 = vsel %vm1786, %v6176, %v6175
    %v6191 = vsel %vm1788, %v6177, %v6190
    %v6192 = vsel %vm1790, %v6178, %v6191
    %v6193 = vsel %vm1792, %v6179, %v6192
    %v6194 = vsel %vm1794, %v6180, %v6193
    %v6195 = vsel %vm1796, %v6181, %v6194
    %v6196 = vsel %vm1798, %v6182, %v6195
    %vm6197 = vcmask 343040
    %v6198 = vsel %vm6197, %v6189, 0
    %v6200 = vsel %vm6197, %v6196, 0
    %vm6202 = vcmask 1041408
    %v6204 = vsel %vm6202, %v6066, 0
    %6206 = vmatpush.msra.mxu0 0.0
    %6207 = vmatpush.msra.mxu0 0.0
    %6208 = vmatpush.msra.mxu0 0.0
    %6209 = vmatpush.msra.mxu0 0.0
    %6210 = vmatpush.msra.mxu0 0.0
    %6211 = vmatpush.msra.mxu0 0.0
    %6212 = vmatpush.msra.mxu0 0.0
    %6213 = vmatpush.msra.mxu0 0.0
    %6214 = vmatpush.msra.mxu0 0.0
    %6215 = vmatpush.msra.mxu0 0.0
    %6216 = vmatpush.msra.mxu0 %v6204
    %6217 = vmatpush.msra.mxu0 %v6065
    %6218 = vmatpush.msra.mxu0 %v6064
    %6219 = vmatpush.msra.mxu0 %v6063
    %6220 = vmatpush.msra.mxu0 %v6062
    %6221 = vmatpush.msra.mxu0 %v6061
    %6222 = vmatmul.f32.gmra.mxu0 %v6198
    %v6223 = vpop.f32.mrf.mxu0
    %v6224 = vadd.f32 %v6150, %v6223
    %6225 = vmatmul.f32.gmra.mxu0 %v6200
    %v6226 = vpop.f32.mrf.mxu0
    %v6227 = vadd.f32 %v6150, %v6226
    %6228 = vdwg.mxu0
    %v6229 = vmax.f32 %v6224, 0.0
    %v6230 = vmax.f32 %v6227, 0.0
    %6231 = vst.msk [vmem:[#allocation2 + $0x8] sm:$0xff] %vm1914, %v6229
    %6232 = vst.msk [vmem:[#allocation2 + $0x58] sm:$0xff] %vm1914, %v6230
    %v6233 = vld [vmem:[#allocation2 + $0x5] sm:$0xff]
    %v6234 = vld [vmem:[#allocation2 + $0x55] sm:$0xff]
    %v6235 = vld [vmem:[#allocation3 + $0x888] sm:$0xff]
    %v6236 = vld [vmem:[#allocation2 + $0x6] sm:$0xff]
    %v6237 = vld [vmem:[#allocation2 + $0x56] sm:$0xff]
    %v6238 = vld [vmem:[#allocation3 + $0x890] sm:$0xff]
    %v6240 = vsel %vm1914, %v6236, 0
    %v6243 = vsel %vm1914, %v6237, 0
    %6245 = vmatpush.msra.mxu0 0.0
    %6246 = vmatpush.msra.mxu0 0.0
    %6247 = vmatpush.msra.mxu0 0.0
    %6248 = vmatpush.msra.mxu0 0.0
    %6249 = vmatpush.msra.mxu0 0.0
    %6250 = vmatpush.msra.mxu0 0.0
    %6251 = vmatpush.msra.mxu0 0.0
    %6252 = vmatpush.msra.mxu0 0.0
    %6253 = vmatpush.msra.mxu0 0.0
    %6254 = vmatpush.msra.mxu0 0.0
    %6255 = vmatpush.msra.mxu0 0.0
    %6256 = vmatpush.msra.mxu0 0.0
    %6257 = vmatpush.msra.mxu0 0.0
    %6258 = vmatpush.msra.mxu0 0.0
    %6259 = vmatpush.msra.mxu0 0.0
    %6260 = vmatpush.msra.mxu0 %v6238
    %6261 = vmatmul.f32.gmra.mxu0 %v6240
    %v6262 = vpop.f32.mrf.mxu0
    %v6263 = vadd.f32 0.0, %v6262
    %6264 = vmatmul.f32.gmra.mxu0 %v6243
    %v6265 = vpop.f32.mrf.mxu0
    %v6266 = vadd.f32 0.0, %v6265
    %6267 = vdwg.mxu0
    %v6269 = vsel %vm1914, %v6233, 0
    %v6272 = vsel %vm1914, %v6234, 0
    %6274 = vmatpush.msra.mxu0 0.0
    %6275 = vmatpush.msra.mxu0 0.0
    %6276 = vmatpush.msra.mxu0 0.0
    %6277 = vmatpush.msra.mxu0 0.0
    %6278 = vmatpush.msra.mxu0 0.0
    %6279 = vmatpush.msra.mxu0 0.0
    %6280 = vmatpush.msra.mxu0 0.0
    %6281 = vmatpush.msra.mxu0 0.0
    %6282 = vmatpush.msra.mxu0 0.0
    %6283 = vmatpush.msra.mxu0 0.0
    %6284 = vmatpush.msra.mxu0 0.0
    %6285 = vmatpush.msra.mxu0 0.0
    %6286 = vmatpush.msra.mxu0 0.0
    %6287 = vmatpush.msra.mxu0 0.0
    %6288 = vmatpush.msra.mxu0 0.0
    %6289 = vmatpush.msra.mxu0 %v6235
    %6290 = vmatmul.f32.gmra.mxu0 %v6269
    %v6291 = vpop.f32.mrf.mxu0
    %v6292 = vadd.f32 %v6263, %v6291
    %6293 = vmatmul.f32.gmra.mxu0 %v6272
    %v6294 = vpop.f32.mrf.mxu0
    %v6295 = vadd.f32 %v6266, %v6294
    %6296 = vdwg.mxu0
    %v6297 = vld [vmem:[#allocation2 + $0x7] sm:$0xff]
    %v6298 = vld [vmem:[#allocation2 + $0x57] sm:$0xff]
    %v6299 = vld [vmem:[#allocation3 + $0x898] sm:$0xff]
    %v6301 = vsel %vm1914, %v6297, 0
    %v6304 = vsel %vm1914, %v6298, 0
    %6306 = vmatpush.msra.mxu0 0.0
    %6307 = vmatpush.msra.mxu0 0.0
    %6308 = vmatpush.msra.mxu0 0.0
    %6309 = vmatpush.msra.mxu0 0.0
    %6310 = vmatpush.msra.mxu0 0.0
    %6311 = vmatpush.msra.mxu0 0.0
    %6312 = vmatpush.msra.mxu0 0.0
    %6313 = vmatpush.msra.mxu0 0.0
    %6314 = vmatpush.msra.mxu0 0.0
    %6315 = vmatpush.msra.mxu0 0.0
    %6316 = vmatpush.msra.mxu0 0.0
    %6317 = vmatpush.msra.mxu0 0.0
    %6318 = vmatpush.msra.mxu0 0.0
    %6319 = vmatpush.msra.mxu0 0.0
    %6320 = vmatpush.msra.mxu0 0.0
    %6321 = vmatpush.msra.mxu0 %v6299
    %6322 = vmatmul.f32.gmra.mxu0 %v6301
    %v6323 = vpop.f32.mrf.mxu0
    %v6324 = vadd.f32 0.0, %v6323
    %6325 = vmatmul.f32.gmra.mxu0 %v6304
    %v6326 = vpop.f32.mrf.mxu0
    %v6327 = vadd.f32 0.0, %v6326
    %6328 = vdwg.mxu0
    %v6329 = vadd.f32 %v6292, %v6324
    %v6330 = vadd.f32 %v6295, %v6327
    %v6331 = vld [vmem:[#allocation2 + $0x8] sm:$0xff]
    %v6332 = vld [vmem:[#allocation2 + $0x58] sm:$0xff]
    %v6333 = vld [vmem:[#allocation3 + $0x8a0] sm:$0xff]
    %v6335 = vsel %vm1914, %v6331, 0
    %v6338 = vsel %vm1914, %v6332, 0
    %6340 = vmatpush.msra.mxu0 0.0
    %6341 = vmatpush.msra.mxu0 0.0
    %6342 = vmatpush.msra.mxu0 0.0
    %6343 = vmatpush.msra.mxu0 0.0
    %6344 = vmatpush.msra.mxu0 0.0
    %6345 = vmatpush.msra.mxu0 0.0
    %6346 = vmatpush.msra.mxu0 0.0
    %6347 = vmatpush.msra.mxu0 0.0
    %6348 = vmatpush.msra.mxu0 0.0
    %6349 = vmatpush.msra.mxu0 0.0
    %6350 = vmatpush.msra.mxu0 0.0
    %6351 = vmatpush.msra.mxu0 0.0
    %6352 = vmatpush.msra.mxu0 0.0
    %6353 = vmatpush.msra.mxu0 0.0
    %6354 = vmatpush.msra.mxu0 0.0
    %6355 = vmatpush.msra.mxu0 %v6333
    %6356 = vmatmul.f32.gmra.mxu0 %v6335
    %v6357 = vpop.f32.mrf.mxu0
    %v6358 = vadd.f32 0.0, %v6357
    %6359 = vmatmul.f32.gmra.mxu0 %v6338
    %v6360 = vpop.f32.mrf.mxu0
    %v6361 = vadd.f32 0.0, %v6360
    %6362 = vdwg.mxu0
    %v6363 = vadd.f32 %v6329, %v6358
    %v6364 = vadd.f32 %v6330, %v6361
    %v6365 = vld [vmem:[#allocation2 + $0x9] sm:$0xff]
    %v6366 = vld [vmem:[#allocation2 + $0x59] sm:$0xff]
    %v6367 = vld [vmem:[#allocation3 + $0x8a8] sm:$0xff]
    %v6369 = vsel %vm1914, %v6365, 0
    %v6372 = vsel %vm1914, %v6366, 0
    %6374 = vmatpush.msra.mxu0 0.0
    %6375 = vmatpush.msra.mxu0 0.0
    %6376 = vmatpush.msra.mxu0 0.0
    %6377 = vmatpush.msra.mxu0 0.0
    %6378 = vmatpush.msra.mxu0 0.0
    %6379 = vmatpush.msra.mxu0 0.0
    %6380 = vmatpush.msra.mxu0 0.0
    %6381 = vmatpush.msra.mxu0 0.0
    %6382 = vmatpush.msra.mxu0 0.0
    %6383 = vmatpush.msra.mxu0 0.0
    %6384 = vmatpush.msra.mxu0 0.0
    %6385 = vmatpush.msra.mxu0 0.0
    %6386 = vmatpush.msra.mxu0 0.0
    %6387 = vmatpush.msra.mxu0 0.0
    %6388 = vmatpush.msra.mxu0 0.0
    %6389 = vmatpush.msra.mxu0 %v6367
    %6390 = vmatmul.f32.gmra.mxu0 %v6369
    %v6391 = vpop.f32.mrf.mxu0
    %v6392 = vadd.f32 0.0, %v6391
    %6393 = vmatmul.f32.gmra.mxu0 %v6372
    %v6394 = vpop.f32.mrf.mxu0
    %v6395 = vadd.f32 0.0, %v6394
    %6396 = vdwg.mxu0
    %v6397 = vadd.f32 %v6363, %v6392
    %v6398 = vadd.f32 %v6364, %v6395
    %v6399 = vld [vmem:[#allocation2 + $0xa] sm:$0xff]
    %v6400 = vld [vmem:[#allocation2 + $0x5a] sm:$0xff]
    %v6401 = vld [vmem:[#allocation3 + $0x8b0] sm:$0xff]
    %v6403 = vsel %vm1914, %v6399, 0
    %v6406 = vsel %vm1914, %v6400, 0
    %6408 = vmatpush.msra.mxu0 0.0
    %6409 = vmatpush.msra.mxu0 0.0
    %6410 = vmatpush.msra.mxu0 0.0
    %6411 = vmatpush.msra.mxu0 0.0
    %6412 = vmatpush.msra.mxu0 0.0
    %6413 = vmatpush.msra.mxu0 0.0
    %6414 = vmatpush.msra.mxu0 0.0
    %6415 = vmatpush.msra.mxu0 0.0
    %6416 = vmatpush.msra.mxu0 0.0
    %6417 = vmatpush.msra.mxu0 0.0
    %6418 = vmatpush.msra.mxu0 0.0
    %6419 = vmatpush.msra.mxu0 0.0
    %6420 = vmatpush.msra.mxu0 0.0
    %6421 = vmatpush.msra.mxu0 0.0
    %6422 = vmatpush.msra.mxu0 0.0
    %6423 = vmatpush.msra.mxu0 %v6401
    %6424 = vmatmul.f32.gmra.mxu0 %v6403
    %v6425 = vpop.f32.mrf.mxu0
    %v6426 = vadd.f32 0.0, %v6425
    %6427 = vmatmul.f32.gmra.mxu0 %v6406
    %v6428 = vpop.f32.mrf.mxu0
    %v6429 = vadd.f32 0.0, %v6428
    %6430 = vdwg.mxu0
    %v6431 = vadd.f32 %v6397, %v6426
    %v6432 = vadd.f32 %v6398, %v6429
    %v6433 = vld [vmem:[#allocation2 + $0xb] sm:$0xff]
    %v6434 = vld [vmem:[#allocation2 + $0x5b] sm:$0xff]
    %v6435 = vld [vmem:[#allocation3 + $0x8b8] sm:$0xff]
    %v6437 = vsel %vm1914, %v6433, 0
    %v6440 = vsel %vm1914, %v6434, 0
    %6442 = vmatpush.msra.mxu0 0.0
    %6443 = vmatpush.msra.mxu0 0.0
    %6444 = vmatpush.msra.mxu0 0.0
    %6445 = vmatpush.msra.mxu0 0.0
    %6446 = vmatpush.msra.mxu0 0.0
    %6447 = vmatpush.msra.mxu0 0.0
    %6448 = vmatpush.msra.mxu0 0.0
    %6449 = vmatpush.msra.mxu0 0.0
    %6450 = vmatpush.msra.mxu0 0.0
    %6451 = vmatpush.msra.mxu0 0.0
    %6452 = vmatpush.msra.mxu0 0.0
    %6453 = vmatpush.msra.mxu0 0.0
    %6454 = vmatpush.msra.mxu0 0.0
    %6455 = vmatpush.msra.mxu0 0.0
    %6456 = vmatpush.msra.mxu0 0.0
    %6457 = vmatpush.msra.mxu0 %v6435
    %6458 = vmatmul.f32.gmra.mxu0 %v6437
    %v6459 = vpop.f32.mrf.mxu0
    %v6460 = vadd.f32 0.0, %v6459
    %6461 = vmatmul.f32.gmra.mxu0 %v6440
    %v6462 = vpop.f32.mrf.mxu0
    %v6463 = vadd.f32 0.0, %v6462
    %6464 = vdwg.mxu0
    %v6465 = vadd.f32 %v6431, %v6460
    %v6466 = vadd.f32 %v6432, %v6463
    %v6483 = vperm.slane %v6041, 0
    %v6484 = vperm.slane %v6042, 0
    %v6485 = vperm.slane %v6043, 0
    %v6486 = vperm.slane %v6044, 0
    %v6487 = vperm.slane %v6045, 0
    %v6488 = vperm.slane %v6046, 0
    %v6489 = vperm.slane %v6047, 0
    %v6490 = vperm.slane %v6048, 0
    %v6491 = vperm.slane %v6049, 0
    %v6492 = vperm.slane %v6050, 0
    %v6493 = vperm.slane %v6051, 0
    %v6494 = vperm.slane %v6052, 0
    %v6495 = vperm.slane %v6053, 0
    %v6496 = vperm.slane %v6054, 0
    %v6497 = vperm.slane %v6055, 0
    %v6498 = vperm.slane %v6056, 0
    %v6499 = vsel %vm1786, %v6484, %v6483
    %v6500 = vsel %vm1788, %v6485, %v6499
    %v6501 = vsel %vm1790, %v6486, %v6500
    %v6502 = vsel %vm1792, %v6487, %v6501
    %v6503 = vsel %vm1794, %v6488, %v6502
    %v6504 = vsel %vm1796, %v6489, %v6503
    %v6505 = vsel %vm1798, %v6490, %v6504
    %v6506 = vsel %vm1786, %v6492, %v6491
    %v6507 = vsel %vm1788, %v6493, %v6506
    %v6508 = vsel %vm1790, %v6494, %v6507
    %v6509 = vsel %vm1792, %v6495, %v6508
    %v6510 = vsel %vm1794, %v6496, %v6509
    %v6511 = vsel %vm1796, %v6497, %v6510
    %v6512 = vsel %vm1798, %v6498, %v6511
    %6517 = vrot.lane.b32.xlu0 %v6465, 42
    %v6518 = vpop.permute.xlu0 %6517
    %6519 = vrot.lane.b32.xlu0 %v6466, 42
    %v6520 = vpop.permute.xlu0 %6519
    %v6523 = vsel %vm6197, %v6505, %v6518
    %v6524 = vsel %vm6197, %v6512, %v6520
    %v6525 = vld [vmem:[#allocation6 + $0x18] sm:$0x1]
    %v6526 = vld [vmem:[#allocation6 + $0x19] sm:$0x1]
    %v6527 = vld [vmem:[#allocation3 + $0x8c0] sm:$0xff]
    %v6528 = vld [vmem:[#allocation3 + $0x8c8] sm:$0xff]
    %v6529 = vld [vmem:[#allocation3 + $0x8d0] sm:$0xff]
    %v6530 = vld [vmem:[#allocation3 + $0x8d8] sm:$0xff]
    %v6531 = vld [vmem:[#allocation3 + $0x8e0] sm:$0xff]
    %v6532 = vld [vmem:[#allocation3 + $0x8e8] sm:$0xff]
    %v6533 = vld [vmem:[#allocation3 + $0x8f0] sm:$0x3f]
    %v6534 = vld [vmem:[#allocation6 + $0x1a] sm:$0x1]
    %v6535 = vperm.slane %v6525, 0
    %v6536 = vmul.f32 %v6523, %v6535
    %v6537 = vmul.f32 %v6524, %v6535
    %v6538 = vperm.slane %v6526, 0
    %v6539 = vadd.f32 %v6536, %v6538
    %v6540 = vadd.f32 %v6537, %v6538
    %v6541 = vmax.f32 %v6539, 0.0
    %v6542 = vmax.f32 %v6540, 0.0
    %v6543 = vperm.slane %v6534, 0
    %vm6544 = vcmask 441344
    %v6546 = vsel %vm6544, %v6541, 0
    %v6549 = vsel %vm6544, %v6542, 0
    %vm6551 = vcmask 1045504
    %v6553 = vsel %vm6551, %v6533, 0
    %6555 = vmatpush.msra.mxu0 0.0
    %6556 = vmatpush.msra.mxu0 0.0
    %6557 = vmatpush.msra.mxu0 0.0
    %6558 = vmatpush.msra.mxu0 0.0
    %6559 = vmatpush.msra.mxu0 0.0
    %6560 = vmatpush.msra.mxu0 0.0
    %6561 = vmatpush.msra.mxu0 0.0
    %6562 = vmatpush.msra.mxu0 0.0
    %6563 = vmatpush.msra.mxu0 0.0
    %6564 = vmatpush.msra.mxu0 %v6553
    %6565 = vmatpush.msra.mxu0 %v6532
    %6566 = vmatpush.msra.mxu0 %v6531
    %6567 = vmatpush.msra.mxu0 %v6530
    %6568 = vmatpush.msra.mxu0 %v6529
    %6569 = vmatpush.msra.mxu0 %v6528
    %6570 = vmatpush.msra.mxu0 %v6527
    %6571 = vmatmul.f32.gmra.mxu0 %v6546
    %v6572 = vpop.f32.mrf.mxu0
    %v6573 = vadd.f32 %v6543, %v6572
    %6574 = vmatmul.f32.gmra.mxu0 %v6549
    %v6575 = vpop.f32.mrf.mxu0
    %v6576 = vadd.f32 %v6543, %v6575
    %6577 = vdwg.mxu0
    %v6578 = vmax.f32 %v6573, 0.0
    %v6579 = vmax.f32 %v6576, 0.0
    %6580 = vst.msk [vmem:[#allocation2 + $0x8] sm:$0xff] %vm1914, %v6578
    %6581 = vst.msk [vmem:[#allocation2 + $0x58] sm:$0xff] %vm1914, %v6579
    %v6582 = vld [vmem:[#allocation2 + $0x5] sm:$0xff]
    %v6583 = vld [vmem:[#allocation2 + $0x55] sm:$0xff]
    %v6584 = vld [vmem:[#allocation3 + $0x8f8] sm:$0xff]
    %v6585 = vld [vmem:[#allocation2 + $0x6] sm:$0xff]
    %v6586 = vld [vmem:[#allocation2 + $0x56] sm:$0xff]
    %v6587 = vld [vmem:[#allocation3 + $0x900] sm:$0xff]
    %v6589 = vsel %vm1914, %v6585, 0
    %v6592 = vsel %vm1914, %v6586, 0
    %6594 = vmatpush.msra.mxu0 0.0
    %6595 = vmatpush.msra.mxu0 0.0
    %6596 = vmatpush.msra.mxu0 0.0
    %6597 = vmatpush.msra.mxu0 0.0
    %6598 = vmatpush.msra.mxu0 0.0
    %6599 = vmatpush.msra.mxu0 0.0
    %6600 = vmatpush.msra.mxu0 0.0
    %6601 = vmatpush.msra.mxu0 0.0
    %6602 = vmatpush.msra.mxu0 0.0
    %6603 = vmatpush.msra.mxu0 0.0
    %6604 = vmatpush.msra.mxu0 0.0
    %6605 = vmatpush.msra.mxu0 0.0
    %6606 = vmatpush.msra.mxu0 0.0
    %6607 = vmatpush.msra.mxu0 0.0
    %6608 = vmatpush.msra.mxu0 0.0
    %6609 = vmatpush.msra.mxu0 %v6587
    %6610 = vmatmul.f32.gmra.mxu0 %v6589
    %v6611 = vpop.f32.mrf.mxu0
    %v6612 = vadd.f32 0.0, %v6611
    %6613 = vmatmul.f32.gmra.mxu0 %v6592
    %v6614 = vpop.f32.mrf.mxu0
    %v6615 = vadd.f32 0.0, %v6614
    %6616 = vdwg.mxu0
    %v6618 = vsel %vm1914, %v6582, 0
    %v6621 = vsel %vm1914, %v6583, 0
    %6623 = vmatpush.msra.mxu0 0.0
    %6624 = vmatpush.msra.mxu0 0.0
    %6625 = vmatpush.msra.mxu0 0.0
    %6626 = vmatpush.msra.mxu0 0.0
    %6627 = vmatpush.msra.mxu0 0.0
    %6628 = vmatpush.msra.mxu0 0.0
    %6629 = vmatpush.msra.mxu0 0.0
    %6630 = vmatpush.msra.mxu0 0.0
    %6631 = vmatpush.msra.mxu0 0.0
    %6632 = vmatpush.msra.mxu0 0.0
    %6633 = vmatpush.msra.mxu0 0.0
    %6634 = vmatpush.msra.mxu0 0.0
    %6635 = vmatpush.msra.mxu0 0.0
    %6636 = vmatpush.msra.mxu0 0.0
    %6637 = vmatpush.msra.mxu0 0.0
    %6638 = vmatpush.msra.mxu0 %v6584
    %6639 = vmatmul.f32.gmra.mxu0 %v6618
    %v6640 = vpop.f32.mrf.mxu0
    %v6641 = vadd.f32 %v6612, %v6640
    %6642 = vmatmul.f32.gmra.mxu0 %v6621
    %v6643 = vpop.f32.mrf.mxu0
    %v6644 = vadd.f32 %v6615, %v6643
    %6645 = vdwg.mxu0
    %v6646 = vld [vmem:[#allocation2 + $0x7] sm:$0xff]
    %v6647 = vld [vmem:[#allocation2 + $0x57] sm:$0xff]
    %v6648 = vld [vmem:[#allocation3 + $0x908] sm:$0xff]
    %v6650 = vsel %vm1914, %v6646, 0
    %v6653 = vsel %vm1914, %v6647, 0
    %6655 = vmatpush.msra.mxu0 0.0
    %6656 = vmatpush.msra.mxu0 0.0
    %6657 = vmatpush.msra.mxu0 0.0
    %6658 = vmatpush.msra.mxu0 0.0
    %6659 = vmatpush.msra.mxu0 0.0
    %6660 = vmatpush.msra.mxu0 0.0
    %6661 = vmatpush.msra.mxu0 0.0
    %6662 = vmatpush.msra.mxu0 0.0
    %6663 = vmatpush.msra.mxu0 0.0
    %6664 = vmatpush.msra.mxu0 0.0
    %6665 = vmatpush.msra.mxu0 0.0
    %6666 = vmatpush.msra.mxu0 0.0
    %6667 = vmatpush.msra.mxu0 0.0
    %6668 = vmatpush.msra.mxu0 0.0
    %6669 = vmatpush.msra.mxu0 0.0
    %6670 = vmatpush.msra.mxu0 %v6648
    %6671 = vmatmul.f32.gmra.mxu0 %v6650
    %v6672 = vpop.f32.mrf.mxu0
    %v6673 = vadd.f32 0.0, %v6672
    %6674 = vmatmul.f32.gmra.mxu0 %v6653
    %v6675 = vpop.f32.mrf.mxu0
    %v6676 = vadd.f32 0.0, %v6675
    %6677 = vdwg.mxu0
    %v6678 = vadd.f32 %v6641, %v6673
    %v6679 = vadd.f32 %v6644, %v6676
    %v6680 = vld [vmem:[#allocation2 + $0x8] sm:$0xff]
    %v6681 = vld [vmem:[#allocation2 + $0x58] sm:$0xff]
    %v6682 = vld [vmem:[#allocation3 + $0x910] sm:$0xff]
    %v6684 = vsel %vm1914, %v6680, 0
    %v6687 = vsel %vm1914, %v6681, 0
    %6689 = vmatpush.msra.mxu0 0.0
    %6690 = vmatpush.msra.mxu0 0.0
    %6691 = vmatpush.msra.mxu0 0.0
    %6692 = vmatpush.msra.mxu0 0.0
    %6693 = vmatpush.msra.mxu0 0.0
    %6694 = vmatpush.msra.mxu0 0.0
    %6695 = vmatpush.msra.mxu0 0.0
    %6696 = vmatpush.msra.mxu0 0.0
    %6697 = vmatpush.msra.mxu0 0.0
    %6698 = vmatpush.msra.mxu0 0.0
    %6699 = vmatpush.msra.mxu0 0.0
    %6700 = vmatpush.msra.mxu0 0.0
    %6701 = vmatpush.msra.mxu0 0.0
    %6702 = vmatpush.msra.mxu0 0.0
    %6703 = vmatpush.msra.mxu0 0.0
    %6704 = vmatpush.msra.mxu0 %v6682
    %6705 = vmatmul.f32.gmra.mxu0 %v6684
    %v6706 = vpop.f32.mrf.mxu0
    %v6707 = vadd.f32 0.0, %v6706
    %6708 = vmatmul.f32.gmra.mxu0 %v6687
    %v6709 = vpop.f32.mrf.mxu0
    %v6710 = vadd.f32 0.0, %v6709
    %6711 = vdwg.mxu0
    %v6712 = vadd.f32 %v6678, %v6707
    %v6713 = vadd.f32 %v6679, %v6710
    %v6714 = vld [vmem:[#allocation2 + $0x9] sm:$0xff]
    %v6715 = vld [vmem:[#allocation2 + $0x59] sm:$0xff]
    %v6716 = vld [vmem:[#allocation3 + $0x918] sm:$0xff]
    %v6718 = vsel %vm1914, %v6714, 0
    %v6721 = vsel %vm1914, %v6715, 0
    %6723 = vmatpush.msra.mxu0 0.0
    %6724 = vmatpush.msra.mxu0 0.0
    %6725 = vmatpush.msra.mxu0 0.0
    %6726 = vmatpush.msra.mxu0 0.0
    %6727 = vmatpush.msra.mxu0 0.0
    %6728 = vmatpush.msra.mxu0 0.0
    %6729 = vmatpush.msra.mxu0 0.0
    %6730 = vmatpush.msra.mxu0 0.0
    %6731 = vmatpush.msra.mxu0 0.0
    %6732 = vmatpush.msra.mxu0 0.0
    %6733 = vmatpush.msra.mxu0 0.0
    %6734 = vmatpush.msra.mxu0 0.0
    %6735 = vmatpush.msra.mxu0 0.0
    %6736 = vmatpush.msra.mxu0 0.0
    %6737 = vmatpush.msra.mxu0 0.0
    %6738 = vmatpush.msra.mxu0 %v6716
    %6739 = vmatmul.f32.gmra.mxu0 %v6718
    %v6740 = vpop.f32.mrf.mxu0
    %v6741 = vadd.f32 0.0, %v6740
    %6742 = vmatmul.f32.gmra.mxu0 %v6721
    %v6743 = vpop.f32.mrf.mxu0
    %v6744 = vadd.f32 0.0, %v6743
    %6745 = vdwg.mxu0
    %v6746 = vadd.f32 %v6712, %v6741
    %v6747 = vadd.f32 %v6713, %v6744
    %v6748 = vld [vmem:[#allocation2 + $0xa] sm:$0xff]
    %v6749 = vld [vmem:[#allocation2 + $0x5a] sm:$0xff]
    %v6750 = vld [vmem:[#allocation3 + $0x920] sm:$0xff]
    %v6752 = vsel %vm1914, %v6748, 0
    %v6755 = vsel %vm1914, %v6749, 0
    %6757 = vmatpush.msra.mxu0 0.0
    %6758 = vmatpush.msra.mxu0 0.0
    %6759 = vmatpush.msra.mxu0 0.0
    %6760 = vmatpush.msra.mxu0 0.0
    %6761 = vmatpush.msra.mxu0 0.0
    %6762 = vmatpush.msra.mxu0 0.0
    %6763 = vmatpush.msra.mxu0 0.0
    %6764 = vmatpush.msra.mxu0 0.0
    %6765 = vmatpush.msra.mxu0 0.0
    %6766 = vmatpush.msra.mxu0 0.0
    %6767 = vmatpush.msra.mxu0 0.0
    %6768 = vmatpush.msra.mxu0 0.0
    %6769 = vmatpush.msra.mxu0 0.0
    %6770 = vmatpush.msra.mxu0 0.0
    %6771 = vmatpush.msra.mxu0 0.0
    %6772 = vmatpush.msra.mxu0 %v6750
    %6773 = vmatmul.f32.gmra.mxu0 %v6752
    %v6774 = vpop.f32.mrf.mxu0
    %v6775 = vadd.f32 0.0, %v6774
    %6776 = vmatmul.f32.gmra.mxu0 %v6755
    %v6777 = vpop.f32.mrf.mxu0
    %v6778 = vadd.f32 0.0, %v6777
    %6779 = vdwg.mxu0
    %v6780 = vadd.f32 %v6746, %v6775
    %v6781 = vadd.f32 %v6747, %v6778
    %v6782 = vld [vmem:[#allocation2 + $0xb] sm:$0xff]
    %v6783 = vld [vmem:[#allocation2 + $0x5b] sm:$0xff]
    %v6784 = vld [vmem:[#allocation3 + $0x928] sm:$0xff]
    %v6786 = vsel %vm1914, %v6782, 0
    %v6789 = vsel %vm1914, %v6783, 0
    %6791 = vmatpush.msra.mxu0 0.0
    %6792 = vmatpush.msra.mxu0 0.0
    %6793 = vmatpush.msra.mxu0 0.0
    %6794 = vmatpush.msra.mxu0 0.0
    %6795 = vmatpush.msra.mxu0 0.0
    %6796 = vmatpush.msra.mxu0 0.0
    %6797 = vmatpush.msra.mxu0 0.0
    %6798 = vmatpush.msra.mxu0 0.0
    %6799 = vmatpush.msra.mxu0 0.0
    %6800 = vmatpush.msra.mxu0 0.0
    %6801 = vmatpush.msra.mxu0 0.0
    %6802 = vmatpush.msra.mxu0 0.0
    %6803 = vmatpush.msra.mxu0 0.0
    %6804 = vmatpush.msra.mxu0 0.0
    %6805 = vmatpush.msra.mxu0 0.0
    %6806 = vmatpush.msra.mxu0 %v6784
    %6807 = vmatmul.f32.gmra.mxu0 %v6786
    %v6808 = vpop.f32.mrf.mxu0
    %v6809 = vadd.f32 0.0, %v6808
    %6810 = vmatmul.f32.gmra.mxu0 %v6789
    %v6811 = vpop.f32.mrf.mxu0
    %v6812 = vadd.f32 0.0, %v6811
    %6813 = vdwg.mxu0
    %v6814 = vadd.f32 %v6780, %v6809
    %v6815 = vadd.f32 %v6781, %v6812
    %6818 = vrot.lane.b32.xlu0 %v6814, 54
    %v6819 = vpop.permute.xlu0 %6818
    %6820 = vrot.lane.b32.xlu0 %v6815, 54
    %v6821 = vpop.permute.xlu0 %6820
    %v6824 = vsel %vm6544, %v6523, %v6819
    %v6825 = vsel %vm6544, %v6524, %v6821
    %v6826 = vld [vmem:[#allocation6 + $0x1b] sm:$0x1]
    %v6827 = vld [vmem:[#allocation6 + $0x1c] sm:$0x1]
    %v6828 = vperm.slane %v6826, 0
    %v6829 = vmul.f32 %v6824, %v6828
    %v6830 = vmul.f32 %v6825, %v6828
    %v6831 = vperm.slane %v6827, 0
    %v6832 = vadd.f32 %v6829, %v6831
    %v6833 = vadd.f32 %v6830, %v6831
    %v6834 = vmax.f32 %v6832, 0.0
    %v6835 = vmax.f32 %v6833, 0.0
    %vm6836 = vcmask 539648
    %v6837 = vsel %vm6836, %v6834, 0.0
    %v6838 = vrot.slane %v6837, 4
    %v6839 = vadd.f32 %v6837, %v6838
    %v6840 = vrot.slane %v6839, 2
    %v6841 = vadd.f32 %v6839, %v6840
    %v6842 = vrot.slane %v6841, 1
    %v6843 = vadd.f32 %v6841, %v6842
    %v6844 = vsel %vm6836, %v6835, 0.0
    %v6845 = vrot.slane %v6844, 4
    %v6846 = vadd.f32 %v6844, %v6845
    %v6847 = vrot.slane %v6846, 2
    %v6848 = vadd.f32 %v6846, %v6847
    %v6849 = vrot.slane %v6848, 1
    %v6850 = vadd.f32 %v6848, %v6849
    %v6851 = vld [vmem:[#allocation3 + $0x930] sm:$0xff]
    %v6852 = vld [vmem:[#allocation3 + $0x938] sm:$0xff]
    %v6853 = vld [vmem:[#allocation3 + $0x940] sm:$0xff]
    %v6854 = vld [vmem:[#allocation3 + $0x948] sm:$0xff]
    %v6855 = vld [vmem:[#allocation3 + $0x950] sm:$0xff]
    %v6856 = vld [vmem:[#allocation3 + $0x958] sm:$0xff]
    %v6857 = vld [vmem:[#allocation3 + $0x960] sm:$0xff]
    %v6858 = vld [vmem:[#allocation3 + $0x968] sm:$0xff]
    %v6859 = vld [vmem:[#allocation3 + $0x970] sm:$0x3]
    %v6860 = vld [vmem:[#allocation6 + $0x1d] sm:$0x1]
    %v6861 = vperm.slane %v6860, 0
    %v6864 = vsel %vm1786, %v6850, %v6843
    %v6865 = vsel %vm6836, %v6864, 0
    %v6868 = vsel %vm6202, %v6859, 0
    %6870 = vmatpush.msra.mxu0 0.0
    %6871 = vmatpush.msra.mxu0 0.0
    %6872 = vmatpush.msra.mxu0 0.0
    %6873 = vmatpush.msra.mxu0 0.0
    %6874 = vmatpush.msra.mxu0 0.0
    %6875 = vmatpush.msra.mxu0 0.0
    %6876 = vmatpush.msra.mxu0 0.0
    %6877 = vmatpush.msra.mxu0 %v6868
    %6878 = vmatpush.msra.mxu0 %v6858
    %6879 = vmatpush.msra.mxu0 %v6857
    %6880 = vmatpush.msra.mxu0 %v6856
    %6881 = vmatpush.msra.mxu0 %v6855
    %6882 = vmatpush.msra.mxu0 %v6854
    %6883 = vmatpush.msra.mxu0 %v6853
    %6884 = vmatpush.msra.mxu0 %v6852
    %6885 = vmatpush.msra.mxu0 %v6851
    %6886 = vmatmul.f32.gmra.mxu0 %v6865
    %v6887 = vpop.f32.mrf.mxu0
    %v6888 = vadd.f32 %v6861, %v6887
    %6889 = vdwg.mxu0
    %vm6890 = vcmask 9216
    %6891 = vst.msk [vmem:[#allocation8] sm:$0x3] %vm6890, %v6888
    // Predicated region
    $region22: #{_lambda_.1} parent=1 // pred_check
      _
    $region23: #{_lambda_.1} parent=1 // pred_check_branch
      %6893 = sbr.rel (0) target = $region25
    $region24: #{_lambda_.1} parent=1 // pred_region
      %6895 = vsyncadd [#allocation5], 0
      %s6897 = sshll.u32 [#allocation8], 4
      %s6898 = int_to_ptr.vmem [resolvable:$true] %s6897
      %s6899 = sshll.u32 %s3, 4
      %s6900 = int_to_ptr.hbm [resolvable:$true] %s6899
      %6902 = dma.vmem_to_hbm [thread:$0]  %s6898, 32, %s6900, [#allocation5]
    $region25: #{_lambda_.1} parent=1 // pred_fallthru
      _
    // Predicated region
    $region26: #{_lambda_.1} parent=1 // pred_check
      _
    $region27: #{_lambda_.1} parent=1 // pred_check_branch
      %6904 = sbr.rel (0) target = $region29
    $region28: #{_lambda_.1} parent=1 // pred_region
      %6906 = dma.done [#allocation5], 32
    $region29: #{_lambda_.1} parent=1 // pred_fallthru
      _
    %6907 = vsyncpa [#allocation4], 1
    %6908 = vsyncpa [#allocation7], 1
    %6909 = vsyncpa [#allocation5], 1

</llo_original>
